<compile_context>
chip_gen: v5e
topology: v5e:2x2
jax: 0.10.0
libtpu: 0.0.40
codegen_flags: <defaults>
</compile_context>

<pallas_src>
import functools

import jax
import jax.numpy as jnp
from jax.experimental import pallas as pl
from jax.experimental.pallas import tpu as pltpu


# ----------------------------------------------------------------------------
# Fused kernel
# ----------------------------------------------------------------------------
def _deepconvnet_kernel(x_ref,
                        w1, gb1, w2, gb2, w3, gb3, w4, gb4,
                        sel_ref, pool_ref, wfc, bfc,
                        o_ref,
                        *, B, Lpad, Lpad_c, L0, K, eps):
    """Whole DeepConvNet forward on VMEM-resident slabs.

    x_ref   : (B*Lpad, Cin) f32   input, NLC flattened; rows >= L0 per batch zero
    w*      : (K, Cin, Cout) bf16 conv weights (tap-major)
    gb*     : (2, Cout) f32       row 0 = BN gamma, row 1 = BN beta
    sel_ref : (B*Lpad_c, B*Lpad) bf16  0/1 row-compaction matrix (post block 2)
    pool_ref: (B, B*Lpad_c) bf16  0/1 adaptive-avg-pool selection matrix
    wfc     : (200, NC) bf16, bfc: (1, NC) f32
    o_ref   : (B, NC) f32         softmax probabilities
    """
    N = B * Lpad
    Nc = B * Lpad_c
    l_idx = jax.lax.broadcasted_iota(jnp.int32, (N, 1), 0) % Lpad
    l_idx_c = jax.lax.broadcasted_iota(jnp.int32, (Nc, 1), 0) % Lpad_c

    def block(h, w_ref, gb_ref, stride, L_in, lidx):
        """Conv1d(K, valid, no bias) + BN(batch stats) + ELU + MaxPool1d(2).

        h: (n_rows, Cin) f32.  Logical element j of batch b lives at row
        b*Lregion + stride*j for j < L_in; other rows are finite filler that is
        masked out of BN statistics.  Returns (h_out, 2*stride, L_out).
        """
        n_rows = h.shape[0]
        Lc = L_in - K + 1            # valid conv output length (logical)
        Lp = Lc // 2                 # after MaxPool1d(2)

        # --- Conv1d(K): per-tap MXU matmuls accumulated into one f32 expr.
        #     tap k = slab rolled up by stride*k rows (XLU sublane rotate).
        y = None
        for k in range(K):
            tap = h if k == 0 else pltpu.roll(h, shift=n_rows - stride * k, axis=0)
            d = jnp.dot(tap.astype(jnp.bfloat16), w_ref[k],
                        preferred_element_type=jnp.float32)
            y = d if y is None else y + d                       # (n_rows, Cout)

        # --- BatchNorm1d (training-mode batch stats), single masked pass.
        if stride == 1:
            valid = lidx < Lc
        else:
            valid = ((lidx % stride) == 0) & (lidx < stride * Lc)   # (n_rows, 1)
        inv_n = 1.0 / float(B * Lc)
        ym = jnp.where(valid, y, 0.0)
        s1 = jnp.sum(ym, axis=0, keepdims=True)                 # (1, Cout)
        s2 = jnp.sum(ym * ym, axis=0, keepdims=True)            # (1, Cout)
        mean = s1 * inv_n
        var = jnp.maximum(s2 * inv_n - mean * mean, 0.0)        # biased, clamped
        gb = gb_ref[...]
        scale = jax.lax.rsqrt(var + eps) * gb[0:1, :]
        shift = gb[1:2, :] - mean * scale
        y = y * scale + shift

        # --- ELU (alpha = 1).
        y = jnp.where(y > 0.0, y, jnp.exp(jnp.minimum(y, 0.0)) - 1.0)

        # --- MaxPool1d(2): pooled logical j (row stride*2*j) = max of conv
        #     rows stride*2j and stride*(2j+1) -> VPU max with a roll.
        y = jnp.maximum(y, pltpu.roll(y, shift=n_rows - stride, axis=0))
        return y, 2 * stride, Lp

    h, s, L = x_ref[...], 1, L0
    h, s, L = block(h, w1, gb1, s, L, l_idx)
    h, s, L = block(h, w2, gb2, s, L, l_idx)

    # --- Compaction: rows at stride 4 -> stride-1 slab of Lpad_c per batch.
    #     0/1 selection matrix on the otherwise-idle MXU; h gets cast to bf16
    #     for the next conv anyway, so this is numerically equivalent.
    h = jnp.dot(sel_ref[...], h.astype(jnp.bfloat16),
                preferred_element_type=jnp.float32)             # (Nc, 50)
    s = 1
    h, s, L = block(h, w3, gb3, s, L, l_idx_c)
    h, s, L = block(h, w4, gb4, s, L, l_idx_c)

    # --- AdaptiveAvgPool1d(1): 0/1 pooling matrix @ slab (MXU), then scale.
    pooled = jnp.dot(pool_ref[...], h.astype(jnp.bfloat16),
                     preferred_element_type=jnp.float32) * (1.0 / float(L))

    # --- Linear + softmax.
    logits = jnp.dot(pooled.astype(jnp.bfloat16), wfc[...],
                     preferred_element_type=jnp.float32) + bfc[...]
    m = jnp.max(logits, axis=1, keepdims=True)
    e = jnp.exp(logits - m)
    o_ref[...] = e / jnp.sum(e, axis=1, keepdims=True)


# ----------------------------------------------------------------------------
# Wrapper
# ----------------------------------------------------------------------------
_VMEM = pl.BlockSpec(memory_space=pltpu.MemorySpace.VMEM)


def deep_conv_net(x_ncl, params):
    """Forward pass. x_ncl: (B, in_channels, seq_len) float32 (PyTorch NCL)."""
    x = jnp.transpose(x_ncl.astype(jnp.float32), (0, 2, 1))     # NCL -> NLC
    B, L0, cin = x.shape
    K = 5

    # Length trace through the 4 conv(k=5,valid) + maxpool(2) blocks.
    L1 = (L0 - K + 1) // 2
    L2 = (L1 - K + 1) // 2
    L3 = (L2 - K + 1) // 2
    L4 = (L3 - K + 1) // 2
    assert L4 >= 1, "seq_len too short for 4 conv/pool blocks"

    Lpad = ((L0 + 7) // 8) * 8                                  # tile-align
    Lpad_c = max(8, ((L2 + 7) // 8) * 8)                        # post-compaction
    # Roll-based im2col must never wrap across batch regions (blocks 1-2 run
    # on the Lpad slab at strides 1/2; blocks 3-4 on the Lpad_c slab at 1/2).
    assert (L0 - 1) < Lpad and 2 * (L1 - 1) < Lpad
    assert (L2 - 1) < Lpad_c and 2 * (L3 - 1) < Lpad_c

    if Lpad != L0:
        x = jnp.pad(x, ((0, 0), (0, Lpad - L0), (0, 0)))
    x2d = x.reshape(B * Lpad, cin)                              # aligned merge

    # 0/1 compaction matrix: after 2 pools valid rows sit at stride 4.
    rows = jnp.arange(B * Lpad_c)
    src = (rows // Lpad_c) * Lpad + 4 * (rows % Lpad_c)
    keep = (rows % Lpad_c) < L2
    cols = jnp.arange(B * Lpad)
    sel = ((cols[None, :] == src[:, None]) & keep[:, None]).astype(jnp.bfloat16)

    # 0/1 adaptive-avg-pool matrix: final valid rows sit at stride 4, j < L4.
    prow = jnp.arange(B)
    pcol = jnp.arange(B * Lpad_c)
    in_batch = (pcol[None, :] // Lpad_c) == prow[:, None]
    off = pcol[None, :] % Lpad_c
    pool_mat = (in_batch & ((off % 4) == 0) & (off < 4 * L4)).astype(jnp.bfloat16)

    flat_args = [x2d]
    for (w, _b, g, be) in params["blocks"]:
        # Conv bias _b intentionally dropped: it cancels exactly under
        # training-mode BatchNorm.
        flat_args.append(w.astype(jnp.bfloat16))                 # (K, Cin, Cout)
        flat_args.append(jnp.concatenate([g, be], axis=0))       # (2, Cout)
    w_fc, b_fc = params["fc"]
    flat_args += [sel, pool_mat, w_fc.astype(jnp.bfloat16), b_fc]

    nc = w_fc.shape[1]
    kernel = functools.partial(_deepconvnet_kernel,
                               B=B, Lpad=Lpad, Lpad_c=Lpad_c,
                               L0=L0, K=K, eps=1e-5)
    return pl.pallas_call(
        kernel,
        out_shape=jax.ShapeDtypeStruct((B, nc), jnp.float32),
        in_specs=[_VMEM] * len(flat_args),
        out_specs=_VMEM,
    )(*flat_args)


# ----------------------------------------------------------------------------
# Parameters (deterministic synthetic init; matches module parameter shapes)
# ----------------------------------------------------------------------------
def init_params(key, in_channels, num_classes):
    chans = [in_channels, 25, 50, 100, 200]
    blocks = []
    for i in range(4):
        key, k1, k2 = jax.random.split(key, 3)
        cin, cout = chans[i], chans[i + 1]
        fan_in = cin * 5
        # stored as (K, Cin, Cout)  (torch Conv1d weight is (Cout, Cin, K))
        w = jax.random.normal(k1, (5, cin, cout), jnp.float32) / jnp.sqrt(fan_in)
        b = 0.01 * jax.random.normal(k2, (1, cout), jnp.float32)  # unused (BN cancels)
        gamma = jnp.ones((1, cout), jnp.float32)
        beta = jnp.zeros((1, cout), jnp.float32)
        blocks.append((w, b, gamma, beta))
    key, k1, k2 = jax.random.split(key, 3)
    # stored as (200, num_classes)  (torch Linear weight is (num_classes, 200))
    w_fc = jax.random.normal(k1, (200, num_classes), jnp.float32) / jnp.sqrt(200.0)
    b_fc = 0.01 * jax.random.normal(k2, (1, num_classes), jnp.float32)
    return {"blocks": blocks, "fc": (w_fc, b_fc)}


# ----------------------------------------------------------------------------
if __name__ == "__main__":
    # Small shapes consistent with the module: batch=2, in_channels=4, seq=128.
    # Length trace: 128 ->conv 124 ->pool 62 ->58 ->29 ->25 ->12 ->8 ->4.
    B, CIN, L, NUM_CLASSES = 2, 4, 128, 2

    key = jax.random.PRNGKey(0)
    key, kx, kp = jax.random.split(key, 3)
    x = jax.random.normal(kx, (B, CIN, L), jnp.float32)
    params = init_params(kp, CIN, NUM_CLASSES)

    probs = deep_conv_net(x, params)
    probs = jax.block_until_ready(probs)

    assert probs.shape == (B, NUM_CLASSES)
    assert bool(jnp.all(jnp.isfinite(probs)))
    # softmax rows sum to 1
    assert bool(jnp.all(jnp.abs(jnp.sum(probs, axis=1) - 1.0) < 1e-5))
    print("KERNEL_OK")
</pallas_src>

<mosaic_0001>
module attributes {stable_mosaic.version = 11 : i64} {
  func.func @_deepconvnet_kernel(%arg0: memref<256x4xf32, #tpu.memory_space<vmem>>, %arg1: memref<5x4x25xbf16, #tpu.memory_space<vmem>>, %arg2: memref<2x25xf32, #tpu.memory_space<vmem>>, %arg3: memref<5x25x50xbf16, #tpu.memory_space<vmem>>, %arg4: memref<2x50xf32, #tpu.memory_space<vmem>>, %arg5: memref<5x50x100xbf16, #tpu.memory_space<vmem>>, %arg6: memref<2x100xf32, #tpu.memory_space<vmem>>, %arg7: memref<5x100x200xbf16, #tpu.memory_space<vmem>>, %arg8: memref<2x200xf32, #tpu.memory_space<vmem>>, %arg9: memref<64x256xbf16, #tpu.memory_space<vmem>>, %arg10: memref<2x64xbf16, #tpu.memory_space<vmem>>, %arg11: memref<200x2xbf16, #tpu.memory_space<vmem>>, %arg12: memref<1x2xf32, #tpu.memory_space<vmem>>, %arg13: memref<2x2xf32, #tpu.memory_space<vmem>>) attributes {dimension_semantics = [], scalar_prefetch = 0 : i64, scratch_operands = 0 : i64, tpu.core_type = #tpu.core_type<tc>} {
    %0 = tpu.iota {dimensions = array<i32: 0>} : vector<256x1xi32>
    %c128_i32 = arith.constant 128 : i32
    %c0_i32 = arith.constant 0 : i32
    %1 = arith.cmpi eq, %c128_i32, %c0_i32 : i32
    %c1_i32 = arith.constant 1 : i32
    %2 = arith.select %1, %c1_i32, %c128_i32 : i32
    %3 = vector.broadcast %2 : i32 to vector<256x1xi32>
    %4 = arith.remsi %0, %3 : vector<256x1xi32>
    %c0_i32_0 = arith.constant 0 : i32
    %5 = vector.broadcast %c0_i32_0 : i32 to vector<256x1xi32>
    %6 = arith.cmpi ne, %4, %5 : vector<256x1xi32>
    %c0_i32_1 = arith.constant 0 : i32
    %7 = vector.broadcast %c0_i32_1 : i32 to vector<256x1xi32>
    %8 = arith.cmpi slt, %4, %7 : vector<256x1xi32>
    %c0_i32_2 = arith.constant 0 : i32
    %9 = arith.cmpi slt, %2, %c0_i32_2 : i32
    %10 = vector.broadcast %9 : i1 to vector<256x1xi1>
    %11 = vector.broadcast %10 : vector<256x1xi1> to vector<256x1xi1>
    %12 = arith.xori %8, %11 : vector<256x1xi1>
    %13 = arith.andi %12, %6 : vector<256x1xi1>
    %14 = vector.broadcast %2 : i32 to vector<256x1xi32>
    %15 = arith.addi %4, %14 : vector<256x1xi32>
    %16 = arith.select %13, %15, %4 : vector<256x1xi1>, vector<256x1xi32>
    %17 = tpu.iota {dimensions = array<i32: 0>} : vector<64x1xi32>
    %c32_i32 = arith.constant 32 : i32
    %c0_i32_3 = arith.constant 0 : i32
    %18 = arith.cmpi eq, %c32_i32, %c0_i32_3 : i32
    %c1_i32_4 = arith.constant 1 : i32
    %19 = arith.select %18, %c1_i32_4, %c32_i32 : i32
    %20 = vector.broadcast %19 : i32 to vector<64x1xi32>
    %21 = arith.remsi %17, %20 : vector<64x1xi32>
    %c0_i32_5 = arith.constant 0 : i32
    %22 = vector.broadcast %c0_i32_5 : i32 to vector<64x1xi32>
    %23 = arith.cmpi ne, %21, %22 : vector<64x1xi32>
    %c0_i32_6 = arith.constant 0 : i32
    %24 = vector.broadcast %c0_i32_6 : i32 to vector<64x1xi32>
    %25 = arith.cmpi slt, %21, %24 : vector<64x1xi32>
    %c0_i32_7 = arith.constant 0 : i32
    %26 = arith.cmpi slt, %19, %c0_i32_7 : i32
    %27 = vector.broadcast %26 : i1 to vector<64x1xi1>
    %28 = vector.broadcast %27 : vector<64x1xi1> to vector<64x1xi1>
    %29 = arith.xori %25, %28 : vector<64x1xi1>
    %30 = arith.andi %29, %23 : vector<64x1xi1>
    %31 = vector.broadcast %19 : i32 to vector<64x1xi32>
    %32 = arith.addi %21, %31 : vector<64x1xi32>
    %33 = arith.select %30, %32, %21 : vector<64x1xi1>, vector<64x1xi32>
    %c0 = arith.constant 0 : index
    %c0_8 = arith.constant 0 : index
    %34 = vector.load %arg0[%c0, %c0_8] : memref<256x4xf32, #tpu.memory_space<vmem>>, vector<256x4xf32>
    %35 = arith.truncf %34 : vector<256x4xf32> to vector<256x4xbf16>
    %c0_9 = arith.constant 0 : index
    %c0_10 = arith.constant 0 : index
    %c0_11 = arith.constant 0 : index
    %36 = vector.load %arg1[%c0_9, %c0_10, %c0_11] : memref<5x4x25xbf16, #tpu.memory_space<vmem>>, vector<1x4x25xbf16>
    %37 = vector.shape_cast %36 : vector<1x4x25xbf16> to vector<4x25xbf16>
    %cst = arith.constant dense<0.000000e+00> : vector<256x25xf32>
    %38 = tpu.matmul %35, %37, %cst {dimension_numbers = #tpu.dot_dimension_numbers<[1], [0], [0], [1], [0, 0, 1, 1], [], []>} : vector<256x4xbf16>, vector<4x25xbf16>, vector<256x25xf32> -> vector<256x25xf32>
    %c255_i32 = arith.constant 255 : i32
    %39 = tpu.dynamic_rotate %34 by %c255_i32 dim 0 : vector<256x4xf32>, i32 -> vector<256x4xf32>
    %40 = arith.truncf %39 : vector<256x4xf32> to vector<256x4xbf16>
    %c1 = arith.constant 1 : index
    %c0_12 = arith.constant 0 : index
    %c0_13 = arith.constant 0 : index
    %41 = vector.load %arg1[%c1, %c0_12, %c0_13] : memref<5x4x25xbf16, #tpu.memory_space<vmem>>, vector<1x4x25xbf16>
    %42 = vector.shape_cast %41 : vector<1x4x25xbf16> to vector<4x25xbf16>
    %cst_14 = arith.constant dense<0.000000e+00> : vector<256x25xf32>
    %43 = tpu.matmul %40, %42, %cst_14 {dimension_numbers = #tpu.dot_dimension_numbers<[1], [0], [0], [1], [0, 0, 1, 1], [], []>} : vector<256x4xbf16>, vector<4x25xbf16>, vector<256x25xf32> -> vector<256x25xf32>
    %44 = arith.addf %38, %43 : vector<256x25xf32>
    %c254_i32 = arith.constant 254 : i32
    %45 = tpu.dynamic_rotate %34 by %c254_i32 dim 0 : vector<256x4xf32>, i32 -> vector<256x4xf32>
    %46 = arith.truncf %45 : vector<256x4xf32> to vector<256x4xbf16>
    %c2 = arith.constant 2 : index
    %c0_15 = arith.constant 0 : index
    %c0_16 = arith.constant 0 : index
    %47 = vector.load %arg1[%c2, %c0_15, %c0_16] : memref<5x4x25xbf16, #tpu.memory_space<vmem>>, vector<1x4x25xbf16>
    %48 = vector.shape_cast %47 : vector<1x4x25xbf16> to vector<4x25xbf16>
    %cst_17 = arith.constant dense<0.000000e+00> : vector<256x25xf32>
    %49 = tpu.matmul %46, %48, %cst_17 {dimension_numbers = #tpu.dot_dimension_numbers<[1], [0], [0], [1], [0, 0, 1, 1], [], []>} : vector<256x4xbf16>, vector<4x25xbf16>, vector<256x25xf32> -> vector<256x25xf32>
    %50 = arith.addf %44, %49 : vector<256x25xf32>
    %c253_i32 = arith.constant 253 : i32
    %51 = tpu.dynamic_rotate %34 by %c253_i32 dim 0 : vector<256x4xf32>, i32 -> vector<256x4xf32>
    %52 = arith.truncf %51 : vector<256x4xf32> to vector<256x4xbf16>
    %c3 = arith.constant 3 : index
    %c0_18 = arith.constant 0 : index
    %c0_19 = arith.constant 0 : index
    %53 = vector.load %arg1[%c3, %c0_18, %c0_19] : memref<5x4x25xbf16, #tpu.memory_space<vmem>>, vector<1x4x25xbf16>
    %54 = vector.shape_cast %53 : vector<1x4x25xbf16> to vector<4x25xbf16>
    %cst_20 = arith.constant dense<0.000000e+00> : vector<256x25xf32>
    %55 = tpu.matmul %52, %54, %cst_20 {dimension_numbers = #tpu.dot_dimension_numbers<[1], [0], [0], [1], [0, 0, 1, 1], [], []>} : vector<256x4xbf16>, vector<4x25xbf16>, vector<256x25xf32> -> vector<256x25xf32>
    %56 = arith.addf %50, %55 : vector<256x25xf32>
    %c252_i32 = arith.constant 252 : i32
    %57 = tpu.dynamic_rotate %34 by %c252_i32 dim 0 : vector<256x4xf32>, i32 -> vector<256x4xf32>
    %58 = arith.truncf %57 : vector<256x4xf32> to vector<256x4xbf16>
    %c4 = arith.constant 4 : index
    %c0_21 = arith.constant 0 : index
    %c0_22 = arith.constant 0 : index
    %59 = vector.load %arg1[%c4, %c0_21, %c0_22] : memref<5x4x25xbf16, #tpu.memory_space<vmem>>, vector<1x4x25xbf16>
    %60 = vector.shape_cast %59 : vector<1x4x25xbf16> to vector<4x25xbf16>
    %cst_23 = arith.constant dense<0.000000e+00> : vector<256x25xf32>
    %61 = tpu.matmul %58, %60, %cst_23 {dimension_numbers = #tpu.dot_dimension_numbers<[1], [0], [0], [1], [0, 0, 1, 1], [], []>} : vector<256x4xbf16>, vector<4x25xbf16>, vector<256x25xf32> -> vector<256x25xf32>
    %62 = arith.addf %56, %61 : vector<256x25xf32>
    %c124_i32 = arith.constant 124 : i32
    %63 = vector.broadcast %c124_i32 : i32 to vector<256x1xi32>
    %64 = arith.cmpi slt, %16, %63 : vector<256x1xi32>
    %cst_24 = arith.constant 0.000000e+00 : f32
    %65 = vector.shape_cast %64 : vector<256x1xi1> to vector<256x1xi1>
    %66 = vector.broadcast %65 : vector<256x1xi1> to vector<256x25xi1>
    %67 = vector.broadcast %cst_24 : f32 to vector<256x25xf32>
    %68 = arith.select %66, %62, %67 : vector<256x25xi1>, vector<256x25xf32>
    %cst_25 = arith.constant dense<0.000000e+00> : vector<25xf32>
    %69 = vector.multi_reduction <add>, %68, %cst_25 [0] : vector<256x25xf32> to vector<25xf32>
    %70 = vector.shape_cast %69 : vector<25xf32> to vector<1x25xf32>
    %71 = arith.mulf %68, %68 : vector<256x25xf32>
    %cst_26 = arith.constant dense<0.000000e+00> : vector<25xf32>
    %72 = vector.multi_reduction <add>, %71, %cst_26 [0] : vector<256x25xf32> to vector<25xf32>
    %73 = vector.shape_cast %72 : vector<25xf32> to vector<1x25xf32>
    %cst_27 = arith.constant 0.00403225794 : f32
    %74 = vector.broadcast %cst_27 : f32 to vector<1x25xf32>
    %75 = arith.mulf %70, %74 : vector<1x25xf32>
    %cst_28 = arith.constant 0.00403225794 : f32
    %76 = vector.broadcast %cst_28 : f32 to vector<1x25xf32>
    %77 = arith.mulf %73, %76 : vector<1x25xf32>
    %78 = arith.mulf %75, %75 : vector<1x25xf32>
    %79 = arith.subf %77, %78 : vector<1x25xf32>
    %cst_29 = arith.constant 0.000000e+00 : f32
    %80 = vector.broadcast %cst_29 : f32 to vector<1x25xf32>
    %81 = arith.maximumf %79, %80 : vector<1x25xf32>
    %c0_30 = arith.constant 0 : index
    %c0_31 = arith.constant 0 : index
    %82 = vector.load %arg2[%c0_30, %c0_31] : memref<2x25xf32, #tpu.memory_space<vmem>>, vector<2x25xf32>
    %cst_32 = arith.constant 9.99999974E-6 : f32
    %83 = vector.broadcast %cst_32 : f32 to vector<1x25xf32>
    %84 = arith.addf %81, %83 : vector<1x25xf32>
    %85 = math.rsqrt %84 : vector<1x25xf32>
    %86 = vector.extract_strided_slice %82 {offsets = [0, 0], sizes = [1, 25], strides = [1, 1]} : vector<2x25xf32> to vector<1x25xf32>
    %87 = arith.mulf %85, %86 : vector<1x25xf32>
    %88 = vector.extract_strided_slice %82 {offsets = [1, 0], sizes = [1, 25], strides = [1, 1]} : vector<2x25xf32> to vector<1x25xf32>
    %89 = arith.mulf %75, %87 : vector<1x25xf32>
    %90 = arith.subf %88, %89 : vector<1x25xf32>
    %91 = vector.broadcast %87 : vector<1x25xf32> to vector<256x25xf32>
    %92 = arith.mulf %62, %91 : vector<256x25xf32>
    %93 = vector.broadcast %90 : vector<1x25xf32> to vector<256x25xf32>
    %94 = arith.addf %92, %93 : vector<256x25xf32>
    %cst_33 = arith.constant 0.000000e+00 : f32
    %95 = vector.broadcast %cst_33 : f32 to vector<256x25xf32>
    %96 = arith.cmpf ogt, %94, %95 : vector<256x25xf32>
    %cst_34 = arith.constant 0.000000e+00 : f32
    %97 = vector.broadcast %cst_34 : f32 to vector<256x25xf32>
    %98 = arith.minimumf %94, %97 : vector<256x25xf32>
    %99 = math.exp %98 : vector<256x25xf32>
    %cst_35 = arith.constant 1.000000e+00 : f32
    %100 = vector.broadcast %cst_35 : f32 to vector<256x25xf32>
    %101 = arith.subf %99, %100 : vector<256x25xf32>
    %102 = arith.select %96, %94, %101 : vector<256x25xi1>, vector<256x25xf32>
    %c255_i32_36 = arith.constant 255 : i32
    %103 = tpu.dynamic_rotate %102 by %c255_i32_36 dim 0 : vector<256x25xf32>, i32 -> vector<256x25xf32>
    %104 = arith.maximumf %102, %103 : vector<256x25xf32>
    %105 = arith.truncf %104 : vector<256x25xf32> to vector<256x25xbf16>
    %c0_37 = arith.constant 0 : index
    %c0_38 = arith.constant 0 : index
    %c0_39 = arith.constant 0 : index
    %106 = vector.load %arg3[%c0_37, %c0_38, %c0_39] : memref<5x25x50xbf16, #tpu.memory_space<vmem>>, vector<1x25x50xbf16>
    %107 = vector.shape_cast %106 : vector<1x25x50xbf16> to vector<25x50xbf16>
    %cst_40 = arith.constant dense<0.000000e+00> : vector<256x50xf32>
    %108 = tpu.matmul %105, %107, %cst_40 {dimension_numbers = #tpu.dot_dimension_numbers<[1], [0], [0], [1], [0, 0, 1, 1], [], []>} : vector<256x25xbf16>, vector<25x50xbf16>, vector<256x50xf32> -> vector<256x50xf32>
    %c254_i32_41 = arith.constant 254 : i32
    %109 = tpu.dynamic_rotate %104 by %c254_i32_41 dim 0 : vector<256x25xf32>, i32 -> vector<256x25xf32>
    %110 = arith.truncf %109 : vector<256x25xf32> to vector<256x25xbf16>
    %c1_42 = arith.constant 1 : index
    %c0_43 = arith.constant 0 : index
    %c0_44 = arith.constant 0 : index
    %111 = vector.load %arg3[%c1_42, %c0_43, %c0_44] : memref<5x25x50xbf16, #tpu.memory_space<vmem>>, vector<1x25x50xbf16>
    %112 = vector.shape_cast %111 : vector<1x25x50xbf16> to vector<25x50xbf16>
    %cst_45 = arith.constant dense<0.000000e+00> : vector<256x50xf32>
    %113 = tpu.matmul %110, %112, %cst_45 {dimension_numbers = #tpu.dot_dimension_numbers<[1], [0], [0], [1], [0, 0, 1, 1], [], []>} : vector<256x25xbf16>, vector<25x50xbf16>, vector<256x50xf32> -> vector<256x50xf32>
    %114 = arith.addf %108, %113 : vector<256x50xf32>
    %c252_i32_46 = arith.constant 252 : i32
    %115 = tpu.dynamic_rotate %104 by %c252_i32_46 dim 0 : vector<256x25xf32>, i32 -> vector<256x25xf32>
    %116 = arith.truncf %115 : vector<256x25xf32> to vector<256x25xbf16>
    %c2_47 = arith.constant 2 : index
    %c0_48 = arith.constant 0 : index
    %c0_49 = arith.constant 0 : index
    %117 = vector.load %arg3[%c2_47, %c0_48, %c0_49] : memref<5x25x50xbf16, #tpu.memory_space<vmem>>, vector<1x25x50xbf16>
    %118 = vector.shape_cast %117 : vector<1x25x50xbf16> to vector<25x50xbf16>
    %cst_50 = arith.constant dense<0.000000e+00> : vector<256x50xf32>
    %119 = tpu.matmul %116, %118, %cst_50 {dimension_numbers = #tpu.dot_dimension_numbers<[1], [0], [0], [1], [0, 0, 1, 1], [], []>} : vector<256x25xbf16>, vector<25x50xbf16>, vector<256x50xf32> -> vector<256x50xf32>
    %120 = arith.addf %114, %119 : vector<256x50xf32>
    %c250_i32 = arith.constant 250 : i32
    %121 = tpu.dynamic_rotate %104 by %c250_i32 dim 0 : vector<256x25xf32>, i32 -> vector<256x25xf32>
    %122 = arith.truncf %121 : vector<256x25xf32> to vector<256x25xbf16>
    %c3_51 = arith.constant 3 : index
    %c0_52 = arith.constant 0 : index
    %c0_53 = arith.constant 0 : index
    %123 = vector.load %arg3[%c3_51, %c0_52, %c0_53] : memref<5x25x50xbf16, #tpu.memory_space<vmem>>, vector<1x25x50xbf16>
    %124 = vector.shape_cast %123 : vector<1x25x50xbf16> to vector<25x50xbf16>
    %cst_54 = arith.constant dense<0.000000e+00> : vector<256x50xf32>
    %125 = tpu.matmul %122, %124, %cst_54 {dimension_numbers = #tpu.dot_dimension_numbers<[1], [0], [0], [1], [0, 0, 1, 1], [], []>} : vector<256x25xbf16>, vector<25x50xbf16>, vector<256x50xf32> -> vector<256x50xf32>
    %126 = arith.addf %120, %125 : vector<256x50xf32>
    %c248_i32 = arith.constant 248 : i32
    %127 = tpu.dynamic_rotate %104 by %c248_i32 dim 0 : vector<256x25xf32>, i32 -> vector<256x25xf32>
    %128 = arith.truncf %127 : vector<256x25xf32> to vector<256x25xbf16>
    %c4_55 = arith.constant 4 : index
    %c0_56 = arith.constant 0 : index
    %c0_57 = arith.constant 0 : index
    %129 = vector.load %arg3[%c4_55, %c0_56, %c0_57] : memref<5x25x50xbf16, #tpu.memory_space<vmem>>, vector<1x25x50xbf16>
    %130 = vector.shape_cast %129 : vector<1x25x50xbf16> to vector<25x50xbf16>
    %cst_58 = arith.constant dense<0.000000e+00> : vector<256x50xf32>
    %131 = tpu.matmul %128, %130, %cst_58 {dimension_numbers = #tpu.dot_dimension_numbers<[1], [0], [0], [1], [0, 0, 1, 1], [], []>} : vector<256x25xbf16>, vector<25x50xbf16>, vector<256x50xf32> -> vector<256x50xf32>
    %132 = arith.addf %126, %131 : vector<256x50xf32>
    %c2_i32 = arith.constant 2 : i32
    %c0_i32_59 = arith.constant 0 : i32
    %133 = arith.cmpi eq, %c2_i32, %c0_i32_59 : i32
    %c1_i32_60 = arith.constant 1 : i32
    %134 = arith.select %133, %c1_i32_60, %c2_i32 : i32
    %135 = vector.broadcast %134 : i32 to vector<256x1xi32>
    %136 = arith.remsi %16, %135 : vector<256x1xi32>
    %c0_i32_61 = arith.constant 0 : i32
    %137 = vector.broadcast %c0_i32_61 : i32 to vector<256x1xi32>
    %138 = arith.cmpi ne, %136, %137 : vector<256x1xi32>
    %c0_i32_62 = arith.constant 0 : i32
    %139 = vector.broadcast %c0_i32_62 : i32 to vector<256x1xi32>
    %140 = arith.cmpi slt, %136, %139 : vector<256x1xi32>
    %c0_i32_63 = arith.constant 0 : i32
    %141 = arith.cmpi slt, %134, %c0_i32_63 : i32
    %142 = vector.broadcast %141 : i1 to vector<256x1xi1>
    %143 = vector.broadcast %142 : vector<256x1xi1> to vector<256x1xi1>
    %144 = arith.xori %140, %143 : vector<256x1xi1>
    %145 = arith.andi %144, %138 : vector<256x1xi1>
    %146 = vector.broadcast %134 : i32 to vector<256x1xi32>
    %147 = arith.addi %136, %146 : vector<256x1xi32>
    %148 = arith.select %145, %147, %136 : vector<256x1xi1>, vector<256x1xi32>
    %c0_i32_64 = arith.constant 0 : i32
    %149 = vector.broadcast %c0_i32_64 : i32 to vector<256x1xi32>
    %150 = arith.cmpi eq, %148, %149 : vector<256x1xi32>
    %c116_i32 = arith.constant 116 : i32
    %151 = vector.broadcast %c116_i32 : i32 to vector<256x1xi32>
    %152 = arith.cmpi slt, %16, %151 : vector<256x1xi32>
    %153 = arith.andi %150, %152 : vector<256x1xi1>
    %cst_65 = arith.constant 0.000000e+00 : f32
    %154 = vector.shape_cast %153 : vector<256x1xi1> to vector<256x1xi1>
    %155 = vector.broadcast %154 : vector<256x1xi1> to vector<256x50xi1>
    %156 = vector.broadcast %cst_65 : f32 to vector<256x50xf32>
    %157 = arith.select %155, %132, %156 : vector<256x50xi1>, vector<256x50xf32>
    %cst_66 = arith.constant dense<0.000000e+00> : vector<50xf32>
    %158 = vector.multi_reduction <add>, %157, %cst_66 [0] : vector<256x50xf32> to vector<50xf32>
    %159 = vector.shape_cast %158 : vector<50xf32> to vector<1x50xf32>
    %160 = arith.mulf %157, %157 : vector<256x50xf32>
    %cst_67 = arith.constant dense<0.000000e+00> : vector<50xf32>
    %161 = vector.multi_reduction <add>, %160, %cst_67 [0] : vector<256x50xf32> to vector<50xf32>
    %162 = vector.shape_cast %161 : vector<50xf32> to vector<1x50xf32>
    %cst_68 = arith.constant 8.620690e-03 : f32
    %163 = vector.broadcast %cst_68 : f32 to vector<1x50xf32>
    %164 = arith.mulf %159, %163 : vector<1x50xf32>
    %cst_69 = arith.constant 8.620690e-03 : f32
    %165 = vector.broadcast %cst_69 : f32 to vector<1x50xf32>
    %166 = arith.mulf %162, %165 : vector<1x50xf32>
    %167 = arith.mulf %164, %164 : vector<1x50xf32>
    %168 = arith.subf %166, %167 : vector<1x50xf32>
    %cst_70 = arith.constant 0.000000e+00 : f32
    %169 = vector.broadcast %cst_70 : f32 to vector<1x50xf32>
    %170 = arith.maximumf %168, %169 : vector<1x50xf32>
    %c0_71 = arith.constant 0 : index
    %c0_72 = arith.constant 0 : index
    %171 = vector.load %arg4[%c0_71, %c0_72] : memref<2x50xf32, #tpu.memory_space<vmem>>, vector<2x50xf32>
    %cst_73 = arith.constant 9.99999974E-6 : f32
    %172 = vector.broadcast %cst_73 : f32 to vector<1x50xf32>
    %173 = arith.addf %170, %172 : vector<1x50xf32>
    %174 = math.rsqrt %173 : vector<1x50xf32>
    %175 = vector.extract_strided_slice %171 {offsets = [0, 0], sizes = [1, 50], strides = [1, 1]} : vector<2x50xf32> to vector<1x50xf32>
    %176 = arith.mulf %174, %175 : vector<1x50xf32>
    %177 = vector.extract_strided_slice %171 {offsets = [1, 0], sizes = [1, 50], strides = [1, 1]} : vector<2x50xf32> to vector<1x50xf32>
    %178 = arith.mulf %164, %176 : vector<1x50xf32>
    %179 = arith.subf %177, %178 : vector<1x50xf32>
    %180 = vector.broadcast %176 : vector<1x50xf32> to vector<256x50xf32>
    %181 = arith.mulf %132, %180 : vector<256x50xf32>
    %182 = vector.broadcast %179 : vector<1x50xf32> to vector<256x50xf32>
    %183 = arith.addf %181, %182 : vector<256x50xf32>
    %cst_74 = arith.constant 0.000000e+00 : f32
    %184 = vector.broadcast %cst_74 : f32 to vector<256x50xf32>
    %185 = arith.cmpf ogt, %183, %184 : vector<256x50xf32>
    %cst_75 = arith.constant 0.000000e+00 : f32
    %186 = vector.broadcast %cst_75 : f32 to vector<256x50xf32>
    %187 = arith.minimumf %183, %186 : vector<256x50xf32>
    %188 = math.exp %187 : vector<256x50xf32>
    %cst_76 = arith.constant 1.000000e+00 : f32
    %189 = vector.broadcast %cst_76 : f32 to vector<256x50xf32>
    %190 = arith.subf %188, %189 : vector<256x50xf32>
    %191 = arith.select %185, %183, %190 : vector<256x50xi1>, vector<256x50xf32>
    %c254_i32_77 = arith.constant 254 : i32
    %192 = tpu.dynamic_rotate %191 by %c254_i32_77 dim 0 : vector<256x50xf32>, i32 -> vector<256x50xf32>
    %193 = arith.maximumf %191, %192 : vector<256x50xf32>
    %c0_78 = arith.constant 0 : index
    %c0_79 = arith.constant 0 : index
    %194 = vector.load %arg9[%c0_78, %c0_79] : memref<64x256xbf16, #tpu.memory_space<vmem>>, vector<64x256xbf16>
    %195 = arith.truncf %193 : vector<256x50xf32> to vector<256x50xbf16>
    %cst_80 = arith.constant dense<0.000000e+00> : vector<64x50xf32>
    %196 = tpu.matmul %194, %195, %cst_80 {dimension_numbers = #tpu.dot_dimension_numbers<[1], [0], [0], [1], [0, 0, 1, 1], [], []>} : vector<64x256xbf16>, vector<256x50xbf16>, vector<64x50xf32> -> vector<64x50xf32>
    %197 = arith.truncf %196 : vector<64x50xf32> to vector<64x50xbf16>
    %c0_81 = arith.constant 0 : index
    %c0_82 = arith.constant 0 : index
    %c0_83 = arith.constant 0 : index
    %198 = vector.load %arg5[%c0_81, %c0_82, %c0_83] : memref<5x50x100xbf16, #tpu.memory_space<vmem>>, vector<1x50x100xbf16>
    %199 = vector.shape_cast %198 : vector<1x50x100xbf16> to vector<50x100xbf16>
    %cst_84 = arith.constant dense<0.000000e+00> : vector<64x100xf32>
    %200 = tpu.matmul %197, %199, %cst_84 {dimension_numbers = #tpu.dot_dimension_numbers<[1], [0], [0], [1], [0, 0, 1, 1], [], []>} : vector<64x50xbf16>, vector<50x100xbf16>, vector<64x100xf32> -> vector<64x100xf32>
    %c63_i32 = arith.constant 63 : i32
    %201 = tpu.dynamic_rotate %196 by %c63_i32 dim 0 : vector<64x50xf32>, i32 -> vector<64x50xf32>
    %202 = arith.truncf %201 : vector<64x50xf32> to vector<64x50xbf16>
    %c1_85 = arith.constant 1 : index
    %c0_86 = arith.constant 0 : index
    %c0_87 = arith.constant 0 : index
    %203 = vector.load %arg5[%c1_85, %c0_86, %c0_87] : memref<5x50x100xbf16, #tpu.memory_space<vmem>>, vector<1x50x100xbf16>
    %204 = vector.shape_cast %203 : vector<1x50x100xbf16> to vector<50x100xbf16>
    %cst_88 = arith.constant dense<0.000000e+00> : vector<64x100xf32>
    %205 = tpu.matmul %202, %204, %cst_88 {dimension_numbers = #tpu.dot_dimension_numbers<[1], [0], [0], [1], [0, 0, 1, 1], [], []>} : vector<64x50xbf16>, vector<50x100xbf16>, vector<64x100xf32> -> vector<64x100xf32>
    %206 = arith.addf %200, %205 : vector<64x100xf32>
    %c62_i32 = arith.constant 62 : i32
    %207 = tpu.dynamic_rotate %196 by %c62_i32 dim 0 : vector<64x50xf32>, i32 -> vector<64x50xf32>
    %208 = arith.truncf %207 : vector<64x50xf32> to vector<64x50xbf16>
    %c2_89 = arith.constant 2 : index
    %c0_90 = arith.constant 0 : index
    %c0_91 = arith.constant 0 : index
    %209 = vector.load %arg5[%c2_89, %c0_90, %c0_91] : memref<5x50x100xbf16, #tpu.memory_space<vmem>>, vector<1x50x100xbf16>
    %210 = vector.shape_cast %209 : vector<1x50x100xbf16> to vector<50x100xbf16>
    %cst_92 = arith.constant dense<0.000000e+00> : vector<64x100xf32>
    %211 = tpu.matmul %208, %210, %cst_92 {dimension_numbers = #tpu.dot_dimension_numbers<[1], [0], [0], [1], [0, 0, 1, 1], [], []>} : vector<64x50xbf16>, vector<50x100xbf16>, vector<64x100xf32> -> vector<64x100xf32>
    %212 = arith.addf %206, %211 : vector<64x100xf32>
    %c61_i32 = arith.constant 61 : i32
    %213 = tpu.dynamic_rotate %196 by %c61_i32 dim 0 : vector<64x50xf32>, i32 -> vector<64x50xf32>
    %214 = arith.truncf %213 : vector<64x50xf32> to vector<64x50xbf16>
    %c3_93 = arith.constant 3 : index
    %c0_94 = arith.constant 0 : index
    %c0_95 = arith.constant 0 : index
    %215 = vector.load %arg5[%c3_93, %c0_94, %c0_95] : memref<5x50x100xbf16, #tpu.memory_space<vmem>>, vector<1x50x100xbf16>
    %216 = vector.shape_cast %215 : vector<1x50x100xbf16> to vector<50x100xbf16>
    %cst_96 = arith.constant dense<0.000000e+00> : vector<64x100xf32>
    %217 = tpu.matmul %214, %216, %cst_96 {dimension_numbers = #tpu.dot_dimension_numbers<[1], [0], [0], [1], [0, 0, 1, 1], [], []>} : vector<64x50xbf16>, vector<50x100xbf16>, vector<64x100xf32> -> vector<64x100xf32>
    %218 = arith.addf %212, %217 : vector<64x100xf32>
    %c60_i32 = arith.constant 60 : i32
    %219 = tpu.dynamic_rotate %196 by %c60_i32 dim 0 : vector<64x50xf32>, i32 -> vector<64x50xf32>
    %220 = arith.truncf %219 : vector<64x50xf32> to vector<64x50xbf16>
    %c4_97 = arith.constant 4 : index
    %c0_98 = arith.constant 0 : index
    %c0_99 = arith.constant 0 : index
    %221 = vector.load %arg5[%c4_97, %c0_98, %c0_99] : memref<5x50x100xbf16, #tpu.memory_space<vmem>>, vector<1x50x100xbf16>
    %222 = vector.shape_cast %221 : vector<1x50x100xbf16> to vector<50x100xbf16>
    %cst_100 = arith.constant dense<0.000000e+00> : vector<64x100xf32>
    %223 = tpu.matmul %220, %222, %cst_100 {dimension_numbers = #tpu.dot_dimension_numbers<[1], [0], [0], [1], [0, 0, 1, 1], [], []>} : vector<64x50xbf16>, vector<50x100xbf16>, vector<64x100xf32> -> vector<64x100xf32>
    %224 = arith.addf %218, %223 : vector<64x100xf32>
    %c25_i32 = arith.constant 25 : i32
    %225 = vector.broadcast %c25_i32 : i32 to vector<64x1xi32>
    %226 = arith.cmpi slt, %33, %225 : vector<64x1xi32>
    %cst_101 = arith.constant 0.000000e+00 : f32
    %227 = vector.shape_cast %226 : vector<64x1xi1> to vector<64x1xi1>
    %228 = vector.broadcast %227 : vector<64x1xi1> to vector<64x100xi1>
    %229 = vector.broadcast %cst_101 : f32 to vector<64x100xf32>
    %230 = arith.select %228, %224, %229 : vector<64x100xi1>, vector<64x100xf32>
    %cst_102 = arith.constant dense<0.000000e+00> : vector<100xf32>
    %231 = vector.multi_reduction <add>, %230, %cst_102 [0] : vector<64x100xf32> to vector<100xf32>
    %232 = vector.shape_cast %231 : vector<100xf32> to vector<1x100xf32>
    %233 = arith.mulf %230, %230 : vector<64x100xf32>
    %cst_103 = arith.constant dense<0.000000e+00> : vector<100xf32>
    %234 = vector.multi_reduction <add>, %233, %cst_103 [0] : vector<64x100xf32> to vector<100xf32>
    %235 = vector.shape_cast %234 : vector<100xf32> to vector<1x100xf32>
    %cst_104 = arith.constant 2.000000e-02 : f32
    %236 = vector.broadcast %cst_104 : f32 to vector<1x100xf32>
    %237 = arith.mulf %232, %236 : vector<1x100xf32>
    %cst_105 = arith.constant 2.000000e-02 : f32
    %238 = vector.broadcast %cst_105 : f32 to vector<1x100xf32>
    %239 = arith.mulf %235, %238 : vector<1x100xf32>
    %240 = arith.mulf %237, %237 : vector<1x100xf32>
    %241 = arith.subf %239, %240 : vector<1x100xf32>
    %cst_106 = arith.constant 0.000000e+00 : f32
    %242 = vector.broadcast %cst_106 : f32 to vector<1x100xf32>
    %243 = arith.maximumf %241, %242 : vector<1x100xf32>
    %c0_107 = arith.constant 0 : index
    %c0_108 = arith.constant 0 : index
    %244 = vector.load %arg6[%c0_107, %c0_108] : memref<2x100xf32, #tpu.memory_space<vmem>>, vector<2x100xf32>
    %cst_109 = arith.constant 9.99999974E-6 : f32
    %245 = vector.broadcast %cst_109 : f32 to vector<1x100xf32>
    %246 = arith.addf %243, %245 : vector<1x100xf32>
    %247 = math.rsqrt %246 : vector<1x100xf32>
    %248 = vector.extract_strided_slice %244 {offsets = [0, 0], sizes = [1, 100], strides = [1, 1]} : vector<2x100xf32> to vector<1x100xf32>
    %249 = arith.mulf %247, %248 : vector<1x100xf32>
    %250 = vector.extract_strided_slice %244 {offsets = [1, 0], sizes = [1, 100], strides = [1, 1]} : vector<2x100xf32> to vector<1x100xf32>
    %251 = arith.mulf %237, %249 : vector<1x100xf32>
    %252 = arith.subf %250, %251 : vector<1x100xf32>
    %253 = vector.broadcast %249 : vector<1x100xf32> to vector<64x100xf32>
    %254 = arith.mulf %224, %253 : vector<64x100xf32>
    %255 = vector.broadcast %252 : vector<1x100xf32> to vector<64x100xf32>
    %256 = arith.addf %254, %255 : vector<64x100xf32>
    %cst_110 = arith.constant 0.000000e+00 : f32
    %257 = vector.broadcast %cst_110 : f32 to vector<64x100xf32>
    %258 = arith.cmpf ogt, %256, %257 : vector<64x100xf32>
    %cst_111 = arith.constant 0.000000e+00 : f32
    %259 = vector.broadcast %cst_111 : f32 to vector<64x100xf32>
    %260 = arith.minimumf %256, %259 : vector<64x100xf32>
    %261 = math.exp %260 : vector<64x100xf32>
    %cst_112 = arith.constant 1.000000e+00 : f32
    %262 = vector.broadcast %cst_112 : f32 to vector<64x100xf32>
    %263 = arith.subf %261, %262 : vector<64x100xf32>
    %264 = arith.select %258, %256, %263 : vector<64x100xi1>, vector<64x100xf32>
    %c63_i32_113 = arith.constant 63 : i32
    %265 = tpu.dynamic_rotate %264 by %c63_i32_113 dim 0 : vector<64x100xf32>, i32 -> vector<64x100xf32>
    %266 = arith.maximumf %264, %265 : vector<64x100xf32>
    %267 = arith.truncf %266 : vector<64x100xf32> to vector<64x100xbf16>
    %c0_114 = arith.constant 0 : index
    %c0_115 = arith.constant 0 : index
    %c0_116 = arith.constant 0 : index
    %268 = vector.load %arg7[%c0_114, %c0_115, %c0_116] : memref<5x100x200xbf16, #tpu.memory_space<vmem>>, vector<1x100x200xbf16>
    %269 = vector.shape_cast %268 : vector<1x100x200xbf16> to vector<100x200xbf16>
    %cst_117 = arith.constant dense<0.000000e+00> : vector<64x200xf32>
    %270 = tpu.matmul %267, %269, %cst_117 {dimension_numbers = #tpu.dot_dimension_numbers<[1], [0], [0], [1], [0, 0, 1, 1], [], []>} : vector<64x100xbf16>, vector<100x200xbf16>, vector<64x200xf32> -> vector<64x200xf32>
    %c62_i32_118 = arith.constant 62 : i32
    %271 = tpu.dynamic_rotate %266 by %c62_i32_118 dim 0 : vector<64x100xf32>, i32 -> vector<64x100xf32>
    %272 = arith.truncf %271 : vector<64x100xf32> to vector<64x100xbf16>
    %c1_119 = arith.constant 1 : index
    %c0_120 = arith.constant 0 : index
    %c0_121 = arith.constant 0 : index
    %273 = vector.load %arg7[%c1_119, %c0_120, %c0_121] : memref<5x100x200xbf16, #tpu.memory_space<vmem>>, vector<1x100x200xbf16>
    %274 = vector.shape_cast %273 : vector<1x100x200xbf16> to vector<100x200xbf16>
    %cst_122 = arith.constant dense<0.000000e+00> : vector<64x200xf32>
    %275 = tpu.matmul %272, %274, %cst_122 {dimension_numbers = #tpu.dot_dimension_numbers<[1], [0], [0], [1], [0, 0, 1, 1], [], []>} : vector<64x100xbf16>, vector<100x200xbf16>, vector<64x200xf32> -> vector<64x200xf32>
    %276 = arith.addf %270, %275 : vector<64x200xf32>
    %c60_i32_123 = arith.constant 60 : i32
    %277 = tpu.dynamic_rotate %266 by %c60_i32_123 dim 0 : vector<64x100xf32>, i32 -> vector<64x100xf32>
    %278 = arith.truncf %277 : vector<64x100xf32> to vector<64x100xbf16>
    %c2_124 = arith.constant 2 : index
    %c0_125 = arith.constant 0 : index
    %c0_126 = arith.constant 0 : index
    %279 = vector.load %arg7[%c2_124, %c0_125, %c0_126] : memref<5x100x200xbf16, #tpu.memory_space<vmem>>, vector<1x100x200xbf16>
    %280 = vector.shape_cast %279 : vector<1x100x200xbf16> to vector<100x200xbf16>
    %cst_127 = arith.constant dense<0.000000e+00> : vector<64x200xf32>
    %281 = tpu.matmul %278, %280, %cst_127 {dimension_numbers = #tpu.dot_dimension_numbers<[1], [0], [0], [1], [0, 0, 1, 1], [], []>} : vector<64x100xbf16>, vector<100x200xbf16>, vector<64x200xf32> -> vector<64x200xf32>
    %282 = arith.addf %276, %281 : vector<64x200xf32>
    %c58_i32 = arith.constant 58 : i32
    %283 = tpu.dynamic_rotate %266 by %c58_i32 dim 0 : vector<64x100xf32>, i32 -> vector<64x100xf32>
    %284 = arith.truncf %283 : vector<64x100xf32> to vector<64x100xbf16>
    %c3_128 = arith.constant 3 : index
    %c0_129 = arith.constant 0 : index
    %c0_130 = arith.constant 0 : index
    %285 = vector.load %arg7[%c3_128, %c0_129, %c0_130] : memref<5x100x200xbf16, #tpu.memory_space<vmem>>, vector<1x100x200xbf16>
    %286 = vector.shape_cast %285 : vector<1x100x200xbf16> to vector<100x200xbf16>
    %cst_131 = arith.constant dense<0.000000e+00> : vector<64x200xf32>
    %287 = tpu.matmul %284, %286, %cst_131 {dimension_numbers = #tpu.dot_dimension_numbers<[1], [0], [0], [1], [0, 0, 1, 1], [], []>} : vector<64x100xbf16>, vector<100x200xbf16>, vector<64x200xf32> -> vector<64x200xf32>
    %288 = arith.addf %282, %287 : vector<64x200xf32>
    %c56_i32 = arith.constant 56 : i32
    %289 = tpu.dynamic_rotate %266 by %c56_i32 dim 0 : vector<64x100xf32>, i32 -> vector<64x100xf32>
    %290 = arith.truncf %289 : vector<64x100xf32> to vector<64x100xbf16>
    %c4_132 = arith.constant 4 : index
    %c0_133 = arith.constant 0 : index
    %c0_134 = arith.constant 0 : index
    %291 = vector.load %arg7[%c4_132, %c0_133, %c0_134] : memref<5x100x200xbf16, #tpu.memory_space<vmem>>, vector<1x100x200xbf16>
    %292 = vector.shape_cast %291 : vector<1x100x200xbf16> to vector<100x200xbf16>
    %cst_135 = arith.constant dense<0.000000e+00> : vector<64x200xf32>
    %293 = tpu.matmul %290, %292, %cst_135 {dimension_numbers = #tpu.dot_dimension_numbers<[1], [0], [0], [1], [0, 0, 1, 1], [], []>} : vector<64x100xbf16>, vector<100x200xbf16>, vector<64x200xf32> -> vector<64x200xf32>
    %294 = arith.addf %288, %293 : vector<64x200xf32>
    %c2_i32_136 = arith.constant 2 : i32
    %c0_i32_137 = arith.constant 0 : i32
    %295 = arith.cmpi eq, %c2_i32_136, %c0_i32_137 : i32
    %c1_i32_138 = arith.constant 1 : i32
    %296 = arith.select %295, %c1_i32_138, %c2_i32_136 : i32
    %297 = vector.broadcast %296 : i32 to vector<64x1xi32>
    %298 = arith.remsi %33, %297 : vector<64x1xi32>
    %c0_i32_139 = arith.constant 0 : i32
    %299 = vector.broadcast %c0_i32_139 : i32 to vector<64x1xi32>
    %300 = arith.cmpi ne, %298, %299 : vector<64x1xi32>
    %c0_i32_140 = arith.constant 0 : i32
    %301 = vector.broadcast %c0_i32_140 : i32 to vector<64x1xi32>
    %302 = arith.cmpi slt, %298, %301 : vector<64x1xi32>
    %c0_i32_141 = arith.constant 0 : i32
    %303 = arith.cmpi slt, %296, %c0_i32_141 : i32
    %304 = vector.broadcast %303 : i1 to vector<64x1xi1>
    %305 = vector.broadcast %304 : vector<64x1xi1> to vector<64x1xi1>
    %306 = arith.xori %302, %305 : vector<64x1xi1>
    %307 = arith.andi %306, %300 : vector<64x1xi1>
    %308 = vector.broadcast %296 : i32 to vector<64x1xi32>
    %309 = arith.addi %298, %308 : vector<64x1xi32>
    %310 = arith.select %307, %309, %298 : vector<64x1xi1>, vector<64x1xi32>
    %c0_i32_142 = arith.constant 0 : i32
    %311 = vector.broadcast %c0_i32_142 : i32 to vector<64x1xi32>
    %312 = arith.cmpi eq, %310, %311 : vector<64x1xi32>
    %c16_i32 = arith.constant 16 : i32
    %313 = vector.broadcast %c16_i32 : i32 to vector<64x1xi32>
    %314 = arith.cmpi slt, %33, %313 : vector<64x1xi32>
    %315 = arith.andi %312, %314 : vector<64x1xi1>
    %cst_143 = arith.constant 0.000000e+00 : f32
    %316 = vector.shape_cast %315 : vector<64x1xi1> to vector<64x1xi1>
    %317 = vector.broadcast %316 : vector<64x1xi1> to vector<64x200xi1>
    %318 = vector.broadcast %cst_143 : f32 to vector<64x200xf32>
    %319 = arith.select %317, %294, %318 : vector<64x200xi1>, vector<64x200xf32>
    %cst_144 = arith.constant dense<0.000000e+00> : vector<200xf32>
    %320 = vector.multi_reduction <add>, %319, %cst_144 [0] : vector<64x200xf32> to vector<200xf32>
    %321 = vector.shape_cast %320 : vector<200xf32> to vector<1x200xf32>
    %322 = arith.mulf %319, %319 : vector<64x200xf32>
    %cst_145 = arith.constant dense<0.000000e+00> : vector<200xf32>
    %323 = vector.multi_reduction <add>, %322, %cst_145 [0] : vector<64x200xf32> to vector<200xf32>
    %324 = vector.shape_cast %323 : vector<200xf32> to vector<1x200xf32>
    %cst_146 = arith.constant 6.250000e-02 : f32
    %325 = vector.broadcast %cst_146 : f32 to vector<1x200xf32>
    %326 = arith.mulf %321, %325 : vector<1x200xf32>
    %cst_147 = arith.constant 6.250000e-02 : f32
    %327 = vector.broadcast %cst_147 : f32 to vector<1x200xf32>
    %328 = arith.mulf %324, %327 : vector<1x200xf32>
    %329 = arith.mulf %326, %326 : vector<1x200xf32>
    %330 = arith.subf %328, %329 : vector<1x200xf32>
    %cst_148 = arith.constant 0.000000e+00 : f32
    %331 = vector.broadcast %cst_148 : f32 to vector<1x200xf32>
    %332 = arith.maximumf %330, %331 : vector<1x200xf32>
    %c0_149 = arith.constant 0 : index
    %c0_150 = arith.constant 0 : index
    %333 = vector.load %arg8[%c0_149, %c0_150] : memref<2x200xf32, #tpu.memory_space<vmem>>, vector<2x200xf32>
    %cst_151 = arith.constant 9.99999974E-6 : f32
    %334 = vector.broadcast %cst_151 : f32 to vector<1x200xf32>
    %335 = arith.addf %332, %334 : vector<1x200xf32>
    %336 = math.rsqrt %335 : vector<1x200xf32>
    %337 = vector.extract_strided_slice %333 {offsets = [0, 0], sizes = [1, 200], strides = [1, 1]} : vector<2x200xf32> to vector<1x200xf32>
    %338 = arith.mulf %336, %337 : vector<1x200xf32>
    %339 = vector.extract_strided_slice %333 {offsets = [1, 0], sizes = [1, 200], strides = [1, 1]} : vector<2x200xf32> to vector<1x200xf32>
    %340 = arith.mulf %326, %338 : vector<1x200xf32>
    %341 = arith.subf %339, %340 : vector<1x200xf32>
    %342 = vector.broadcast %338 : vector<1x200xf32> to vector<64x200xf32>
    %343 = arith.mulf %294, %342 : vector<64x200xf32>
    %344 = vector.broadcast %341 : vector<1x200xf32> to vector<64x200xf32>
    %345 = arith.addf %343, %344 : vector<64x200xf32>
    %cst_152 = arith.constant 0.000000e+00 : f32
    %346 = vector.broadcast %cst_152 : f32 to vector<64x200xf32>
    %347 = arith.cmpf ogt, %345, %346 : vector<64x200xf32>
    %cst_153 = arith.constant 0.000000e+00 : f32
    %348 = vector.broadcast %cst_153 : f32 to vector<64x200xf32>
    %349 = arith.minimumf %345, %348 : vector<64x200xf32>
    %350 = math.exp %349 : vector<64x200xf32>
    %cst_154 = arith.constant 1.000000e+00 : f32
    %351 = vector.broadcast %cst_154 : f32 to vector<64x200xf32>
    %352 = arith.subf %350, %351 : vector<64x200xf32>
    %353 = arith.select %347, %345, %352 : vector<64x200xi1>, vector<64x200xf32>
    %c62_i32_155 = arith.constant 62 : i32
    %354 = tpu.dynamic_rotate %353 by %c62_i32_155 dim 0 : vector<64x200xf32>, i32 -> vector<64x200xf32>
    %355 = arith.maximumf %353, %354 : vector<64x200xf32>
    %c0_156 = arith.constant 0 : index
    %c0_157 = arith.constant 0 : index
    %356 = vector.load %arg10[%c0_156, %c0_157] : memref<2x64xbf16, #tpu.memory_space<vmem>>, vector<2x64xbf16>
    %357 = arith.truncf %355 : vector<64x200xf32> to vector<64x200xbf16>
    %cst_158 = arith.constant dense<0.000000e+00> : vector<2x200xf32>
    %358 = tpu.matmul %356, %357, %cst_158 {dimension_numbers = #tpu.dot_dimension_numbers<[1], [0], [0], [1], [0, 0, 1, 1], [], []>} : vector<2x64xbf16>, vector<64x200xbf16>, vector<2x200xf32> -> vector<2x200xf32>
    %cst_159 = arith.constant 2.500000e-01 : f32
    %359 = vector.broadcast %cst_159 : f32 to vector<2x200xf32>
    %360 = arith.mulf %358, %359 : vector<2x200xf32>
    %361 = arith.truncf %360 : vector<2x200xf32> to vector<2x200xbf16>
    %c0_160 = arith.constant 0 : index
    %c0_161 = arith.constant 0 : index
    %362 = vector.load %arg11[%c0_160, %c0_161] : memref<200x2xbf16, #tpu.memory_space<vmem>>, vector<200x2xbf16>
    %cst_162 = arith.constant dense<0.000000e+00> : vector<2x2xf32>
    %363 = tpu.matmul %361, %362, %cst_162 {dimension_numbers = #tpu.dot_dimension_numbers<[1], [0], [0], [1], [0, 0, 1, 1], [], []>} : vector<2x200xbf16>, vector<200x2xbf16>, vector<2x2xf32> -> vector<2x2xf32>
    %c0_163 = arith.constant 0 : index
    %c0_164 = arith.constant 0 : index
    %364 = vector.load %arg12[%c0_163, %c0_164] : memref<1x2xf32, #tpu.memory_space<vmem>>, vector<1x2xf32>
    %365 = vector.broadcast %364 : vector<1x2xf32> to vector<2x2xf32>
    %366 = arith.addf %363, %365 : vector<2x2xf32>
    %cst_165 = arith.constant dense<0xFF800000> : vector<2xf32>
    %367 = vector.multi_reduction <maximumf>, %366, %cst_165 [1] : vector<2x2xf32> to vector<2xf32>
    %368 = vector.shape_cast %367 : vector<2xf32> to vector<2x1xf32>
    %369 = vector.broadcast %368 : vector<2x1xf32> to vector<2x2xf32>
    %370 = arith.subf %366, %369 : vector<2x2xf32>
    %371 = math.exp %370 : vector<2x2xf32>
    %cst_166 = arith.constant dense<0.000000e+00> : vector<2xf32>
    %372 = vector.multi_reduction <add>, %371, %cst_166 [1] : vector<2x2xf32> to vector<2xf32>
    %373 = vector.shape_cast %372 : vector<2xf32> to vector<2x1xf32>
    %374 = vector.broadcast %373 : vector<2x1xf32> to vector<2x2xf32>
    %375 = arith.divf %371, %374 : vector<2x2xf32>
    %c0_167 = arith.constant 0 : index
    %c0_168 = arith.constant 0 : index
    %376 = vector.load %arg13[%c0_167, %c0_168] : memref<2x2xf32, #tpu.memory_space<vmem>>, vector<2x2xf32>
    tpu.vector_store %arg13[%c0_167, %c0_168], %375 {strides = array<i32>} : memref<2x2xf32, #tpu.memory_space<vmem>>, vector<2x2xf32>,
    return
  }
}

</mosaic_0001>

<llo_original>
// kernel: tpu_custom_call.1
$region0: #{tpu_custom_call.1}
  #allocation0 [shape = 'u32[]', space=smem, size = 0x4, offset = 0x4, fixed_abs, tag = 'smem constant byte address 0x4 - core index']
  #allocation1 [shape = 'u32[72,128]{1,0:T(1,128)}', space=vmem, size = 0x9000, scoped, tag = 'internal scratch']
  %s0 = inlined_call_operand.vmem [shape: f32[256,4], index: 0, kind: input, shape index: {}]
  %s1 = inlined_call_operand.vmem [shape: bf16[5,4,25], index: 1, kind: input, shape index: {}]
  %s2 = inlined_call_operand.vmem [shape: f32[2,25], index: 2, kind: input, shape index: {}]
  %s3 = inlined_call_operand.vmem [shape: bf16[5,25,50], index: 3, kind: input, shape index: {}]
  %s4 = inlined_call_operand.vmem [shape: f32[2,50], index: 4, kind: input, shape index: {}]
  %s5 = inlined_call_operand.vmem [shape: bf16[5,50,100], index: 5, kind: input, shape index: {}]
  %s6 = inlined_call_operand.vmem [shape: f32[2,100], index: 6, kind: input, shape index: {}]
  %s7 = inlined_call_operand.vmem [shape: bf16[5,100,200], index: 7, kind: input, shape index: {}]
  %s8 = inlined_call_operand.vmem [shape: f32[2,200], index: 8, kind: input, shape index: {}]
  %s9 = inlined_call_operand.vmem [shape: bf16[64,256], index: 9, kind: input, shape index: {}]
  %s10 = inlined_call_operand.vmem [shape: bf16[2,64], index: 10, kind: input, shape index: {}]
  %s11 = inlined_call_operand.vmem [shape: bf16[200,2], index: 11, kind: input, shape index: {}]
  %s12 = inlined_call_operand.vmem [shape: f32[1,2], index: 12, kind: input, shape index: {}]
  %s13 = inlined_call_operand.hbm [shape: f32[2,2], index: 13, kind: output, shape index: {}]
  %s14 = sld [smem:[#allocation0]]
  $region62: #{tpu_custom_call.1} parent=0
    _
  %s16 = ssub.s32 1, %s14
  %s17 = scalar_select 0, %s16, %s14
  $region1: #{tpu_custom_call.1} parent=0
    #allocation2 [shape = 'u8[1024]{0}', space=vmem, size = 0x400, scoped, tag = 'output window, operand 0, single buffered']
    #allocation3 [shape = 's32[1]{0}', space=sflag, size = 0x4, scoped, tag = 'scoped memory for tpu_custom_call.1']
    %18 = vsyncpa [#allocation3], 0
    // Predicated region
    $region2: #{tpu_custom_call.1} parent=1 // pred_check
      _
    $region3: #{tpu_custom_call.1} parent=1 // pred_check_branch
      %20 = sbr.rel (0) target = $region5
    $region4: #{tpu_custom_call.1} parent=1 // pred_region
      _
    $region5: #{tpu_custom_call.1} parent=1 // pred_fallthru
      _
    // Predicated region
    $region6: #{tpu_custom_call.1} parent=1 // pred_check
      _
    $region7: #{tpu_custom_call.1} parent=1 // pred_check_branch
      %22 = sbr.rel (0) target = $region9
    $region8: #{tpu_custom_call.1} parent=1 // pred_region
      _
    $region9: #{tpu_custom_call.1} parent=1 // pred_fallthru
      _
    // Predicated region
    $region10: #{tpu_custom_call.1} parent=1 // pred_check
      _
    $region11: #{tpu_custom_call.1} parent=1 // pred_check_branch
      %24 = sbr.rel (0) target = $region13
    $region12: #{tpu_custom_call.1} parent=1 // pred_region
      _
    $region13: #{tpu_custom_call.1} parent=1 // pred_fallthru
      _
    // Predicated region
    $region14: #{tpu_custom_call.1} parent=1 // pred_check
      _
    $region15: #{tpu_custom_call.1} parent=1 // pred_check_branch
      %26 = sbr.rel (0) target = $region17
    $region16: #{tpu_custom_call.1} parent=1 // pred_region
      _
    $region17: #{tpu_custom_call.1} parent=1 // pred_fallthru
      _
    // Predicated region
    $region18: #{tpu_custom_call.1} parent=1 // pred_check
      _
    $region19: #{tpu_custom_call.1} parent=1 // pred_check_branch
      %28 = sbr.rel (0) target = $region21
    $region20: #{tpu_custom_call.1} parent=1 // pred_region
      _
    $region21: #{tpu_custom_call.1} parent=1 // pred_fallthru
      _
    // Predicated region
    $region22: #{tpu_custom_call.1} parent=1 // pred_check
      _
    $region23: #{tpu_custom_call.1} parent=1 // pred_check_branch
      %30 = sbr.rel (0) target = $region25
    $region24: #{tpu_custom_call.1} parent=1 // pred_region
      _
    $region25: #{tpu_custom_call.1} parent=1 // pred_fallthru
      _
    // Predicated region
    $region26: #{tpu_custom_call.1} parent=1 // pred_check
      _
    $region27: #{tpu_custom_call.1} parent=1 // pred_check_branch
      %32 = sbr.rel (0) target = $region29
    $region28: #{tpu_custom_call.1} parent=1 // pred_region
      _
    $region29: #{tpu_custom_call.1} parent=1 // pred_fallthru
      _
    // Predicated region
    $region30: #{tpu_custom_call.1} parent=1 // pred_check
      _
    $region31: #{tpu_custom_call.1} parent=1 // pred_check_branch
      %34 = sbr.rel (0) target = $region33
    $region32: #{tpu_custom_call.1} parent=1 // pred_region
      _
    $region33: #{tpu_custom_call.1} parent=1 // pred_fallthru
      _
    // Predicated region
    $region34: #{tpu_custom_call.1} parent=1 // pred_check
      _
    $region35: #{tpu_custom_call.1} parent=1 // pred_check_branch
      %36 = sbr.rel (0) target = $region37
    $region36: #{tpu_custom_call.1} parent=1 // pred_region
      _
    $region37: #{tpu_custom_call.1} parent=1 // pred_fallthru
      _
    // Predicated region
    $region38: #{tpu_custom_call.1} parent=1 // pred_check
      _
    $region39: #{tpu_custom_call.1} parent=1 // pred_check_branch
      %38 = sbr.rel (0) target = $region41
    $region40: #{tpu_custom_call.1} parent=1 // pred_region
      _
    $region41: #{tpu_custom_call.1} parent=1 // pred_fallthru
      _
    // Predicated region
    $region42: #{tpu_custom_call.1} parent=1 // pred_check
      _
    $region43: #{tpu_custom_call.1} parent=1 // pred_check_branch
      %40 = sbr.rel (0) target = $region45
    $region44: #{tpu_custom_call.1} parent=1 // pred_region
      _
    $region45: #{tpu_custom_call.1} parent=1 // pred_fallthru
      _
    // Predicated region
    $region46: #{tpu_custom_call.1} parent=1 // pred_check
      _
    $region47: #{tpu_custom_call.1} parent=1 // pred_check_branch
      %42 = sbr.rel (0) target = $region49
    $region48: #{tpu_custom_call.1} parent=1 // pred_region
      _
    $region49: #{tpu_custom_call.1} parent=1 // pred_fallthru
      _
    // Predicated region
    $region50: #{tpu_custom_call.1} parent=1 // pred_check
      _
    $region51: #{tpu_custom_call.1} parent=1 // pred_check_branch
      %44 = sbr.rel (0) target = $region53
    $region52: #{tpu_custom_call.1} parent=1 // pred_region
      _
    $region53: #{tpu_custom_call.1} parent=1 // pred_fallthru
      _
    %v46 = vlaneseq
    %v47 = vshrl.u32 %v46, 7
    %v48 = vadd.s32 %v47, 8
    %v49 = vadd.s32 %v47, 16
    %v50 = vadd.s32 %v47, 24
    %v51 = vadd.s32 %v47, 32
    %v52 = vadd.s32 %v47, 40
    %v53 = vadd.s32 %v47, 48
    %v54 = vadd.s32 %v47, 56
    %v55 = vadd.s32 %v47, 64
    %v56 = vadd.s32 %v47, 72
    %v57 = vadd.s32 %v47, 80
    %v58 = vadd.s32 %v47, 88
    %v59 = vadd.s32 %v47, 96
    %v60 = vadd.s32 %v47, 104
    %v61 = vadd.s32 %v47, 112
    %v62 = vadd.s32 %v47, 120
    %v63 = vadd.s32 %v47, 128
    %v64 = vadd.s32 %v47, 136
    %v65 = vadd.s32 %v47, 144
    %v66 = vadd.s32 %v47, 152
    %v67 = vadd.s32 %v47, 160
    %v68 = vadd.s32 %v47, 168
    %v69 = vadd.s32 %v47, 176
    %v70 = vadd.s32 %v47, 184
    %v71 = vadd.s32 %v47, 192
    %v72 = vadd.s32 %v47, 200
    %v73 = vadd.s32 %v47, 208
    %v74 = vadd.s32 %v47, 216
    %v75 = vadd.s32 %v47, 224
    %v76 = vadd.s32 %v47, 232
    %v77 = vadd.s32 %v47, 240
    %v78 = vadd.s32 %v47, 248
    %vm79 = vcmp.lt.s32.totalorder %v47, 0
    %v80 = vsub.s32 0, %v47
    %v81 = vsel %vm79, %v80, %v47
    %v82 = vshrl.u32 %v81, 7
    %v83 = vand.u32 %v81, 127
    %v84 = vsub.s32 0, %v83
    %v85 = vsel %vm79, %v84, %v83
    %vm86 = vcmp.lt.s32.totalorder %v48, 0
    %v87 = vsub.s32 0, %v48
    %v88 = vsel %vm86, %v87, %v48
    %v89 = vshrl.u32 %v88, 7
    %v90 = vand.u32 %v88, 127
    %v91 = vsub.s32 0, %v90
    %v92 = vsel %vm86, %v91, %v90
    %vm93 = vcmp.lt.s32.totalorder %v49, 0
    %v94 = vsub.s32 0, %v49
    %v95 = vsel %vm93, %v94, %v49
    %v96 = vshrl.u32 %v95, 7
    %v97 = vand.u32 %v95, 127
    %v98 = vsub.s32 0, %v97
    %v99 = vsel %vm93, %v98, %v97
    %vm100 = vcmp.lt.s32.totalorder %v50, 0
    %v101 = vsub.s32 0, %v50
    %v102 = vsel %vm100, %v101, %v50
    %v103 = vshrl.u32 %v102, 7
    %v104 = vand.u32 %v102, 127
    %v105 = vsub.s32 0, %v104
    %v106 = vsel %vm100, %v105, %v104
    %vm107 = vcmp.lt.s32.totalorder %v51, 0
    %v108 = vsub.s32 0, %v51
    %v109 = vsel %vm107, %v108, %v51
    %v110 = vshrl.u32 %v109, 7
    %v111 = vand.u32 %v109, 127
    %v112 = vsub.s32 0, %v111
    %v113 = vsel %vm107, %v112, %v111
    %vm114 = vcmp.lt.s32.totalorder %v52, 0
    %v115 = vsub.s32 0, %v52
    %v116 = vsel %vm114, %v115, %v52
    %v117 = vshrl.u32 %v116, 7
    %v118 = vand.u32 %v116, 127
    %v119 = vsub.s32 0, %v118
    %v120 = vsel %vm114, %v119, %v118
    %vm121 = vcmp.lt.s32.totalorder %v53, 0
    %v122 = vsub.s32 0, %v53
    %v123 = vsel %vm121, %v122, %v53
    %v124 = vshrl.u32 %v123, 7
    %v125 = vand.u32 %v123, 127
    %v126 = vsub.s32 0, %v125
    %v127 = vsel %vm121, %v126, %v125
    %vm128 = vcmp.lt.s32.totalorder %v54, 0
    %v129 = vsub.s32 0, %v54
    %v130 = vsel %vm128, %v129, %v54
    %v131 = vshrl.u32 %v130, 7
    %v132 = vand.u32 %v130, 127
    %v133 = vsub.s32 0, %v132
    %v134 = vsel %vm128, %v133, %v132
    %vm135 = vcmp.lt.s32.totalorder %v55, 0
    %v136 = vsub.s32 0, %v55
    %v137 = vsel %vm135, %v136, %v55
    %v138 = vshrl.u32 %v137, 7
    %v139 = vand.u32 %v137, 127
    %v140 = vsub.s32 0, %v139
    %v141 = vsel %vm135, %v140, %v139
    %vm142 = vcmp.lt.s32.totalorder %v56, 0
    %v143 = vsub.s32 0, %v56
    %v144 = vsel %vm142, %v143, %v56
    %v145 = vshrl.u32 %v144, 7
    %v146 = vand.u32 %v144, 127
    %v147 = vsub.s32 0, %v146
    %v148 = vsel %vm142, %v147, %v146
    %vm149 = vcmp.lt.s32.totalorder %v57, 0
    %v150 = vsub.s32 0, %v57
    %v151 = vsel %vm149, %v150, %v57
    %v152 = vshrl.u32 %v151, 7
    %v153 = vand.u32 %v151, 127
    %v154 = vsub.s32 0, %v153
    %v155 = vsel %vm149, %v154, %v153
    %vm156 = vcmp.lt.s32.totalorder %v58, 0
    %v157 = vsub.s32 0, %v58
    %v158 = vsel %vm156, %v157, %v58
    %v159 = vshrl.u32 %v158, 7
    %v160 = vand.u32 %v158, 127
    %v161 = vsub.s32 0, %v160
    %v162 = vsel %vm156, %v161, %v160
    %vm163 = vcmp.lt.s32.totalorder %v59, 0
    %v164 = vsub.s32 0, %v59
    %v165 = vsel %vm163, %v164, %v59
    %v166 = vshrl.u32 %v165, 7
    %v167 = vand.u32 %v165, 127
    %v168 = vsub.s32 0, %v167
    %v169 = vsel %vm163, %v168, %v167
    %vm170 = vcmp.lt.s32.totalorder %v60, 0
    %v171 = vsub.s32 0, %v60
    %v172 = vsel %vm170, %v171, %v60
    %v173 = vshrl.u32 %v172, 7
    %v174 = vand.u32 %v172, 127
    %v175 = vsub.s32 0, %v174
    %v176 = vsel %vm170, %v175, %v174
    %vm177 = vcmp.lt.s32.totalorder %v61, 0
    %v178 = vsub.s32 0, %v61
    %v179 = vsel %vm177, %v178, %v61
    %v180 = vshrl.u32 %v179, 7
    %v181 = vand.u32 %v179, 127
    %v182 = vsub.s32 0, %v181
    %v183 = vsel %vm177, %v182, %v181
    %vm184 = vcmp.lt.s32.totalorder %v62, 0
    %v185 = vsub.s32 0, %v62
    %v186 = vsel %vm184, %v185, %v62
    %v187 = vshrl.u32 %v186, 7
    %v188 = vand.u32 %v186, 127
    %v189 = vsub.s32 0, %v188
    %v190 = vsel %vm184, %v189, %v188
    %vm191 = vcmp.lt.s32.totalorder %v63, 0
    %v192 = vsub.s32 0, %v63
    %v193 = vsel %vm191, %v192, %v63
    %v194 = vshrl.u32 %v193, 7
    %v195 = vand.u32 %v193, 127
    %v196 = vsub.s32 0, %v195
    %v197 = vsel %vm191, %v196, %v195
    %vm198 = vcmp.lt.s32.totalorder %v64, 0
    %v199 = vsub.s32 0, %v64
    %v200 = vsel %vm198, %v199, %v64
    %v201 = vshrl.u32 %v200, 7
    %v202 = vand.u32 %v200, 127
    %v203 = vsub.s32 0, %v202
    %v204 = vsel %vm198, %v203, %v202
    %vm205 = vcmp.lt.s32.totalorder %v65, 0
    %v206 = vsub.s32 0, %v65
    %v207 = vsel %vm205, %v206, %v65
    %v208 = vshrl.u32 %v207, 7
    %v209 = vand.u32 %v207, 127
    %v210 = vsub.s32 0, %v209
    %v211 = vsel %vm205, %v210, %v209
    %vm212 = vcmp.lt.s32.totalorder %v66, 0
    %v213 = vsub.s32 0, %v66
    %v214 = vsel %vm212, %v213, %v66
    %v215 = vshrl.u32 %v214, 7
    %v216 = vand.u32 %v214, 127
    %v217 = vsub.s32 0, %v216
    %v218 = vsel %vm212, %v217, %v216
    %vm219 = vcmp.lt.s32.totalorder %v67, 0
    %v220 = vsub.s32 0, %v67
    %v221 = vsel %vm219, %v220, %v67
    %v222 = vshrl.u32 %v221, 7
    %v223 = vand.u32 %v221, 127
    %v224 = vsub.s32 0, %v223
    %v225 = vsel %vm219, %v224, %v223
    %vm226 = vcmp.lt.s32.totalorder %v68, 0
    %v227 = vsub.s32 0, %v68
    %v228 = vsel %vm226, %v227, %v68
    %v229 = vshrl.u32 %v228, 7
    %v230 = vand.u32 %v228, 127
    %v231 = vsub.s32 0, %v230
    %v232 = vsel %vm226, %v231, %v230
    %vm233 = vcmp.lt.s32.totalorder %v69, 0
    %v234 = vsub.s32 0, %v69
    %v235 = vsel %vm233, %v234, %v69
    %v236 = vshrl.u32 %v235, 7
    %v237 = vand.u32 %v235, 127
    %v238 = vsub.s32 0, %v237
    %v239 = vsel %vm233, %v238, %v237
    %vm240 = vcmp.lt.s32.totalorder %v70, 0
    %v241 = vsub.s32 0, %v70
    %v242 = vsel %vm240, %v241, %v70
    %v243 = vshrl.u32 %v242, 7
    %v244 = vand.u32 %v242, 127
    %v245 = vsub.s32 0, %v244
    %v246 = vsel %vm240, %v245, %v244
    %vm247 = vcmp.lt.s32.totalorder %v71, 0
    %v248 = vsub.s32 0, %v71
    %v249 = vsel %vm247, %v248, %v71
    %v250 = vshrl.u32 %v249, 7
    %v251 = vand.u32 %v249, 127
    %v252 = vsub.s32 0, %v251
    %v253 = vsel %vm247, %v252, %v251
    %vm254 = vcmp.lt.s32.totalorder %v72, 0
    %v255 = vsub.s32 0, %v72
    %v256 = vsel %vm254, %v255, %v72
    %v257 = vshrl.u32 %v256, 7
    %v258 = vand.u32 %v256, 127
    %v259 = vsub.s32 0, %v258
    %v260 = vsel %vm254, %v259, %v258
    %vm261 = vcmp.lt.s32.totalorder %v73, 0
    %v262 = vsub.s32 0, %v73
    %v263 = vsel %vm261, %v262, %v73
    %v264 = vshrl.u32 %v263, 7
    %v265 = vand.u32 %v263, 127
    %v266 = vsub.s32 0, %v265
    %v267 = vsel %vm261, %v266, %v265
    %vm268 = vcmp.lt.s32.totalorder %v74, 0
    %v269 = vsub.s32 0, %v74
    %v270 = vsel %vm268, %v269, %v74
    %v271 = vshrl.u32 %v270, 7
    %v272 = vand.u32 %v270, 127
    %v273 = vsub.s32 0, %v272
    %v274 = vsel %vm268, %v273, %v272
    %vm275 = vcmp.lt.s32.totalorder %v75, 0
    %v276 = vsub.s32 0, %v75
    %v277 = vsel %vm275, %v276, %v75
    %v278 = vshrl.u32 %v277, 7
    %v279 = vand.u32 %v277, 127
    %v280 = vsub.s32 0, %v279
    %v281 = vsel %vm275, %v280, %v279
    %vm282 = vcmp.lt.s32.totalorder %v76, 0
    %v283 = vsub.s32 0, %v76
    %v284 = vsel %vm282, %v283, %v76
    %v285 = vshrl.u32 %v284, 7
    %v286 = vand.u32 %v284, 127
    %v287 = vsub.s32 0, %v286
    %v288 = vsel %vm282, %v287, %v286
    %vm289 = vcmp.lt.s32.totalorder %v77, 0
    %v290 = vsub.s32 0, %v77
    %v291 = vsel %vm289, %v290, %v77
    %v292 = vshrl.u32 %v291, 7
    %v293 = vand.u32 %v291, 127
    %v294 = vsub.s32 0, %v293
    %v295 = vsel %vm289, %v294, %v293
    %vm296 = vcmp.lt.s32.totalorder %v78, 0
    %v297 = vsub.s32 0, %v78
    %v298 = vsel %vm296, %v297, %v78
    %v299 = vshrl.u32 %v298, 7
    %v300 = vand.u32 %v298, 127
    %v301 = vsub.s32 0, %v300
    %v302 = vsel %vm296, %v301, %v300
    %vm303 = vcmp.ne.s32.totalorder %v85, 0
    %vm304 = vcmp.ne.s32.totalorder %v92, 0
    %vm305 = vcmp.ne.s32.totalorder %v99, 0
    %vm306 = vcmp.ne.s32.totalorder %v106, 0
    %vm307 = vcmp.ne.s32.totalorder %v113, 0
    %vm308 = vcmp.ne.s32.totalorder %v120, 0
    %vm309 = vcmp.ne.s32.totalorder %v127, 0
    %vm310 = vcmp.ne.s32.totalorder %v134, 0
    %vm311 = vcmp.ne.s32.totalorder %v141, 0
    %vm312 = vcmp.ne.s32.totalorder %v148, 0
    %vm313 = vcmp.ne.s32.totalorder %v155, 0
    %vm314 = vcmp.ne.s32.totalorder %v162, 0
    %vm315 = vcmp.ne.s32.totalorder %v169, 0
    %vm316 = vcmp.ne.s32.totalorder %v176, 0
    %vm317 = vcmp.ne.s32.totalorder %v183, 0
    %vm318 = vcmp.ne.s32.totalorder %v190, 0
    %vm319 = vcmp.ne.s32.totalorder %v197, 0
    %vm320 = vcmp.ne.s32.totalorder %v204, 0
    %vm321 = vcmp.ne.s32.totalorder %v211, 0
    %vm322 = vcmp.ne.s32.totalorder %v218, 0
    %vm323 = vcmp.ne.s32.totalorder %v225, 0
    %vm324 = vcmp.ne.s32.totalorder %v232, 0
    %vm325 = vcmp.ne.s32.totalorder %v239, 0
    %vm326 = vcmp.ne.s32.totalorder %v246, 0
    %vm327 = vcmp.ne.s32.totalorder %v253, 0
    %vm328 = vcmp.ne.s32.totalorder %v260, 0
    %vm329 = vcmp.ne.s32.totalorder %v267, 0
    %vm330 = vcmp.ne.s32.totalorder %v274, 0
    %vm331 = vcmp.ne.s32.totalorder %v281, 0
    %vm332 = vcmp.ne.s32.totalorder %v288, 0
    %vm333 = vcmp.ne.s32.totalorder %v295, 0
    %vm334 = vcmp.ne.s32.totalorder %v302, 0
    %vm335 = vcmp.lt.s32.totalorder %v85, 0
    %vm336 = vcmp.lt.s32.totalorder %v92, 0
    %vm337 = vcmp.lt.s32.totalorder %v99, 0
    %vm338 = vcmp.lt.s32.totalorder %v106, 0
    %vm339 = vcmp.lt.s32.totalorder %v113, 0
    %vm340 = vcmp.lt.s32.totalorder %v120, 0
    %vm341 = vcmp.lt.s32.totalorder %v127, 0
    %vm342 = vcmp.lt.s32.totalorder %v134, 0
    %vm343 = vcmp.lt.s32.totalorder %v141, 0
    %vm344 = vcmp.lt.s32.totalorder %v148, 0
    %vm345 = vcmp.lt.s32.totalorder %v155, 0
    %vm346 = vcmp.lt.s32.totalorder %v162, 0
    %vm347 = vcmp.lt.s32.totalorder %v169, 0
    %vm348 = vcmp.lt.s32.totalorder %v176, 0
    %vm349 = vcmp.lt.s32.totalorder %v183, 0
    %vm350 = vcmp.lt.s32.totalorder %v190, 0
    %vm351 = vcmp.lt.s32.totalorder %v197, 0
    %vm352 = vcmp.lt.s32.totalorder %v204, 0
    %vm353 = vcmp.lt.s32.totalorder %v211, 0
    %vm354 = vcmp.lt.s32.totalorder %v218, 0
    %vm355 = vcmp.lt.s32.totalorder %v225, 0
    %vm356 = vcmp.lt.s32.totalorder %v232, 0
    %vm357 = vcmp.lt.s32.totalorder %v239, 0
    %vm358 = vcmp.lt.s32.totalorder %v246, 0
    %vm359 = vcmp.lt.s32.totalorder %v253, 0
    %vm360 = vcmp.lt.s32.totalorder %v260, 0
    %vm361 = vcmp.lt.s32.totalorder %v267, 0
    %vm362 = vcmp.lt.s32.totalorder %v274, 0
    %vm363 = vcmp.lt.s32.totalorder %v281, 0
    %vm364 = vcmp.lt.s32.totalorder %v288, 0
    %vm365 = vcmp.lt.s32.totalorder %v295, 0
    %vm366 = vcmp.lt.s32.totalorder %v302, 0
    %vm367 = vmand %vm335, %vm303
    %vm368 = vmand %vm336, %vm304
    %vm369 = vmand %vm337, %vm305
    %vm370 = vmand %vm338, %vm306
    %vm371 = vmand %vm339, %vm307
    %vm372 = vmand %vm340, %vm308
    %vm373 = vmand %vm341, %vm309
    %vm374 = vmand %vm342, %vm310
    %vm375 = vmand %vm343, %vm311
    %vm376 = vmand %vm344, %vm312
    %vm377 = vmand %vm345, %vm313
    %vm378 = vmand %vm346, %vm314
    %vm379 = vmand %vm347, %vm315
    %vm380 = vmand %vm348, %vm316
    %vm381 = vmand %vm349, %vm317
    %vm382 = vmand %vm350, %vm318
    %vm383 = vmand %vm351, %vm319
    %vm384 = vmand %vm352, %vm320
    %vm385 = vmand %vm353, %vm321
    %vm386 = vmand %vm354, %vm322
    %vm387 = vmand %vm355, %vm323
    %vm388 = vmand %vm356, %vm324
    %vm389 = vmand %vm357, %vm325
    %vm390 = vmand %vm358, %vm326
    %vm391 = vmand %vm359, %vm327
    %vm392 = vmand %vm360, %vm328
    %vm393 = vmand %vm361, %vm329
    %vm394 = vmand %vm362, %vm330
    %vm395 = vmand %vm363, %vm331
    %vm396 = vmand %vm364, %vm332
    %vm397 = vmand %vm365, %vm333
    %vm398 = vmand %vm366, %vm334
    %v399 = vadd.s32 %v85, 128
    %v400 = vadd.s32 %v92, 128
    %v401 = vadd.s32 %v99, 128
    %v402 = vadd.s32 %v106, 128
    %v403 = vadd.s32 %v113, 128
    %v404 = vadd.s32 %v120, 128
    %v405 = vadd.s32 %v127, 128
    %v406 = vadd.s32 %v134, 128
    %v407 = vadd.s32 %v141, 128
    %v408 = vadd.s32 %v148, 128
    %v409 = vadd.s32 %v155, 128
    %v410 = vadd.s32 %v162, 128
    %v411 = vadd.s32 %v169, 128
    %v412 = vadd.s32 %v176, 128
    %v413 = vadd.s32 %v183, 128
    %v414 = vadd.s32 %v190, 128
    %v415 = vadd.s32 %v197, 128
    %v416 = vadd.s32 %v204, 128
    %v417 = vadd.s32 %v211, 128
    %v418 = vadd.s32 %v218, 128
    %v419 = vadd.s32 %v225, 128
    %v420 = vadd.s32 %v232, 128
    %v421 = vadd.s32 %v239, 128
    %v422 = vadd.s32 %v246, 128
    %v423 = vadd.s32 %v253, 128
    %v424 = vadd.s32 %v260, 128
    %v425 = vadd.s32 %v267, 128
    %v426 = vadd.s32 %v274, 128
    %v427 = vadd.s32 %v281, 128
    %v428 = vadd.s32 %v288, 128
    %v429 = vadd.s32 %v295, 128
    %v430 = vadd.s32 %v302, 128
    %v431 = vsel %vm367, %v399, %v85
    %v432 = vsel %vm368, %v400, %v92
    %v433 = vsel %vm369, %v401, %v99
    %v434 = vsel %vm370, %v402, %v106
    %v435 = vsel %vm371, %v403, %v113
    %v436 = vsel %vm372, %v404, %v120
    %v437 = vsel %vm373, %v405, %v127
    %v438 = vsel %vm374, %v406, %v134
    %v439 = vsel %vm375, %v407, %v141
    %v440 = vsel %vm376, %v408, %v148
    %v441 = vsel %vm377, %v409, %v155
    %v442 = vsel %vm378, %v410, %v162
    %v443 = vsel %vm379, %v411, %v169
    %v444 = vsel %vm380, %v412, %v176
    %v445 = vsel %vm381, %v413, %v183
    %v446 = vsel %vm382, %v414, %v190
    %v447 = vsel %vm383, %v415, %v197
    %v448 = vsel %vm384, %v416, %v204
    %v449 = vsel %vm385, %v417, %v211
    %v450 = vsel %vm386, %v418, %v218
    %v451 = vsel %vm387, %v419, %v225
    %v452 = vsel %vm388, %v420, %v232
    %v453 = vsel %vm389, %v421, %v239
    %v454 = vsel %vm390, %v422, %v246
    %v455 = vsel %vm391, %v423, %v253
    %v456 = vsel %vm392, %v424, %v260
    %v457 = vsel %vm393, %v425, %v267
    %v458 = vsel %vm394, %v426, %v274
    %v459 = vsel %vm395, %v427, %v281
    %v460 = vsel %vm396, %v428, %v288
    %v461 = vsel %vm397, %v429, %v295
    %v462 = vsel %vm398, %v430, %v302
    %vm463 = vcmp.lt.s32.totalorder %v47, 0
    %v464 = vsub.s32 0, %v47
    %v465 = vsel %vm463, %v464, %v47
    %v466 = vshrl.u32 %v465, 5
    %v467 = vand.u32 %v465, 31
    %v468 = vsub.s32 0, %v467
    %v469 = vsel %vm463, %v468, %v467
    %vm470 = vcmp.lt.s32.totalorder %v48, 0
    %v471 = vsub.s32 0, %v48
    %v472 = vsel %vm470, %v471, %v48
    %v473 = vshrl.u32 %v472, 5
    %v474 = vand.u32 %v472, 31
    %v475 = vsub.s32 0, %v474
    %v476 = vsel %vm470, %v475, %v474
    %vm477 = vcmp.lt.s32.totalorder %v49, 0
    %v478 = vsub.s32 0, %v49
    %v479 = vsel %vm477, %v478, %v49
    %v480 = vshrl.u32 %v479, 5
    %v481 = vand.u32 %v479, 31
    %v482 = vsub.s32 0, %v481
    %v483 = vsel %vm477, %v482, %v481
    %vm484 = vcmp.lt.s32.totalorder %v50, 0
    %v485 = vsub.s32 0, %v50
    %v486 = vsel %vm484, %v485, %v50
    %v487 = vshrl.u32 %v486, 5
    %v488 = vand.u32 %v486, 31
    %v489 = vsub.s32 0, %v488
    %v490 = vsel %vm484, %v489, %v488
    %vm491 = vcmp.lt.s32.totalorder %v51, 0
    %v492 = vsub.s32 0, %v51
    %v493 = vsel %vm491, %v492, %v51
    %v494 = vshrl.u32 %v493, 5
    %v495 = vand.u32 %v493, 31
    %v496 = vsub.s32 0, %v495
    %v497 = vsel %vm491, %v496, %v495
    %vm498 = vcmp.lt.s32.totalorder %v52, 0
    %v499 = vsub.s32 0, %v52
    %v500 = vsel %vm498, %v499, %v52
    %v501 = vshrl.u32 %v500, 5
    %v502 = vand.u32 %v500, 31
    %v503 = vsub.s32 0, %v502
    %v504 = vsel %vm498, %v503, %v502
    %vm505 = vcmp.lt.s32.totalorder %v53, 0
    %v506 = vsub.s32 0, %v53
    %v507 = vsel %vm505, %v506, %v53
    %v508 = vshrl.u32 %v507, 5
    %v509 = vand.u32 %v507, 31
    %v510 = vsub.s32 0, %v509
    %v511 = vsel %vm505, %v510, %v509
    %vm512 = vcmp.lt.s32.totalorder %v54, 0
    %v513 = vsub.s32 0, %v54
    %v514 = vsel %vm512, %v513, %v54
    %v515 = vshrl.u32 %v514, 5
    %v516 = vand.u32 %v514, 31
    %v517 = vsub.s32 0, %v516
    %v518 = vsel %vm512, %v517, %v516
    %vm519 = vcmp.ne.s32.totalorder %v469, 0
    %vm520 = vcmp.ne.s32.totalorder %v476, 0
    %vm521 = vcmp.ne.s32.totalorder %v483, 0
    %vm522 = vcmp.ne.s32.totalorder %v490, 0
    %vm523 = vcmp.ne.s32.totalorder %v497, 0
    %vm524 = vcmp.ne.s32.totalorder %v504, 0
    %vm525 = vcmp.ne.s32.totalorder %v511, 0
    %vm526 = vcmp.ne.s32.totalorder %v518, 0
    %vm527 = vcmp.lt.s32.totalorder %v469, 0
    %vm528 = vcmp.lt.s32.totalorder %v476, 0
    %vm529 = vcmp.lt.s32.totalorder %v483, 0
    %vm530 = vcmp.lt.s32.totalorder %v490, 0
    %vm531 = vcmp.lt.s32.totalorder %v497, 0
    %vm532 = vcmp.lt.s32.totalorder %v504, 0
    %vm533 = vcmp.lt.s32.totalorder %v511, 0
    %vm534 = vcmp.lt.s32.totalorder %v518, 0
    %vm535 = vmand %vm527, %vm519
    %vm536 = vmand %vm528, %vm520
    %vm537 = vmand %vm529, %vm521
    %vm538 = vmand %vm530, %vm522
    %vm539 = vmand %vm531, %vm523
    %vm540 = vmand %vm532, %vm524
    %vm541 = vmand %vm533, %vm525
    %vm542 = vmand %vm534, %vm526
    %v543 = vadd.s32 %v469, 32
    %v544 = vadd.s32 %v476, 32
    %v545 = vadd.s32 %v483, 32
    %v546 = vadd.s32 %v490, 32
    %v547 = vadd.s32 %v497, 32
    %v548 = vadd.s32 %v504, 32
    %v549 = vadd.s32 %v511, 32
    %v550 = vadd.s32 %v518, 32
    %v551 = vsel %vm535, %v543, %v469
    %v552 = vsel %vm536, %v544, %v476
    %v553 = vsel %vm537, %v545, %v483
    %v554 = vsel %vm538, %v546, %v490
    %v555 = vsel %vm539, %v547, %v497
    %v556 = vsel %vm540, %v548, %v504
    %v557 = vsel %vm541, %v549, %v511
    %v558 = vsel %vm542, %v550, %v518
    %v559 = vld [vmem:[%s0] sm:$0xff]
    %v560 = vld [vmem:[%s0 + $0x8] sm:$0xff]
    %v561 = vld [vmem:[%s0 + $0x10] sm:$0xff]
    %v562 = vld [vmem:[%s0 + $0x18] sm:$0xff]
    %v563 = vld [vmem:[%s0 + $0x20] sm:$0xff]
    %v564 = vld [vmem:[%s0 + $0x28] sm:$0xff]
    %v565 = vld [vmem:[%s0 + $0x30] sm:$0xff]
    %v566 = vld [vmem:[%s0 + $0x38] sm:$0xff]
    %v567 = vld [vmem:[%s0 + $0x40] sm:$0xff]
    %v568 = vld [vmem:[%s0 + $0x48] sm:$0xff]
    %v569 = vld [vmem:[%s0 + $0x50] sm:$0xff]
    %v570 = vld [vmem:[%s0 + $0x58] sm:$0xff]
    %v571 = vld [vmem:[%s0 + $0x60] sm:$0xff]
    %v572 = vld [vmem:[%s0 + $0x68] sm:$0xff]
    %v573 = vld [vmem:[%s0 + $0x70] sm:$0xff]
    %v574 = vld [vmem:[%s0 + $0x78] sm:$0xff]
    %v575 = vld [vmem:[%s0 + $0x80] sm:$0xff]
    %v576 = vld [vmem:[%s0 + $0x88] sm:$0xff]
    %v577 = vld [vmem:[%s0 + $0x90] sm:$0xff]
    %v578 = vld [vmem:[%s0 + $0x98] sm:$0xff]
    %v579 = vld [vmem:[%s0 + $0xa0] sm:$0xff]
    %v580 = vld [vmem:[%s0 + $0xa8] sm:$0xff]
    %v581 = vld [vmem:[%s0 + $0xb0] sm:$0xff]
    %v582 = vld [vmem:[%s0 + $0xb8] sm:$0xff]
    %v583 = vld [vmem:[%s0 + $0xc0] sm:$0xff]
    %v584 = vld [vmem:[%s0 + $0xc8] sm:$0xff]
    %v585 = vld [vmem:[%s0 + $0xd0] sm:$0xff]
    %v586 = vld [vmem:[%s0 + $0xd8] sm:$0xff]
    %v587 = vld [vmem:[%s0 + $0xe0] sm:$0xff]
    %v588 = vld [vmem:[%s0 + $0xe8] sm:$0xff]
    %v589 = vld [vmem:[%s0 + $0xf0] sm:$0xff]
    %v590 = vld [vmem:[%s0 + $0xf8] sm:$0xff]
    %v591 = vpack.c.bf16 %v560, %v559
    %v592 = vpack.c.bf16 %v562, %v561
    %v593 = vpack.c.bf16 %v564, %v563
    %v594 = vpack.c.bf16 %v566, %v565
    %v595 = vpack.c.bf16 %v568, %v567
    %v596 = vpack.c.bf16 %v570, %v569
    %v597 = vpack.c.bf16 %v572, %v571
    %v598 = vpack.c.bf16 %v574, %v573
    %v599 = vpack.c.bf16 %v576, %v575
    %v600 = vpack.c.bf16 %v578, %v577
    %v601 = vpack.c.bf16 %v580, %v579
    %v602 = vpack.c.bf16 %v582, %v581
    %v603 = vpack.c.bf16 %v584, %v583
    %v604 = vpack.c.bf16 %v586, %v585
    %v605 = vpack.c.bf16 %v588, %v587
    %v606 = vpack.c.bf16 %v590, %v589
    %v607 = vld [vmem:[%s1] sm:$0x3]
    %v608 = vrot.slane %v559, 1
    %v609 = vrot.slane %v560, 1
    %v610 = vrot.slane %v561, 1
    %v611 = vrot.slane %v562, 1
    %v612 = vrot.slane %v563, 1
    %v613 = vrot.slane %v564, 1
    %v614 = vrot.slane %v565, 1
    %v615 = vrot.slane %v566, 1
    %v616 = vrot.slane %v567, 1
    %v617 = vrot.slane %v568, 1
    %v618 = vrot.slane %v569, 1
    %v619 = vrot.slane %v570, 1
    %v620 = vrot.slane %v571, 1
    %v621 = vrot.slane %v572, 1
    %v622 = vrot.slane %v573, 1
    %v623 = vrot.slane %v574, 1
    %v624 = vrot.slane %v575, 1
    %v625 = vrot.slane %v576, 1
    %v626 = vrot.slane %v577, 1
    %v627 = vrot.slane %v578, 1
    %v628 = vrot.slane %v579, 1
    %v629 = vrot.slane %v580, 1
    %v630 = vrot.slane %v581, 1
    %v631 = vrot.slane %v582, 1
    %v632 = vrot.slane %v583, 1
    %v633 = vrot.slane %v584, 1
    %v634 = vrot.slane %v585, 1
    %v635 = vrot.slane %v586, 1
    %v636 = vrot.slane %v587, 1
    %v637 = vrot.slane %v588, 1
    %v638 = vrot.slane %v589, 1
    %v639 = vrot.slane %v590, 1
    %vm640 = vcmp.lt.s32.totalorder %v47, 7
    %v641 = vsel %vm640, %v638, %v639
    %v642 = vsel %vm640, %v637, %v638
    %v643 = vsel %vm640, %v636, %v637
    %v644 = vsel %vm640, %v635, %v636
    %v645 = vsel %vm640, %v634, %v635
    %v646 = vsel %vm640, %v633, %v634
    %v647 = vsel %vm640, %v632, %v633
    %v648 = vsel %vm640, %v631, %v632
    %v649 = vsel %vm640, %v630, %v631
    %v650 = vsel %vm640, %v629, %v630
    %v651 = vsel %vm640, %v628, %v629
    %v652 = vsel %vm640, %v627, %v628
    %v653 = vsel %vm640, %v626, %v627
    %v654 = vsel %vm640, %v625, %v626
    %v655 = vsel %vm640, %v624, %v625
    %v656 = vsel %vm640, %v623, %v624
    %v657 = vsel %vm640, %v622, %v623
    %v658 = vsel %vm640, %v621, %v622
    %v659 = vsel %vm640, %v620, %v621
    %v660 = vsel %vm640, %v619, %v620
    %v661 = vsel %vm640, %v618, %v619
    %v662 = vsel %vm640, %v617, %v618
    %v663 = vsel %vm640, %v616, %v617
    %v664 = vsel %vm640, %v615, %v616
    %v665 = vsel %vm640, %v614, %v615
    %v666 = vsel %vm640, %v613, %v614
    %v667 = vsel %vm640, %v612, %v613
    %v668 = vsel %vm640, %v611, %v612
    %v669 = vsel %vm640, %v610, %v611
    %v670 = vsel %vm640, %v609, %v610
    %v671 = vsel %vm640, %v608, %v609
    %v672 = vsel %vm640, %v639, %v608
    %v673 = vpack.c.bf16 %v670, %v671
    %v674 = vpack.c.bf16 %v668, %v669
    %v675 = vpack.c.bf16 %v666, %v667
    %v676 = vpack.c.bf16 %v664, %v665
    %v677 = vpack.c.bf16 %v662, %v663
    %v678 = vpack.c.bf16 %v660, %v661
    %v679 = vpack.c.bf16 %v658, %v659
    %v680 = vpack.c.bf16 %v656, %v657
    %v681 = vpack.c.bf16 %v654, %v655
    %v682 = vpack.c.bf16 %v652, %v653
    %v683 = vpack.c.bf16 %v650, %v651
    %v684 = vpack.c.bf16 %v648, %v649
    %v685 = vpack.c.bf16 %v646, %v647
    %v686 = vpack.c.bf16 %v644, %v645
    %v687 = vpack.c.bf16 %v642, %v643
    %v688 = vpack.c.bf16 %v672, %v641
    %s689 = scalar_lea.vmem %s1, 2
    %v690 = vld [vmem:[%s689] sm:$0x3]
    %vm691 = vcmask 31744
    %v693 = vsel %vm691, %v673, 0
    %v696 = vsel %vm691, %v674, 0
    %v699 = vsel %vm691, %v675, 0
    %v702 = vsel %vm691, %v676, 0
    %v705 = vsel %vm691, %v677, 0
    %v708 = vsel %vm691, %v678, 0
    %v711 = vsel %vm691, %v679, 0
    %v714 = vsel %vm691, %v680, 0
    %v717 = vsel %vm691, %v681, 0
    %v720 = vsel %vm691, %v682, 0
    %v723 = vsel %vm691, %v683, 0
    %v726 = vsel %vm691, %v684, 0
    %v729 = vsel %vm691, %v685, 0
    %v732 = vsel %vm691, %v686, 0
    %v735 = vsel %vm691, %v687, 0
    %v738 = vsel %vm691, %v688, 0
    %vm740 = vcmask 1041408
    %v742 = vsel %vm740, %v690, 0
    %744 = vmatpush.bf16.msra.mxu0 0
    %745 = vmatpush.bf16.msra.mxu0 0
    %746 = vmatpush.bf16.msra.mxu0 0
    %747 = vmatpush.bf16.msra.mxu0 0
    %748 = vmatpush.bf16.msra.mxu0 0
    %749 = vmatpush.bf16.msra.mxu0 0
    %750 = vmatpush.bf16.msra.mxu0 0
    %751 = vmatpush.bf16.msra.mxu0 %v742
    %752 = vmatmul.bf16.gmra.mxu0 %v693
    %v753 = vpop.f32.mrf.mxu0
    %v754 = vadd.f32 0.0, %v753
    %v755 = vpop.f32.mrf.mxu0
    %v756 = vadd.f32 0.0, %v755
    %757 = vmatmul.bf16.gmra.mxu0 %v696
    %v758 = vpop.f32.mrf.mxu0
    %v759 = vadd.f32 0.0, %v758
    %v760 = vpop.f32.mrf.mxu0
    %v761 = vadd.f32 0.0, %v760
    %762 = vmatmul.bf16.gmra.mxu0 %v699
    %v763 = vpop.f32.mrf.mxu0
    %v764 = vadd.f32 0.0, %v763
    %v765 = vpop.f32.mrf.mxu0
    %v766 = vadd.f32 0.0, %v765
    %767 = vmatmul.bf16.gmra.mxu0 %v702
    %v768 = vpop.f32.mrf.mxu0
    %v769 = vadd.f32 0.0, %v768
    %v770 = vpop.f32.mrf.mxu0
    %v771 = vadd.f32 0.0, %v770
    %772 = vmatmul.bf16.gmra.mxu0 %v705
    %v773 = vpop.f32.mrf.mxu0
    %v774 = vadd.f32 0.0, %v773
    %v775 = vpop.f32.mrf.mxu0
    %v776 = vadd.f32 0.0, %v775
    %777 = vmatmul.bf16.gmra.mxu0 %v708
    %v778 = vpop.f32.mrf.mxu0
    %v779 = vadd.f32 0.0, %v778
    %v780 = vpop.f32.mrf.mxu0
    %v781 = vadd.f32 0.0, %v780
    %782 = vmatmul.bf16.gmra.mxu0 %v711
    %v783 = vpop.f32.mrf.mxu0
    %v784 = vadd.f32 0.0, %v783
    %v785 = vpop.f32.mrf.mxu0
    %v786 = vadd.f32 0.0, %v785
    %787 = vmatmul.bf16.gmra.mxu0 %v714
    %v788 = vpop.f32.mrf.mxu0
    %v789 = vadd.f32 0.0, %v788
    %v790 = vpop.f32.mrf.mxu0
    %v791 = vadd.f32 0.0, %v790
    %792 = vmatmul.bf16.gmra.mxu0 %v717
    %v793 = vpop.f32.mrf.mxu0
    %v794 = vadd.f32 0.0, %v793
    %v795 = vpop.f32.mrf.mxu0
    %v796 = vadd.f32 0.0, %v795
    %797 = vmatmul.bf16.gmra.mxu0 %v720
    %v798 = vpop.f32.mrf.mxu0
    %v799 = vadd.f32 0.0, %v798
    %v800 = vpop.f32.mrf.mxu0
    %v801 = vadd.f32 0.0, %v800
    %802 = vmatmul.bf16.gmra.mxu0 %v723
    %v803 = vpop.f32.mrf.mxu0
    %v804 = vadd.f32 0.0, %v803
    %v805 = vpop.f32.mrf.mxu0
    %v806 = vadd.f32 0.0, %v805
    %807 = vmatmul.bf16.gmra.mxu0 %v726
    %v808 = vpop.f32.mrf.mxu0
    %v809 = vadd.f32 0.0, %v808
    %v810 = vpop.f32.mrf.mxu0
    %v811 = vadd.f32 0.0, %v810
    %812 = vmatmul.bf16.gmra.mxu0 %v729
    %v813 = vpop.f32.mrf.mxu0
    %v814 = vadd.f32 0.0, %v813
    %v815 = vpop.f32.mrf.mxu0
    %v816 = vadd.f32 0.0, %v815
    %817 = vmatmul.bf16.gmra.mxu0 %v732
    %v818 = vpop.f32.mrf.mxu0
    %v819 = vadd.f32 0.0, %v818
    %v820 = vpop.f32.mrf.mxu0
    %v821 = vadd.f32 0.0, %v820
    %822 = vmatmul.bf16.gmra.mxu0 %v735
    %v823 = vpop.f32.mrf.mxu0
    %v824 = vadd.f32 0.0, %v823
    %v825 = vpop.f32.mrf.mxu0
    %v826 = vadd.f32 0.0, %v825
    %827 = vmatmul.bf16.gmra.mxu0 %v738
    %v828 = vpop.f32.mrf.mxu0
    %v829 = vadd.f32 0.0, %v828
    %v830 = vpop.f32.mrf.mxu0
    %v831 = vadd.f32 0.0, %v830
    %832 = vdwg.mxu0
    %v834 = vsel %vm691, %v591, 0
    %v837 = vsel %vm691, %v592, 0
    %v840 = vsel %vm691, %v593, 0
    %v843 = vsel %vm691, %v594, 0
    %v846 = vsel %vm691, %v595, 0
    %v849 = vsel %vm691, %v596, 0
    %v852 = vsel %vm691, %v597, 0
    %v855 = vsel %vm691, %v598, 0
    %v858 = vsel %vm691, %v599, 0
    %v861 = vsel %vm691, %v600, 0
    %v864 = vsel %vm691, %v601, 0
    %v867 = vsel %vm691, %v602, 0
    %v870 = vsel %vm691, %v603, 0
    %v873 = vsel %vm691, %v604, 0
    %v876 = vsel %vm691, %v605, 0
    %v879 = vsel %vm691, %v606, 0
    %v882 = vsel %vm740, %v607, 0
    %884 = vmatpush.bf16.msra.mxu0 0
    %885 = vmatpush.bf16.msra.mxu0 0
    %886 = vmatpush.bf16.msra.mxu0 0
    %887 = vmatpush.bf16.msra.mxu0 0
    %888 = vmatpush.bf16.msra.mxu0 0
    %889 = vmatpush.bf16.msra.mxu0 0
    %890 = vmatpush.bf16.msra.mxu0 0
    %891 = vmatpush.bf16.msra.mxu0 %v882
    %892 = vmatmul.bf16.gmra.mxu0 %v834
    %v893 = vpop.f32.mrf.mxu0
    %v894 = vadd.f32 %v754, %v893
    %v895 = vpop.f32.mrf.mxu0
    %v896 = vadd.f32 %v756, %v895
    %897 = vmatmul.bf16.gmra.mxu0 %v837
    %v898 = vpop.f32.mrf.mxu0
    %v899 = vadd.f32 %v759, %v898
    %v900 = vpop.f32.mrf.mxu0
    %v901 = vadd.f32 %v761, %v900
    %902 = vmatmul.bf16.gmra.mxu0 %v840
    %v903 = vpop.f32.mrf.mxu0
    %v904 = vadd.f32 %v764, %v903
    %v905 = vpop.f32.mrf.mxu0
    %v906 = vadd.f32 %v766, %v905
    %907 = vmatmul.bf16.gmra.mxu0 %v843
    %v908 = vpop.f32.mrf.mxu0
    %v909 = vadd.f32 %v769, %v908
    %v910 = vpop.f32.mrf.mxu0
    %v911 = vadd.f32 %v771, %v910
    %912 = vmatmul.bf16.gmra.mxu0 %v846
    %v913 = vpop.f32.mrf.mxu0
    %v914 = vadd.f32 %v774, %v913
    %v915 = vpop.f32.mrf.mxu0
    %v916 = vadd.f32 %v776, %v915
    %917 = vmatmul.bf16.gmra.mxu0 %v849
    %v918 = vpop.f32.mrf.mxu0
    %v919 = vadd.f32 %v779, %v918
    %v920 = vpop.f32.mrf.mxu0
    %v921 = vadd.f32 %v781, %v920
    %922 = vmatmul.bf16.gmra.mxu0 %v852
    %v923 = vpop.f32.mrf.mxu0
    %v924 = vadd.f32 %v784, %v923
    %v925 = vpop.f32.mrf.mxu0
    %v926 = vadd.f32 %v786, %v925
    %927 = vmatmul.bf16.gmra.mxu0 %v855
    %v928 = vpop.f32.mrf.mxu0
    %v929 = vadd.f32 %v789, %v928
    %v930 = vpop.f32.mrf.mxu0
    %v931 = vadd.f32 %v791, %v930
    %932 = vmatmul.bf16.gmra.mxu0 %v858
    %v933 = vpop.f32.mrf.mxu0
    %v934 = vadd.f32 %v794, %v933
    %v935 = vpop.f32.mrf.mxu0
    %v936 = vadd.f32 %v796, %v935
    %937 = vmatmul.bf16.gmra.mxu0 %v861
    %v938 = vpop.f32.mrf.mxu0
    %v939 = vadd.f32 %v799, %v938
    %v940 = vpop.f32.mrf.mxu0
    %v941 = vadd.f32 %v801, %v940
    %942 = vmatmul.bf16.gmra.mxu0 %v864
    %v943 = vpop.f32.mrf.mxu0
    %v944 = vadd.f32 %v804, %v943
    %v945 = vpop.f32.mrf.mxu0
    %v946 = vadd.f32 %v806, %v945
    %947 = vmatmul.bf16.gmra.mxu0 %v867
    %v948 = vpop.f32.mrf.mxu0
    %v949 = vadd.f32 %v809, %v948
    %v950 = vpop.f32.mrf.mxu0
    %v951 = vadd.f32 %v811, %v950
    %952 = vmatmul.bf16.gmra.mxu0 %v870
    %v953 = vpop.f32.mrf.mxu0
    %v954 = vadd.f32 %v814, %v953
    %v955 = vpop.f32.mrf.mxu0
    %v956 = vadd.f32 %v816, %v955
    %957 = vmatmul.bf16.gmra.mxu0 %v873
    %v958 = vpop.f32.mrf.mxu0
    %v959 = vadd.f32 %v819, %v958
    %v960 = vpop.f32.mrf.mxu0
    %v961 = vadd.f32 %v821, %v960
    %962 = vmatmul.bf16.gmra.mxu0 %v876
    %v963 = vpop.f32.mrf.mxu0
    %v964 = vadd.f32 %v824, %v963
    %v965 = vpop.f32.mrf.mxu0
    %v966 = vadd.f32 %v826, %v965
    %967 = vmatmul.bf16.gmra.mxu0 %v879
    %v968 = vpop.f32.mrf.mxu0
    %v969 = vadd.f32 %v829, %v968
    %v970 = vpop.f32.mrf.mxu0
    %v971 = vadd.f32 %v831, %v970
    %972 = vdwg.mxu0
    %v973 = vrot.slane %v559, 2
    %v974 = vrot.slane %v560, 2
    %v975 = vrot.slane %v561, 2
    %v976 = vrot.slane %v562, 2
    %v977 = vrot.slane %v563, 2
    %v978 = vrot.slane %v564, 2
    %v979 = vrot.slane %v565, 2
    %v980 = vrot.slane %v566, 2
    %v981 = vrot.slane %v567, 2
    %v982 = vrot.slane %v568, 2
    %v983 = vrot.slane %v569, 2
    %v984 = vrot.slane %v570, 2
    %v985 = vrot.slane %v571, 2
    %v986 = vrot.slane %v572, 2
    %v987 = vrot.slane %v573, 2
    %v988 = vrot.slane %v574, 2
    %v989 = vrot.slane %v575, 2
    %v990 = vrot.slane %v576, 2
    %v991 = vrot.slane %v577, 2
    %v992 = vrot.slane %v578, 2
    %v993 = vrot.slane %v579, 2
    %v994 = vrot.slane %v580, 2
    %v995 = vrot.slane %v581, 2
    %v996 = vrot.slane %v582, 2
    %v997 = vrot.slane %v583, 2
    %v998 = vrot.slane %v584, 2
    %v999 = vrot.slane %v585, 2
    %v1000 = vrot.slane %v586, 2
    %v1001 = vrot.slane %v587, 2
    %v1002 = vrot.slane %v588, 2
    %v1003 = vrot.slane %v589, 2
    %v1004 = vrot.slane %v590, 2
    %vm1005 = vcmp.lt.s32.totalorder %v47, 6
    %v1006 = vsel %vm1005, %v1003, %v1004
    %v1007 = vsel %vm1005, %v1002, %v1003
    %v1008 = vsel %vm1005, %v1001, %v1002
    %v1009 = vsel %vm1005, %v1000, %v1001
    %v1010 = vsel %vm1005, %v999, %v1000
    %v1011 = vsel %vm1005, %v998, %v999
    %v1012 = vsel %vm1005, %v997, %v998
    %v1013 = vsel %vm1005, %v996, %v997
    %v1014 = vsel %vm1005, %v995, %v996
    %v1015 = vsel %vm1005, %v994, %v995
    %v1016 = vsel %vm1005, %v993, %v994
    %v1017 = vsel %vm1005, %v992, %v993
    %v1018 = vsel %vm1005, %v991, %v992
    %v1019 = vsel %vm1005, %v990, %v991
    %v1020 = vsel %vm1005, %v989, %v990
    %v1021 = vsel %vm1005, %v988, %v989
    %v1022 = vsel %vm1005, %v987, %v988
    %v1023 = vsel %vm1005, %v986, %v987
    %v1024 = vsel %vm1005, %v985, %v986
    %v1025 = vsel %vm1005, %v984, %v985
    %v1026 = vsel %vm1005, %v983, %v984
    %v1027 = vsel %vm1005, %v982, %v983
    %v1028 = vsel %vm1005, %v981, %v982
    %v1029 = vsel %vm1005, %v980, %v981
    %v1030 = vsel %vm1005, %v979, %v980
    %v1031 = vsel %vm1005, %v978, %v979
    %v1032 = vsel %vm1005, %v977, %v978
    %v1033 = vsel %vm1005, %v976, %v977
    %v1034 = vsel %vm1005, %v975, %v976
    %v1035 = vsel %vm1005, %v974, %v975
    %v1036 = vsel %vm1005, %v973, %v974
    %v1037 = vsel %vm1005, %v1004, %v973
    %v1038 = vpack.c.bf16 %v1035, %v1036
    %v1039 = vpack.c.bf16 %v1033, %v1034
    %v1040 = vpack.c.bf16 %v1031, %v1032
    %v1041 = vpack.c.bf16 %v1029, %v1030
    %v1042 = vpack.c.bf16 %v1027, %v1028
    %v1043 = vpack.c.bf16 %v1025, %v1026
    %v1044 = vpack.c.bf16 %v1023, %v1024
    %v1045 = vpack.c.bf16 %v1021, %v1022
    %v1046 = vpack.c.bf16 %v1019, %v1020
    %v1047 = vpack.c.bf16 %v1017, %v1018
    %v1048 = vpack.c.bf16 %v1015, %v1016
    %v1049 = vpack.c.bf16 %v1013, %v1014
    %v1050 = vpack.c.bf16 %v1011, %v1012
    %v1051 = vpack.c.bf16 %v1009, %v1010
    %v1052 = vpack.c.bf16 %v1007, %v1008
    %v1053 = vpack.c.bf16 %v1037, %v1006
    %s1054 = scalar_lea.vmem %s1, 4
    %v1055 = vld [vmem:[%s1054] sm:$0x3]
    %v1057 = vsel %vm691, %v1038, 0
    %v1060 = vsel %vm691, %v1039, 0
    %v1063 = vsel %vm691, %v1040, 0
    %v1066 = vsel %vm691, %v1041, 0
    %v1069 = vsel %vm691, %v1042, 0
    %v1072 = vsel %vm691, %v1043, 0
    %v1075 = vsel %vm691, %v1044, 0
    %v1078 = vsel %vm691, %v1045, 0
    %v1081 = vsel %vm691, %v1046, 0
    %v1084 = vsel %vm691, %v1047, 0
    %v1087 = vsel %vm691, %v1048, 0
    %v1090 = vsel %vm691, %v1049, 0
    %v1093 = vsel %vm691, %v1050, 0
    %v1096 = vsel %vm691, %v1051, 0
    %v1099 = vsel %vm691, %v1052, 0
    %v1102 = vsel %vm691, %v1053, 0
    %v1105 = vsel %vm740, %v1055, 0
    %1107 = vmatpush.bf16.msra.mxu0 0
    %1108 = vmatpush.bf16.msra.mxu0 0
    %1109 = vmatpush.bf16.msra.mxu0 0
    %1110 = vmatpush.bf16.msra.mxu0 0
    %1111 = vmatpush.bf16.msra.mxu0 0
    %1112 = vmatpush.bf16.msra.mxu0 0
    %1113 = vmatpush.bf16.msra.mxu0 0
    %1114 = vmatpush.bf16.msra.mxu0 %v1105
    %1115 = vmatmul.bf16.gmra.mxu0 %v1057
    %v1116 = vpop.f32.mrf.mxu0
    %v1117 = vadd.f32 0.0, %v1116
    %v1118 = vpop.f32.mrf.mxu0
    %v1119 = vadd.f32 0.0, %v1118
    %1120 = vmatmul.bf16.gmra.mxu0 %v1060
    %v1121 = vpop.f32.mrf.mxu0
    %v1122 = vadd.f32 0.0, %v1121
    %v1123 = vpop.f32.mrf.mxu0
    %v1124 = vadd.f32 0.0, %v1123
    %1125 = vmatmul.bf16.gmra.mxu0 %v1063
    %v1126 = vpop.f32.mrf.mxu0
    %v1127 = vadd.f32 0.0, %v1126
    %v1128 = vpop.f32.mrf.mxu0
    %v1129 = vadd.f32 0.0, %v1128
    %1130 = vmatmul.bf16.gmra.mxu0 %v1066
    %v1131 = vpop.f32.mrf.mxu0
    %v1132 = vadd.f32 0.0, %v1131
    %v1133 = vpop.f32.mrf.mxu0
    %v1134 = vadd.f32 0.0, %v1133
    %1135 = vmatmul.bf16.gmra.mxu0 %v1069
    %v1136 = vpop.f32.mrf.mxu0
    %v1137 = vadd.f32 0.0, %v1136
    %v1138 = vpop.f32.mrf.mxu0
    %v1139 = vadd.f32 0.0, %v1138
    %1140 = vmatmul.bf16.gmra.mxu0 %v1072
    %v1141 = vpop.f32.mrf.mxu0
    %v1142 = vadd.f32 0.0, %v1141
    %v1143 = vpop.f32.mrf.mxu0
    %v1144 = vadd.f32 0.0, %v1143
    %1145 = vmatmul.bf16.gmra.mxu0 %v1075
    %v1146 = vpop.f32.mrf.mxu0
    %v1147 = vadd.f32 0.0, %v1146
    %v1148 = vpop.f32.mrf.mxu0
    %v1149 = vadd.f32 0.0, %v1148
    %1150 = vmatmul.bf16.gmra.mxu0 %v1078
    %v1151 = vpop.f32.mrf.mxu0
    %v1152 = vadd.f32 0.0, %v1151
    %v1153 = vpop.f32.mrf.mxu0
    %v1154 = vadd.f32 0.0, %v1153
    %1155 = vmatmul.bf16.gmra.mxu0 %v1081
    %v1156 = vpop.f32.mrf.mxu0
    %v1157 = vadd.f32 0.0, %v1156
    %v1158 = vpop.f32.mrf.mxu0
    %v1159 = vadd.f32 0.0, %v1158
    %1160 = vmatmul.bf16.gmra.mxu0 %v1084
    %v1161 = vpop.f32.mrf.mxu0
    %v1162 = vadd.f32 0.0, %v1161
    %v1163 = vpop.f32.mrf.mxu0
    %v1164 = vadd.f32 0.0, %v1163
    %1165 = vmatmul.bf16.gmra.mxu0 %v1087
    %v1166 = vpop.f32.mrf.mxu0
    %v1167 = vadd.f32 0.0, %v1166
    %v1168 = vpop.f32.mrf.mxu0
    %v1169 = vadd.f32 0.0, %v1168
    %1170 = vmatmul.bf16.gmra.mxu0 %v1090
    %v1171 = vpop.f32.mrf.mxu0
    %v1172 = vadd.f32 0.0, %v1171
    %v1173 = vpop.f32.mrf.mxu0
    %v1174 = vadd.f32 0.0, %v1173
    %1175 = vmatmul.bf16.gmra.mxu0 %v1093
    %v1176 = vpop.f32.mrf.mxu0
    %v1177 = vadd.f32 0.0, %v1176
    %v1178 = vpop.f32.mrf.mxu0
    %v1179 = vadd.f32 0.0, %v1178
    %1180 = vmatmul.bf16.gmra.mxu0 %v1096
    %v1181 = vpop.f32.mrf.mxu0
    %v1182 = vadd.f32 0.0, %v1181
    %v1183 = vpop.f32.mrf.mxu0
    %v1184 = vadd.f32 0.0, %v1183
    %1185 = vmatmul.bf16.gmra.mxu0 %v1099
    %v1186 = vpop.f32.mrf.mxu0
    %v1187 = vadd.f32 0.0, %v1186
    %v1188 = vpop.f32.mrf.mxu0
    %v1189 = vadd.f32 0.0, %v1188
    %1190 = vmatmul.bf16.gmra.mxu0 %v1102
    %v1191 = vpop.f32.mrf.mxu0
    %v1192 = vadd.f32 0.0, %v1191
    %v1193 = vpop.f32.mrf.mxu0
    %v1194 = vadd.f32 0.0, %v1193
    %1195 = vdwg.mxu0
    %v1196 = vadd.f32 %v894, %v1117
    %v1197 = vadd.f32 %v896, %v1119
    %v1198 = vadd.f32 %v899, %v1122
    %v1199 = vadd.f32 %v901, %v1124
    %v1200 = vadd.f32 %v904, %v1127
    %v1201 = vadd.f32 %v906, %v1129
    %v1202 = vadd.f32 %v909, %v1132
    %v1203 = vadd.f32 %v911, %v1134
    %v1204 = vadd.f32 %v914, %v1137
    %v1205 = vadd.f32 %v916, %v1139
    %v1206 = vadd.f32 %v919, %v1142
    %v1207 = vadd.f32 %v921, %v1144
    %v1208 = vadd.f32 %v924, %v1147
    %v1209 = vadd.f32 %v926, %v1149
    %v1210 = vadd.f32 %v929, %v1152
    %v1211 = vadd.f32 %v931, %v1154
    %v1212 = vadd.f32 %v934, %v1157
    %v1213 = vadd.f32 %v936, %v1159
    %v1214 = vadd.f32 %v939, %v1162
    %v1215 = vadd.f32 %v941, %v1164
    %v1216 = vadd.f32 %v944, %v1167
    %v1217 = vadd.f32 %v946, %v1169
    %v1218 = vadd.f32 %v949, %v1172
    %v1219 = vadd.f32 %v951, %v1174
    %v1220 = vadd.f32 %v954, %v1177
    %v1221 = vadd.f32 %v956, %v1179
    %v1222 = vadd.f32 %v959, %v1182
    %v1223 = vadd.f32 %v961, %v1184
    %v1224 = vadd.f32 %v964, %v1187
    %v1225 = vadd.f32 %v966, %v1189
    %v1226 = vadd.f32 %v969, %v1192
    %v1227 = vadd.f32 %v971, %v1194
    %v1228 = vrot.slane %v559, 3
    %v1229 = vrot.slane %v560, 3
    %v1230 = vrot.slane %v561, 3
    %v1231 = vrot.slane %v562, 3
    %v1232 = vrot.slane %v563, 3
    %v1233 = vrot.slane %v564, 3
    %v1234 = vrot.slane %v565, 3
    %v1235 = vrot.slane %v566, 3
    %v1236 = vrot.slane %v567, 3
    %v1237 = vrot.slane %v568, 3
    %v1238 = vrot.slane %v569, 3
    %v1239 = vrot.slane %v570, 3
    %v1240 = vrot.slane %v571, 3
    %v1241 = vrot.slane %v572, 3
    %v1242 = vrot.slane %v573, 3
    %v1243 = vrot.slane %v574, 3
    %v1244 = vrot.slane %v575, 3
    %v1245 = vrot.slane %v576, 3
    %v1246 = vrot.slane %v577, 3
    %v1247 = vrot.slane %v578, 3
    %v1248 = vrot.slane %v579, 3
    %v1249 = vrot.slane %v580, 3
    %v1250 = vrot.slane %v581, 3
    %v1251 = vrot.slane %v582, 3
    %v1252 = vrot.slane %v583, 3
    %v1253 = vrot.slane %v584, 3
    %v1254 = vrot.slane %v585, 3
    %v1255 = vrot.slane %v586, 3
    %v1256 = vrot.slane %v587, 3
    %v1257 = vrot.slane %v588, 3
    %v1258 = vrot.slane %v589, 3
    %v1259 = vrot.slane %v590, 3
    %vm1260 = vcmp.lt.s32.totalorder %v47, 5
    %v1261 = vsel %vm1260, %v1258, %v1259
    %v1262 = vsel %vm1260, %v1257, %v1258
    %v1263 = vsel %vm1260, %v1256, %v1257
    %v1264 = vsel %vm1260, %v1255, %v1256
    %v1265 = vsel %vm1260, %v1254, %v1255
    %v1266 = vsel %vm1260, %v1253, %v1254
    %v1267 = vsel %vm1260, %v1252, %v1253
    %v1268 = vsel %vm1260, %v1251, %v1252
    %v1269 = vsel %vm1260, %v1250, %v1251
    %v1270 = vsel %vm1260, %v1249, %v1250
    %v1271 = vsel %vm1260, %v1248, %v1249
    %v1272 = vsel %vm1260, %v1247, %v1248
    %v1273 = vsel %vm1260, %v1246, %v1247
    %v1274 = vsel %vm1260, %v1245, %v1246
    %v1275 = vsel %vm1260, %v1244, %v1245
    %v1276 = vsel %vm1260, %v1243, %v1244
    %v1277 = vsel %vm1260, %v1242, %v1243
    %v1278 = vsel %vm1260, %v1241, %v1242
    %v1279 = vsel %vm1260, %v1240, %v1241
    %v1280 = vsel %vm1260, %v1239, %v1240
    %v1281 = vsel %vm1260, %v1238, %v1239
    %v1282 = vsel %vm1260, %v1237, %v1238
    %v1283 = vsel %vm1260, %v1236, %v1237
    %v1284 = vsel %vm1260, %v1235, %v1236
    %v1285 = vsel %vm1260, %v1234, %v1235
    %v1286 = vsel %vm1260, %v1233, %v1234
    %v1287 = vsel %vm1260, %v1232, %v1233
    %v1288 = vsel %vm1260, %v1231, %v1232
    %v1289 = vsel %vm1260, %v1230, %v1231
    %v1290 = vsel %vm1260, %v1229, %v1230
    %v1291 = vsel %vm1260, %v1228, %v1229
    %v1292 = vsel %vm1260, %v1259, %v1228
    %v1293 = vpack.c.bf16 %v1290, %v1291
    %v1294 = vpack.c.bf16 %v1288, %v1289
    %v1295 = vpack.c.bf16 %v1286, %v1287
    %v1296 = vpack.c.bf16 %v1284, %v1285
    %v1297 = vpack.c.bf16 %v1282, %v1283
    %v1298 = vpack.c.bf16 %v1280, %v1281
    %v1299 = vpack.c.bf16 %v1278, %v1279
    %v1300 = vpack.c.bf16 %v1276, %v1277
    %v1301 = vpack.c.bf16 %v1274, %v1275
    %v1302 = vpack.c.bf16 %v1272, %v1273
    %v1303 = vpack.c.bf16 %v1270, %v1271
    %v1304 = vpack.c.bf16 %v1268, %v1269
    %v1305 = vpack.c.bf16 %v1266, %v1267
    %v1306 = vpack.c.bf16 %v1264, %v1265
    %v1307 = vpack.c.bf16 %v1262, %v1263
    %v1308 = vpack.c.bf16 %v1292, %v1261
    %s1309 = scalar_lea.vmem %s1, 6
    %v1310 = vld [vmem:[%s1309] sm:$0x3]
    %v1312 = vsel %vm691, %v1293, 0
    %v1315 = vsel %vm691, %v1294, 0
    %v1318 = vsel %vm691, %v1295, 0
    %v1321 = vsel %vm691, %v1296, 0
    %v1324 = vsel %vm691, %v1297, 0
    %v1327 = vsel %vm691, %v1298, 0
    %v1330 = vsel %vm691, %v1299, 0
    %v1333 = vsel %vm691, %v1300, 0
    %v1336 = vsel %vm691, %v1301, 0
    %v1339 = vsel %vm691, %v1302, 0
    %v1342 = vsel %vm691, %v1303, 0
    %v1345 = vsel %vm691, %v1304, 0
    %v1348 = vsel %vm691, %v1305, 0
    %v1351 = vsel %vm691, %v1306, 0
    %v1354 = vsel %vm691, %v1307, 0
    %v1357 = vsel %vm691, %v1308, 0
    %v1360 = vsel %vm740, %v1310, 0
    %1362 = vmatpush.bf16.msra.mxu0 0
    %1363 = vmatpush.bf16.msra.mxu0 0
    %1364 = vmatpush.bf16.msra.mxu0 0
    %1365 = vmatpush.bf16.msra.mxu0 0
    %1366 = vmatpush.bf16.msra.mxu0 0
    %1367 = vmatpush.bf16.msra.mxu0 0
    %1368 = vmatpush.bf16.msra.mxu0 0
    %1369 = vmatpush.bf16.msra.mxu0 %v1360
    %1370 = vmatmul.bf16.gmra.mxu0 %v1312
    %v1371 = vpop.f32.mrf.mxu0
    %v1372 = vadd.f32 0.0, %v1371
    %v1373 = vpop.f32.mrf.mxu0
    %v1374 = vadd.f32 0.0, %v1373
    %1375 = vmatmul.bf16.gmra.mxu0 %v1315
    %v1376 = vpop.f32.mrf.mxu0
    %v1377 = vadd.f32 0.0, %v1376
    %v1378 = vpop.f32.mrf.mxu0
    %v1379 = vadd.f32 0.0, %v1378
    %1380 = vmatmul.bf16.gmra.mxu0 %v1318
    %v1381 = vpop.f32.mrf.mxu0
    %v1382 = vadd.f32 0.0, %v1381
    %v1383 = vpop.f32.mrf.mxu0
    %v1384 = vadd.f32 0.0, %v1383
    %1385 = vmatmul.bf16.gmra.mxu0 %v1321
    %v1386 = vpop.f32.mrf.mxu0
    %v1387 = vadd.f32 0.0, %v1386
    %v1388 = vpop.f32.mrf.mxu0
    %v1389 = vadd.f32 0.0, %v1388
    %1390 = vmatmul.bf16.gmra.mxu0 %v1324
    %v1391 = vpop.f32.mrf.mxu0
    %v1392 = vadd.f32 0.0, %v1391
    %v1393 = vpop.f32.mrf.mxu0
    %v1394 = vadd.f32 0.0, %v1393
    %1395 = vmatmul.bf16.gmra.mxu0 %v1327
    %v1396 = vpop.f32.mrf.mxu0
    %v1397 = vadd.f32 0.0, %v1396
    %v1398 = vpop.f32.mrf.mxu0
    %v1399 = vadd.f32 0.0, %v1398
    %1400 = vmatmul.bf16.gmra.mxu0 %v1330
    %v1401 = vpop.f32.mrf.mxu0
    %v1402 = vadd.f32 0.0, %v1401
    %v1403 = vpop.f32.mrf.mxu0
    %v1404 = vadd.f32 0.0, %v1403
    %1405 = vmatmul.bf16.gmra.mxu0 %v1333
    %v1406 = vpop.f32.mrf.mxu0
    %v1407 = vadd.f32 0.0, %v1406
    %v1408 = vpop.f32.mrf.mxu0
    %v1409 = vadd.f32 0.0, %v1408
    %1410 = vmatmul.bf16.gmra.mxu0 %v1336
    %v1411 = vpop.f32.mrf.mxu0
    %v1412 = vadd.f32 0.0, %v1411
    %v1413 = vpop.f32.mrf.mxu0
    %v1414 = vadd.f32 0.0, %v1413
    %1415 = vmatmul.bf16.gmra.mxu0 %v1339
    %v1416 = vpop.f32.mrf.mxu0
    %v1417 = vadd.f32 0.0, %v1416
    %v1418 = vpop.f32.mrf.mxu0
    %v1419 = vadd.f32 0.0, %v1418
    %1420 = vmatmul.bf16.gmra.mxu0 %v1342
    %v1421 = vpop.f32.mrf.mxu0
    %v1422 = vadd.f32 0.0, %v1421
    %v1423 = vpop.f32.mrf.mxu0
    %v1424 = vadd.f32 0.0, %v1423
    %1425 = vmatmul.bf16.gmra.mxu0 %v1345
    %v1426 = vpop.f32.mrf.mxu0
    %v1427 = vadd.f32 0.0, %v1426
    %v1428 = vpop.f32.mrf.mxu0
    %v1429 = vadd.f32 0.0, %v1428
    %1430 = vmatmul.bf16.gmra.mxu0 %v1348
    %v1431 = vpop.f32.mrf.mxu0
    %v1432 = vadd.f32 0.0, %v1431
    %v1433 = vpop.f32.mrf.mxu0
    %v1434 = vadd.f32 0.0, %v1433
    %1435 = vmatmul.bf16.gmra.mxu0 %v1351
    %v1436 = vpop.f32.mrf.mxu0
    %v1437 = vadd.f32 0.0, %v1436
    %v1438 = vpop.f32.mrf.mxu0
    %v1439 = vadd.f32 0.0, %v1438
    %1440 = vmatmul.bf16.gmra.mxu0 %v1354
    %v1441 = vpop.f32.mrf.mxu0
    %v1442 = vadd.f32 0.0, %v1441
    %v1443 = vpop.f32.mrf.mxu0
    %v1444 = vadd.f32 0.0, %v1443
    %1445 = vmatmul.bf16.gmra.mxu0 %v1357
    %v1446 = vpop.f32.mrf.mxu0
    %v1447 = vadd.f32 0.0, %v1446
    %v1448 = vpop.f32.mrf.mxu0
    %v1449 = vadd.f32 0.0, %v1448
    %1450 = vdwg.mxu0
    %v1451 = vadd.f32 %v1196, %v1372
    %v1452 = vadd.f32 %v1197, %v1374
    %v1453 = vadd.f32 %v1198, %v1377
    %v1454 = vadd.f32 %v1199, %v1379
    %v1455 = vadd.f32 %v1200, %v1382
    %v1456 = vadd.f32 %v1201, %v1384
    %v1457 = vadd.f32 %v1202, %v1387
    %v1458 = vadd.f32 %v1203, %v1389
    %v1459 = vadd.f32 %v1204, %v1392
    %v1460 = vadd.f32 %v1205, %v1394
    %v1461 = vadd.f32 %v1206, %v1397
    %v1462 = vadd.f32 %v1207, %v1399
    %v1463 = vadd.f32 %v1208, %v1402
    %v1464 = vadd.f32 %v1209, %v1404
    %v1465 = vadd.f32 %v1210, %v1407
    %v1466 = vadd.f32 %v1211, %v1409
    %v1467 = vadd.f32 %v1212, %v1412
    %v1468 = vadd.f32 %v1213, %v1414
    %v1469 = vadd.f32 %v1214, %v1417
    %v1470 = vadd.f32 %v1215, %v1419
    %v1471 = vadd.f32 %v1216, %v1422
    %v1472 = vadd.f32 %v1217, %v1424
    %v1473 = vadd.f32 %v1218, %v1427
    %v1474 = vadd.f32 %v1219, %v1429
    %v1475 = vadd.f32 %v1220, %v1432
    %v1476 = vadd.f32 %v1221, %v1434
    %v1477 = vadd.f32 %v1222, %v1437
    %v1478 = vadd.f32 %v1223, %v1439
    %v1479 = vadd.f32 %v1224, %v1442
    %v1480 = vadd.f32 %v1225, %v1444
    %v1481 = vadd.f32 %v1226, %v1447
    %v1482 = vadd.f32 %v1227, %v1449
    %v1483 = vrot.slane %v559, 4
    %v1484 = vrot.slane %v560, 4
    %v1485 = vrot.slane %v561, 4
    %v1486 = vrot.slane %v562, 4
    %v1487 = vrot.slane %v563, 4
    %v1488 = vrot.slane %v564, 4
    %v1489 = vrot.slane %v565, 4
    %v1490 = vrot.slane %v566, 4
    %v1491 = vrot.slane %v567, 4
    %v1492 = vrot.slane %v568, 4
    %v1493 = vrot.slane %v569, 4
    %v1494 = vrot.slane %v570, 4
    %v1495 = vrot.slane %v571, 4
    %v1496 = vrot.slane %v572, 4
    %v1497 = vrot.slane %v573, 4
    %v1498 = vrot.slane %v574, 4
    %v1499 = vrot.slane %v575, 4
    %v1500 = vrot.slane %v576, 4
    %v1501 = vrot.slane %v577, 4
    %v1502 = vrot.slane %v578, 4
    %v1503 = vrot.slane %v579, 4
    %v1504 = vrot.slane %v580, 4
    %v1505 = vrot.slane %v581, 4
    %v1506 = vrot.slane %v582, 4
    %v1507 = vrot.slane %v583, 4
    %v1508 = vrot.slane %v584, 4
    %v1509 = vrot.slane %v585, 4
    %v1510 = vrot.slane %v586, 4
    %v1511 = vrot.slane %v587, 4
    %v1512 = vrot.slane %v588, 4
    %v1513 = vrot.slane %v589, 4
    %v1514 = vrot.slane %v590, 4
    %vm1515 = vcmp.lt.s32.totalorder %v47, 4
    %v1516 = vsel %vm1515, %v1513, %v1514
    %v1517 = vsel %vm1515, %v1512, %v1513
    %v1518 = vsel %vm1515, %v1511, %v1512
    %v1519 = vsel %vm1515, %v1510, %v1511
    %v1520 = vsel %vm1515, %v1509, %v1510
    %v1521 = vsel %vm1515, %v1508, %v1509
    %v1522 = vsel %vm1515, %v1507, %v1508
    %v1523 = vsel %vm1515, %v1506, %v1507
    %v1524 = vsel %vm1515, %v1505, %v1506
    %v1525 = vsel %vm1515, %v1504, %v1505
    %v1526 = vsel %vm1515, %v1503, %v1504
    %v1527 = vsel %vm1515, %v1502, %v1503
    %v1528 = vsel %vm1515, %v1501, %v1502
    %v1529 = vsel %vm1515, %v1500, %v1501
    %v1530 = vsel %vm1515, %v1499, %v1500
    %v1531 = vsel %vm1515, %v1498, %v1499
    %v1532 = vsel %vm1515, %v1497, %v1498
    %v1533 = vsel %vm1515, %v1496, %v1497
    %v1534 = vsel %vm1515, %v1495, %v1496
    %v1535 = vsel %vm1515, %v1494, %v1495
    %v1536 = vsel %vm1515, %v1493, %v1494
    %v1537 = vsel %vm1515, %v1492, %v1493
    %v1538 = vsel %vm1515, %v1491, %v1492
    %v1539 = vsel %vm1515, %v1490, %v1491
    %v1540 = vsel %vm1515, %v1489, %v1490
    %v1541 = vsel %vm1515, %v1488, %v1489
    %v1542 = vsel %vm1515, %v1487, %v1488
    %v1543 = vsel %vm1515, %v1486, %v1487
    %v1544 = vsel %vm1515, %v1485, %v1486
    %v1545 = vsel %vm1515, %v1484, %v1485
    %v1546 = vsel %vm1515, %v1483, %v1484
    %v1547 = vsel %vm1515, %v1514, %v1483
    %v1548 = vpack.c.bf16 %v1545, %v1546
    %v1549 = vpack.c.bf16 %v1543, %v1544
    %v1550 = vpack.c.bf16 %v1541, %v1542
    %v1551 = vpack.c.bf16 %v1539, %v1540
    %v1552 = vpack.c.bf16 %v1537, %v1538
    %v1553 = vpack.c.bf16 %v1535, %v1536
    %v1554 = vpack.c.bf16 %v1533, %v1534
    %v1555 = vpack.c.bf16 %v1531, %v1532
    %v1556 = vpack.c.bf16 %v1529, %v1530
    %v1557 = vpack.c.bf16 %v1527, %v1528
    %v1558 = vpack.c.bf16 %v1525, %v1526
    %v1559 = vpack.c.bf16 %v1523, %v1524
    %v1560 = vpack.c.bf16 %v1521, %v1522
    %v1561 = vpack.c.bf16 %v1519, %v1520
    %v1562 = vpack.c.bf16 %v1517, %v1518
    %v1563 = vpack.c.bf16 %v1547, %v1516
    %s1564 = scalar_lea.vmem %s1, 8
    %v1565 = vld [vmem:[%s1564] sm:$0x3]
    %v1567 = vsel %vm691, %v1548, 0
    %v1570 = vsel %vm691, %v1549, 0
    %v1573 = vsel %vm691, %v1550, 0
    %v1576 = vsel %vm691, %v1551, 0
    %v1579 = vsel %vm691, %v1552, 0
    %v1582 = vsel %vm691, %v1553, 0
    %v1585 = vsel %vm691, %v1554, 0
    %v1588 = vsel %vm691, %v1555, 0
    %v1591 = vsel %vm691, %v1556, 0
    %v1594 = vsel %vm691, %v1557, 0
    %v1597 = vsel %vm691, %v1558, 0
    %v1600 = vsel %vm691, %v1559, 0
    %v1603 = vsel %vm691, %v1560, 0
    %v1606 = vsel %vm691, %v1561, 0
    %v1609 = vsel %vm691, %v1562, 0
    %v1612 = vsel %vm691, %v1563, 0
    %v1615 = vsel %vm740, %v1565, 0
    %1617 = vmatpush.bf16.msra.mxu0 0
    %1618 = vmatpush.bf16.msra.mxu0 0
    %1619 = vmatpush.bf16.msra.mxu0 0
    %1620 = vmatpush.bf16.msra.mxu0 0
    %1621 = vmatpush.bf16.msra.mxu0 0
    %1622 = vmatpush.bf16.msra.mxu0 0
    %1623 = vmatpush.bf16.msra.mxu0 0
    %1624 = vmatpush.bf16.msra.mxu0 %v1615
    %1625 = vmatmul.bf16.gmra.mxu0 %v1567
    %v1626 = vpop.f32.mrf.mxu0
    %v1627 = vadd.f32 0.0, %v1626
    %v1628 = vpop.f32.mrf.mxu0
    %v1629 = vadd.f32 0.0, %v1628
    %1630 = vmatmul.bf16.gmra.mxu0 %v1570
    %v1631 = vpop.f32.mrf.mxu0
    %v1632 = vadd.f32 0.0, %v1631
    %v1633 = vpop.f32.mrf.mxu0
    %v1634 = vadd.f32 0.0, %v1633
    %1635 = vmatmul.bf16.gmra.mxu0 %v1573
    %v1636 = vpop.f32.mrf.mxu0
    %v1637 = vadd.f32 0.0, %v1636
    %v1638 = vpop.f32.mrf.mxu0
    %v1639 = vadd.f32 0.0, %v1638
    %1640 = vmatmul.bf16.gmra.mxu0 %v1576
    %v1641 = vpop.f32.mrf.mxu0
    %v1642 = vadd.f32 0.0, %v1641
    %v1643 = vpop.f32.mrf.mxu0
    %v1644 = vadd.f32 0.0, %v1643
    %1645 = vmatmul.bf16.gmra.mxu0 %v1579
    %v1646 = vpop.f32.mrf.mxu0
    %v1647 = vadd.f32 0.0, %v1646
    %v1648 = vpop.f32.mrf.mxu0
    %v1649 = vadd.f32 0.0, %v1648
    %1650 = vmatmul.bf16.gmra.mxu0 %v1582
    %v1651 = vpop.f32.mrf.mxu0
    %v1652 = vadd.f32 0.0, %v1651
    %v1653 = vpop.f32.mrf.mxu0
    %v1654 = vadd.f32 0.0, %v1653
    %1655 = vmatmul.bf16.gmra.mxu0 %v1585
    %v1656 = vpop.f32.mrf.mxu0
    %v1657 = vadd.f32 0.0, %v1656
    %v1658 = vpop.f32.mrf.mxu0
    %v1659 = vadd.f32 0.0, %v1658
    %1660 = vmatmul.bf16.gmra.mxu0 %v1588
    %v1661 = vpop.f32.mrf.mxu0
    %v1662 = vadd.f32 0.0, %v1661
    %v1663 = vpop.f32.mrf.mxu0
    %v1664 = vadd.f32 0.0, %v1663
    %1665 = vmatmul.bf16.gmra.mxu0 %v1591
    %v1666 = vpop.f32.mrf.mxu0
    %v1667 = vadd.f32 0.0, %v1666
    %v1668 = vpop.f32.mrf.mxu0
    %v1669 = vadd.f32 0.0, %v1668
    %1670 = vmatmul.bf16.gmra.mxu0 %v1594
    %v1671 = vpop.f32.mrf.mxu0
    %v1672 = vadd.f32 0.0, %v1671
    %v1673 = vpop.f32.mrf.mxu0
    %v1674 = vadd.f32 0.0, %v1673
    %1675 = vmatmul.bf16.gmra.mxu0 %v1597
    %v1676 = vpop.f32.mrf.mxu0
    %v1677 = vadd.f32 0.0, %v1676
    %v1678 = vpop.f32.mrf.mxu0
    %v1679 = vadd.f32 0.0, %v1678
    %1680 = vmatmul.bf16.gmra.mxu0 %v1600
    %v1681 = vpop.f32.mrf.mxu0
    %v1682 = vadd.f32 0.0, %v1681
    %v1683 = vpop.f32.mrf.mxu0
    %v1684 = vadd.f32 0.0, %v1683
    %1685 = vmatmul.bf16.gmra.mxu0 %v1603
    %v1686 = vpop.f32.mrf.mxu0
    %v1687 = vadd.f32 0.0, %v1686
    %v1688 = vpop.f32.mrf.mxu0
    %v1689 = vadd.f32 0.0, %v1688
    %1690 = vmatmul.bf16.gmra.mxu0 %v1606
    %v1691 = vpop.f32.mrf.mxu0
    %v1692 = vadd.f32 0.0, %v1691
    %v1693 = vpop.f32.mrf.mxu0
    %v1694 = vadd.f32 0.0, %v1693
    %1695 = vmatmul.bf16.gmra.mxu0 %v1609
    %v1696 = vpop.f32.mrf.mxu0
    %v1697 = vadd.f32 0.0, %v1696
    %v1698 = vpop.f32.mrf.mxu0
    %v1699 = vadd.f32 0.0, %v1698
    %1700 = vmatmul.bf16.gmra.mxu0 %v1612
    %v1701 = vpop.f32.mrf.mxu0
    %v1702 = vadd.f32 0.0, %v1701
    %v1703 = vpop.f32.mrf.mxu0
    %v1704 = vadd.f32 0.0, %v1703
    %1705 = vdwg.mxu0
    %v1706 = vadd.f32 %v1451, %v1627
    %v1707 = vadd.f32 %v1452, %v1629
    %v1708 = vadd.f32 %v1453, %v1632
    %v1709 = vadd.f32 %v1454, %v1634
    %v1710 = vadd.f32 %v1455, %v1637
    %v1711 = vadd.f32 %v1456, %v1639
    %v1712 = vadd.f32 %v1457, %v1642
    %v1713 = vadd.f32 %v1458, %v1644
    %v1714 = vadd.f32 %v1459, %v1647
    %v1715 = vadd.f32 %v1460, %v1649
    %v1716 = vadd.f32 %v1461, %v1652
    %v1717 = vadd.f32 %v1462, %v1654
    %v1718 = vadd.f32 %v1463, %v1657
    %v1719 = vadd.f32 %v1464, %v1659
    %v1720 = vadd.f32 %v1465, %v1662
    %v1721 = vadd.f32 %v1466, %v1664
    %v1722 = vadd.f32 %v1467, %v1667
    %v1723 = vadd.f32 %v1468, %v1669
    %v1724 = vadd.f32 %v1469, %v1672
    %v1725 = vadd.f32 %v1470, %v1674
    %v1726 = vadd.f32 %v1471, %v1677
    %v1727 = vadd.f32 %v1472, %v1679
    %v1728 = vadd.f32 %v1473, %v1682
    %v1729 = vadd.f32 %v1474, %v1684
    %v1730 = vadd.f32 %v1475, %v1687
    %v1731 = vadd.f32 %v1476, %v1689
    %v1732 = vadd.f32 %v1477, %v1692
    %v1733 = vadd.f32 %v1478, %v1694
    %v1734 = vadd.f32 %v1479, %v1697
    %v1735 = vadd.f32 %v1480, %v1699
    %v1736 = vadd.f32 %v1481, %v1702
    %v1737 = vadd.f32 %v1482, %v1704
    %vm1738 = vcmp.lt.s32.totalorder %v431, 124
    %vm1739 = vcmp.lt.s32.totalorder %v432, 124
    %vm1740 = vcmp.lt.s32.totalorder %v433, 124
    %vm1741 = vcmp.lt.s32.totalorder %v434, 124
    %vm1742 = vcmp.lt.s32.totalorder %v435, 124
    %vm1743 = vcmp.lt.s32.totalorder %v436, 124
    %vm1744 = vcmp.lt.s32.totalorder %v437, 124
    %vm1745 = vcmp.lt.s32.totalorder %v438, 124
    %vm1746 = vcmp.lt.s32.totalorder %v439, 124
    %vm1747 = vcmp.lt.s32.totalorder %v440, 124
    %vm1748 = vcmp.lt.s32.totalorder %v441, 124
    %vm1749 = vcmp.lt.s32.totalorder %v442, 124
    %vm1750 = vcmp.lt.s32.totalorder %v443, 124
    %vm1751 = vcmp.lt.s32.totalorder %v444, 124
    %vm1752 = vcmp.lt.s32.totalorder %v445, 124
    %vm1753 = vcmp.lt.s32.totalorder %v446, 124
    %vm1754 = vcmp.lt.s32.totalorder %v447, 124
    %vm1755 = vcmp.lt.s32.totalorder %v448, 124
    %vm1756 = vcmp.lt.s32.totalorder %v449, 124
    %vm1757 = vcmp.lt.s32.totalorder %v450, 124
    %vm1758 = vcmp.lt.s32.totalorder %v451, 124
    %vm1759 = vcmp.lt.s32.totalorder %v452, 124
    %vm1760 = vcmp.lt.s32.totalorder %v453, 124
    %vm1761 = vcmp.lt.s32.totalorder %v454, 124
    %vm1762 = vcmp.lt.s32.totalorder %v455, 124
    %vm1763 = vcmp.lt.s32.totalorder %v456, 124
    %vm1764 = vcmp.lt.s32.totalorder %v457, 124
    %vm1765 = vcmp.lt.s32.totalorder %v458, 124
    %vm1766 = vcmp.lt.s32.totalorder %v459, 124
    %vm1767 = vcmp.lt.s32.totalorder %v460, 124
    %vm1768 = vcmp.lt.s32.totalorder %v461, 124
    %vm1769 = vcmp.lt.s32.totalorder %v462, 124
    %v1770 = vsel %vm1738, 1, 0
    %v1771 = vsel %vm1739, 1, 0
    %v1772 = vsel %vm1740, 1, 0
    %v1773 = vsel %vm1741, 1, 0
    %v1774 = vsel %vm1742, 1, 0
    %v1775 = vsel %vm1743, 1, 0
    %v1776 = vsel %vm1744, 1, 0
    %v1777 = vsel %vm1745, 1, 0
    %v1778 = vsel %vm1746, 1, 0
    %v1779 = vsel %vm1747, 1, 0
    %v1780 = vsel %vm1748, 1, 0
    %v1781 = vsel %vm1749, 1, 0
    %v1782 = vsel %vm1750, 1, 0
    %v1783 = vsel %vm1751, 1, 0
    %v1784 = vsel %vm1752, 1, 0
    %v1785 = vsel %vm1753, 1, 0
    %v1786 = vsel %vm1754, 1, 0
    %v1787 = vsel %vm1755, 1, 0
    %v1788 = vsel %vm1756, 1, 0
    %v1789 = vsel %vm1757, 1, 0
    %v1790 = vsel %vm1758, 1, 0
    %v1791 = vsel %vm1759, 1, 0
    %v1792 = vsel %vm1760, 1, 0
    %v1793 = vsel %vm1761, 1, 0
    %v1794 = vsel %vm1762, 1, 0
    %v1795 = vsel %vm1763, 1, 0
    %v1796 = vsel %vm1764, 1, 0
    %v1797 = vsel %vm1765, 1, 0
    %v1798 = vsel %vm1766, 1, 0
    %v1799 = vsel %vm1767, 1, 0
    %v1800 = vsel %vm1768, 1, 0
    %v1801 = vsel %vm1769, 1, 0
    %vm1802 = vcmp.eq.s32.totalorder %v1770, 1
    %vm1803 = vcmp.eq.s32.totalorder %v1771, 1
    %vm1804 = vcmp.eq.s32.totalorder %v1772, 1
    %vm1805 = vcmp.eq.s32.totalorder %v1773, 1
    %vm1806 = vcmp.eq.s32.totalorder %v1774, 1
    %vm1807 = vcmp.eq.s32.totalorder %v1775, 1
    %vm1808 = vcmp.eq.s32.totalorder %v1776, 1
    %vm1809 = vcmp.eq.s32.totalorder %v1777, 1
    %vm1810 = vcmp.eq.s32.totalorder %v1778, 1
    %vm1811 = vcmp.eq.s32.totalorder %v1779, 1
    %vm1812 = vcmp.eq.s32.totalorder %v1780, 1
    %vm1813 = vcmp.eq.s32.totalorder %v1781, 1
    %vm1814 = vcmp.eq.s32.totalorder %v1782, 1
    %vm1815 = vcmp.eq.s32.totalorder %v1783, 1
    %vm1816 = vcmp.eq.s32.totalorder %v1784, 1
    %vm1817 = vcmp.eq.s32.totalorder %v1785, 1
    %vm1818 = vcmp.eq.s32.totalorder %v1786, 1
    %vm1819 = vcmp.eq.s32.totalorder %v1787, 1
    %vm1820 = vcmp.eq.s32.totalorder %v1788, 1
    %vm1821 = vcmp.eq.s32.totalorder %v1789, 1
    %vm1822 = vcmp.eq.s32.totalorder %v1790, 1
    %vm1823 = vcmp.eq.s32.totalorder %v1791, 1
    %vm1824 = vcmp.eq.s32.totalorder %v1792, 1
    %vm1825 = vcmp.eq.s32.totalorder %v1793, 1
    %vm1826 = vcmp.eq.s32.totalorder %v1794, 1
    %vm1827 = vcmp.eq.s32.totalorder %v1795, 1
    %vm1828 = vcmp.eq.s32.totalorder %v1796, 1
    %vm1829 = vcmp.eq.s32.totalorder %v1797, 1
    %vm1830 = vcmp.eq.s32.totalorder %v1798, 1
    %vm1831 = vcmp.eq.s32.totalorder %v1799, 1
    %vm1832 = vcmp.eq.s32.totalorder %v1800, 1
    %vm1833 = vcmp.eq.s32.totalorder %v1801, 1
    %v1834 = vsel %vm1802, %v1706, 0.0
    %v1835 = vsel %vm1803, %v1707, 0.0
    %v1836 = vsel %vm1804, %v1708, 0.0
    %v1837 = vsel %vm1805, %v1709, 0.0
    %v1838 = vsel %vm1806, %v1710, 0.0
    %v1839 = vsel %vm1807, %v1711, 0.0
    %v1840 = vsel %vm1808, %v1712, 0.0
    %v1841 = vsel %vm1809, %v1713, 0.0
    %v1842 = vsel %vm1810, %v1714, 0.0
    %v1843 = vsel %vm1811, %v1715, 0.0
    %v1844 = vsel %vm1812, %v1716, 0.0
    %v1845 = vsel %vm1813, %v1717, 0.0
    %v1846 = vsel %vm1814, %v1718, 0.0
    %v1847 = vsel %vm1815, %v1719, 0.0
    %v1848 = vsel %vm1816, %v1720, 0.0
    %v1849 = vsel %vm1817, %v1721, 0.0
    %v1850 = vsel %vm1818, %v1722, 0.0
    %v1851 = vsel %vm1819, %v1723, 0.0
    %v1852 = vsel %vm1820, %v1724, 0.0
    %v1853 = vsel %vm1821, %v1725, 0.0
    %v1854 = vsel %vm1822, %v1726, 0.0
    %v1855 = vsel %vm1823, %v1727, 0.0
    %v1856 = vsel %vm1824, %v1728, 0.0
    %v1857 = vsel %vm1825, %v1729, 0.0
    %v1858 = vsel %vm1826, %v1730, 0.0
    %v1859 = vsel %vm1827, %v1731, 0.0
    %v1860 = vsel %vm1828, %v1732, 0.0
    %v1861 = vsel %vm1829, %v1733, 0.0
    %v1862 = vsel %vm1830, %v1734, 0.0
    %v1863 = vsel %vm1831, %v1735, 0.0
    %v1864 = vsel %vm1832, %v1736, 0.0
    %v1865 = vsel %vm1833, %v1737, 0.0
    %vm1866 = vcmask 203776
    %v1867 = vsel %vm1866, %v1834, 0.0
    %v1868 = vsel %vm1866, %v1835, 0.0
    %v1869 = vadd.f32 %v1867, %v1868
    %v1870 = vsel %vm1866, %v1836, 0.0
    %v1871 = vadd.f32 %v1869, %v1870
    %v1872 = vsel %vm1866, %v1837, 0.0
    %v1873 = vadd.f32 %v1871, %v1872
    %v1874 = vsel %vm1866, %v1838, 0.0
    %v1875 = vadd.f32 %v1873, %v1874
    %v1876 = vsel %vm1866, %v1839, 0.0
    %v1877 = vadd.f32 %v1875, %v1876
    %v1878 = vsel %vm1866, %v1840, 0.0
    %v1879 = vadd.f32 %v1877, %v1878
    %v1880 = vsel %vm1866, %v1841, 0.0
    %v1881 = vadd.f32 %v1879, %v1880
    %v1882 = vsel %vm1866, %v1842, 0.0
    %v1883 = vadd.f32 %v1881, %v1882
    %v1884 = vsel %vm1866, %v1843, 0.0
    %v1885 = vadd.f32 %v1883, %v1884
    %v1886 = vsel %vm1866, %v1844, 0.0
    %v1887 = vadd.f32 %v1885, %v1886
    %v1888 = vsel %vm1866, %v1845, 0.0
    %v1889 = vadd.f32 %v1887, %v1888
    %v1890 = vsel %vm1866, %v1846, 0.0
    %v1891 = vadd.f32 %v1889, %v1890
    %v1892 = vsel %vm1866, %v1847, 0.0
    %v1893 = vadd.f32 %v1891, %v1892
    %v1894 = vsel %vm1866, %v1848, 0.0
    %v1895 = vadd.f32 %v1893, %v1894
    %v1896 = vsel %vm1866, %v1849, 0.0
    %v1897 = vadd.f32 %v1895, %v1896
    %v1898 = vsel %vm1866, %v1850, 0.0
    %v1899 = vadd.f32 %v1897, %v1898
    %v1900 = vsel %vm1866, %v1851, 0.0
    %v1901 = vadd.f32 %v1899, %v1900
    %v1902 = vsel %vm1866, %v1852, 0.0
    %v1903 = vadd.f32 %v1901, %v1902
    %v1904 = vsel %vm1866, %v1853, 0.0
    %v1905 = vadd.f32 %v1903, %v1904
    %v1906 = vsel %vm1866, %v1854, 0.0
    %v1907 = vadd.f32 %v1905, %v1906
    %v1908 = vsel %vm1866, %v1855, 0.0
    %v1909 = vadd.f32 %v1907, %v1908
    %v1910 = vsel %vm1866, %v1856, 0.0
    %v1911 = vadd.f32 %v1909, %v1910
    %v1912 = vsel %vm1866, %v1857, 0.0
    %v1913 = vadd.f32 %v1911, %v1912
    %v1914 = vsel %vm1866, %v1858, 0.0
    %v1915 = vadd.f32 %v1913, %v1914
    %v1916 = vsel %vm1866, %v1859, 0.0
    %v1917 = vadd.f32 %v1915, %v1916
    %v1918 = vsel %vm1866, %v1860, 0.0
    %v1919 = vadd.f32 %v1917, %v1918
    %v1920 = vsel %vm1866, %v1861, 0.0
    %v1921 = vadd.f32 %v1919, %v1920
    %v1922 = vsel %vm1866, %v1862, 0.0
    %v1923 = vadd.f32 %v1921, %v1922
    %v1924 = vsel %vm1866, %v1863, 0.0
    %v1925 = vadd.f32 %v1923, %v1924
    %v1926 = vsel %vm1866, %v1864, 0.0
    %v1927 = vadd.f32 %v1925, %v1926
    %v1928 = vsel %vm1866, %v1865, 0.0
    %v1929 = vadd.f32 %v1927, %v1928
    %v1930 = vrot.slane %v1929, 4
    %v1931 = vadd.f32 %v1929, %v1930
    %v1932 = vrot.slane %v1931, 2
    %v1933 = vadd.f32 %v1931, %v1932
    %v1934 = vrot.slane %v1933, 1
    %v1935 = vadd.f32 %v1933, %v1934
    %v1936 = vmul.f32 %v1834, %v1834
    %v1937 = vmul.f32 %v1835, %v1835
    %v1938 = vmul.f32 %v1836, %v1836
    %v1939 = vmul.f32 %v1837, %v1837
    %v1940 = vmul.f32 %v1838, %v1838
    %v1941 = vmul.f32 %v1839, %v1839
    %v1942 = vmul.f32 %v1840, %v1840
    %v1943 = vmul.f32 %v1841, %v1841
    %v1944 = vmul.f32 %v1842, %v1842
    %v1945 = vmul.f32 %v1843, %v1843
    %v1946 = vmul.f32 %v1844, %v1844
    %v1947 = vmul.f32 %v1845, %v1845
    %v1948 = vmul.f32 %v1846, %v1846
    %v1949 = vmul.f32 %v1847, %v1847
    %v1950 = vmul.f32 %v1848, %v1848
    %v1951 = vmul.f32 %v1849, %v1849
    %v1952 = vmul.f32 %v1850, %v1850
    %v1953 = vmul.f32 %v1851, %v1851
    %v1954 = vmul.f32 %v1852, %v1852
    %v1955 = vmul.f32 %v1853, %v1853
    %v1956 = vmul.f32 %v1854, %v1854
    %v1957 = vmul.f32 %v1855, %v1855
    %v1958 = vmul.f32 %v1856, %v1856
    %v1959 = vmul.f32 %v1857, %v1857
    %v1960 = vmul.f32 %v1858, %v1858
    %v1961 = vmul.f32 %v1859, %v1859
    %v1962 = vmul.f32 %v1860, %v1860
    %v1963 = vmul.f32 %v1861, %v1861
    %v1964 = vmul.f32 %v1862, %v1862
    %v1965 = vmul.f32 %v1863, %v1863
    %v1966 = vmul.f32 %v1864, %v1864
    %v1967 = vmul.f32 %v1865, %v1865
    %v1968 = vsel %vm1866, %v1936, 0.0
    %v1969 = vsel %vm1866, %v1937, 0.0
    %v1970 = vadd.f32 %v1968, %v1969
    %v1971 = vsel %vm1866, %v1938, 0.0
    %v1972 = vadd.f32 %v1970, %v1971
    %v1973 = vsel %vm1866, %v1939, 0.0
    %v1974 = vadd.f32 %v1972, %v1973
    %v1975 = vsel %vm1866, %v1940, 0.0
    %v1976 = vadd.f32 %v1974, %v1975
    %v1977 = vsel %vm1866, %v1941, 0.0
    %v1978 = vadd.f32 %v1976, %v1977
    %v1979 = vsel %vm1866, %v1942, 0.0
    %v1980 = vadd.f32 %v1978, %v1979
    %v1981 = vsel %vm1866, %v1943, 0.0
    %v1982 = vadd.f32 %v1980, %v1981
    %v1983 = vsel %vm1866, %v1944, 0.0
    %v1984 = vadd.f32 %v1982, %v1983
    %v1985 = vsel %vm1866, %v1945, 0.0
    %v1986 = vadd.f32 %v1984, %v1985
    %v1987 = vsel %vm1866, %v1946, 0.0
    %v1988 = vadd.f32 %v1986, %v1987
    %v1989 = vsel %vm1866, %v1947, 0.0
    %v1990 = vadd.f32 %v1988, %v1989
    %v1991 = vsel %vm1866, %v1948, 0.0
    %v1992 = vadd.f32 %v1990, %v1991
    %v1993 = vsel %vm1866, %v1949, 0.0
    %v1994 = vadd.f32 %v1992, %v1993
    %v1995 = vsel %vm1866, %v1950, 0.0
    %v1996 = vadd.f32 %v1994, %v1995
    %v1997 = vsel %vm1866, %v1951, 0.0
    %v1998 = vadd.f32 %v1996, %v1997
    %v1999 = vsel %vm1866, %v1952, 0.0
    %v2000 = vadd.f32 %v1998, %v1999
    %v2001 = vsel %vm1866, %v1953, 0.0
    %v2002 = vadd.f32 %v2000, %v2001
    %v2003 = vsel %vm1866, %v1954, 0.0
    %v2004 = vadd.f32 %v2002, %v2003
    %v2005 = vsel %vm1866, %v1955, 0.0
    %v2006 = vadd.f32 %v2004, %v2005
    %v2007 = vsel %vm1866, %v1956, 0.0
    %v2008 = vadd.f32 %v2006, %v2007
    %v2009 = vsel %vm1866, %v1957, 0.0
    %v2010 = vadd.f32 %v2008, %v2009
    %v2011 = vsel %vm1866, %v1958, 0.0
    %v2012 = vadd.f32 %v2010, %v2011
    %v2013 = vsel %vm1866, %v1959, 0.0
    %v2014 = vadd.f32 %v2012, %v2013
    %v2015 = vsel %vm1866, %v1960, 0.0
    %v2016 = vadd.f32 %v2014, %v2015
    %v2017 = vsel %vm1866, %v1961, 0.0
    %v2018 = vadd.f32 %v2016, %v2017
    %v2019 = vsel %vm1866, %v1962, 0.0
    %v2020 = vadd.f32 %v2018, %v2019
    %v2021 = vsel %vm1866, %v1963, 0.0
    %v2022 = vadd.f32 %v2020, %v2021
    %v2023 = vsel %vm1866, %v1964, 0.0
    %v2024 = vadd.f32 %v2022, %v2023
    %v2025 = vsel %vm1866, %v1965, 0.0
    %v2026 = vadd.f32 %v2024, %v2025
    %v2027 = vsel %vm1866, %v1966, 0.0
    %v2028 = vadd.f32 %v2026, %v2027
    %v2029 = vsel %vm1866, %v1967, 0.0
    %v2030 = vadd.f32 %v2028, %v2029
    %v2031 = vrot.slane %v2030, 4
    %v2032 = vadd.f32 %v2030, %v2031
    %v2033 = vrot.slane %v2032, 2
    %v2034 = vadd.f32 %v2032, %v2033
    %v2035 = vrot.slane %v2034, 1
    %v2036 = vadd.f32 %v2034, %v2035
    %v2037 = vmul.f32 %v1935, 0.004032258
    %v2038 = vmul.f32 %v2036, 0.004032258
    %v2039 = vmul.f32 %v2037, %v2037
    %v2040 = vsub.f32 %v2038, %v2039
    %v2041 = vmax.f32 %v2040, 0.0
    %v2042 = vld [vmem:[%s2] sm:$0x3]
    %v2043 = vadd.f32 %v2041, 1e-05
    %v2044 = vrsqrt.pop %v2043
    %v2045 = vmul.f32 %v2044, %v2043
    %v2046 = vmul.f32 %v2045, %v2044
    %v2047 = vmul.f32 0.5, %v2046
    %v2048 = vsub.f32 1.5, %v2047
    %v2049 = vmul.f32 %v2044, %v2048
    %vm2050 = vweird.f32 %v2043
    %vm2051 = vweird.f32 %v2044
    %vm2052 = vmor %vm2050, %vm2051
    %v2053 = vsel %vm2052, %v2044, %v2049
    %v2054 = vmul.f32 %v2053, %v2042
    %v2055 = vmul.f32 %v2037, %v2054
    %v2057 = vrot.slane %v2055, 7
    %v2059 = vsub.f32 %v2042, %v2057
    %v2060 = vperm.slane %v2054, 0
    %v2061 = vmul.f32 %v1706, %v2060
    %v2062 = vmul.f32 %v1707, %v2060
    %v2063 = vmul.f32 %v1708, %v2060
    %v2064 = vmul.f32 %v1709, %v2060
    %v2065 = vmul.f32 %v1710, %v2060
    %v2066 = vmul.f32 %v1711, %v2060
    %v2067 = vmul.f32 %v1712, %v2060
    %v2068 = vmul.f32 %v1713, %v2060
    %v2069 = vmul.f32 %v1714, %v2060
    %v2070 = vmul.f32 %v1715, %v2060
    %v2071 = vmul.f32 %v1716, %v2060
    %v2072 = vmul.f32 %v1717, %v2060
    %v2073 = vmul.f32 %v1718, %v2060
    %v2074 = vmul.f32 %v1719, %v2060
    %v2075 = vmul.f32 %v1720, %v2060
    %v2076 = vmul.f32 %v1721, %v2060
    %v2077 = vmul.f32 %v1722, %v2060
    %v2078 = vmul.f32 %v1723, %v2060
    %v2079 = vmul.f32 %v1724, %v2060
    %v2080 = vmul.f32 %v1725, %v2060
    %v2081 = vmul.f32 %v1726, %v2060
    %v2082 = vmul.f32 %v1727, %v2060
    %v2083 = vmul.f32 %v1728, %v2060
    %v2084 = vmul.f32 %v1729, %v2060
    %v2085 = vmul.f32 %v1730, %v2060
    %v2086 = vmul.f32 %v1731, %v2060
    %v2087 = vmul.f32 %v1732, %v2060
    %v2088 = vmul.f32 %v1733, %v2060
    %v2089 = vmul.f32 %v1734, %v2060
    %v2090 = vmul.f32 %v1735, %v2060
    %v2091 = vmul.f32 %v1736, %v2060
    %v2092 = vmul.f32 %v1737, %v2060
    %v2093 = vperm.slane %v2059, 1
    %v2094 = vadd.f32 %v2061, %v2093
    %v2095 = vadd.f32 %v2062, %v2093
    %v2096 = vadd.f32 %v2063, %v2093
    %v2097 = vadd.f32 %v2064, %v2093
    %v2098 = vadd.f32 %v2065, %v2093
    %v2099 = vadd.f32 %v2066, %v2093
    %v2100 = vadd.f32 %v2067, %v2093
    %v2101 = vadd.f32 %v2068, %v2093
    %v2102 = vadd.f32 %v2069, %v2093
    %v2103 = vadd.f32 %v2070, %v2093
    %v2104 = vadd.f32 %v2071, %v2093
    %v2105 = vadd.f32 %v2072, %v2093
    %v2106 = vadd.f32 %v2073, %v2093
    %v2107 = vadd.f32 %v2074, %v2093
    %v2108 = vadd.f32 %v2075, %v2093
    %v2109 = vadd.f32 %v2076, %v2093
    %v2110 = vadd.f32 %v2077, %v2093
    %v2111 = vadd.f32 %v2078, %v2093
    %v2112 = vadd.f32 %v2079, %v2093
    %v2113 = vadd.f32 %v2080, %v2093
    %v2114 = vadd.f32 %v2081, %v2093
    %v2115 = vadd.f32 %v2082, %v2093
    %v2116 = vadd.f32 %v2083, %v2093
    %v2117 = vadd.f32 %v2084, %v2093
    %v2118 = vadd.f32 %v2085, %v2093
    %v2119 = vadd.f32 %v2086, %v2093
    %v2120 = vadd.f32 %v2087, %v2093
    %v2121 = vadd.f32 %v2088, %v2093
    %v2122 = vadd.f32 %v2089, %v2093
    %v2123 = vadd.f32 %v2090, %v2093
    %v2124 = vadd.f32 %v2091, %v2093
    %v2125 = vadd.f32 %v2092, %v2093
    %vm2126 = vcmp.gt.f32.partialorder %v2094, 0.0
    %vm2127 = vcmp.gt.f32.partialorder %v2095, 0.0
    %vm2128 = vcmp.gt.f32.partialorder %v2096, 0.0
    %vm2129 = vcmp.gt.f32.partialorder %v2097, 0.0
    %vm2130 = vcmp.gt.f32.partialorder %v2098, 0.0
    %vm2131 = vcmp.gt.f32.partialorder %v2099, 0.0
    %vm2132 = vcmp.gt.f32.partialorder %v2100, 0.0
    %vm2133 = vcmp.gt.f32.partialorder %v2101, 0.0
    %vm2134 = vcmp.gt.f32.partialorder %v2102, 0.0
    %vm2135 = vcmp.gt.f32.partialorder %v2103, 0.0
    %vm2136 = vcmp.gt.f32.partialorder %v2104, 0.0
    %vm2137 = vcmp.gt.f32.partialorder %v2105, 0.0
    %vm2138 = vcmp.gt.f32.partialorder %v2106, 0.0
    %vm2139 = vcmp.gt.f32.partialorder %v2107, 0.0
    %vm2140 = vcmp.gt.f32.partialorder %v2108, 0.0
    %vm2141 = vcmp.gt.f32.partialorder %v2109, 0.0
    %vm2142 = vcmp.gt.f32.partialorder %v2110, 0.0
    %vm2143 = vcmp.gt.f32.partialorder %v2111, 0.0
    %vm2144 = vcmp.gt.f32.partialorder %v2112, 0.0
    %vm2145 = vcmp.gt.f32.partialorder %v2113, 0.0
    %vm2146 = vcmp.gt.f32.partialorder %v2114, 0.0
    %vm2147 = vcmp.gt.f32.partialorder %v2115, 0.0
    %vm2148 = vcmp.gt.f32.partialorder %v2116, 0.0
    %vm2149 = vcmp.gt.f32.partialorder %v2117, 0.0
    %vm2150 = vcmp.gt.f32.partialorder %v2118, 0.0
    %vm2151 = vcmp.gt.f32.partialorder %v2119, 0.0
    %vm2152 = vcmp.gt.f32.partialorder %v2120, 0.0
    %vm2153 = vcmp.gt.f32.partialorder %v2121, 0.0
    %vm2154 = vcmp.gt.f32.partialorder %v2122, 0.0
    %vm2155 = vcmp.gt.f32.partialorder %v2123, 0.0
    %vm2156 = vcmp.gt.f32.partialorder %v2124, 0.0
    %vm2157 = vcmp.gt.f32.partialorder %v2125, 0.0
    %v2158 = vmin.f32 %v2094, 0.0
    %v2159 = vmin.f32 %v2095, 0.0
    %v2160 = vmin.f32 %v2096, 0.0
    %v2161 = vmin.f32 %v2097, 0.0
    %v2162 = vmin.f32 %v2098, 0.0
    %v2163 = vmin.f32 %v2099, 0.0
    %v2164 = vmin.f32 %v2100, 0.0
    %v2165 = vmin.f32 %v2101, 0.0
    %v2166 = vmin.f32 %v2102, 0.0
    %v2167 = vmin.f32 %v2103, 0.0
    %v2168 = vmin.f32 %v2104, 0.0
    %v2169 = vmin.f32 %v2105, 0.0
    %v2170 = vmin.f32 %v2106, 0.0
    %v2171 = vmin.f32 %v2107, 0.0
    %v2172 = vmin.f32 %v2108, 0.0
    %v2173 = vmin.f32 %v2109, 0.0
    %v2174 = vmin.f32 %v2110, 0.0
    %v2175 = vmin.f32 %v2111, 0.0
    %v2176 = vmin.f32 %v2112, 0.0
    %v2177 = vmin.f32 %v2113, 0.0
    %v2178 = vmin.f32 %v2114, 0.0
    %v2179 = vmin.f32 %v2115, 0.0
    %v2180 = vmin.f32 %v2116, 0.0
    %v2181 = vmin.f32 %v2117, 0.0
    %v2182 = vmin.f32 %v2118, 0.0
    %v2183 = vmin.f32 %v2119, 0.0
    %v2184 = vmin.f32 %v2120, 0.0
    %v2185 = vmin.f32 %v2121, 0.0
    %v2186 = vmin.f32 %v2122, 0.0
    %v2187 = vmin.f32 %v2123, 0.0
    %v2188 = vmin.f32 %v2124, 0.0
    %v2189 = vmin.f32 %v2125, 0.0
    %v2190 = vmul.f32 %v2158, 1.442695
    %v2191 = vpow.pop %v2190
    %v2192 = vmul.f32 %v2159, 1.442695
    %v2193 = vpow.pop %v2192
    %v2194 = vmul.f32 %v2160, 1.442695
    %v2195 = vpow.pop %v2194
    %v2196 = vmul.f32 %v2161, 1.442695
    %v2197 = vpow.pop %v2196
    %v2198 = vmul.f32 %v2162, 1.442695
    %v2199 = vpow.pop %v2198
    %v2200 = vmul.f32 %v2163, 1.442695
    %v2201 = vpow.pop %v2200
    %v2202 = vmul.f32 %v2164, 1.442695
    %v2203 = vpow.pop %v2202
    %v2204 = vmul.f32 %v2165, 1.442695
    %v2205 = vpow.pop %v2204
    %v2206 = vmul.f32 %v2166, 1.442695
    %v2207 = vpow.pop %v2206
    %v2208 = vmul.f32 %v2167, 1.442695
    %v2209 = vpow.pop %v2208
    %v2210 = vmul.f32 %v2168, 1.442695
    %v2211 = vpow.pop %v2210
    %v2212 = vmul.f32 %v2169, 1.442695
    %v2213 = vpow.pop %v2212
    %v2214 = vmul.f32 %v2170, 1.442695
    %v2215 = vpow.pop %v2214
    %v2216 = vmul.f32 %v2171, 1.442695
    %v2217 = vpow.pop %v2216
    %v2218 = vmul.f32 %v2172, 1.442695
    %v2219 = vpow.pop %v2218
    %v2220 = vmul.f32 %v2173, 1.442695
    %v2221 = vpow.pop %v2220
    %v2222 = vmul.f32 %v2174, 1.442695
    %v2223 = vpow.pop %v2222
    %v2224 = vmul.f32 %v2175, 1.442695
    %v2225 = vpow.pop %v2224
    %v2226 = vmul.f32 %v2176, 1.442695
    %v2227 = vpow.pop %v2226
    %v2228 = vmul.f32 %v2177, 1.442695
    %v2229 = vpow.pop %v2228
    %v2230 = vmul.f32 %v2178, 1.442695
    %v2231 = vpow.pop %v2230
    %v2232 = vmul.f32 %v2179, 1.442695
    %v2233 = vpow.pop %v2232
    %v2234 = vmul.f32 %v2180, 1.442695
    %v2235 = vpow.pop %v2234
    %v2236 = vmul.f32 %v2181, 1.442695
    %v2237 = vpow.pop %v2236
    %v2238 = vmul.f32 %v2182, 1.442695
    %v2239 = vpow.pop %v2238
    %v2240 = vmul.f32 %v2183, 1.442695
    %v2241 = vpow.pop %v2240
    %v2242 = vmul.f32 %v2184, 1.442695
    %v2243 = vpow.pop %v2242
    %v2244 = vmul.f32 %v2185, 1.442695
    %v2245 = vpow.pop %v2244
    %v2246 = vmul.f32 %v2186, 1.442695
    %v2247 = vpow.pop %v2246
    %v2248 = vmul.f32 %v2187, 1.442695
    %v2249 = vpow.pop %v2248
    %v2250 = vmul.f32 %v2188, 1.442695
    %v2251 = vpow.pop %v2250
    %v2252 = vmul.f32 %v2189, 1.442695
    %v2253 = vpow.pop %v2252
    %v2254 = vsub.f32 %v2191, 1.0
    %v2255 = vsub.f32 %v2193, 1.0
    %v2256 = vsub.f32 %v2195, 1.0
    %v2257 = vsub.f32 %v2197, 1.0
    %v2258 = vsub.f32 %v2199, 1.0
    %v2259 = vsub.f32 %v2201, 1.0
    %v2260 = vsub.f32 %v2203, 1.0
    %v2261 = vsub.f32 %v2205, 1.0
    %v2262 = vsub.f32 %v2207, 1.0
    %v2263 = vsub.f32 %v2209, 1.0
    %v2264 = vsub.f32 %v2211, 1.0
    %v2265 = vsub.f32 %v2213, 1.0
    %v2266 = vsub.f32 %v2215, 1.0
    %v2267 = vsub.f32 %v2217, 1.0
    %v2268 = vsub.f32 %v2219, 1.0
    %v2269 = vsub.f32 %v2221, 1.0
    %v2270 = vsub.f32 %v2223, 1.0
    %v2271 = vsub.f32 %v2225, 1.0
    %v2272 = vsub.f32 %v2227, 1.0
    %v2273 = vsub.f32 %v2229, 1.0
    %v2274 = vsub.f32 %v2231, 1.0
    %v2275 = vsub.f32 %v2233, 1.0
    %v2276 = vsub.f32 %v2235, 1.0
    %v2277 = vsub.f32 %v2237, 1.0
    %v2278 = vsub.f32 %v2239, 1.0
    %v2279 = vsub.f32 %v2241, 1.0
    %v2280 = vsub.f32 %v2243, 1.0
    %v2281 = vsub.f32 %v2245, 1.0
    %v2282 = vsub.f32 %v2247, 1.0
    %v2283 = vsub.f32 %v2249, 1.0
    %v2284 = vsub.f32 %v2251, 1.0
    %v2285 = vsub.f32 %v2253, 1.0
    %v2286 = vsel %vm2126, %v2094, %v2254
    %v2287 = vsel %vm2127, %v2095, %v2255
    %v2288 = vsel %vm2128, %v2096, %v2256
    %v2289 = vsel %vm2129, %v2097, %v2257
    %v2290 = vsel %vm2130, %v2098, %v2258
    %v2291 = vsel %vm2131, %v2099, %v2259
    %v2292 = vsel %vm2132, %v2100, %v2260
    %v2293 = vsel %vm2133, %v2101, %v2261
    %v2294 = vsel %vm2134, %v2102, %v2262
    %v2295 = vsel %vm2135, %v2103, %v2263
    %v2296 = vsel %vm2136, %v2104, %v2264
    %v2297 = vsel %vm2137, %v2105, %v2265
    %v2298 = vsel %vm2138, %v2106, %v2266
    %v2299 = vsel %vm2139, %v2107, %v2267
    %v2300 = vsel %vm2140, %v2108, %v2268
    %v2301 = vsel %vm2141, %v2109, %v2269
    %v2302 = vsel %vm2142, %v2110, %v2270
    %v2303 = vsel %vm2143, %v2111, %v2271
    %v2304 = vsel %vm2144, %v2112, %v2272
    %v2305 = vsel %vm2145, %v2113, %v2273
    %v2306 = vsel %vm2146, %v2114, %v2274
    %v2307 = vsel %vm2147, %v2115, %v2275
    %v2308 = vsel %vm2148, %v2116, %v2276
    %v2309 = vsel %vm2149, %v2117, %v2277
    %v2310 = vsel %vm2150, %v2118, %v2278
    %v2311 = vsel %vm2151, %v2119, %v2279
    %v2312 = vsel %vm2152, %v2120, %v2280
    %v2313 = vsel %vm2153, %v2121, %v2281
    %v2314 = vsel %vm2154, %v2122, %v2282
    %v2315 = vsel %vm2155, %v2123, %v2283
    %v2316 = vsel %vm2156, %v2124, %v2284
    %v2317 = vsel %vm2157, %v2125, %v2285
    %v2318 = vrot.slane %v2286, 1
    %v2319 = vrot.slane %v2287, 1
    %v2320 = vrot.slane %v2288, 1
    %v2321 = vrot.slane %v2289, 1
    %v2322 = vrot.slane %v2290, 1
    %v2323 = vrot.slane %v2291, 1
    %v2324 = vrot.slane %v2292, 1
    %v2325 = vrot.slane %v2293, 1
    %v2326 = vrot.slane %v2294, 1
    %v2327 = vrot.slane %v2295, 1
    %v2328 = vrot.slane %v2296, 1
    %v2329 = vrot.slane %v2297, 1
    %v2330 = vrot.slane %v2298, 1
    %v2331 = vrot.slane %v2299, 1
    %v2332 = vrot.slane %v2300, 1
    %v2333 = vrot.slane %v2301, 1
    %v2334 = vrot.slane %v2302, 1
    %v2335 = vrot.slane %v2303, 1
    %v2336 = vrot.slane %v2304, 1
    %v2337 = vrot.slane %v2305, 1
    %v2338 = vrot.slane %v2306, 1
    %v2339 = vrot.slane %v2307, 1
    %v2340 = vrot.slane %v2308, 1
    %v2341 = vrot.slane %v2309, 1
    %v2342 = vrot.slane %v2310, 1
    %v2343 = vrot.slane %v2311, 1
    %v2344 = vrot.slane %v2312, 1
    %v2345 = vrot.slane %v2313, 1
    %v2346 = vrot.slane %v2314, 1
    %v2347 = vrot.slane %v2315, 1
    %v2348 = vrot.slane %v2316, 1
    %v2349 = vrot.slane %v2317, 1
    %v2350 = vsel %vm640, %v2348, %v2349
    %v2351 = vsel %vm640, %v2347, %v2348
    %v2352 = vsel %vm640, %v2346, %v2347
    %v2353 = vsel %vm640, %v2345, %v2346
    %v2354 = vsel %vm640, %v2344, %v2345
    %v2355 = vsel %vm640, %v2343, %v2344
    %v2356 = vsel %vm640, %v2342, %v2343
    %v2357 = vsel %vm640, %v2341, %v2342
    %v2358 = vsel %vm640, %v2340, %v2341
    %v2359 = vsel %vm640, %v2339, %v2340
    %v2360 = vsel %vm640, %v2338, %v2339
    %v2361 = vsel %vm640, %v2337, %v2338
    %v2362 = vsel %vm640, %v2336, %v2337
    %v2363 = vsel %vm640, %v2335, %v2336
    %v2364 = vsel %vm640, %v2334, %v2335
    %v2365 = vsel %vm640, %v2333, %v2334
    %v2366 = vsel %vm640, %v2332, %v2333
    %v2367 = vsel %vm640, %v2331, %v2332
    %v2368 = vsel %vm640, %v2330, %v2331
    %v2369 = vsel %vm640, %v2329, %v2330
    %v2370 = vsel %vm640, %v2328, %v2329
    %v2371 = vsel %vm640, %v2327, %v2328
    %v2372 = vsel %vm640, %v2326, %v2327
    %v2373 = vsel %vm640, %v2325, %v2326
    %v2374 = vsel %vm640, %v2324, %v2325
    %v2375 = vsel %vm640, %v2323, %v2324
    %v2376 = vsel %vm640, %v2322, %v2323
    %v2377 = vsel %vm640, %v2321, %v2322
    %v2378 = vsel %vm640, %v2320, %v2321
    %v2379 = vsel %vm640, %v2319, %v2320
    %v2380 = vsel %vm640, %v2318, %v2319
    %v2381 = vsel %vm640, %v2349, %v2318
    %v2382 = vmax.f32 %v2286, %v2380
    %v2383 = vmax.f32 %v2287, %v2379
    %v2384 = vmax.f32 %v2288, %v2378
    %v2385 = vmax.f32 %v2289, %v2377
    %v2386 = vmax.f32 %v2290, %v2376
    %v2387 = vmax.f32 %v2291, %v2375
    %v2388 = vmax.f32 %v2292, %v2374
    %v2389 = vmax.f32 %v2293, %v2373
    %v2390 = vmax.f32 %v2294, %v2372
    %v2391 = vmax.f32 %v2295, %v2371
    %v2392 = vmax.f32 %v2296, %v2370
    %v2393 = vmax.f32 %v2297, %v2369
    %v2394 = vmax.f32 %v2298, %v2368
    %v2395 = vmax.f32 %v2299, %v2367
    %v2396 = vmax.f32 %v2300, %v2366
    %v2397 = vmax.f32 %v2301, %v2365
    %v2398 = vmax.f32 %v2302, %v2364
    %v2399 = vmax.f32 %v2303, %v2363
    %v2400 = vmax.f32 %v2304, %v2362
    %v2401 = vmax.f32 %v2305, %v2361
    %v2402 = vmax.f32 %v2306, %v2360
    %v2403 = vmax.f32 %v2307, %v2359
    %v2404 = vmax.f32 %v2308, %v2358
    %v2405 = vmax.f32 %v2309, %v2357
    %v2406 = vmax.f32 %v2310, %v2356
    %v2407 = vmax.f32 %v2311, %v2355
    %v2408 = vmax.f32 %v2312, %v2354
    %v2409 = vmax.f32 %v2313, %v2353
    %v2410 = vmax.f32 %v2314, %v2352
    %v2411 = vmax.f32 %v2315, %v2351
    %v2412 = vmax.f32 %v2316, %v2350
    %v2413 = vmax.f32 %v2317, %v2381
    %v2414 = vpack.c.bf16 %v2383, %v2382
    %v2415 = vpack.c.bf16 %v2385, %v2384
    %v2416 = vpack.c.bf16 %v2387, %v2386
    %v2417 = vpack.c.bf16 %v2389, %v2388
    %v2418 = vpack.c.bf16 %v2391, %v2390
    %v2419 = vpack.c.bf16 %v2393, %v2392
    %v2420 = vpack.c.bf16 %v2395, %v2394
    %v2421 = vpack.c.bf16 %v2397, %v2396
    %v2422 = vpack.c.bf16 %v2399, %v2398
    %v2423 = vpack.c.bf16 %v2401, %v2400
    %v2424 = vpack.c.bf16 %v2403, %v2402
    %v2425 = vpack.c.bf16 %v2405, %v2404
    %v2426 = vpack.c.bf16 %v2407, %v2406
    %v2427 = vpack.c.bf16 %v2409, %v2408
    %v2428 = vpack.c.bf16 %v2411, %v2410
    %v2429 = vpack.c.bf16 %v2413, %v2412
    %v2430 = vld [vmem:[%s3] sm:$0xf]
    %v2431 = vld [vmem:[%s3 + $0x4] sm:$0xf]
    %v2432 = vld [vmem:[%s3 + $0x8] sm:$0xf]
    %v2433 = vld [vmem:[%s3 + $0xc] sm:$0x1]
    %v2434 = vrot.slane %v2382, 2
    %v2435 = vrot.slane %v2383, 2
    %v2436 = vrot.slane %v2384, 2
    %v2437 = vrot.slane %v2385, 2
    %v2438 = vrot.slane %v2386, 2
    %v2439 = vrot.slane %v2387, 2
    %v2440 = vrot.slane %v2388, 2
    %v2441 = vrot.slane %v2389, 2
    %v2442 = vrot.slane %v2390, 2
    %v2443 = vrot.slane %v2391, 2
    %v2444 = vrot.slane %v2392, 2
    %v2445 = vrot.slane %v2393, 2
    %v2446 = vrot.slane %v2394, 2
    %v2447 = vrot.slane %v2395, 2
    %v2448 = vrot.slane %v2396, 2
    %v2449 = vrot.slane %v2397, 2
    %v2450 = vrot.slane %v2398, 2
    %v2451 = vrot.slane %v2399, 2
    %v2452 = vrot.slane %v2400, 2
    %v2453 = vrot.slane %v2401, 2
    %v2454 = vrot.slane %v2402, 2
    %v2455 = vrot.slane %v2403, 2
    %v2456 = vrot.slane %v2404, 2
    %v2457 = vrot.slane %v2405, 2
    %v2458 = vrot.slane %v2406, 2
    %v2459 = vrot.slane %v2407, 2
    %v2460 = vrot.slane %v2408, 2
    %v2461 = vrot.slane %v2409, 2
    %v2462 = vrot.slane %v2410, 2
    %v2463 = vrot.slane %v2411, 2
    %v2464 = vrot.slane %v2412, 2
    %v2465 = vrot.slane %v2413, 2
    %v2466 = vsel %vm1005, %v2464, %v2465
    %v2467 = vsel %vm1005, %v2463, %v2464
    %v2468 = vsel %vm1005, %v2462, %v2463
    %v2469 = vsel %vm1005, %v2461, %v2462
    %v2470 = vsel %vm1005, %v2460, %v2461
    %v2471 = vsel %vm1005, %v2459, %v2460
    %v2472 = vsel %vm1005, %v2458, %v2459
    %v2473 = vsel %vm1005, %v2457, %v2458
    %v2474 = vsel %vm1005, %v2456, %v2457
    %v2475 = vsel %vm1005, %v2455, %v2456
    %v2476 = vsel %vm1005, %v2454, %v2455
    %v2477 = vsel %vm1005, %v2453, %v2454
    %v2478 = vsel %vm1005, %v2452, %v2453
    %v2479 = vsel %vm1005, %v2451, %v2452
    %v2480 = vsel %vm1005, %v2450, %v2451
    %v2481 = vsel %vm1005, %v2449, %v2450
    %v2482 = vsel %vm1005, %v2448, %v2449
    %v2483 = vsel %vm1005, %v2447, %v2448
    %v2484 = vsel %vm1005, %v2446, %v2447
    %v2485 = vsel %vm1005, %v2445, %v2446
    %v2486 = vsel %vm1005, %v2444, %v2445
    %v2487 = vsel %vm1005, %v2443, %v2444
    %v2488 = vsel %vm1005, %v2442, %v2443
    %v2489 = vsel %vm1005, %v2441, %v2442
    %v2490 = vsel %vm1005, %v2440, %v2441
    %v2491 = vsel %vm1005, %v2439, %v2440
    %v2492 = vsel %vm1005, %v2438, %v2439
    %v2493 = vsel %vm1005, %v2437, %v2438
    %v2494 = vsel %vm1005, %v2436, %v2437
    %v2495 = vsel %vm1005, %v2435, %v2436
    %v2496 = vsel %vm1005, %v2434, %v2435
    %v2497 = vsel %vm1005, %v2465, %v2434
    %v2498 = vpack.c.bf16 %v2495, %v2496
    %v2499 = vpack.c.bf16 %v2493, %v2494
    %v2500 = vpack.c.bf16 %v2491, %v2492
    %v2501 = vpack.c.bf16 %v2489, %v2490
    %v2502 = vpack.c.bf16 %v2487, %v2488
    %v2503 = vpack.c.bf16 %v2485, %v2486
    %v2504 = vpack.c.bf16 %v2483, %v2484
    %v2505 = vpack.c.bf16 %v2481, %v2482
    %v2506 = vpack.c.bf16 %v2479, %v2480
    %v2507 = vpack.c.bf16 %v2477, %v2478
    %v2508 = vpack.c.bf16 %v2475, %v2476
    %v2509 = vpack.c.bf16 %v2473, %v2474
    %v2510 = vpack.c.bf16 %v2471, %v2472
    %v2511 = vpack.c.bf16 %v2469, %v2470
    %v2512 = vpack.c.bf16 %v2467, %v2468
    %v2513 = vpack.c.bf16 %v2497, %v2466
    %s2514 = scalar_lea.vmem %s3, 16
    %v2515 = vld [vmem:[%s2514] sm:$0xf]
    %v2516 = vld [vmem:[%s2514 + $0x4] sm:$0xf]
    %v2517 = vld [vmem:[%s2514 + $0x8] sm:$0xf]
    %v2518 = vld [vmem:[%s2514 + $0xc] sm:$0x1]
    %v2523 = vunpack.c.l.b16 %v2515
    %v2524 = vunpack.c.l.b16 %v2516
    %v2525 = vunpack.c.l.b16 %v2517
    %v2526 = vunpack.c.l.b16 %v2518
    %v2527 = vpack.c.b16 %v2524, %v2523
    %v2528 = vpack.c.b16 %v2526, %v2525
    %v2531 = vsel %vm1866, %v2498, 0
    %v2534 = vsel %vm1866, %v2499, 0
    %v2537 = vsel %vm1866, %v2500, 0
    %v2540 = vsel %vm1866, %v2501, 0
    %v2543 = vsel %vm1866, %v2502, 0
    %v2546 = vsel %vm1866, %v2503, 0
    %v2549 = vsel %vm1866, %v2504, 0
    %v2552 = vsel %vm1866, %v2505, 0
    %v2555 = vsel %vm1866, %v2506, 0
    %v2558 = vsel %vm1866, %v2507, 0
    %v2561 = vsel %vm1866, %v2508, 0
    %v2564 = vsel %vm1866, %v2509, 0
    %v2567 = vsel %vm1866, %v2510, 0
    %v2570 = vsel %vm1866, %v2511, 0
    %v2573 = vsel %vm1866, %v2512, 0
    %v2576 = vsel %vm1866, %v2513, 0
    %vm2578 = vcmask 1043456
    %vm2579 = vcmask 1044480
    %v2580 = vsel %vm2578, 4294967295, 65535
    %v2581 = vsel %vm2579, %v2580, 0
    %v2583 = vand.u32 %v2528, %v2581
    %2585 = vmatpush.bf16.msra.mxu0 0
    %2586 = vmatpush.bf16.msra.mxu0 0
    %2587 = vmatpush.bf16.msra.mxu0 0
    %2588 = vmatpush.bf16.msra.mxu0 0
    %2589 = vmatpush.bf16.msra.mxu0 0
    %2590 = vmatpush.bf16.msra.mxu0 0
    %2591 = vmatpush.bf16.msra.mxu0 %v2583
    %2592 = vmatpush.bf16.msra.mxu0 %v2527
    %2593 = vmatmul.bf16.gmra.mxu0 %v2531
    %v2594 = vpop.f32.mrf.mxu0
    %v2595 = vadd.f32 0.0, %v2594
    %v2596 = vpop.f32.mrf.mxu0
    %v2597 = vadd.f32 0.0, %v2596
    %2598 = vmatmul.bf16.gmra.mxu0 %v2534
    %v2599 = vpop.f32.mrf.mxu0
    %v2600 = vadd.f32 0.0, %v2599
    %v2601 = vpop.f32.mrf.mxu0
    %v2602 = vadd.f32 0.0, %v2601
    %2603 = vmatmul.bf16.gmra.mxu0 %v2537
    %v2604 = vpop.f32.mrf.mxu0
    %v2605 = vadd.f32 0.0, %v2604
    %v2606 = vpop.f32.mrf.mxu0
    %v2607 = vadd.f32 0.0, %v2606
    %2608 = vmatmul.bf16.gmra.mxu0 %v2540
    %v2609 = vpop.f32.mrf.mxu0
    %v2610 = vadd.f32 0.0, %v2609
    %v2611 = vpop.f32.mrf.mxu0
    %v2612 = vadd.f32 0.0, %v2611
    %2613 = vmatmul.bf16.gmra.mxu0 %v2543
    %v2614 = vpop.f32.mrf.mxu0
    %v2615 = vadd.f32 0.0, %v2614
    %v2616 = vpop.f32.mrf.mxu0
    %v2617 = vadd.f32 0.0, %v2616
    %2618 = vmatmul.bf16.gmra.mxu0 %v2546
    %v2619 = vpop.f32.mrf.mxu0
    %v2620 = vadd.f32 0.0, %v2619
    %v2621 = vpop.f32.mrf.mxu0
    %v2622 = vadd.f32 0.0, %v2621
    %2623 = vmatmul.bf16.gmra.mxu0 %v2549
    %v2624 = vpop.f32.mrf.mxu0
    %v2625 = vadd.f32 0.0, %v2624
    %v2626 = vpop.f32.mrf.mxu0
    %v2627 = vadd.f32 0.0, %v2626
    %2628 = vmatmul.bf16.gmra.mxu0 %v2552
    %v2629 = vpop.f32.mrf.mxu0
    %v2630 = vadd.f32 0.0, %v2629
    %v2631 = vpop.f32.mrf.mxu0
    %v2632 = vadd.f32 0.0, %v2631
    %2633 = vmatmul.bf16.gmra.mxu0 %v2555
    %v2634 = vpop.f32.mrf.mxu0
    %v2635 = vadd.f32 0.0, %v2634
    %v2636 = vpop.f32.mrf.mxu0
    %v2637 = vadd.f32 0.0, %v2636
    %2638 = vmatmul.bf16.gmra.mxu0 %v2558
    %v2639 = vpop.f32.mrf.mxu0
    %v2640 = vadd.f32 0.0, %v2639
    %v2641 = vpop.f32.mrf.mxu0
    %v2642 = vadd.f32 0.0, %v2641
    %2643 = vmatmul.bf16.gmra.mxu0 %v2561
    %v2644 = vpop.f32.mrf.mxu0
    %v2645 = vadd.f32 0.0, %v2644
    %v2646 = vpop.f32.mrf.mxu0
    %v2647 = vadd.f32 0.0, %v2646
    %2648 = vmatmul.bf16.gmra.mxu0 %v2564
    %v2649 = vpop.f32.mrf.mxu0
    %v2650 = vadd.f32 0.0, %v2649
    %v2651 = vpop.f32.mrf.mxu0
    %v2652 = vadd.f32 0.0, %v2651
    %2653 = vmatmul.bf16.gmra.mxu0 %v2567
    %v2654 = vpop.f32.mrf.mxu0
    %v2655 = vadd.f32 0.0, %v2654
    %v2656 = vpop.f32.mrf.mxu0
    %v2657 = vadd.f32 0.0, %v2656
    %2658 = vmatmul.bf16.gmra.mxu0 %v2570
    %v2659 = vpop.f32.mrf.mxu0
    %v2660 = vadd.f32 0.0, %v2659
    %v2661 = vpop.f32.mrf.mxu0
    %v2662 = vadd.f32 0.0, %v2661
    %2663 = vmatmul.bf16.gmra.mxu0 %v2573
    %v2664 = vpop.f32.mrf.mxu0
    %v2665 = vadd.f32 0.0, %v2664
    %v2666 = vpop.f32.mrf.mxu0
    %v2667 = vadd.f32 0.0, %v2666
    %2668 = vmatmul.bf16.gmra.mxu0 %v2576
    %v2669 = vpop.f32.mrf.mxu0
    %v2670 = vadd.f32 0.0, %v2669
    %v2671 = vpop.f32.mrf.mxu0
    %v2672 = vadd.f32 0.0, %v2671
    %2673 = vdwg.mxu0
    %v2678 = vunpack.c.l.b16 %v2430
    %v2679 = vunpack.c.l.b16 %v2431
    %v2680 = vunpack.c.l.b16 %v2432
    %v2681 = vunpack.c.l.b16 %v2433
    %v2682 = vpack.c.b16 %v2679, %v2678
    %v2683 = vpack.c.b16 %v2681, %v2680
    %v2686 = vsel %vm1866, %v2414, 0
    %v2689 = vsel %vm1866, %v2415, 0
    %v2692 = vsel %vm1866, %v2416, 0
    %v2695 = vsel %vm1866, %v2417, 0
    %v2698 = vsel %vm1866, %v2418, 0
    %v2701 = vsel %vm1866, %v2419, 0
    %v2704 = vsel %vm1866, %v2420, 0
    %v2707 = vsel %vm1866, %v2421, 0
    %v2710 = vsel %vm1866, %v2422, 0
    %v2713 = vsel %vm1866, %v2423, 0
    %v2716 = vsel %vm1866, %v2424, 0
    %v2719 = vsel %vm1866, %v2425, 0
    %v2722 = vsel %vm1866, %v2426, 0
    %v2725 = vsel %vm1866, %v2427, 0
    %v2728 = vsel %vm1866, %v2428, 0
    %v2731 = vsel %vm1866, %v2429, 0
    %v2734 = vand.u32 %v2683, %v2581
    %2736 = vmatpush.bf16.msra.mxu0 0
    %2737 = vmatpush.bf16.msra.mxu0 0
    %2738 = vmatpush.bf16.msra.mxu0 0
    %2739 = vmatpush.bf16.msra.mxu0 0
    %2740 = vmatpush.bf16.msra.mxu0 0
    %2741 = vmatpush.bf16.msra.mxu0 0
    %2742 = vmatpush.bf16.msra.mxu0 %v2734
    %2743 = vmatpush.bf16.msra.mxu0 %v2682
    %2744 = vmatmul.bf16.gmra.mxu0 %v2686
    %v2745 = vpop.f32.mrf.mxu0
    %v2746 = vadd.f32 %v2595, %v2745
    %v2747 = vpop.f32.mrf.mxu0
    %v2748 = vadd.f32 %v2597, %v2747
    %2749 = vmatmul.bf16.gmra.mxu0 %v2689
    %v2750 = vpop.f32.mrf.mxu0
    %v2751 = vadd.f32 %v2600, %v2750
    %v2752 = vpop.f32.mrf.mxu0
    %v2753 = vadd.f32 %v2602, %v2752
    %2754 = vmatmul.bf16.gmra.mxu0 %v2692
    %v2755 = vpop.f32.mrf.mxu0
    %v2756 = vadd.f32 %v2605, %v2755
    %v2757 = vpop.f32.mrf.mxu0
    %v2758 = vadd.f32 %v2607, %v2757
    %2759 = vmatmul.bf16.gmra.mxu0 %v2695
    %v2760 = vpop.f32.mrf.mxu0
    %v2761 = vadd.f32 %v2610, %v2760
    %v2762 = vpop.f32.mrf.mxu0
    %v2763 = vadd.f32 %v2612, %v2762
    %2764 = vmatmul.bf16.gmra.mxu0 %v2698
    %v2765 = vpop.f32.mrf.mxu0
    %v2766 = vadd.f32 %v2615, %v2765
    %v2767 = vpop.f32.mrf.mxu0
    %v2768 = vadd.f32 %v2617, %v2767
    %2769 = vmatmul.bf16.gmra.mxu0 %v2701
    %v2770 = vpop.f32.mrf.mxu0
    %v2771 = vadd.f32 %v2620, %v2770
    %v2772 = vpop.f32.mrf.mxu0
    %v2773 = vadd.f32 %v2622, %v2772
    %2774 = vmatmul.bf16.gmra.mxu0 %v2704
    %v2775 = vpop.f32.mrf.mxu0
    %v2776 = vadd.f32 %v2625, %v2775
    %v2777 = vpop.f32.mrf.mxu0
    %v2778 = vadd.f32 %v2627, %v2777
    %2779 = vmatmul.bf16.gmra.mxu0 %v2707
    %v2780 = vpop.f32.mrf.mxu0
    %v2781 = vadd.f32 %v2630, %v2780
    %v2782 = vpop.f32.mrf.mxu0
    %v2783 = vadd.f32 %v2632, %v2782
    %2784 = vmatmul.bf16.gmra.mxu0 %v2710
    %v2785 = vpop.f32.mrf.mxu0
    %v2786 = vadd.f32 %v2635, %v2785
    %v2787 = vpop.f32.mrf.mxu0
    %v2788 = vadd.f32 %v2637, %v2787
    %2789 = vmatmul.bf16.gmra.mxu0 %v2713
    %v2790 = vpop.f32.mrf.mxu0
    %v2791 = vadd.f32 %v2640, %v2790
    %v2792 = vpop.f32.mrf.mxu0
    %v2793 = vadd.f32 %v2642, %v2792
    %2794 = vmatmul.bf16.gmra.mxu0 %v2716
    %v2795 = vpop.f32.mrf.mxu0
    %v2796 = vadd.f32 %v2645, %v2795
    %v2797 = vpop.f32.mrf.mxu0
    %v2798 = vadd.f32 %v2647, %v2797
    %2799 = vmatmul.bf16.gmra.mxu0 %v2719
    %v2800 = vpop.f32.mrf.mxu0
    %v2801 = vadd.f32 %v2650, %v2800
    %v2802 = vpop.f32.mrf.mxu0
    %v2803 = vadd.f32 %v2652, %v2802
    %2804 = vmatmul.bf16.gmra.mxu0 %v2722
    %v2805 = vpop.f32.mrf.mxu0
    %v2806 = vadd.f32 %v2655, %v2805
    %v2807 = vpop.f32.mrf.mxu0
    %v2808 = vadd.f32 %v2657, %v2807
    %2809 = vmatmul.bf16.gmra.mxu0 %v2725
    %v2810 = vpop.f32.mrf.mxu0
    %v2811 = vadd.f32 %v2660, %v2810
    %v2812 = vpop.f32.mrf.mxu0
    %v2813 = vadd.f32 %v2662, %v2812
    %2814 = vmatmul.bf16.gmra.mxu0 %v2728
    %v2815 = vpop.f32.mrf.mxu0
    %v2816 = vadd.f32 %v2665, %v2815
    %v2817 = vpop.f32.mrf.mxu0
    %v2818 = vadd.f32 %v2667, %v2817
    %2819 = vmatmul.bf16.gmra.mxu0 %v2731
    %v2820 = vpop.f32.mrf.mxu0
    %v2821 = vadd.f32 %v2670, %v2820
    %v2822 = vpop.f32.mrf.mxu0
    %v2823 = vadd.f32 %v2672, %v2822
    %2824 = vdwg.mxu0
    %v2825 = vrot.slane %v2382, 4
    %v2826 = vrot.slane %v2383, 4
    %v2827 = vrot.slane %v2384, 4
    %v2828 = vrot.slane %v2385, 4
    %v2829 = vrot.slane %v2386, 4
    %v2830 = vrot.slane %v2387, 4
    %v2831 = vrot.slane %v2388, 4
    %v2832 = vrot.slane %v2389, 4
    %v2833 = vrot.slane %v2390, 4
    %v2834 = vrot.slane %v2391, 4
    %v2835 = vrot.slane %v2392, 4
    %v2836 = vrot.slane %v2393, 4
    %v2837 = vrot.slane %v2394, 4
    %v2838 = vrot.slane %v2395, 4
    %v2839 = vrot.slane %v2396, 4
    %v2840 = vrot.slane %v2397, 4
    %v2841 = vrot.slane %v2398, 4
    %v2842 = vrot.slane %v2399, 4
    %v2843 = vrot.slane %v2400, 4
    %v2844 = vrot.slane %v2401, 4
    %v2845 = vrot.slane %v2402, 4
    %v2846 = vrot.slane %v2403, 4
    %v2847 = vrot.slane %v2404, 4
    %v2848 = vrot.slane %v2405, 4
    %v2849 = vrot.slane %v2406, 4
    %v2850 = vrot.slane %v2407, 4
    %v2851 = vrot.slane %v2408, 4
    %v2852 = vrot.slane %v2409, 4
    %v2853 = vrot.slane %v2410, 4
    %v2854 = vrot.slane %v2411, 4
    %v2855 = vrot.slane %v2412, 4
    %v2856 = vrot.slane %v2413, 4
    %v2857 = vsel %vm1515, %v2855, %v2856
    %v2858 = vsel %vm1515, %v2854, %v2855
    %v2859 = vsel %vm1515, %v2853, %v2854
    %v2860 = vsel %vm1515, %v2852, %v2853
    %v2861 = vsel %vm1515, %v2851, %v2852
    %v2862 = vsel %vm1515, %v2850, %v2851
    %v2863 = vsel %vm1515, %v2849, %v2850
    %v2864 = vsel %vm1515, %v2848, %v2849
    %v2865 = vsel %vm1515, %v2847, %v2848
    %v2866 = vsel %vm1515, %v2846, %v2847
    %v2867 = vsel %vm1515, %v2845, %v2846
    %v2868 = vsel %vm1515, %v2844, %v2845
    %v2869 = vsel %vm1515, %v2843, %v2844
    %v2870 = vsel %vm1515, %v2842, %v2843
    %v2871 = vsel %vm1515, %v2841, %v2842
    %v2872 = vsel %vm1515, %v2840, %v2841
    %v2873 = vsel %vm1515, %v2839, %v2840
    %v2874 = vsel %vm1515, %v2838, %v2839
    %v2875 = vsel %vm1515, %v2837, %v2838
    %v2876 = vsel %vm1515, %v2836, %v2837
    %v2877 = vsel %vm1515, %v2835, %v2836
    %v2878 = vsel %vm1515, %v2834, %v2835
    %v2879 = vsel %vm1515, %v2833, %v2834
    %v2880 = vsel %vm1515, %v2832, %v2833
    %v2881 = vsel %vm1515, %v2831, %v2832
    %v2882 = vsel %vm1515, %v2830, %v2831
    %v2883 = vsel %vm1515, %v2829, %v2830
    %v2884 = vsel %vm1515, %v2828, %v2829
    %v2885 = vsel %vm1515, %v2827, %v2828
    %v2886 = vsel %vm1515, %v2826, %v2827
    %v2887 = vsel %vm1515, %v2825, %v2826
    %v2888 = vsel %vm1515, %v2856, %v2825
    %v2889 = vpack.c.bf16 %v2886, %v2887
    %v2890 = vpack.c.bf16 %v2884, %v2885
    %v2891 = vpack.c.bf16 %v2882, %v2883
    %v2892 = vpack.c.bf16 %v2880, %v2881
    %v2893 = vpack.c.bf16 %v2878, %v2879
    %v2894 = vpack.c.bf16 %v2876, %v2877
    %v2895 = vpack.c.bf16 %v2874, %v2875
    %v2896 = vpack.c.bf16 %v2872, %v2873
    %v2897 = vpack.c.bf16 %v2870, %v2871
    %v2898 = vpack.c.bf16 %v2868, %v2869
    %v2899 = vpack.c.bf16 %v2866, %v2867
    %v2900 = vpack.c.bf16 %v2864, %v2865
    %v2901 = vpack.c.bf16 %v2862, %v2863
    %v2902 = vpack.c.bf16 %v2860, %v2861
    %v2903 = vpack.c.bf16 %v2858, %v2859
    %v2904 = vpack.c.bf16 %v2888, %v2857
    %s2905 = scalar_lea.vmem %s3, 32
    %v2906 = vld [vmem:[%s2905] sm:$0xf]
    %v2907 = vld [vmem:[%s2905 + $0x4] sm:$0xf]
    %v2908 = vld [vmem:[%s2905 + $0x8] sm:$0xf]
    %v2909 = vld [vmem:[%s2905 + $0xc] sm:$0x1]
    %v2914 = vunpack.c.l.b16 %v2906
    %v2915 = vunpack.c.l.b16 %v2907
    %v2916 = vunpack.c.l.b16 %v2908
    %v2917 = vunpack.c.l.b16 %v2909
    %v2918 = vpack.c.b16 %v2915, %v2914
    %v2919 = vpack.c.b16 %v2917, %v2916
    %v2922 = vsel %vm1866, %v2889, 0
    %v2925 = vsel %vm1866, %v2890, 0
    %v2928 = vsel %vm1866, %v2891, 0
    %v2931 = vsel %vm1866, %v2892, 0
    %v2934 = vsel %vm1866, %v2893, 0
    %v2937 = vsel %vm1866, %v2894, 0
    %v2940 = vsel %vm1866, %v2895, 0
    %v2943 = vsel %vm1866, %v2896, 0
    %v2946 = vsel %vm1866, %v2897, 0
    %v2949 = vsel %vm1866, %v2898, 0
    %v2952 = vsel %vm1866, %v2899, 0
    %v2955 = vsel %vm1866, %v2900, 0
    %v2958 = vsel %vm1866, %v2901, 0
    %v2961 = vsel %vm1866, %v2902, 0
    %v2964 = vsel %vm1866, %v2903, 0
    %v2967 = vsel %vm1866, %v2904, 0
    %v2970 = vand.u32 %v2919, %v2581
    %2972 = vmatpush.bf16.msra.mxu0 0
    %2973 = vmatpush.bf16.msra.mxu0 0
    %2974 = vmatpush.bf16.msra.mxu0 0
    %2975 = vmatpush.bf16.msra.mxu0 0
    %2976 = vmatpush.bf16.msra.mxu0 0
    %2977 = vmatpush.bf16.msra.mxu0 0
    %2978 = vmatpush.bf16.msra.mxu0 %v2970
    %2979 = vmatpush.bf16.msra.mxu0 %v2918
    %2980 = vmatmul.bf16.gmra.mxu0 %v2922
    %v2981 = vpop.f32.mrf.mxu0
    %v2982 = vadd.f32 0.0, %v2981
    %v2983 = vpop.f32.mrf.mxu0
    %v2984 = vadd.f32 0.0, %v2983
    %2985 = vmatmul.bf16.gmra.mxu0 %v2925
    %v2986 = vpop.f32.mrf.mxu0
    %v2987 = vadd.f32 0.0, %v2986
    %v2988 = vpop.f32.mrf.mxu0
    %v2989 = vadd.f32 0.0, %v2988
    %2990 = vmatmul.bf16.gmra.mxu0 %v2928
    %v2991 = vpop.f32.mrf.mxu0
    %v2992 = vadd.f32 0.0, %v2991
    %v2993 = vpop.f32.mrf.mxu0
    %v2994 = vadd.f32 0.0, %v2993
    %2995 = vmatmul.bf16.gmra.mxu0 %v2931
    %v2996 = vpop.f32.mrf.mxu0
    %v2997 = vadd.f32 0.0, %v2996
    %v2998 = vpop.f32.mrf.mxu0
    %v2999 = vadd.f32 0.0, %v2998
    %3000 = vmatmul.bf16.gmra.mxu0 %v2934
    %v3001 = vpop.f32.mrf.mxu0
    %v3002 = vadd.f32 0.0, %v3001
    %v3003 = vpop.f32.mrf.mxu0
    %v3004 = vadd.f32 0.0, %v3003
    %3005 = vmatmul.bf16.gmra.mxu0 %v2937
    %v3006 = vpop.f32.mrf.mxu0
    %v3007 = vadd.f32 0.0, %v3006
    %v3008 = vpop.f32.mrf.mxu0
    %v3009 = vadd.f32 0.0, %v3008
    %3010 = vmatmul.bf16.gmra.mxu0 %v2940
    %v3011 = vpop.f32.mrf.mxu0
    %v3012 = vadd.f32 0.0, %v3011
    %v3013 = vpop.f32.mrf.mxu0
    %v3014 = vadd.f32 0.0, %v3013
    %3015 = vmatmul.bf16.gmra.mxu0 %v2943
    %v3016 = vpop.f32.mrf.mxu0
    %v3017 = vadd.f32 0.0, %v3016
    %v3018 = vpop.f32.mrf.mxu0
    %v3019 = vadd.f32 0.0, %v3018
    %3020 = vmatmul.bf16.gmra.mxu0 %v2946
    %v3021 = vpop.f32.mrf.mxu0
    %v3022 = vadd.f32 0.0, %v3021
    %v3023 = vpop.f32.mrf.mxu0
    %v3024 = vadd.f32 0.0, %v3023
    %3025 = vmatmul.bf16.gmra.mxu0 %v2949
    %v3026 = vpop.f32.mrf.mxu0
    %v3027 = vadd.f32 0.0, %v3026
    %v3028 = vpop.f32.mrf.mxu0
    %v3029 = vadd.f32 0.0, %v3028
    %3030 = vmatmul.bf16.gmra.mxu0 %v2952
    %v3031 = vpop.f32.mrf.mxu0
    %v3032 = vadd.f32 0.0, %v3031
    %v3033 = vpop.f32.mrf.mxu0
    %v3034 = vadd.f32 0.0, %v3033
    %3035 = vmatmul.bf16.gmra.mxu0 %v2955
    %v3036 = vpop.f32.mrf.mxu0
    %v3037 = vadd.f32 0.0, %v3036
    %v3038 = vpop.f32.mrf.mxu0
    %v3039 = vadd.f32 0.0, %v3038
    %3040 = vmatmul.bf16.gmra.mxu0 %v2958
    %v3041 = vpop.f32.mrf.mxu0
    %v3042 = vadd.f32 0.0, %v3041
    %v3043 = vpop.f32.mrf.mxu0
    %v3044 = vadd.f32 0.0, %v3043
    %3045 = vmatmul.bf16.gmra.mxu0 %v2961
    %v3046 = vpop.f32.mrf.mxu0
    %v3047 = vadd.f32 0.0, %v3046
    %v3048 = vpop.f32.mrf.mxu0
    %v3049 = vadd.f32 0.0, %v3048
    %3050 = vmatmul.bf16.gmra.mxu0 %v2964
    %v3051 = vpop.f32.mrf.mxu0
    %v3052 = vadd.f32 0.0, %v3051
    %v3053 = vpop.f32.mrf.mxu0
    %v3054 = vadd.f32 0.0, %v3053
    %3055 = vmatmul.bf16.gmra.mxu0 %v2967
    %v3056 = vpop.f32.mrf.mxu0
    %v3057 = vadd.f32 0.0, %v3056
    %v3058 = vpop.f32.mrf.mxu0
    %v3059 = vadd.f32 0.0, %v3058
    %3060 = vdwg.mxu0
    %v3061 = vadd.f32 %v2746, %v2982
    %v3062 = vadd.f32 %v2748, %v2984
    %v3063 = vadd.f32 %v2751, %v2987
    %v3064 = vadd.f32 %v2753, %v2989
    %v3065 = vadd.f32 %v2756, %v2992
    %v3066 = vadd.f32 %v2758, %v2994
    %v3067 = vadd.f32 %v2761, %v2997
    %v3068 = vadd.f32 %v2763, %v2999
    %v3069 = vadd.f32 %v2766, %v3002
    %v3070 = vadd.f32 %v2768, %v3004
    %v3071 = vadd.f32 %v2771, %v3007
    %v3072 = vadd.f32 %v2773, %v3009
    %v3073 = vadd.f32 %v2776, %v3012
    %v3074 = vadd.f32 %v2778, %v3014
    %v3075 = vadd.f32 %v2781, %v3017
    %v3076 = vadd.f32 %v2783, %v3019
    %v3077 = vadd.f32 %v2786, %v3022
    %v3078 = vadd.f32 %v2788, %v3024
    %v3079 = vadd.f32 %v2791, %v3027
    %v3080 = vadd.f32 %v2793, %v3029
    %v3081 = vadd.f32 %v2796, %v3032
    %v3082 = vadd.f32 %v2798, %v3034
    %v3083 = vadd.f32 %v2801, %v3037
    %v3084 = vadd.f32 %v2803, %v3039
    %v3085 = vadd.f32 %v2806, %v3042
    %v3086 = vadd.f32 %v2808, %v3044
    %v3087 = vadd.f32 %v2811, %v3047
    %v3088 = vadd.f32 %v2813, %v3049
    %v3089 = vadd.f32 %v2816, %v3052
    %v3090 = vadd.f32 %v2818, %v3054
    %v3091 = vadd.f32 %v2821, %v3057
    %v3092 = vadd.f32 %v2823, %v3059
    %v3093 = vrot.slane %v2382, 6
    %v3094 = vrot.slane %v2383, 6
    %v3095 = vrot.slane %v2384, 6
    %v3096 = vrot.slane %v2385, 6
    %v3097 = vrot.slane %v2386, 6
    %v3098 = vrot.slane %v2387, 6
    %v3099 = vrot.slane %v2388, 6
    %v3100 = vrot.slane %v2389, 6
    %v3101 = vrot.slane %v2390, 6
    %v3102 = vrot.slane %v2391, 6
    %v3103 = vrot.slane %v2392, 6
    %v3104 = vrot.slane %v2393, 6
    %v3105 = vrot.slane %v2394, 6
    %v3106 = vrot.slane %v2395, 6
    %v3107 = vrot.slane %v2396, 6
    %v3108 = vrot.slane %v2397, 6
    %v3109 = vrot.slane %v2398, 6
    %v3110 = vrot.slane %v2399, 6
    %v3111 = vrot.slane %v2400, 6
    %v3112 = vrot.slane %v2401, 6
    %v3113 = vrot.slane %v2402, 6
    %v3114 = vrot.slane %v2403, 6
    %v3115 = vrot.slane %v2404, 6
    %v3116 = vrot.slane %v2405, 6
    %v3117 = vrot.slane %v2406, 6
    %v3118 = vrot.slane %v2407, 6
    %v3119 = vrot.slane %v2408, 6
    %v3120 = vrot.slane %v2409, 6
    %v3121 = vrot.slane %v2410, 6
    %v3122 = vrot.slane %v2411, 6
    %v3123 = vrot.slane %v2412, 6
    %v3124 = vrot.slane %v2413, 6
    %vm3125 = vcmp.lt.s32.totalorder %v47, 2
    %v3126 = vsel %vm3125, %v3123, %v3124
    %v3127 = vsel %vm3125, %v3122, %v3123
    %v3128 = vsel %vm3125, %v3121, %v3122
    %v3129 = vsel %vm3125, %v3120, %v3121
    %v3130 = vsel %vm3125, %v3119, %v3120
    %v3131 = vsel %vm3125, %v3118, %v3119
    %v3132 = vsel %vm3125, %v3117, %v3118
    %v3133 = vsel %vm3125, %v3116, %v3117
    %v3134 = vsel %vm3125, %v3115, %v3116
    %v3135 = vsel %vm3125, %v3114, %v3115
    %v3136 = vsel %vm3125, %v3113, %v3114
    %v3137 = vsel %vm3125, %v3112, %v3113
    %v3138 = vsel %vm3125, %v3111, %v3112
    %v3139 = vsel %vm3125, %v3110, %v3111
    %v3140 = vsel %vm3125, %v3109, %v3110
    %v3141 = vsel %vm3125, %v3108, %v3109
    %v3142 = vsel %vm3125, %v3107, %v3108
    %v3143 = vsel %vm3125, %v3106, %v3107
    %v3144 = vsel %vm3125, %v3105, %v3106
    %v3145 = vsel %vm3125, %v3104, %v3105
    %v3146 = vsel %vm3125, %v3103, %v3104
    %v3147 = vsel %vm3125, %v3102, %v3103
    %v3148 = vsel %vm3125, %v3101, %v3102
    %v3149 = vsel %vm3125, %v3100, %v3101
    %v3150 = vsel %vm3125, %v3099, %v3100
    %v3151 = vsel %vm3125, %v3098, %v3099
    %v3152 = vsel %vm3125, %v3097, %v3098
    %v3153 = vsel %vm3125, %v3096, %v3097
    %v3154 = vsel %vm3125, %v3095, %v3096
    %v3155 = vsel %vm3125, %v3094, %v3095
    %v3156 = vsel %vm3125, %v3093, %v3094
    %v3157 = vsel %vm3125, %v3124, %v3093
    %v3158 = vpack.c.bf16 %v3155, %v3156
    %v3159 = vpack.c.bf16 %v3153, %v3154
    %v3160 = vpack.c.bf16 %v3151, %v3152
    %v3161 = vpack.c.bf16 %v3149, %v3150
    %v3162 = vpack.c.bf16 %v3147, %v3148
    %v3163 = vpack.c.bf16 %v3145, %v3146
    %v3164 = vpack.c.bf16 %v3143, %v3144
    %v3165 = vpack.c.bf16 %v3141, %v3142
    %v3166 = vpack.c.bf16 %v3139, %v3140
    %v3167 = vpack.c.bf16 %v3137, %v3138
    %v3168 = vpack.c.bf16 %v3135, %v3136
    %v3169 = vpack.c.bf16 %v3133, %v3134
    %v3170 = vpack.c.bf16 %v3131, %v3132
    %v3171 = vpack.c.bf16 %v3129, %v3130
    %v3172 = vpack.c.bf16 %v3127, %v3128
    %v3173 = vpack.c.bf16 %v3157, %v3126
    %s3174 = scalar_lea.vmem %s3, 48
    %v3175 = vld [vmem:[%s3174] sm:$0xf]
    %v3176 = vld [vmem:[%s3174 + $0x4] sm:$0xf]
    %v3177 = vld [vmem:[%s3174 + $0x8] sm:$0xf]
    %v3178 = vld [vmem:[%s3174 + $0xc] sm:$0x1]
    %v3183 = vunpack.c.l.b16 %v3175
    %v3184 = vunpack.c.l.b16 %v3176
    %v3185 = vunpack.c.l.b16 %v3177
    %v3186 = vunpack.c.l.b16 %v3178
    %v3187 = vpack.c.b16 %v3184, %v3183
    %v3188 = vpack.c.b16 %v3186, %v3185
    %v3191 = vsel %vm1866, %v3158, 0
    %v3194 = vsel %vm1866, %v3159, 0
    %v3197 = vsel %vm1866, %v3160, 0
    %v3200 = vsel %vm1866, %v3161, 0
    %v3203 = vsel %vm1866, %v3162, 0
    %v3206 = vsel %vm1866, %v3163, 0
    %v3209 = vsel %vm1866, %v3164, 0
    %v3212 = vsel %vm1866, %v3165, 0
    %v3215 = vsel %vm1866, %v3166, 0
    %v3218 = vsel %vm1866, %v3167, 0
    %v3221 = vsel %vm1866, %v3168, 0
    %v3224 = vsel %vm1866, %v3169, 0
    %v3227 = vsel %vm1866, %v3170, 0
    %v3230 = vsel %vm1866, %v3171, 0
    %v3233 = vsel %vm1866, %v3172, 0
    %v3236 = vsel %vm1866, %v3173, 0
    %v3239 = vand.u32 %v3188, %v2581
    %3241 = vmatpush.bf16.msra.mxu0 0
    %3242 = vmatpush.bf16.msra.mxu0 0
    %3243 = vmatpush.bf16.msra.mxu0 0
    %3244 = vmatpush.bf16.msra.mxu0 0
    %3245 = vmatpush.bf16.msra.mxu0 0
    %3246 = vmatpush.bf16.msra.mxu0 0
    %3247 = vmatpush.bf16.msra.mxu0 %v3239
    %3248 = vmatpush.bf16.msra.mxu0 %v3187
    %3249 = vmatmul.bf16.gmra.mxu0 %v3191
    %v3250 = vpop.f32.mrf.mxu0
    %v3251 = vadd.f32 0.0, %v3250
    %v3252 = vpop.f32.mrf.mxu0
    %v3253 = vadd.f32 0.0, %v3252
    %3254 = vmatmul.bf16.gmra.mxu0 %v3194
    %v3255 = vpop.f32.mrf.mxu0
    %v3256 = vadd.f32 0.0, %v3255
    %v3257 = vpop.f32.mrf.mxu0
    %v3258 = vadd.f32 0.0, %v3257
    %3259 = vmatmul.bf16.gmra.mxu0 %v3197
    %v3260 = vpop.f32.mrf.mxu0
    %v3261 = vadd.f32 0.0, %v3260
    %v3262 = vpop.f32.mrf.mxu0
    %v3263 = vadd.f32 0.0, %v3262
    %3264 = vmatmul.bf16.gmra.mxu0 %v3200
    %v3265 = vpop.f32.mrf.mxu0
    %v3266 = vadd.f32 0.0, %v3265
    %v3267 = vpop.f32.mrf.mxu0
    %v3268 = vadd.f32 0.0, %v3267
    %3269 = vmatmul.bf16.gmra.mxu0 %v3203
    %v3270 = vpop.f32.mrf.mxu0
    %v3271 = vadd.f32 0.0, %v3270
    %v3272 = vpop.f32.mrf.mxu0
    %v3273 = vadd.f32 0.0, %v3272
    %3274 = vmatmul.bf16.gmra.mxu0 %v3206
    %v3275 = vpop.f32.mrf.mxu0
    %v3276 = vadd.f32 0.0, %v3275
    %v3277 = vpop.f32.mrf.mxu0
    %v3278 = vadd.f32 0.0, %v3277
    %3279 = vmatmul.bf16.gmra.mxu0 %v3209
    %v3280 = vpop.f32.mrf.mxu0
    %v3281 = vadd.f32 0.0, %v3280
    %v3282 = vpop.f32.mrf.mxu0
    %v3283 = vadd.f32 0.0, %v3282
    %3284 = vmatmul.bf16.gmra.mxu0 %v3212
    %v3285 = vpop.f32.mrf.mxu0
    %v3286 = vadd.f32 0.0, %v3285
    %v3287 = vpop.f32.mrf.mxu0
    %v3288 = vadd.f32 0.0, %v3287
    %3289 = vmatmul.bf16.gmra.mxu0 %v3215
    %v3290 = vpop.f32.mrf.mxu0
    %v3291 = vadd.f32 0.0, %v3290
    %v3292 = vpop.f32.mrf.mxu0
    %v3293 = vadd.f32 0.0, %v3292
    %3294 = vmatmul.bf16.gmra.mxu0 %v3218
    %v3295 = vpop.f32.mrf.mxu0
    %v3296 = vadd.f32 0.0, %v3295
    %v3297 = vpop.f32.mrf.mxu0
    %v3298 = vadd.f32 0.0, %v3297
    %3299 = vmatmul.bf16.gmra.mxu0 %v3221
    %v3300 = vpop.f32.mrf.mxu0
    %v3301 = vadd.f32 0.0, %v3300
    %v3302 = vpop.f32.mrf.mxu0
    %v3303 = vadd.f32 0.0, %v3302
    %3304 = vmatmul.bf16.gmra.mxu0 %v3224
    %v3305 = vpop.f32.mrf.mxu0
    %v3306 = vadd.f32 0.0, %v3305
    %v3307 = vpop.f32.mrf.mxu0
    %v3308 = vadd.f32 0.0, %v3307
    %3309 = vmatmul.bf16.gmra.mxu0 %v3227
    %v3310 = vpop.f32.mrf.mxu0
    %v3311 = vadd.f32 0.0, %v3310
    %v3312 = vpop.f32.mrf.mxu0
    %v3313 = vadd.f32 0.0, %v3312
    %3314 = vmatmul.bf16.gmra.mxu0 %v3230
    %v3315 = vpop.f32.mrf.mxu0
    %v3316 = vadd.f32 0.0, %v3315
    %v3317 = vpop.f32.mrf.mxu0
    %v3318 = vadd.f32 0.0, %v3317
    %3319 = vmatmul.bf16.gmra.mxu0 %v3233
    %v3320 = vpop.f32.mrf.mxu0
    %v3321 = vadd.f32 0.0, %v3320
    %v3322 = vpop.f32.mrf.mxu0
    %v3323 = vadd.f32 0.0, %v3322
    %3324 = vmatmul.bf16.gmra.mxu0 %v3236
    %v3325 = vpop.f32.mrf.mxu0
    %v3326 = vadd.f32 0.0, %v3325
    %v3327 = vpop.f32.mrf.mxu0
    %v3328 = vadd.f32 0.0, %v3327
    %3329 = vdwg.mxu0
    %v3330 = vadd.f32 %v3061, %v3251
    %v3331 = vadd.f32 %v3062, %v3253
    %v3332 = vadd.f32 %v3063, %v3256
    %v3333 = vadd.f32 %v3064, %v3258
    %v3334 = vadd.f32 %v3065, %v3261
    %v3335 = vadd.f32 %v3066, %v3263
    %v3336 = vadd.f32 %v3067, %v3266
    %v3337 = vadd.f32 %v3068, %v3268
    %v3338 = vadd.f32 %v3069, %v3271
    %v3339 = vadd.f32 %v3070, %v3273
    %v3340 = vadd.f32 %v3071, %v3276
    %v3341 = vadd.f32 %v3072, %v3278
    %v3342 = vadd.f32 %v3073, %v3281
    %v3343 = vadd.f32 %v3074, %v3283
    %v3344 = vadd.f32 %v3075, %v3286
    %v3345 = vadd.f32 %v3076, %v3288
    %v3346 = vadd.f32 %v3077, %v3291
    %v3347 = vadd.f32 %v3078, %v3293
    %v3348 = vadd.f32 %v3079, %v3296
    %v3349 = vadd.f32 %v3080, %v3298
    %v3350 = vadd.f32 %v3081, %v3301
    %v3351 = vadd.f32 %v3082, %v3303
    %v3352 = vadd.f32 %v3083, %v3306
    %v3353 = vadd.f32 %v3084, %v3308
    %v3354 = vadd.f32 %v3085, %v3311
    %v3355 = vadd.f32 %v3086, %v3313
    %v3356 = vadd.f32 %v3087, %v3316
    %v3357 = vadd.f32 %v3088, %v3318
    %v3358 = vadd.f32 %v3089, %v3321
    %v3359 = vadd.f32 %v3090, %v3323
    %v3360 = vadd.f32 %v3091, %v3326
    %v3361 = vadd.f32 %v3092, %v3328
    %v3362 = vpack.c.bf16 %v2384, %v2383
    %v3363 = vpack.c.bf16 %v2386, %v2385
    %v3364 = vpack.c.bf16 %v2388, %v2387
    %v3365 = vpack.c.bf16 %v2390, %v2389
    %v3366 = vpack.c.bf16 %v2392, %v2391
    %v3367 = vpack.c.bf16 %v2394, %v2393
    %v3368 = vpack.c.bf16 %v2396, %v2395
    %v3369 = vpack.c.bf16 %v2398, %v2397
    %v3370 = vpack.c.bf16 %v2400, %v2399
    %v3371 = vpack.c.bf16 %v2402, %v2401
    %v3372 = vpack.c.bf16 %v2404, %v2403
    %v3373 = vpack.c.bf16 %v2406, %v2405
    %v3374 = vpack.c.bf16 %v2408, %v2407
    %v3375 = vpack.c.bf16 %v2410, %v2409
    %v3376 = vpack.c.bf16 %v2412, %v2411
    %v3377 = vpack.c.bf16 %v2382, %v2413
    %s3378 = scalar_lea.vmem %s3, 64
    %v3379 = vld [vmem:[%s3378] sm:$0xf]
    %v3380 = vld [vmem:[%s3378 + $0x4] sm:$0xf]
    %v3381 = vld [vmem:[%s3378 + $0x8] sm:$0xf]
    %v3382 = vld [vmem:[%s3378 + $0xc] sm:$0x1]
    %v3387 = vunpack.c.l.b16 %v3379
    %v3388 = vunpack.c.l.b16 %v3380
    %v3389 = vunpack.c.l.b16 %v3381
    %v3390 = vunpack.c.l.b16 %v3382
    %v3391 = vpack.c.b16 %v3388, %v3387
    %v3392 = vpack.c.b16 %v3390, %v3389
    %v3395 = vsel %vm1866, %v3362, 0
    %v3398 = vsel %vm1866, %v3363, 0
    %v3401 = vsel %vm1866, %v3364, 0
    %v3404 = vsel %vm1866, %v3365, 0
    %v3407 = vsel %vm1866, %v3366, 0
    %v3410 = vsel %vm1866, %v3367, 0
    %v3413 = vsel %vm1866, %v3368, 0
    %v3416 = vsel %vm1866, %v3369, 0
    %v3419 = vsel %vm1866, %v3370, 0
    %v3422 = vsel %vm1866, %v3371, 0
    %v3425 = vsel %vm1866, %v3372, 0
    %v3428 = vsel %vm1866, %v3373, 0
    %v3431 = vsel %vm1866, %v3374, 0
    %v3434 = vsel %vm1866, %v3375, 0
    %v3437 = vsel %vm1866, %v3376, 0
    %v3440 = vsel %vm1866, %v3377, 0
    %v3443 = vand.u32 %v3392, %v2581
    %3445 = vmatpush.bf16.msra.mxu0 0
    %3446 = vmatpush.bf16.msra.mxu0 0
    %3447 = vmatpush.bf16.msra.mxu0 0
    %3448 = vmatpush.bf16.msra.mxu0 0
    %3449 = vmatpush.bf16.msra.mxu0 0
    %3450 = vmatpush.bf16.msra.mxu0 0
    %3451 = vmatpush.bf16.msra.mxu0 %v3443
    %3452 = vmatpush.bf16.msra.mxu0 %v3391
    %3453 = vmatmul.bf16.gmra.mxu0 %v3395
    %v3454 = vpop.f32.mrf.mxu0
    %v3455 = vadd.f32 0.0, %v3454
    %v3456 = vpop.f32.mrf.mxu0
    %v3457 = vadd.f32 0.0, %v3456
    %3458 = vmatmul.bf16.gmra.mxu0 %v3398
    %v3459 = vpop.f32.mrf.mxu0
    %v3460 = vadd.f32 0.0, %v3459
    %v3461 = vpop.f32.mrf.mxu0
    %v3462 = vadd.f32 0.0, %v3461
    %3463 = vmatmul.bf16.gmra.mxu0 %v3401
    %v3464 = vpop.f32.mrf.mxu0
    %v3465 = vadd.f32 0.0, %v3464
    %v3466 = vpop.f32.mrf.mxu0
    %v3467 = vadd.f32 0.0, %v3466
    %3468 = vmatmul.bf16.gmra.mxu0 %v3404
    %v3469 = vpop.f32.mrf.mxu0
    %v3470 = vadd.f32 0.0, %v3469
    %v3471 = vpop.f32.mrf.mxu0
    %v3472 = vadd.f32 0.0, %v3471
    %3473 = vmatmul.bf16.gmra.mxu0 %v3407
    %v3474 = vpop.f32.mrf.mxu0
    %v3475 = vadd.f32 0.0, %v3474
    %v3476 = vpop.f32.mrf.mxu0
    %v3477 = vadd.f32 0.0, %v3476
    %3478 = vmatmul.bf16.gmra.mxu0 %v3410
    %v3479 = vpop.f32.mrf.mxu0
    %v3480 = vadd.f32 0.0, %v3479
    %v3481 = vpop.f32.mrf.mxu0
    %v3482 = vadd.f32 0.0, %v3481
    %3483 = vmatmul.bf16.gmra.mxu0 %v3413
    %v3484 = vpop.f32.mrf.mxu0
    %v3485 = vadd.f32 0.0, %v3484
    %v3486 = vpop.f32.mrf.mxu0
    %v3487 = vadd.f32 0.0, %v3486
    %3488 = vmatmul.bf16.gmra.mxu0 %v3416
    %v3489 = vpop.f32.mrf.mxu0
    %v3490 = vadd.f32 0.0, %v3489
    %v3491 = vpop.f32.mrf.mxu0
    %v3492 = vadd.f32 0.0, %v3491
    %3493 = vmatmul.bf16.gmra.mxu0 %v3419
    %v3494 = vpop.f32.mrf.mxu0
    %v3495 = vadd.f32 0.0, %v3494
    %v3496 = vpop.f32.mrf.mxu0
    %v3497 = vadd.f32 0.0, %v3496
    %3498 = vmatmul.bf16.gmra.mxu0 %v3422
    %v3499 = vpop.f32.mrf.mxu0
    %v3500 = vadd.f32 0.0, %v3499
    %v3501 = vpop.f32.mrf.mxu0
    %v3502 = vadd.f32 0.0, %v3501
    %3503 = vmatmul.bf16.gmra.mxu0 %v3425
    %v3504 = vpop.f32.mrf.mxu0
    %v3505 = vadd.f32 0.0, %v3504
    %v3506 = vpop.f32.mrf.mxu0
    %v3507 = vadd.f32 0.0, %v3506
    %3508 = vmatmul.bf16.gmra.mxu0 %v3428
    %v3509 = vpop.f32.mrf.mxu0
    %v3510 = vadd.f32 0.0, %v3509
    %v3511 = vpop.f32.mrf.mxu0
    %v3512 = vadd.f32 0.0, %v3511
    %3513 = vmatmul.bf16.gmra.mxu0 %v3431
    %v3514 = vpop.f32.mrf.mxu0
    %v3515 = vadd.f32 0.0, %v3514
    %v3516 = vpop.f32.mrf.mxu0
    %v3517 = vadd.f32 0.0, %v3516
    %3518 = vmatmul.bf16.gmra.mxu0 %v3434
    %v3519 = vpop.f32.mrf.mxu0
    %v3520 = vadd.f32 0.0, %v3519
    %v3521 = vpop.f32.mrf.mxu0
    %v3522 = vadd.f32 0.0, %v3521
    %3523 = vmatmul.bf16.gmra.mxu0 %v3437
    %v3524 = vpop.f32.mrf.mxu0
    %v3525 = vadd.f32 0.0, %v3524
    %v3526 = vpop.f32.mrf.mxu0
    %v3527 = vadd.f32 0.0, %v3526
    %3528 = vmatmul.bf16.gmra.mxu0 %v3440
    %v3529 = vpop.f32.mrf.mxu0
    %v3530 = vadd.f32 0.0, %v3529
    %v3531 = vpop.f32.mrf.mxu0
    %v3532 = vadd.f32 0.0, %v3531
    %3533 = vdwg.mxu0
    %v3534 = vadd.f32 %v3330, %v3455
    %v3535 = vadd.f32 %v3331, %v3457
    %v3536 = vadd.f32 %v3332, %v3460
    %v3537 = vadd.f32 %v3333, %v3462
    %v3538 = vadd.f32 %v3334, %v3465
    %v3539 = vadd.f32 %v3335, %v3467
    %v3540 = vadd.f32 %v3336, %v3470
    %v3541 = vadd.f32 %v3337, %v3472
    %v3542 = vadd.f32 %v3338, %v3475
    %v3543 = vadd.f32 %v3339, %v3477
    %v3544 = vadd.f32 %v3340, %v3480
    %v3545 = vadd.f32 %v3341, %v3482
    %v3546 = vadd.f32 %v3342, %v3485
    %v3547 = vadd.f32 %v3343, %v3487
    %v3548 = vadd.f32 %v3344, %v3490
    %v3549 = vadd.f32 %v3345, %v3492
    %v3550 = vadd.f32 %v3346, %v3495
    %v3551 = vadd.f32 %v3347, %v3497
    %v3552 = vadd.f32 %v3348, %v3500
    %v3553 = vadd.f32 %v3349, %v3502
    %v3554 = vadd.f32 %v3350, %v3505
    %v3555 = vadd.f32 %v3351, %v3507
    %v3556 = vadd.f32 %v3352, %v3510
    %v3557 = vadd.f32 %v3353, %v3512
    %v3558 = vadd.f32 %v3354, %v3515
    %v3559 = vadd.f32 %v3355, %v3517
    %v3560 = vadd.f32 %v3356, %v3520
    %v3561 = vadd.f32 %v3357, %v3522
    %v3562 = vadd.f32 %v3358, %v3525
    %v3563 = vadd.f32 %v3359, %v3527
    %v3564 = vadd.f32 %v3360, %v3530
    %v3565 = vadd.f32 %v3361, %v3532
    %vm3566 = vcmp.lt.s32.totalorder %v431, 0
    %v3567 = vsub.s32 0, %v431
    %v3568 = vsel %vm3566, %v3567, %v431
    %v3569 = vshrl.u32 %v3568, 1
    %v3570 = vand.u32 %v3568, 1
    %v3571 = vsub.s32 0, %v3570
    %v3572 = vsel %vm3566, %v3571, %v3570
    %vm3573 = vcmp.lt.s32.totalorder %v432, 0
    %v3574 = vsub.s32 0, %v432
    %v3575 = vsel %vm3573, %v3574, %v432
    %v3576 = vshrl.u32 %v3575, 1
    %v3577 = vand.u32 %v3575, 1
    %v3578 = vsub.s32 0, %v3577
    %v3579 = vsel %vm3573, %v3578, %v3577
    %vm3580 = vcmp.lt.s32.totalorder %v433, 0
    %v3581 = vsub.s32 0, %v433
    %v3582 = vsel %vm3580, %v3581, %v433
    %v3583 = vshrl.u32 %v3582, 1
    %v3584 = vand.u32 %v3582, 1
    %v3585 = vsub.s32 0, %v3584
    %v3586 = vsel %vm3580, %v3585, %v3584
    %vm3587 = vcmp.lt.s32.totalorder %v434, 0
    %v3588 = vsub.s32 0, %v434
    %v3589 = vsel %vm3587, %v3588, %v434
    %v3590 = vshrl.u32 %v3589, 1
    %v3591 = vand.u32 %v3589, 1
    %v3592 = vsub.s32 0, %v3591
    %v3593 = vsel %vm3587, %v3592, %v3591
    %vm3594 = vcmp.lt.s32.totalorder %v435, 0
    %v3595 = vsub.s32 0, %v435
    %v3596 = vsel %vm3594, %v3595, %v435
    %v3597 = vshrl.u32 %v3596, 1
    %v3598 = vand.u32 %v3596, 1
    %v3599 = vsub.s32 0, %v3598
    %v3600 = vsel %vm3594, %v3599, %v3598
    %vm3601 = vcmp.lt.s32.totalorder %v436, 0
    %v3602 = vsub.s32 0, %v436
    %v3603 = vsel %vm3601, %v3602, %v436
    %v3604 = vshrl.u32 %v3603, 1
    %v3605 = vand.u32 %v3603, 1
    %v3606 = vsub.s32 0, %v3605
    %v3607 = vsel %vm3601, %v3606, %v3605
    %vm3608 = vcmp.lt.s32.totalorder %v437, 0
    %v3609 = vsub.s32 0, %v437
    %v3610 = vsel %vm3608, %v3609, %v437
    %v3611 = vshrl.u32 %v3610, 1
    %v3612 = vand.u32 %v3610, 1
    %v3613 = vsub.s32 0, %v3612
    %v3614 = vsel %vm3608, %v3613, %v3612
    %vm3615 = vcmp.lt.s32.totalorder %v438, 0
    %v3616 = vsub.s32 0, %v438
    %v3617 = vsel %vm3615, %v3616, %v438
    %v3618 = vshrl.u32 %v3617, 1
    %v3619 = vand.u32 %v3617, 1
    %v3620 = vsub.s32 0, %v3619
    %v3621 = vsel %vm3615, %v3620, %v3619
    %vm3622 = vcmp.lt.s32.totalorder %v439, 0
    %v3623 = vsub.s32 0, %v439
    %v3624 = vsel %vm3622, %v3623, %v439
    %v3625 = vshrl.u32 %v3624, 1
    %v3626 = vand.u32 %v3624, 1
    %v3627 = vsub.s32 0, %v3626
    %v3628 = vsel %vm3622, %v3627, %v3626
    %vm3629 = vcmp.lt.s32.totalorder %v440, 0
    %v3630 = vsub.s32 0, %v440
    %v3631 = vsel %vm3629, %v3630, %v440
    %v3632 = vshrl.u32 %v3631, 1
    %v3633 = vand.u32 %v3631, 1
    %v3634 = vsub.s32 0, %v3633
    %v3635 = vsel %vm3629, %v3634, %v3633
    %vm3636 = vcmp.lt.s32.totalorder %v441, 0
    %v3637 = vsub.s32 0, %v441
    %v3638 = vsel %vm3636, %v3637, %v441
    %v3639 = vshrl.u32 %v3638, 1
    %v3640 = vand.u32 %v3638, 1
    %v3641 = vsub.s32 0, %v3640
    %v3642 = vsel %vm3636, %v3641, %v3640
    %vm3643 = vcmp.lt.s32.totalorder %v442, 0
    %v3644 = vsub.s32 0, %v442
    %v3645 = vsel %vm3643, %v3644, %v442
    %v3646 = vshrl.u32 %v3645, 1
    %v3647 = vand.u32 %v3645, 1
    %v3648 = vsub.s32 0, %v3647
    %v3649 = vsel %vm3643, %v3648, %v3647
    %vm3650 = vcmp.lt.s32.totalorder %v443, 0
    %v3651 = vsub.s32 0, %v443
    %v3652 = vsel %vm3650, %v3651, %v443
    %v3653 = vshrl.u32 %v3652, 1
    %v3654 = vand.u32 %v3652, 1
    %v3655 = vsub.s32 0, %v3654
    %v3656 = vsel %vm3650, %v3655, %v3654
    %vm3657 = vcmp.lt.s32.totalorder %v444, 0
    %v3658 = vsub.s32 0, %v444
    %v3659 = vsel %vm3657, %v3658, %v444
    %v3660 = vshrl.u32 %v3659, 1
    %v3661 = vand.u32 %v3659, 1
    %v3662 = vsub.s32 0, %v3661
    %v3663 = vsel %vm3657, %v3662, %v3661
    %vm3664 = vcmp.lt.s32.totalorder %v445, 0
    %v3665 = vsub.s32 0, %v445
    %v3666 = vsel %vm3664, %v3665, %v445
    %v3667 = vshrl.u32 %v3666, 1
    %v3668 = vand.u32 %v3666, 1
    %v3669 = vsub.s32 0, %v3668
    %v3670 = vsel %vm3664, %v3669, %v3668
    %vm3671 = vcmp.lt.s32.totalorder %v446, 0
    %v3672 = vsub.s32 0, %v446
    %v3673 = vsel %vm3671, %v3672, %v446
    %v3674 = vshrl.u32 %v3673, 1
    %v3675 = vand.u32 %v3673, 1
    %v3676 = vsub.s32 0, %v3675
    %v3677 = vsel %vm3671, %v3676, %v3675
    %vm3678 = vcmp.lt.s32.totalorder %v447, 0
    %v3679 = vsub.s32 0, %v447
    %v3680 = vsel %vm3678, %v3679, %v447
    %v3681 = vshrl.u32 %v3680, 1
    %v3682 = vand.u32 %v3680, 1
    %v3683 = vsub.s32 0, %v3682
    %v3684 = vsel %vm3678, %v3683, %v3682
    %vm3685 = vcmp.lt.s32.totalorder %v448, 0
    %v3686 = vsub.s32 0, %v448
    %v3687 = vsel %vm3685, %v3686, %v448
    %v3688 = vshrl.u32 %v3687, 1
    %v3689 = vand.u32 %v3687, 1
    %v3690 = vsub.s32 0, %v3689
    %v3691 = vsel %vm3685, %v3690, %v3689
    %vm3692 = vcmp.lt.s32.totalorder %v449, 0
    %v3693 = vsub.s32 0, %v449
    %v3694 = vsel %vm3692, %v3693, %v449
    %v3695 = vshrl.u32 %v3694, 1
    %v3696 = vand.u32 %v3694, 1
    %v3697 = vsub.s32 0, %v3696
    %v3698 = vsel %vm3692, %v3697, %v3696
    %vm3699 = vcmp.lt.s32.totalorder %v450, 0
    %v3700 = vsub.s32 0, %v450
    %v3701 = vsel %vm3699, %v3700, %v450
    %v3702 = vshrl.u32 %v3701, 1
    %v3703 = vand.u32 %v3701, 1
    %v3704 = vsub.s32 0, %v3703
    %v3705 = vsel %vm3699, %v3704, %v3703
    %vm3706 = vcmp.lt.s32.totalorder %v451, 0
    %v3707 = vsub.s32 0, %v451
    %v3708 = vsel %vm3706, %v3707, %v451
    %v3709 = vshrl.u32 %v3708, 1
    %v3710 = vand.u32 %v3708, 1
    %v3711 = vsub.s32 0, %v3710
    %v3712 = vsel %vm3706, %v3711, %v3710
    %vm3713 = vcmp.lt.s32.totalorder %v452, 0
    %v3714 = vsub.s32 0, %v452
    %v3715 = vsel %vm3713, %v3714, %v452
    %v3716 = vshrl.u32 %v3715, 1
    %v3717 = vand.u32 %v3715, 1
    %v3718 = vsub.s32 0, %v3717
    %v3719 = vsel %vm3713, %v3718, %v3717
    %vm3720 = vcmp.lt.s32.totalorder %v453, 0
    %v3721 = vsub.s32 0, %v453
    %v3722 = vsel %vm3720, %v3721, %v453
    %v3723 = vshrl.u32 %v3722, 1
    %v3724 = vand.u32 %v3722, 1
    %v3725 = vsub.s32 0, %v3724
    %v3726 = vsel %vm3720, %v3725, %v3724
    %vm3727 = vcmp.lt.s32.totalorder %v454, 0
    %v3728 = vsub.s32 0, %v454
    %v3729 = vsel %vm3727, %v3728, %v454
    %v3730 = vshrl.u32 %v3729, 1
    %v3731 = vand.u32 %v3729, 1
    %v3732 = vsub.s32 0, %v3731
    %v3733 = vsel %vm3727, %v3732, %v3731
    %vm3734 = vcmp.lt.s32.totalorder %v455, 0
    %v3735 = vsub.s32 0, %v455
    %v3736 = vsel %vm3734, %v3735, %v455
    %v3737 = vshrl.u32 %v3736, 1
    %v3738 = vand.u32 %v3736, 1
    %v3739 = vsub.s32 0, %v3738
    %v3740 = vsel %vm3734, %v3739, %v3738
    %vm3741 = vcmp.lt.s32.totalorder %v456, 0
    %v3742 = vsub.s32 0, %v456
    %v3743 = vsel %vm3741, %v3742, %v456
    %v3744 = vshrl.u32 %v3743, 1
    %v3745 = vand.u32 %v3743, 1
    %v3746 = vsub.s32 0, %v3745
    %v3747 = vsel %vm3741, %v3746, %v3745
    %vm3748 = vcmp.lt.s32.totalorder %v457, 0
    %v3749 = vsub.s32 0, %v457
    %v3750 = vsel %vm3748, %v3749, %v457
    %v3751 = vshrl.u32 %v3750, 1
    %v3752 = vand.u32 %v3750, 1
    %v3753 = vsub.s32 0, %v3752
    %v3754 = vsel %vm3748, %v3753, %v3752
    %vm3755 = vcmp.lt.s32.totalorder %v458, 0
    %v3756 = vsub.s32 0, %v458
    %v3757 = vsel %vm3755, %v3756, %v458
    %v3758 = vshrl.u32 %v3757, 1
    %v3759 = vand.u32 %v3757, 1
    %v3760 = vsub.s32 0, %v3759
    %v3761 = vsel %vm3755, %v3760, %v3759
    %vm3762 = vcmp.lt.s32.totalorder %v459, 0
    %v3763 = vsub.s32 0, %v459
    %v3764 = vsel %vm3762, %v3763, %v459
    %v3765 = vshrl.u32 %v3764, 1
    %v3766 = vand.u32 %v3764, 1
    %v3767 = vsub.s32 0, %v3766
    %v3768 = vsel %vm3762, %v3767, %v3766
    %vm3769 = vcmp.lt.s32.totalorder %v460, 0
    %v3770 = vsub.s32 0, %v460
    %v3771 = vsel %vm3769, %v3770, %v460
    %v3772 = vshrl.u32 %v3771, 1
    %v3773 = vand.u32 %v3771, 1
    %v3774 = vsub.s32 0, %v3773
    %v3775 = vsel %vm3769, %v3774, %v3773
    %vm3776 = vcmp.lt.s32.totalorder %v461, 0
    %v3777 = vsub.s32 0, %v461
    %v3778 = vsel %vm3776, %v3777, %v461
    %v3779 = vshrl.u32 %v3778, 1
    %v3780 = vand.u32 %v3778, 1
    %v3781 = vsub.s32 0, %v3780
    %v3782 = vsel %vm3776, %v3781, %v3780
    %vm3783 = vcmp.lt.s32.totalorder %v462, 0
    %v3784 = vsub.s32 0, %v462
    %v3785 = vsel %vm3783, %v3784, %v462
    %v3786 = vshrl.u32 %v3785, 1
    %v3787 = vand.u32 %v3785, 1
    %v3788 = vsub.s32 0, %v3787
    %v3789 = vsel %vm3783, %v3788, %v3787
    %vm3790 = vcmp.ne.s32.totalorder %v3572, 0
    %vm3791 = vcmp.ne.s32.totalorder %v3579, 0
    %vm3792 = vcmp.ne.s32.totalorder %v3586, 0
    %vm3793 = vcmp.ne.s32.totalorder %v3593, 0
    %vm3794 = vcmp.ne.s32.totalorder %v3600, 0
    %vm3795 = vcmp.ne.s32.totalorder %v3607, 0
    %vm3796 = vcmp.ne.s32.totalorder %v3614, 0
    %vm3797 = vcmp.ne.s32.totalorder %v3621, 0
    %vm3798 = vcmp.ne.s32.totalorder %v3628, 0
    %vm3799 = vcmp.ne.s32.totalorder %v3635, 0
    %vm3800 = vcmp.ne.s32.totalorder %v3642, 0
    %vm3801 = vcmp.ne.s32.totalorder %v3649, 0
    %vm3802 = vcmp.ne.s32.totalorder %v3656, 0
    %vm3803 = vcmp.ne.s32.totalorder %v3663, 0
    %vm3804 = vcmp.ne.s32.totalorder %v3670, 0
    %vm3805 = vcmp.ne.s32.totalorder %v3677, 0
    %vm3806 = vcmp.ne.s32.totalorder %v3684, 0
    %vm3807 = vcmp.ne.s32.totalorder %v3691, 0
    %vm3808 = vcmp.ne.s32.totalorder %v3698, 0
    %vm3809 = vcmp.ne.s32.totalorder %v3705, 0
    %vm3810 = vcmp.ne.s32.totalorder %v3712, 0
    %vm3811 = vcmp.ne.s32.totalorder %v3719, 0
    %vm3812 = vcmp.ne.s32.totalorder %v3726, 0
    %vm3813 = vcmp.ne.s32.totalorder %v3733, 0
    %vm3814 = vcmp.ne.s32.totalorder %v3740, 0
    %vm3815 = vcmp.ne.s32.totalorder %v3747, 0
    %vm3816 = vcmp.ne.s32.totalorder %v3754, 0
    %vm3817 = vcmp.ne.s32.totalorder %v3761, 0
    %vm3818 = vcmp.ne.s32.totalorder %v3768, 0
    %vm3819 = vcmp.ne.s32.totalorder %v3775, 0
    %vm3820 = vcmp.ne.s32.totalorder %v3782, 0
    %vm3821 = vcmp.ne.s32.totalorder %v3789, 0
    %vm3822 = vcmp.lt.s32.totalorder %v3572, 0
    %vm3823 = vcmp.lt.s32.totalorder %v3579, 0
    %vm3824 = vcmp.lt.s32.totalorder %v3586, 0
    %vm3825 = vcmp.lt.s32.totalorder %v3593, 0
    %vm3826 = vcmp.lt.s32.totalorder %v3600, 0
    %vm3827 = vcmp.lt.s32.totalorder %v3607, 0
    %vm3828 = vcmp.lt.s32.totalorder %v3614, 0
    %vm3829 = vcmp.lt.s32.totalorder %v3621, 0
    %vm3830 = vcmp.lt.s32.totalorder %v3628, 0
    %vm3831 = vcmp.lt.s32.totalorder %v3635, 0
    %vm3832 = vcmp.lt.s32.totalorder %v3642, 0
    %vm3833 = vcmp.lt.s32.totalorder %v3649, 0
    %vm3834 = vcmp.lt.s32.totalorder %v3656, 0
    %vm3835 = vcmp.lt.s32.totalorder %v3663, 0
    %vm3836 = vcmp.lt.s32.totalorder %v3670, 0
    %vm3837 = vcmp.lt.s32.totalorder %v3677, 0
    %vm3838 = vcmp.lt.s32.totalorder %v3684, 0
    %vm3839 = vcmp.lt.s32.totalorder %v3691, 0
    %vm3840 = vcmp.lt.s32.totalorder %v3698, 0
    %vm3841 = vcmp.lt.s32.totalorder %v3705, 0
    %vm3842 = vcmp.lt.s32.totalorder %v3712, 0
    %vm3843 = vcmp.lt.s32.totalorder %v3719, 0
    %vm3844 = vcmp.lt.s32.totalorder %v3726, 0
    %vm3845 = vcmp.lt.s32.totalorder %v3733, 0
    %vm3846 = vcmp.lt.s32.totalorder %v3740, 0
    %vm3847 = vcmp.lt.s32.totalorder %v3747, 0
    %vm3848 = vcmp.lt.s32.totalorder %v3754, 0
    %vm3849 = vcmp.lt.s32.totalorder %v3761, 0
    %vm3850 = vcmp.lt.s32.totalorder %v3768, 0
    %vm3851 = vcmp.lt.s32.totalorder %v3775, 0
    %vm3852 = vcmp.lt.s32.totalorder %v3782, 0
    %vm3853 = vcmp.lt.s32.totalorder %v3789, 0
    %vm3854 = vmand %vm3822, %vm3790
    %vm3855 = vmand %vm3823, %vm3791
    %vm3856 = vmand %vm3824, %vm3792
    %vm3857 = vmand %vm3825, %vm3793
    %vm3858 = vmand %vm3826, %vm3794
    %vm3859 = vmand %vm3827, %vm3795
    %vm3860 = vmand %vm3828, %vm3796
    %vm3861 = vmand %vm3829, %vm3797
    %vm3862 = vmand %vm3830, %vm3798
    %vm3863 = vmand %vm3831, %vm3799
    %vm3864 = vmand %vm3832, %vm3800
    %vm3865 = vmand %vm3833, %vm3801
    %vm3866 = vmand %vm3834, %vm3802
    %vm3867 = vmand %vm3835, %vm3803
    %vm3868 = vmand %vm3836, %vm3804
    %vm3869 = vmand %vm3837, %vm3805
    %vm3870 = vmand %vm3838, %vm3806
    %vm3871 = vmand %vm3839, %vm3807
    %vm3872 = vmand %vm3840, %vm3808
    %vm3873 = vmand %vm3841, %vm3809
    %vm3874 = vmand %vm3842, %vm3810
    %vm3875 = vmand %vm3843, %vm3811
    %vm3876 = vmand %vm3844, %vm3812
    %vm3877 = vmand %vm3845, %vm3813
    %vm3878 = vmand %vm3846, %vm3814
    %vm3879 = vmand %vm3847, %vm3815
    %vm3880 = vmand %vm3848, %vm3816
    %vm3881 = vmand %vm3849, %vm3817
    %vm3882 = vmand %vm3850, %vm3818
    %vm3883 = vmand %vm3851, %vm3819
    %vm3884 = vmand %vm3852, %vm3820
    %vm3885 = vmand %vm3853, %vm3821
    %v3886 = vadd.s32 %v3572, 2
    %v3887 = vadd.s32 %v3579, 2
    %v3888 = vadd.s32 %v3586, 2
    %v3889 = vadd.s32 %v3593, 2
    %v3890 = vadd.s32 %v3600, 2
    %v3891 = vadd.s32 %v3607, 2
    %v3892 = vadd.s32 %v3614, 2
    %v3893 = vadd.s32 %v3621, 2
    %v3894 = vadd.s32 %v3628, 2
    %v3895 = vadd.s32 %v3635, 2
    %v3896 = vadd.s32 %v3642, 2
    %v3897 = vadd.s32 %v3649, 2
    %v3898 = vadd.s32 %v3656, 2
    %v3899 = vadd.s32 %v3663, 2
    %v3900 = vadd.s32 %v3670, 2
    %v3901 = vadd.s32 %v3677, 2
    %v3902 = vadd.s32 %v3684, 2
    %v3903 = vadd.s32 %v3691, 2
    %v3904 = vadd.s32 %v3698, 2
    %v3905 = vadd.s32 %v3705, 2
    %v3906 = vadd.s32 %v3712, 2
    %v3907 = vadd.s32 %v3719, 2
    %v3908 = vadd.s32 %v3726, 2
    %v3909 = vadd.s32 %v3733, 2
    %v3910 = vadd.s32 %v3740, 2
    %v3911 = vadd.s32 %v3747, 2
    %v3912 = vadd.s32 %v3754, 2
    %v3913 = vadd.s32 %v3761, 2
    %v3914 = vadd.s32 %v3768, 2
    %v3915 = vadd.s32 %v3775, 2
    %v3916 = vadd.s32 %v3782, 2
    %v3917 = vadd.s32 %v3789, 2
    %v3918 = vsel %vm3854, %v3886, %v3572
    %v3919 = vsel %vm3855, %v3887, %v3579
    %v3920 = vsel %vm3856, %v3888, %v3586
    %v3921 = vsel %vm3857, %v3889, %v3593
    %v3922 = vsel %vm3858, %v3890, %v3600
    %v3923 = vsel %vm3859, %v3891, %v3607
    %v3924 = vsel %vm3860, %v3892, %v3614
    %v3925 = vsel %vm3861, %v3893, %v3621
    %v3926 = vsel %vm3862, %v3894, %v3628
    %v3927 = vsel %vm3863, %v3895, %v3635
    %v3928 = vsel %vm3864, %v3896, %v3642
    %v3929 = vsel %vm3865, %v3897, %v3649
    %v3930 = vsel %vm3866, %v3898, %v3656
    %v3931 = vsel %vm3867, %v3899, %v3663
    %v3932 = vsel %vm3868, %v3900, %v3670
    %v3933 = vsel %vm3869, %v3901, %v3677
    %v3934 = vsel %vm3870, %v3902, %v3684
    %v3935 = vsel %vm3871, %v3903, %v3691
    %v3936 = vsel %vm3872, %v3904, %v3698
    %v3937 = vsel %vm3873, %v3905, %v3705
    %v3938 = vsel %vm3874, %v3906, %v3712
    %v3939 = vsel %vm3875, %v3907, %v3719
    %v3940 = vsel %vm3876, %v3908, %v3726
    %v3941 = vsel %vm3877, %v3909, %v3733
    %v3942 = vsel %vm3878, %v3910, %v3740
    %v3943 = vsel %vm3879, %v3911, %v3747
    %v3944 = vsel %vm3880, %v3912, %v3754
    %v3945 = vsel %vm3881, %v3913, %v3761
    %v3946 = vsel %vm3882, %v3914, %v3768
    %v3947 = vsel %vm3883, %v3915, %v3775
    %v3948 = vsel %vm3884, %v3916, %v3782
    %v3949 = vsel %vm3885, %v3917, %v3789
    %vm3950 = vcmp.eq.s32.totalorder %v3918, 0
    %vm3951 = vcmp.eq.s32.totalorder %v3919, 0
    %vm3952 = vcmp.eq.s32.totalorder %v3920, 0
    %vm3953 = vcmp.eq.s32.totalorder %v3921, 0
    %vm3954 = vcmp.eq.s32.totalorder %v3922, 0
    %vm3955 = vcmp.eq.s32.totalorder %v3923, 0
    %vm3956 = vcmp.eq.s32.totalorder %v3924, 0
    %vm3957 = vcmp.eq.s32.totalorder %v3925, 0
    %vm3958 = vcmp.eq.s32.totalorder %v3926, 0
    %vm3959 = vcmp.eq.s32.totalorder %v3927, 0
    %vm3960 = vcmp.eq.s32.totalorder %v3928, 0
    %vm3961 = vcmp.eq.s32.totalorder %v3929, 0
    %vm3962 = vcmp.eq.s32.totalorder %v3930, 0
    %vm3963 = vcmp.eq.s32.totalorder %v3931, 0
    %vm3964 = vcmp.eq.s32.totalorder %v3932, 0
    %vm3965 = vcmp.eq.s32.totalorder %v3933, 0
    %vm3966 = vcmp.eq.s32.totalorder %v3934, 0
    %vm3967 = vcmp.eq.s32.totalorder %v3935, 0
    %vm3968 = vcmp.eq.s32.totalorder %v3936, 0
    %vm3969 = vcmp.eq.s32.totalorder %v3937, 0
    %vm3970 = vcmp.eq.s32.totalorder %v3938, 0
    %vm3971 = vcmp.eq.s32.totalorder %v3939, 0
    %vm3972 = vcmp.eq.s32.totalorder %v3940, 0
    %vm3973 = vcmp.eq.s32.totalorder %v3941, 0
    %vm3974 = vcmp.eq.s32.totalorder %v3942, 0
    %vm3975 = vcmp.eq.s32.totalorder %v3943, 0
    %vm3976 = vcmp.eq.s32.totalorder %v3944, 0
    %vm3977 = vcmp.eq.s32.totalorder %v3945, 0
    %vm3978 = vcmp.eq.s32.totalorder %v3946, 0
    %vm3979 = vcmp.eq.s32.totalorder %v3947, 0
    %vm3980 = vcmp.eq.s32.totalorder %v3948, 0
    %vm3981 = vcmp.eq.s32.totalorder %v3949, 0
    %vm3982 = vcmp.lt.s32.totalorder %v431, 116
    %vm3983 = vcmp.lt.s32.totalorder %v432, 116
    %vm3984 = vcmp.lt.s32.totalorder %v433, 116
    %vm3985 = vcmp.lt.s32.totalorder %v434, 116
    %vm3986 = vcmp.lt.s32.totalorder %v435, 116
    %vm3987 = vcmp.lt.s32.totalorder %v436, 116
    %vm3988 = vcmp.lt.s32.totalorder %v437, 116
    %vm3989 = vcmp.lt.s32.totalorder %v438, 116
    %vm3990 = vcmp.lt.s32.totalorder %v439, 116
    %vm3991 = vcmp.lt.s32.totalorder %v440, 116
    %vm3992 = vcmp.lt.s32.totalorder %v441, 116
    %vm3993 = vcmp.lt.s32.totalorder %v442, 116
    %vm3994 = vcmp.lt.s32.totalorder %v443, 116
    %vm3995 = vcmp.lt.s32.totalorder %v444, 116
    %vm3996 = vcmp.lt.s32.totalorder %v445, 116
    %vm3997 = vcmp.lt.s32.totalorder %v446, 116
    %vm3998 = vcmp.lt.s32.totalorder %v447, 116
    %vm3999 = vcmp.lt.s32.totalorder %v448, 116
    %vm4000 = vcmp.lt.s32.totalorder %v449, 116
    %vm4001 = vcmp.lt.s32.totalorder %v450, 116
    %vm4002 = vcmp.lt.s32.totalorder %v451, 116
    %vm4003 = vcmp.lt.s32.totalorder %v452, 116
    %vm4004 = vcmp.lt.s32.totalorder %v453, 116
    %vm4005 = vcmp.lt.s32.totalorder %v454, 116
    %vm4006 = vcmp.lt.s32.totalorder %v455, 116
    %vm4007 = vcmp.lt.s32.totalorder %v456, 116
    %vm4008 = vcmp.lt.s32.totalorder %v457, 116
    %vm4009 = vcmp.lt.s32.totalorder %v458, 116
    %vm4010 = vcmp.lt.s32.totalorder %v459, 116
    %vm4011 = vcmp.lt.s32.totalorder %v460, 116
    %vm4012 = vcmp.lt.s32.totalorder %v461, 116
    %vm4013 = vcmp.lt.s32.totalorder %v462, 116
    %vm4014 = vmand %vm3950, %vm3982
    %vm4015 = vmand %vm3951, %vm3983
    %vm4016 = vmand %vm3952, %vm3984
    %vm4017 = vmand %vm3953, %vm3985
    %vm4018 = vmand %vm3954, %vm3986
    %vm4019 = vmand %vm3955, %vm3987
    %vm4020 = vmand %vm3956, %vm3988
    %vm4021 = vmand %vm3957, %vm3989
    %vm4022 = vmand %vm3958, %vm3990
    %vm4023 = vmand %vm3959, %vm3991
    %vm4024 = vmand %vm3960, %vm3992
    %vm4025 = vmand %vm3961, %vm3993
    %vm4026 = vmand %vm3962, %vm3994
    %vm4027 = vmand %vm3963, %vm3995
    %vm4028 = vmand %vm3964, %vm3996
    %vm4029 = vmand %vm3965, %vm3997
    %vm4030 = vmand %vm3966, %vm3998
    %vm4031 = vmand %vm3967, %vm3999
    %vm4032 = vmand %vm3968, %vm4000
    %vm4033 = vmand %vm3969, %vm4001
    %vm4034 = vmand %vm3970, %vm4002
    %vm4035 = vmand %vm3971, %vm4003
    %vm4036 = vmand %vm3972, %vm4004
    %vm4037 = vmand %vm3973, %vm4005
    %vm4038 = vmand %vm3974, %vm4006
    %vm4039 = vmand %vm3975, %vm4007
    %vm4040 = vmand %vm3976, %vm4008
    %vm4041 = vmand %vm3977, %vm4009
    %vm4042 = vmand %vm3978, %vm4010
    %vm4043 = vmand %vm3979, %vm4011
    %vm4044 = vmand %vm3980, %vm4012
    %vm4045 = vmand %vm3981, %vm4013
    %v4046 = vsel %vm4014, 1, 0
    %v4047 = vsel %vm4015, 1, 0
    %v4048 = vsel %vm4016, 1, 0
    %v4049 = vsel %vm4017, 1, 0
    %v4050 = vsel %vm4018, 1, 0
    %v4051 = vsel %vm4019, 1, 0
    %v4052 = vsel %vm4020, 1, 0
    %v4053 = vsel %vm4021, 1, 0
    %v4054 = vsel %vm4022, 1, 0
    %v4055 = vsel %vm4023, 1, 0
    %v4056 = vsel %vm4024, 1, 0
    %v4057 = vsel %vm4025, 1, 0
    %v4058 = vsel %vm4026, 1, 0
    %v4059 = vsel %vm4027, 1, 0
    %v4060 = vsel %vm4028, 1, 0
    %v4061 = vsel %vm4029, 1, 0
    %v4062 = vsel %vm4030, 1, 0
    %v4063 = vsel %vm4031, 1, 0
    %v4064 = vsel %vm4032, 1, 0
    %v4065 = vsel %vm4033, 1, 0
    %v4066 = vsel %vm4034, 1, 0
    %v4067 = vsel %vm4035, 1, 0
    %v4068 = vsel %vm4036, 1, 0
    %v4069 = vsel %vm4037, 1, 0
    %v4070 = vsel %vm4038, 1, 0
    %v4071 = vsel %vm4039, 1, 0
    %v4072 = vsel %vm4040, 1, 0
    %v4073 = vsel %vm4041, 1, 0
    %v4074 = vsel %vm4042, 1, 0
    %v4075 = vsel %vm4043, 1, 0
    %v4076 = vsel %vm4044, 1, 0
    %v4077 = vsel %vm4045, 1, 0
    %vm4078 = vcmp.eq.s32.totalorder %v4046, 1
    %vm4079 = vcmp.eq.s32.totalorder %v4047, 1
    %vm4080 = vcmp.eq.s32.totalorder %v4048, 1
    %vm4081 = vcmp.eq.s32.totalorder %v4049, 1
    %vm4082 = vcmp.eq.s32.totalorder %v4050, 1
    %vm4083 = vcmp.eq.s32.totalorder %v4051, 1
    %vm4084 = vcmp.eq.s32.totalorder %v4052, 1
    %vm4085 = vcmp.eq.s32.totalorder %v4053, 1
    %vm4086 = vcmp.eq.s32.totalorder %v4054, 1
    %vm4087 = vcmp.eq.s32.totalorder %v4055, 1
    %vm4088 = vcmp.eq.s32.totalorder %v4056, 1
    %vm4089 = vcmp.eq.s32.totalorder %v4057, 1
    %vm4090 = vcmp.eq.s32.totalorder %v4058, 1
    %vm4091 = vcmp.eq.s32.totalorder %v4059, 1
    %vm4092 = vcmp.eq.s32.totalorder %v4060, 1
    %vm4093 = vcmp.eq.s32.totalorder %v4061, 1
    %vm4094 = vcmp.eq.s32.totalorder %v4062, 1
    %vm4095 = vcmp.eq.s32.totalorder %v4063, 1
    %vm4096 = vcmp.eq.s32.totalorder %v4064, 1
    %vm4097 = vcmp.eq.s32.totalorder %v4065, 1
    %vm4098 = vcmp.eq.s32.totalorder %v4066, 1
    %vm4099 = vcmp.eq.s32.totalorder %v4067, 1
    %vm4100 = vcmp.eq.s32.totalorder %v4068, 1
    %vm4101 = vcmp.eq.s32.totalorder %v4069, 1
    %vm4102 = vcmp.eq.s32.totalorder %v4070, 1
    %vm4103 = vcmp.eq.s32.totalorder %v4071, 1
    %vm4104 = vcmp.eq.s32.totalorder %v4072, 1
    %vm4105 = vcmp.eq.s32.totalorder %v4073, 1
    %vm4106 = vcmp.eq.s32.totalorder %v4074, 1
    %vm4107 = vcmp.eq.s32.totalorder %v4075, 1
    %vm4108 = vcmp.eq.s32.totalorder %v4076, 1
    %vm4109 = vcmp.eq.s32.totalorder %v4077, 1
    %v4110 = vsel %vm4078, %v3534, 0.0
    %v4111 = vsel %vm4079, %v3535, 0.0
    %v4112 = vsel %vm4080, %v3536, 0.0
    %v4113 = vsel %vm4081, %v3537, 0.0
    %v4114 = vsel %vm4082, %v3538, 0.0
    %v4115 = vsel %vm4083, %v3539, 0.0
    %v4116 = vsel %vm4084, %v3540, 0.0
    %v4117 = vsel %vm4085, %v3541, 0.0
    %v4118 = vsel %vm4086, %v3542, 0.0
    %v4119 = vsel %vm4087, %v3543, 0.0
    %v4120 = vsel %vm4088, %v3544, 0.0
    %v4121 = vsel %vm4089, %v3545, 0.0
    %v4122 = vsel %vm4090, %v3546, 0.0
    %v4123 = vsel %vm4091, %v3547, 0.0
    %v4124 = vsel %vm4092, %v3548, 0.0
    %v4125 = vsel %vm4093, %v3549, 0.0
    %v4126 = vsel %vm4094, %v3550, 0.0
    %v4127 = vsel %vm4095, %v3551, 0.0
    %v4128 = vsel %vm4096, %v3552, 0.0
    %v4129 = vsel %vm4097, %v3553, 0.0
    %v4130 = vsel %vm4098, %v3554, 0.0
    %v4131 = vsel %vm4099, %v3555, 0.0
    %v4132 = vsel %vm4100, %v3556, 0.0
    %v4133 = vsel %vm4101, %v3557, 0.0
    %v4134 = vsel %vm4102, %v3558, 0.0
    %v4135 = vsel %vm4103, %v3559, 0.0
    %v4136 = vsel %vm4104, %v3560, 0.0
    %v4137 = vsel %vm4105, %v3561, 0.0
    %v4138 = vsel %vm4106, %v3562, 0.0
    %v4139 = vsel %vm4107, %v3563, 0.0
    %v4140 = vsel %vm4108, %v3564, 0.0
    %v4141 = vsel %vm4109, %v3565, 0.0
    %vm4142 = vcmask 408576
    %v4143 = vsel %vm4142, %v4110, 0.0
    %v4144 = vsel %vm4142, %v4111, 0.0
    %v4145 = vadd.f32 %v4143, %v4144
    %v4146 = vsel %vm4142, %v4112, 0.0
    %v4147 = vadd.f32 %v4145, %v4146
    %v4148 = vsel %vm4142, %v4113, 0.0
    %v4149 = vadd.f32 %v4147, %v4148
    %v4150 = vsel %vm4142, %v4114, 0.0
    %v4151 = vadd.f32 %v4149, %v4150
    %v4152 = vsel %vm4142, %v4115, 0.0
    %v4153 = vadd.f32 %v4151, %v4152
    %v4154 = vsel %vm4142, %v4116, 0.0
    %v4155 = vadd.f32 %v4153, %v4154
    %v4156 = vsel %vm4142, %v4117, 0.0
    %v4157 = vadd.f32 %v4155, %v4156
    %v4158 = vsel %vm4142, %v4118, 0.0
    %v4159 = vadd.f32 %v4157, %v4158
    %v4160 = vsel %vm4142, %v4119, 0.0
    %v4161 = vadd.f32 %v4159, %v4160
    %v4162 = vsel %vm4142, %v4120, 0.0
    %v4163 = vadd.f32 %v4161, %v4162
    %v4164 = vsel %vm4142, %v4121, 0.0
    %v4165 = vadd.f32 %v4163, %v4164
    %v4166 = vsel %vm4142, %v4122, 0.0
    %v4167 = vadd.f32 %v4165, %v4166
    %v4168 = vsel %vm4142, %v4123, 0.0
    %v4169 = vadd.f32 %v4167, %v4168
    %v4170 = vsel %vm4142, %v4124, 0.0
    %v4171 = vadd.f32 %v4169, %v4170
    %v4172 = vsel %vm4142, %v4125, 0.0
    %v4173 = vadd.f32 %v4171, %v4172
    %v4174 = vsel %vm4142, %v4126, 0.0
    %v4175 = vadd.f32 %v4173, %v4174
    %v4176 = vsel %vm4142, %v4127, 0.0
    %v4177 = vadd.f32 %v4175, %v4176
    %v4178 = vsel %vm4142, %v4128, 0.0
    %v4179 = vadd.f32 %v4177, %v4178
    %v4180 = vsel %vm4142, %v4129, 0.0
    %v4181 = vadd.f32 %v4179, %v4180
    %v4182 = vsel %vm4142, %v4130, 0.0
    %v4183 = vadd.f32 %v4181, %v4182
    %v4184 = vsel %vm4142, %v4131, 0.0
    %v4185 = vadd.f32 %v4183, %v4184
    %v4186 = vsel %vm4142, %v4132, 0.0
    %v4187 = vadd.f32 %v4185, %v4186
    %v4188 = vsel %vm4142, %v4133, 0.0
    %v4189 = vadd.f32 %v4187, %v4188
    %v4190 = vsel %vm4142, %v4134, 0.0
    %v4191 = vadd.f32 %v4189, %v4190
    %v4192 = vsel %vm4142, %v4135, 0.0
    %v4193 = vadd.f32 %v4191, %v4192
    %v4194 = vsel %vm4142, %v4136, 0.0
    %v4195 = vadd.f32 %v4193, %v4194
    %v4196 = vsel %vm4142, %v4137, 0.0
    %v4197 = vadd.f32 %v4195, %v4196
    %v4198 = vsel %vm4142, %v4138, 0.0
    %v4199 = vadd.f32 %v4197, %v4198
    %v4200 = vsel %vm4142, %v4139, 0.0
    %v4201 = vadd.f32 %v4199, %v4200
    %v4202 = vsel %vm4142, %v4140, 0.0
    %v4203 = vadd.f32 %v4201, %v4202
    %v4204 = vsel %vm4142, %v4141, 0.0
    %v4205 = vadd.f32 %v4203, %v4204
    %v4206 = vrot.slane %v4205, 4
    %v4207 = vadd.f32 %v4205, %v4206
    %v4208 = vrot.slane %v4207, 2
    %v4209 = vadd.f32 %v4207, %v4208
    %v4210 = vrot.slane %v4209, 1
    %v4211 = vadd.f32 %v4209, %v4210
    %v4212 = vmul.f32 %v4110, %v4110
    %v4213 = vmul.f32 %v4111, %v4111
    %v4214 = vmul.f32 %v4112, %v4112
    %v4215 = vmul.f32 %v4113, %v4113
    %v4216 = vmul.f32 %v4114, %v4114
    %v4217 = vmul.f32 %v4115, %v4115
    %v4218 = vmul.f32 %v4116, %v4116
    %v4219 = vmul.f32 %v4117, %v4117
    %v4220 = vmul.f32 %v4118, %v4118
    %v4221 = vmul.f32 %v4119, %v4119
    %v4222 = vmul.f32 %v4120, %v4120
    %v4223 = vmul.f32 %v4121, %v4121
    %v4224 = vmul.f32 %v4122, %v4122
    %v4225 = vmul.f32 %v4123, %v4123
    %v4226 = vmul.f32 %v4124, %v4124
    %v4227 = vmul.f32 %v4125, %v4125
    %v4228 = vmul.f32 %v4126, %v4126
    %v4229 = vmul.f32 %v4127, %v4127
    %v4230 = vmul.f32 %v4128, %v4128
    %v4231 = vmul.f32 %v4129, %v4129
    %v4232 = vmul.f32 %v4130, %v4130
    %v4233 = vmul.f32 %v4131, %v4131
    %v4234 = vmul.f32 %v4132, %v4132
    %v4235 = vmul.f32 %v4133, %v4133
    %v4236 = vmul.f32 %v4134, %v4134
    %v4237 = vmul.f32 %v4135, %v4135
    %v4238 = vmul.f32 %v4136, %v4136
    %v4239 = vmul.f32 %v4137, %v4137
    %v4240 = vmul.f32 %v4138, %v4138
    %v4241 = vmul.f32 %v4139, %v4139
    %v4242 = vmul.f32 %v4140, %v4140
    %v4243 = vmul.f32 %v4141, %v4141
    %v4244 = vsel %vm4142, %v4212, 0.0
    %v4245 = vsel %vm4142, %v4213, 0.0
    %v4246 = vadd.f32 %v4244, %v4245
    %v4247 = vsel %vm4142, %v4214, 0.0
    %v4248 = vadd.f32 %v4246, %v4247
    %v4249 = vsel %vm4142, %v4215, 0.0
    %v4250 = vadd.f32 %v4248, %v4249
    %v4251 = vsel %vm4142, %v4216, 0.0
    %v4252 = vadd.f32 %v4250, %v4251
    %v4253 = vsel %vm4142, %v4217, 0.0
    %v4254 = vadd.f32 %v4252, %v4253
    %v4255 = vsel %vm4142, %v4218, 0.0
    %v4256 = vadd.f32 %v4254, %v4255
    %v4257 = vsel %vm4142, %v4219, 0.0
    %v4258 = vadd.f32 %v4256, %v4257
    %v4259 = vsel %vm4142, %v4220, 0.0
    %v4260 = vadd.f32 %v4258, %v4259
    %v4261 = vsel %vm4142, %v4221, 0.0
    %v4262 = vadd.f32 %v4260, %v4261
    %v4263 = vsel %vm4142, %v4222, 0.0
    %v4264 = vadd.f32 %v4262, %v4263
    %v4265 = vsel %vm4142, %v4223, 0.0
    %v4266 = vadd.f32 %v4264, %v4265
    %v4267 = vsel %vm4142, %v4224, 0.0
    %v4268 = vadd.f32 %v4266, %v4267
    %v4269 = vsel %vm4142, %v4225, 0.0
    %v4270 = vadd.f32 %v4268, %v4269
    %v4271 = vsel %vm4142, %v4226, 0.0
    %v4272 = vadd.f32 %v4270, %v4271
    %v4273 = vsel %vm4142, %v4227, 0.0
    %v4274 = vadd.f32 %v4272, %v4273
    %v4275 = vsel %vm4142, %v4228, 0.0
    %v4276 = vadd.f32 %v4274, %v4275
    %v4277 = vsel %vm4142, %v4229, 0.0
    %v4278 = vadd.f32 %v4276, %v4277
    %v4279 = vsel %vm4142, %v4230, 0.0
    %v4280 = vadd.f32 %v4278, %v4279
    %v4281 = vsel %vm4142, %v4231, 0.0
    %v4282 = vadd.f32 %v4280, %v4281
    %v4283 = vsel %vm4142, %v4232, 0.0
    %v4284 = vadd.f32 %v4282, %v4283
    %v4285 = vsel %vm4142, %v4233, 0.0
    %v4286 = vadd.f32 %v4284, %v4285
    %v4287 = vsel %vm4142, %v4234, 0.0
    %v4288 = vadd.f32 %v4286, %v4287
    %v4289 = vsel %vm4142, %v4235, 0.0
    %v4290 = vadd.f32 %v4288, %v4289
    %v4291 = vsel %vm4142, %v4236, 0.0
    %v4292 = vadd.f32 %v4290, %v4291
    %v4293 = vsel %vm4142, %v4237, 0.0
    %v4294 = vadd.f32 %v4292, %v4293
    %v4295 = vsel %vm4142, %v4238, 0.0
    %v4296 = vadd.f32 %v4294, %v4295
    %v4297 = vsel %vm4142, %v4239, 0.0
    %v4298 = vadd.f32 %v4296, %v4297
    %v4299 = vsel %vm4142, %v4240, 0.0
    %v4300 = vadd.f32 %v4298, %v4299
    %v4301 = vsel %vm4142, %v4241, 0.0
    %v4302 = vadd.f32 %v4300, %v4301
    %v4303 = vsel %vm4142, %v4242, 0.0
    %v4304 = vadd.f32 %v4302, %v4303
    %v4305 = vsel %vm4142, %v4243, 0.0
    %v4306 = vadd.f32 %v4304, %v4305
    %v4307 = vrot.slane %v4306, 4
    %v4308 = vadd.f32 %v4306, %v4307
    %v4309 = vrot.slane %v4308, 2
    %v4310 = vadd.f32 %v4308, %v4309
    %v4311 = vrot.slane %v4310, 1
    %v4312 = vadd.f32 %v4310, %v4311
    %v4313 = vmul.f32 %v4211, 0.00862069
    %v4314 = vmul.f32 %v4312, 0.00862069
    %v4315 = vmul.f32 %v4313, %v4313
    %v4316 = vsub.f32 %v4314, %v4315
    %v4317 = vmax.f32 %v4316, 0.0
    %v4318 = vld [vmem:[%s4] sm:$0x3]
    %v4319 = vadd.f32 %v4317, 1e-05
    %v4320 = vrsqrt.pop %v4319
    %v4321 = vmul.f32 %v4320, %v4319
    %v4322 = vmul.f32 %v4321, %v4320
    %v4323 = vmul.f32 0.5, %v4322
    %v4324 = vsub.f32 1.5, %v4323
    %v4325 = vmul.f32 %v4320, %v4324
    %vm4326 = vweird.f32 %v4319
    %vm4327 = vweird.f32 %v4320
    %vm4328 = vmor %vm4326, %vm4327
    %v4329 = vsel %vm4328, %v4320, %v4325
    %v4330 = vmul.f32 %v4329, %v4318
    %v4331 = vmul.f32 %v4313, %v4330
    %v4333 = vrot.slane %v4331, 7
    %v4335 = vsub.f32 %v4318, %v4333
    %v4336 = vperm.slane %v4330, 0
    %v4337 = vmul.f32 %v3534, %v4336
    %v4338 = vmul.f32 %v3535, %v4336
    %v4339 = vmul.f32 %v3536, %v4336
    %v4340 = vmul.f32 %v3537, %v4336
    %v4341 = vmul.f32 %v3538, %v4336
    %v4342 = vmul.f32 %v3539, %v4336
    %v4343 = vmul.f32 %v3540, %v4336
    %v4344 = vmul.f32 %v3541, %v4336
    %v4345 = vmul.f32 %v3542, %v4336
    %v4346 = vmul.f32 %v3543, %v4336
    %v4347 = vmul.f32 %v3544, %v4336
    %v4348 = vmul.f32 %v3545, %v4336
    %v4349 = vmul.f32 %v3546, %v4336
    %v4350 = vmul.f32 %v3547, %v4336
    %v4351 = vmul.f32 %v3548, %v4336
    %v4352 = vmul.f32 %v3549, %v4336
    %v4353 = vmul.f32 %v3550, %v4336
    %v4354 = vmul.f32 %v3551, %v4336
    %v4355 = vmul.f32 %v3552, %v4336
    %v4356 = vmul.f32 %v3553, %v4336
    %v4357 = vmul.f32 %v3554, %v4336
    %v4358 = vmul.f32 %v3555, %v4336
    %v4359 = vmul.f32 %v3556, %v4336
    %v4360 = vmul.f32 %v3557, %v4336
    %v4361 = vmul.f32 %v3558, %v4336
    %v4362 = vmul.f32 %v3559, %v4336
    %v4363 = vmul.f32 %v3560, %v4336
    %v4364 = vmul.f32 %v3561, %v4336
    %v4365 = vmul.f32 %v3562, %v4336
    %v4366 = vmul.f32 %v3563, %v4336
    %v4367 = vmul.f32 %v3564, %v4336
    %v4368 = vmul.f32 %v3565, %v4336
    %v4369 = vperm.slane %v4335, 1
    %v4370 = vadd.f32 %v4337, %v4369
    %v4371 = vadd.f32 %v4338, %v4369
    %v4372 = vadd.f32 %v4339, %v4369
    %v4373 = vadd.f32 %v4340, %v4369
    %v4374 = vadd.f32 %v4341, %v4369
    %v4375 = vadd.f32 %v4342, %v4369
    %v4376 = vadd.f32 %v4343, %v4369
    %v4377 = vadd.f32 %v4344, %v4369
    %v4378 = vadd.f32 %v4345, %v4369
    %v4379 = vadd.f32 %v4346, %v4369
    %v4380 = vadd.f32 %v4347, %v4369
    %v4381 = vadd.f32 %v4348, %v4369
    %v4382 = vadd.f32 %v4349, %v4369
    %v4383 = vadd.f32 %v4350, %v4369
    %v4384 = vadd.f32 %v4351, %v4369
    %v4385 = vadd.f32 %v4352, %v4369
    %v4386 = vadd.f32 %v4353, %v4369
    %v4387 = vadd.f32 %v4354, %v4369
    %v4388 = vadd.f32 %v4355, %v4369
    %v4389 = vadd.f32 %v4356, %v4369
    %v4390 = vadd.f32 %v4357, %v4369
    %v4391 = vadd.f32 %v4358, %v4369
    %v4392 = vadd.f32 %v4359, %v4369
    %v4393 = vadd.f32 %v4360, %v4369
    %v4394 = vadd.f32 %v4361, %v4369
    %v4395 = vadd.f32 %v4362, %v4369
    %v4396 = vadd.f32 %v4363, %v4369
    %v4397 = vadd.f32 %v4364, %v4369
    %v4398 = vadd.f32 %v4365, %v4369
    %v4399 = vadd.f32 %v4366, %v4369
    %v4400 = vadd.f32 %v4367, %v4369
    %v4401 = vadd.f32 %v4368, %v4369
    %vm4402 = vcmp.gt.f32.partialorder %v4370, 0.0
    %vm4403 = vcmp.gt.f32.partialorder %v4371, 0.0
    %vm4404 = vcmp.gt.f32.partialorder %v4372, 0.0
    %vm4405 = vcmp.gt.f32.partialorder %v4373, 0.0
    %vm4406 = vcmp.gt.f32.partialorder %v4374, 0.0
    %vm4407 = vcmp.gt.f32.partialorder %v4375, 0.0
    %vm4408 = vcmp.gt.f32.partialorder %v4376, 0.0
    %vm4409 = vcmp.gt.f32.partialorder %v4377, 0.0
    %vm4410 = vcmp.gt.f32.partialorder %v4378, 0.0
    %vm4411 = vcmp.gt.f32.partialorder %v4379, 0.0
    %vm4412 = vcmp.gt.f32.partialorder %v4380, 0.0
    %vm4413 = vcmp.gt.f32.partialorder %v4381, 0.0
    %vm4414 = vcmp.gt.f32.partialorder %v4382, 0.0
    %vm4415 = vcmp.gt.f32.partialorder %v4383, 0.0
    %vm4416 = vcmp.gt.f32.partialorder %v4384, 0.0
    %vm4417 = vcmp.gt.f32.partialorder %v4385, 0.0
    %vm4418 = vcmp.gt.f32.partialorder %v4386, 0.0
    %vm4419 = vcmp.gt.f32.partialorder %v4387, 0.0
    %vm4420 = vcmp.gt.f32.partialorder %v4388, 0.0
    %vm4421 = vcmp.gt.f32.partialorder %v4389, 0.0
    %vm4422 = vcmp.gt.f32.partialorder %v4390, 0.0
    %vm4423 = vcmp.gt.f32.partialorder %v4391, 0.0
    %vm4424 = vcmp.gt.f32.partialorder %v4392, 0.0
    %vm4425 = vcmp.gt.f32.partialorder %v4393, 0.0
    %vm4426 = vcmp.gt.f32.partialorder %v4394, 0.0
    %vm4427 = vcmp.gt.f32.partialorder %v4395, 0.0
    %vm4428 = vcmp.gt.f32.partialorder %v4396, 0.0
    %vm4429 = vcmp.gt.f32.partialorder %v4397, 0.0
    %vm4430 = vcmp.gt.f32.partialorder %v4398, 0.0
    %vm4431 = vcmp.gt.f32.partialorder %v4399, 0.0
    %vm4432 = vcmp.gt.f32.partialorder %v4400, 0.0
    %vm4433 = vcmp.gt.f32.partialorder %v4401, 0.0
    %v4434 = vmin.f32 %v4370, 0.0
    %v4435 = vmin.f32 %v4371, 0.0
    %v4436 = vmin.f32 %v4372, 0.0
    %v4437 = vmin.f32 %v4373, 0.0
    %v4438 = vmin.f32 %v4374, 0.0
    %v4439 = vmin.f32 %v4375, 0.0
    %v4440 = vmin.f32 %v4376, 0.0
    %v4441 = vmin.f32 %v4377, 0.0
    %v4442 = vmin.f32 %v4378, 0.0
    %v4443 = vmin.f32 %v4379, 0.0
    %v4444 = vmin.f32 %v4380, 0.0
    %v4445 = vmin.f32 %v4381, 0.0
    %v4446 = vmin.f32 %v4382, 0.0
    %v4447 = vmin.f32 %v4383, 0.0
    %v4448 = vmin.f32 %v4384, 0.0
    %v4449 = vmin.f32 %v4385, 0.0
    %v4450 = vmin.f32 %v4386, 0.0
    %v4451 = vmin.f32 %v4387, 0.0
    %v4452 = vmin.f32 %v4388, 0.0
    %v4453 = vmin.f32 %v4389, 0.0
    %v4454 = vmin.f32 %v4390, 0.0
    %v4455 = vmin.f32 %v4391, 0.0
    %v4456 = vmin.f32 %v4392, 0.0
    %v4457 = vmin.f32 %v4393, 0.0
    %v4458 = vmin.f32 %v4394, 0.0
    %v4459 = vmin.f32 %v4395, 0.0
    %v4460 = vmin.f32 %v4396, 0.0
    %v4461 = vmin.f32 %v4397, 0.0
    %v4462 = vmin.f32 %v4398, 0.0
    %v4463 = vmin.f32 %v4399, 0.0
    %v4464 = vmin.f32 %v4400, 0.0
    %v4465 = vmin.f32 %v4401, 0.0
    %v4466 = vmul.f32 %v4434, 1.442695
    %v4467 = vpow.pop %v4466
    %v4468 = vmul.f32 %v4435, 1.442695
    %v4469 = vpow.pop %v4468
    %v4470 = vmul.f32 %v4436, 1.442695
    %v4471 = vpow.pop %v4470
    %v4472 = vmul.f32 %v4437, 1.442695
    %v4473 = vpow.pop %v4472
    %v4474 = vmul.f32 %v4438, 1.442695
    %v4475 = vpow.pop %v4474
    %v4476 = vmul.f32 %v4439, 1.442695
    %v4477 = vpow.pop %v4476
    %v4478 = vmul.f32 %v4440, 1.442695
    %v4479 = vpow.pop %v4478
    %v4480 = vmul.f32 %v4441, 1.442695
    %v4481 = vpow.pop %v4480
    %v4482 = vmul.f32 %v4442, 1.442695
    %v4483 = vpow.pop %v4482
    %v4484 = vmul.f32 %v4443, 1.442695
    %v4485 = vpow.pop %v4484
    %v4486 = vmul.f32 %v4444, 1.442695
    %v4487 = vpow.pop %v4486
    %v4488 = vmul.f32 %v4445, 1.442695
    %v4489 = vpow.pop %v4488
    %v4490 = vmul.f32 %v4446, 1.442695
    %v4491 = vpow.pop %v4490
    %v4492 = vmul.f32 %v4447, 1.442695
    %v4493 = vpow.pop %v4492
    %v4494 = vmul.f32 %v4448, 1.442695
    %v4495 = vpow.pop %v4494
    %v4496 = vmul.f32 %v4449, 1.442695
    %v4497 = vpow.pop %v4496
    %v4498 = vmul.f32 %v4450, 1.442695
    %v4499 = vpow.pop %v4498
    %v4500 = vmul.f32 %v4451, 1.442695
    %v4501 = vpow.pop %v4500
    %v4502 = vmul.f32 %v4452, 1.442695
    %v4503 = vpow.pop %v4502
    %v4504 = vmul.f32 %v4453, 1.442695
    %v4505 = vpow.pop %v4504
    %v4506 = vmul.f32 %v4454, 1.442695
    %v4507 = vpow.pop %v4506
    %v4508 = vmul.f32 %v4455, 1.442695
    %v4509 = vpow.pop %v4508
    %v4510 = vmul.f32 %v4456, 1.442695
    %v4511 = vpow.pop %v4510
    %v4512 = vmul.f32 %v4457, 1.442695
    %v4513 = vpow.pop %v4512
    %v4514 = vmul.f32 %v4458, 1.442695
    %v4515 = vpow.pop %v4514
    %v4516 = vmul.f32 %v4459, 1.442695
    %v4517 = vpow.pop %v4516
    %v4518 = vmul.f32 %v4460, 1.442695
    %v4519 = vpow.pop %v4518
    %v4520 = vmul.f32 %v4461, 1.442695
    %v4521 = vpow.pop %v4520
    %v4522 = vmul.f32 %v4462, 1.442695
    %v4523 = vpow.pop %v4522
    %v4524 = vmul.f32 %v4463, 1.442695
    %v4525 = vpow.pop %v4524
    %v4526 = vmul.f32 %v4464, 1.442695
    %v4527 = vpow.pop %v4526
    %v4528 = vmul.f32 %v4465, 1.442695
    %v4529 = vpow.pop %v4528
    %v4530 = vsub.f32 %v4467, 1.0
    %v4531 = vsub.f32 %v4469, 1.0
    %v4532 = vsub.f32 %v4471, 1.0
    %v4533 = vsub.f32 %v4473, 1.0
    %v4534 = vsub.f32 %v4475, 1.0
    %v4535 = vsub.f32 %v4477, 1.0
    %v4536 = vsub.f32 %v4479, 1.0
    %v4537 = vsub.f32 %v4481, 1.0
    %v4538 = vsub.f32 %v4483, 1.0
    %v4539 = vsub.f32 %v4485, 1.0
    %v4540 = vsub.f32 %v4487, 1.0
    %v4541 = vsub.f32 %v4489, 1.0
    %v4542 = vsub.f32 %v4491, 1.0
    %v4543 = vsub.f32 %v4493, 1.0
    %v4544 = vsub.f32 %v4495, 1.0
    %v4545 = vsub.f32 %v4497, 1.0
    %v4546 = vsub.f32 %v4499, 1.0
    %v4547 = vsub.f32 %v4501, 1.0
    %v4548 = vsub.f32 %v4503, 1.0
    %v4549 = vsub.f32 %v4505, 1.0
    %v4550 = vsub.f32 %v4507, 1.0
    %v4551 = vsub.f32 %v4509, 1.0
    %v4552 = vsub.f32 %v4511, 1.0
    %v4553 = vsub.f32 %v4513, 1.0
    %v4554 = vsub.f32 %v4515, 1.0
    %v4555 = vsub.f32 %v4517, 1.0
    %v4556 = vsub.f32 %v4519, 1.0
    %v4557 = vsub.f32 %v4521, 1.0
    %v4558 = vsub.f32 %v4523, 1.0
    %v4559 = vsub.f32 %v4525, 1.0
    %v4560 = vsub.f32 %v4527, 1.0
    %v4561 = vsub.f32 %v4529, 1.0
    %v4562 = vsel %vm4402, %v4370, %v4530
    %v4563 = vsel %vm4403, %v4371, %v4531
    %v4564 = vsel %vm4404, %v4372, %v4532
    %v4565 = vsel %vm4405, %v4373, %v4533
    %v4566 = vsel %vm4406, %v4374, %v4534
    %v4567 = vsel %vm4407, %v4375, %v4535
    %v4568 = vsel %vm4408, %v4376, %v4536
    %v4569 = vsel %vm4409, %v4377, %v4537
    %v4570 = vsel %vm4410, %v4378, %v4538
    %v4571 = vsel %vm4411, %v4379, %v4539
    %v4572 = vsel %vm4412, %v4380, %v4540
    %v4573 = vsel %vm4413, %v4381, %v4541
    %v4574 = vsel %vm4414, %v4382, %v4542
    %v4575 = vsel %vm4415, %v4383, %v4543
    %v4576 = vsel %vm4416, %v4384, %v4544
    %v4577 = vsel %vm4417, %v4385, %v4545
    %v4578 = vsel %vm4418, %v4386, %v4546
    %v4579 = vsel %vm4419, %v4387, %v4547
    %v4580 = vsel %vm4420, %v4388, %v4548
    %v4581 = vsel %vm4421, %v4389, %v4549
    %v4582 = vsel %vm4422, %v4390, %v4550
    %v4583 = vsel %vm4423, %v4391, %v4551
    %v4584 = vsel %vm4424, %v4392, %v4552
    %v4585 = vsel %vm4425, %v4393, %v4553
    %v4586 = vsel %vm4426, %v4394, %v4554
    %v4587 = vsel %vm4427, %v4395, %v4555
    %v4588 = vsel %vm4428, %v4396, %v4556
    %v4589 = vsel %vm4429, %v4397, %v4557
    %v4590 = vsel %vm4430, %v4398, %v4558
    %v4591 = vsel %vm4431, %v4399, %v4559
    %v4592 = vsel %vm4432, %v4400, %v4560
    %v4593 = vsel %vm4433, %v4401, %v4561
    %v4594 = vrot.slane %v4562, 2
    %v4595 = vrot.slane %v4563, 2
    %v4596 = vrot.slane %v4564, 2
    %v4597 = vrot.slane %v4565, 2
    %v4598 = vrot.slane %v4566, 2
    %v4599 = vrot.slane %v4567, 2
    %v4600 = vrot.slane %v4568, 2
    %v4601 = vrot.slane %v4569, 2
    %v4602 = vrot.slane %v4570, 2
    %v4603 = vrot.slane %v4571, 2
    %v4604 = vrot.slane %v4572, 2
    %v4605 = vrot.slane %v4573, 2
    %v4606 = vrot.slane %v4574, 2
    %v4607 = vrot.slane %v4575, 2
    %v4608 = vrot.slane %v4576, 2
    %v4609 = vrot.slane %v4577, 2
    %v4610 = vrot.slane %v4578, 2
    %v4611 = vrot.slane %v4579, 2
    %v4612 = vrot.slane %v4580, 2
    %v4613 = vrot.slane %v4581, 2
    %v4614 = vrot.slane %v4582, 2
    %v4615 = vrot.slane %v4583, 2
    %v4616 = vrot.slane %v4584, 2
    %v4617 = vrot.slane %v4585, 2
    %v4618 = vrot.slane %v4586, 2
    %v4619 = vrot.slane %v4587, 2
    %v4620 = vrot.slane %v4588, 2
    %v4621 = vrot.slane %v4589, 2
    %v4622 = vrot.slane %v4590, 2
    %v4623 = vrot.slane %v4591, 2
    %v4624 = vrot.slane %v4592, 2
    %v4625 = vrot.slane %v4593, 2
    %v4626 = vsel %vm1005, %v4624, %v4625
    %v4627 = vsel %vm1005, %v4623, %v4624
    %v4628 = vsel %vm1005, %v4622, %v4623
    %v4629 = vsel %vm1005, %v4621, %v4622
    %v4630 = vsel %vm1005, %v4620, %v4621
    %v4631 = vsel %vm1005, %v4619, %v4620
    %v4632 = vsel %vm1005, %v4618, %v4619
    %v4633 = vsel %vm1005, %v4617, %v4618
    %v4634 = vsel %vm1005, %v4616, %v4617
    %v4635 = vsel %vm1005, %v4615, %v4616
    %v4636 = vsel %vm1005, %v4614, %v4615
    %v4637 = vsel %vm1005, %v4613, %v4614
    %v4638 = vsel %vm1005, %v4612, %v4613
    %v4639 = vsel %vm1005, %v4611, %v4612
    %v4640 = vsel %vm1005, %v4610, %v4611
    %v4641 = vsel %vm1005, %v4609, %v4610
    %v4642 = vsel %vm1005, %v4608, %v4609
    %v4643 = vsel %vm1005, %v4607, %v4608
    %v4644 = vsel %vm1005, %v4606, %v4607
    %v4645 = vsel %vm1005, %v4605, %v4606
    %v4646 = vsel %vm1005, %v4604, %v4605
    %v4647 = vsel %vm1005, %v4603, %v4604
    %v4648 = vsel %vm1005, %v4602, %v4603
    %v4649 = vsel %vm1005, %v4601, %v4602
    %v4650 = vsel %vm1005, %v4600, %v4601
    %v4651 = vsel %vm1005, %v4599, %v4600
    %v4652 = vsel %vm1005, %v4598, %v4599
    %v4653 = vsel %vm1005, %v4597, %v4598
    %v4654 = vsel %vm1005, %v4596, %v4597
    %v4655 = vsel %vm1005, %v4595, %v4596
    %v4656 = vsel %vm1005, %v4594, %v4595
    %v4657 = vsel %vm1005, %v4625, %v4594
    %v4658 = vmax.f32 %v4562, %v4656
    %v4659 = vmax.f32 %v4563, %v4655
    %v4660 = vmax.f32 %v4564, %v4654
    %v4661 = vmax.f32 %v4565, %v4653
    %v4662 = vmax.f32 %v4566, %v4652
    %v4663 = vmax.f32 %v4567, %v4651
    %v4664 = vmax.f32 %v4568, %v4650
    %v4665 = vmax.f32 %v4569, %v4649
    %v4666 = vmax.f32 %v4570, %v4648
    %v4667 = vmax.f32 %v4571, %v4647
    %v4668 = vmax.f32 %v4572, %v4646
    %v4669 = vmax.f32 %v4573, %v4645
    %v4670 = vmax.f32 %v4574, %v4644
    %v4671 = vmax.f32 %v4575, %v4643
    %v4672 = vmax.f32 %v4576, %v4642
    %v4673 = vmax.f32 %v4577, %v4641
    %v4674 = vmax.f32 %v4578, %v4640
    %v4675 = vmax.f32 %v4579, %v4639
    %v4676 = vmax.f32 %v4580, %v4638
    %v4677 = vmax.f32 %v4581, %v4637
    %v4678 = vmax.f32 %v4582, %v4636
    %v4679 = vmax.f32 %v4583, %v4635
    %v4680 = vmax.f32 %v4584, %v4634
    %v4681 = vmax.f32 %v4585, %v4633
    %v4682 = vmax.f32 %v4586, %v4632
    %v4683 = vmax.f32 %v4587, %v4631
    %v4684 = vmax.f32 %v4588, %v4630
    %v4685 = vmax.f32 %v4589, %v4629
    %v4686 = vmax.f32 %v4590, %v4628
    %v4687 = vmax.f32 %v4591, %v4627
    %v4688 = vmax.f32 %v4592, %v4626
    %v4689 = vmax.f32 %v4593, %v4657
    %v4690 = vld [vmem:[%s9] sm:$0xff]
    %v4691 = vld [vmem:[%s9 + $0x8] sm:$0xff]
    %v4692 = vld [vmem:[%s9 + $0x10] sm:$0xff]
    %v4693 = vld [vmem:[%s9 + $0x18] sm:$0xff]
    %v4694 = vld [vmem:[%s9 + $0x20] sm:$0xff]
    %v4695 = vld [vmem:[%s9 + $0x28] sm:$0xff]
    %v4696 = vld [vmem:[%s9 + $0x30] sm:$0xff]
    %v4697 = vld [vmem:[%s9 + $0x38] sm:$0xff]
    %v4698 = vpack.c.bf16 %v4659, %v4658
    %v4699 = vpack.c.bf16 %v4661, %v4660
    %v4700 = vpack.c.bf16 %v4663, %v4662
    %v4701 = vpack.c.bf16 %v4665, %v4664
    %v4702 = vpack.c.bf16 %v4667, %v4666
    %v4703 = vpack.c.bf16 %v4669, %v4668
    %v4704 = vpack.c.bf16 %v4671, %v4670
    %v4705 = vpack.c.bf16 %v4673, %v4672
    %v4706 = vpack.c.bf16 %v4675, %v4674
    %v4707 = vpack.c.bf16 %v4677, %v4676
    %v4708 = vpack.c.bf16 %v4679, %v4678
    %v4709 = vpack.c.bf16 %v4681, %v4680
    %v4710 = vpack.c.bf16 %v4683, %v4682
    %v4711 = vpack.c.bf16 %v4685, %v4684
    %v4712 = vpack.c.bf16 %v4687, %v4686
    %v4713 = vpack.c.bf16 %v4689, %v4688
    %v4722 = vunpack.c.l.b16 %v4690
    %v4723 = vunpack.c.h.b16 %v4690
    %v4724 = vunpack.c.l.b16 %v4691
    %v4725 = vunpack.c.h.b16 %v4691
    %v4726 = vunpack.c.l.b16 %v4692
    %v4727 = vunpack.c.h.b16 %v4692
    %v4728 = vunpack.c.l.b16 %v4693
    %v4729 = vunpack.c.h.b16 %v4693
    %v4730 = vunpack.c.l.b16 %v4694
    %v4731 = vunpack.c.h.b16 %v4694
    %v4732 = vunpack.c.l.b16 %v4695
    %v4733 = vunpack.c.h.b16 %v4695
    %v4734 = vunpack.c.l.b16 %v4696
    %v4735 = vunpack.c.h.b16 %v4696
    %v4736 = vunpack.c.l.b16 %v4697
    %v4737 = vunpack.c.h.b16 %v4697
    %v4738 = vpack.c.b16 %v4724, %v4722
    %v4739 = vpack.c.b16 %v4725, %v4723
    %v4740 = vpack.c.b16 %v4728, %v4726
    %v4741 = vpack.c.b16 %v4729, %v4727
    %v4742 = vpack.c.b16 %v4732, %v4730
    %v4743 = vpack.c.b16 %v4733, %v4731
    %v4744 = vpack.c.b16 %v4736, %v4734
    %v4745 = vpack.c.b16 %v4737, %v4735
    %4754 = vmatpush.bf16.msra.mxu0 %v4705
    %4755 = vmatpush.bf16.msra.mxu0 %v4704
    %4756 = vmatpush.bf16.msra.mxu0 %v4703
    %4757 = vmatpush.bf16.msra.mxu0 %v4702
    %4758 = vmatpush.bf16.msra.mxu0 %v4701
    %4759 = vmatpush.bf16.msra.mxu0 %v4700
    %4760 = vmatpush.bf16.msra.mxu0 %v4699
    %4761 = vmatpush.bf16.msra.mxu0 %v4698
    %4762 = vmatmul.bf16.gmra.mxu0 %v4738
    %v4763 = vpop.f32.mrf.mxu0
    %v4764 = vadd.f32 0.0, %v4763
    %v4765 = vpop.f32.mrf.mxu0
    %v4766 = vadd.f32 0.0, %v4765
    %4767 = vmatmul.bf16.gmra.mxu0 %v4740
    %v4768 = vpop.f32.mrf.mxu0
    %v4769 = vadd.f32 0.0, %v4768
    %v4770 = vpop.f32.mrf.mxu0
    %v4771 = vadd.f32 0.0, %v4770
    %4772 = vmatmul.bf16.gmra.mxu0 %v4742
    %v4773 = vpop.f32.mrf.mxu0
    %v4774 = vadd.f32 0.0, %v4773
    %v4775 = vpop.f32.mrf.mxu0
    %v4776 = vadd.f32 0.0, %v4775
    %4777 = vmatmul.bf16.gmra.mxu0 %v4744
    %v4778 = vpop.f32.mrf.mxu0
    %v4779 = vadd.f32 0.0, %v4778
    %v4780 = vpop.f32.mrf.mxu0
    %v4781 = vadd.f32 0.0, %v4780
    %4782 = vdwg.mxu0
    %4783 = vmatpush.bf16.msra.mxu0 %v4713
    %4784 = vmatpush.bf16.msra.mxu0 %v4712
    %4785 = vmatpush.bf16.msra.mxu0 %v4711
    %4786 = vmatpush.bf16.msra.mxu0 %v4710
    %4787 = vmatpush.bf16.msra.mxu0 %v4709
    %4788 = vmatpush.bf16.msra.mxu0 %v4708
    %4789 = vmatpush.bf16.msra.mxu0 %v4707
    %4790 = vmatpush.bf16.msra.mxu0 %v4706
    %4791 = vmatmul.bf16.gmra.mxu0 %v4739
    %v4792 = vpop.f32.mrf.mxu0
    %v4793 = vadd.f32 %v4764, %v4792
    %v4794 = vpop.f32.mrf.mxu0
    %v4795 = vadd.f32 %v4766, %v4794
    %4796 = vmatmul.bf16.gmra.mxu0 %v4741
    %v4797 = vpop.f32.mrf.mxu0
    %v4798 = vadd.f32 %v4769, %v4797
    %v4799 = vpop.f32.mrf.mxu0
    %v4800 = vadd.f32 %v4771, %v4799
    %4801 = vmatmul.bf16.gmra.mxu0 %v4743
    %v4802 = vpop.f32.mrf.mxu0
    %v4803 = vadd.f32 %v4774, %v4802
    %v4804 = vpop.f32.mrf.mxu0
    %v4805 = vadd.f32 %v4776, %v4804
    %4806 = vmatmul.bf16.gmra.mxu0 %v4745
    %v4807 = vpop.f32.mrf.mxu0
    %v4808 = vadd.f32 %v4779, %v4807
    %v4809 = vpop.f32.mrf.mxu0
    %v4810 = vadd.f32 %v4781, %v4809
    %4811 = vdwg.mxu0
    %v4812 = vpack.c.bf16 %v4795, %v4793
    %v4813 = vpack.c.bf16 %v4800, %v4798
    %v4814 = vpack.c.bf16 %v4805, %v4803
    %v4815 = vpack.c.bf16 %v4810, %v4808
    %v4816 = vld [vmem:[%s5] sm:$0xf]
    %v4817 = vld [vmem:[%s5 + $0x4] sm:$0xf]
    %v4818 = vld [vmem:[%s5 + $0x8] sm:$0xf]
    %v4819 = vld [vmem:[%s5 + $0xc] sm:$0xf]
    %v4820 = vld [vmem:[%s5 + $0x10] sm:$0xf]
    %v4821 = vld [vmem:[%s5 + $0x14] sm:$0xf]
    %v4822 = vld [vmem:[%s5 + $0x18] sm:$0x1]
    %v4823 = vrot.slane %v4793, 1
    %v4824 = vrot.slane %v4795, 1
    %v4825 = vrot.slane %v4798, 1
    %v4826 = vrot.slane %v4800, 1
    %v4827 = vrot.slane %v4803, 1
    %v4828 = vrot.slane %v4805, 1
    %v4829 = vrot.slane %v4808, 1
    %v4830 = vrot.slane %v4810, 1
    %v4831 = vsel %vm640, %v4829, %v4830
    %v4832 = vsel %vm640, %v4828, %v4829
    %v4833 = vsel %vm640, %v4827, %v4828
    %v4834 = vsel %vm640, %v4826, %v4827
    %v4835 = vsel %vm640, %v4825, %v4826
    %v4836 = vsel %vm640, %v4824, %v4825
    %v4837 = vsel %vm640, %v4823, %v4824
    %v4838 = vsel %vm640, %v4830, %v4823
    %v4839 = vpack.c.bf16 %v4836, %v4837
    %v4840 = vpack.c.bf16 %v4834, %v4835
    %v4841 = vpack.c.bf16 %v4832, %v4833
    %v4842 = vpack.c.bf16 %v4838, %v4831
    %s4843 = scalar_lea.vmem %s5, 28
    %v4844 = vld [vmem:[%s4843] sm:$0xf]
    %v4845 = vld [vmem:[%s4843 + $0x4] sm:$0xf]
    %v4846 = vld [vmem:[%s4843 + $0x8] sm:$0xf]
    %v4847 = vld [vmem:[%s4843 + $0xc] sm:$0xf]
    %v4848 = vld [vmem:[%s4843 + $0x10] sm:$0xf]
    %v4849 = vld [vmem:[%s4843 + $0x14] sm:$0xf]
    %v4850 = vld [vmem:[%s4843 + $0x18] sm:$0x1]
    %v4858 = vunpack.c.l.b16 %v4844
    %v4859 = vunpack.c.l.b16 %v4845
    %v4860 = vunpack.c.l.b16 %v4846
    %v4861 = vunpack.c.l.b16 %v4847
    %v4862 = vunpack.c.l.b16 %v4848
    %v4863 = vunpack.c.l.b16 %v4849
    %v4864 = vunpack.c.l.b16 %v4850
    %v4865 = vpack.c.b16 %v4859, %v4858
    %v4866 = vpack.c.b16 %v4861, %v4860
    %v4867 = vpack.c.b16 %v4863, %v4862
    %v4868 = vpack.c.b16 %v4864, %v4864
    %v4873 = vsel %vm4142, %v4839, 0
    %v4876 = vsel %vm4142, %v4840, 0
    %v4879 = vsel %vm4142, %v4841, 0
    %v4882 = vsel %vm4142, %v4842, 0
    %vm4884 = vcmask 1040384
    %v4886 = vsel %vm4884, %v4868, 0
    %4888 = vmatpush.bf16.msra.mxu0 0
    %4889 = vmatpush.bf16.msra.mxu0 0
    %4890 = vmatpush.bf16.msra.mxu0 0
    %4891 = vmatpush.bf16.msra.mxu0 0
    %4892 = vmatpush.bf16.msra.mxu0 %v4886
    %4893 = vmatpush.bf16.msra.mxu0 %v4867
    %4894 = vmatpush.bf16.msra.mxu0 %v4866
    %4895 = vmatpush.bf16.msra.mxu0 %v4865
    %4896 = vmatmul.bf16.gmra.mxu0 %v4873
    %v4897 = vpop.f32.mrf.mxu0
    %v4898 = vadd.f32 0.0, %v4897
    %v4899 = vpop.f32.mrf.mxu0
    %v4900 = vadd.f32 0.0, %v4899
    %4901 = vmatmul.bf16.gmra.mxu0 %v4876
    %v4902 = vpop.f32.mrf.mxu0
    %v4903 = vadd.f32 0.0, %v4902
    %v4904 = vpop.f32.mrf.mxu0
    %v4905 = vadd.f32 0.0, %v4904
    %4906 = vmatmul.bf16.gmra.mxu0 %v4879
    %v4907 = vpop.f32.mrf.mxu0
    %v4908 = vadd.f32 0.0, %v4907
    %v4909 = vpop.f32.mrf.mxu0
    %v4910 = vadd.f32 0.0, %v4909
    %4911 = vmatmul.bf16.gmra.mxu0 %v4882
    %v4912 = vpop.f32.mrf.mxu0
    %v4913 = vadd.f32 0.0, %v4912
    %v4914 = vpop.f32.mrf.mxu0
    %v4915 = vadd.f32 0.0, %v4914
    %4916 = vdwg.mxu0
    %v4924 = vunpack.c.l.b16 %v4816
    %v4925 = vunpack.c.l.b16 %v4817
    %v4926 = vunpack.c.l.b16 %v4818
    %v4927 = vunpack.c.l.b16 %v4819
    %v4928 = vunpack.c.l.b16 %v4820
    %v4929 = vunpack.c.l.b16 %v4821
    %v4930 = vunpack.c.l.b16 %v4822
    %v4931 = vpack.c.b16 %v4925, %v4924
    %v4932 = vpack.c.b16 %v4927, %v4926
    %v4933 = vpack.c.b16 %v4929, %v4928
    %v4934 = vpack.c.b16 %v4930, %v4930
    %v4939 = vsel %vm4142, %v4812, 0
    %v4942 = vsel %vm4142, %v4813, 0
    %v4945 = vsel %vm4142, %v4814, 0
    %v4948 = vsel %vm4142, %v4815, 0
    %v4951 = vsel %vm4884, %v4934, 0
    %4953 = vmatpush.bf16.msra.mxu0 0
    %4954 = vmatpush.bf16.msra.mxu0 0
    %4955 = vmatpush.bf16.msra.mxu0 0
    %4956 = vmatpush.bf16.msra.mxu0 0
    %4957 = vmatpush.bf16.msra.mxu0 %v4951
    %4958 = vmatpush.bf16.msra.mxu0 %v4933
    %4959 = vmatpush.bf16.msra.mxu0 %v4932
    %4960 = vmatpush.bf16.msra.mxu0 %v4931
    %4961 = vmatmul.bf16.gmra.mxu0 %v4939
    %v4962 = vpop.f32.mrf.mxu0
    %v4963 = vadd.f32 %v4898, %v4962
    %v4964 = vpop.f32.mrf.mxu0
    %v4965 = vadd.f32 %v4900, %v4964
    %4966 = vmatmul.bf16.gmra.mxu0 %v4942
    %v4967 = vpop.f32.mrf.mxu0
    %v4968 = vadd.f32 %v4903, %v4967
    %v4969 = vpop.f32.mrf.mxu0
    %v4970 = vadd.f32 %v4905, %v4969
    %4971 = vmatmul.bf16.gmra.mxu0 %v4945
    %v4972 = vpop.f32.mrf.mxu0
    %v4973 = vadd.f32 %v4908, %v4972
    %v4974 = vpop.f32.mrf.mxu0
    %v4975 = vadd.f32 %v4910, %v4974
    %4976 = vmatmul.bf16.gmra.mxu0 %v4948
    %v4977 = vpop.f32.mrf.mxu0
    %v4978 = vadd.f32 %v4913, %v4977
    %v4979 = vpop.f32.mrf.mxu0
    %v4980 = vadd.f32 %v4915, %v4979
    %4981 = vdwg.mxu0
    %v4982 = vrot.slane %v4793, 2
    %v4983 = vrot.slane %v4795, 2
    %v4984 = vrot.slane %v4798, 2
    %v4985 = vrot.slane %v4800, 2
    %v4986 = vrot.slane %v4803, 2
    %v4987 = vrot.slane %v4805, 2
    %v4988 = vrot.slane %v4808, 2
    %v4989 = vrot.slane %v4810, 2
    %v4990 = vsel %vm1005, %v4988, %v4989
    %v4991 = vsel %vm1005, %v4987, %v4988
    %v4992 = vsel %vm1005, %v4986, %v4987
    %v4993 = vsel %vm1005, %v4985, %v4986
    %v4994 = vsel %vm1005, %v4984, %v4985
    %v4995 = vsel %vm1005, %v4983, %v4984
    %v4996 = vsel %vm1005, %v4982, %v4983
    %v4997 = vsel %vm1005, %v4989, %v4982
    %v4998 = vpack.c.bf16 %v4995, %v4996
    %v4999 = vpack.c.bf16 %v4993, %v4994
    %v5000 = vpack.c.bf16 %v4991, %v4992
    %v5001 = vpack.c.bf16 %v4997, %v4990
    %s5002 = scalar_lea.vmem %s5, 56
    %v5003 = vld [vmem:[%s5002] sm:$0xf]
    %v5004 = vld [vmem:[%s5002 + $0x4] sm:$0xf]
    %v5005 = vld [vmem:[%s5002 + $0x8] sm:$0xf]
    %v5006 = vld [vmem:[%s5002 + $0xc] sm:$0xf]
    %v5007 = vld [vmem:[%s5002 + $0x10] sm:$0xf]
    %v5008 = vld [vmem:[%s5002 + $0x14] sm:$0xf]
    %v5009 = vld [vmem:[%s5002 + $0x18] sm:$0x1]
    %v5017 = vunpack.c.l.b16 %v5003
    %v5018 = vunpack.c.l.b16 %v5004
    %v5019 = vunpack.c.l.b16 %v5005
    %v5020 = vunpack.c.l.b16 %v5006
    %v5021 = vunpack.c.l.b16 %v5007
    %v5022 = vunpack.c.l.b16 %v5008
    %v5023 = vunpack.c.l.b16 %v5009
    %v5024 = vpack.c.b16 %v5018, %v5017
    %v5025 = vpack.c.b16 %v5020, %v5019
    %v5026 = vpack.c.b16 %v5022, %v5021
    %v5027 = vpack.c.b16 %v5023, %v5023
    %v5032 = vsel %vm4142, %v4998, 0
    %v5035 = vsel %vm4142, %v4999, 0
    %v5038 = vsel %vm4142, %v5000, 0
    %v5041 = vsel %vm4142, %v5001, 0
    %v5044 = vsel %vm4884, %v5027, 0
    %5046 = vmatpush.bf16.msra.mxu0 0
    %5047 = vmatpush.bf16.msra.mxu0 0
    %5048 = vmatpush.bf16.msra.mxu0 0
    %5049 = vmatpush.bf16.msra.mxu0 0
    %5050 = vmatpush.bf16.msra.mxu0 %v5044
    %5051 = vmatpush.bf16.msra.mxu0 %v5026
    %5052 = vmatpush.bf16.msra.mxu0 %v5025
    %5053 = vmatpush.bf16.msra.mxu0 %v5024
    %5054 = vmatmul.bf16.gmra.mxu0 %v5032
    %v5055 = vpop.f32.mrf.mxu0
    %v5056 = vadd.f32 0.0, %v5055
    %v5057 = vpop.f32.mrf.mxu0
    %v5058 = vadd.f32 0.0, %v5057
    %5059 = vmatmul.bf16.gmra.mxu0 %v5035
    %v5060 = vpop.f32.mrf.mxu0
    %v5061 = vadd.f32 0.0, %v5060
    %v5062 = vpop.f32.mrf.mxu0
    %v5063 = vadd.f32 0.0, %v5062
    %5064 = vmatmul.bf16.gmra.mxu0 %v5038
    %v5065 = vpop.f32.mrf.mxu0
    %v5066 = vadd.f32 0.0, %v5065
    %v5067 = vpop.f32.mrf.mxu0
    %v5068 = vadd.f32 0.0, %v5067
    %5069 = vmatmul.bf16.gmra.mxu0 %v5041
    %v5070 = vpop.f32.mrf.mxu0
    %v5071 = vadd.f32 0.0, %v5070
    %v5072 = vpop.f32.mrf.mxu0
    %v5073 = vadd.f32 0.0, %v5072
    %5074 = vdwg.mxu0
    %v5075 = vadd.f32 %v4963, %v5056
    %v5076 = vadd.f32 %v4965, %v5058
    %v5077 = vadd.f32 %v4968, %v5061
    %v5078 = vadd.f32 %v4970, %v5063
    %v5079 = vadd.f32 %v4973, %v5066
    %v5080 = vadd.f32 %v4975, %v5068
    %v5081 = vadd.f32 %v4978, %v5071
    %v5082 = vadd.f32 %v4980, %v5073
    %v5083 = vrot.slane %v4793, 3
    %v5084 = vrot.slane %v4795, 3
    %v5085 = vrot.slane %v4798, 3
    %v5086 = vrot.slane %v4800, 3
    %v5087 = vrot.slane %v4803, 3
    %v5088 = vrot.slane %v4805, 3
    %v5089 = vrot.slane %v4808, 3
    %v5090 = vrot.slane %v4810, 3
    %v5091 = vsel %vm1260, %v5089, %v5090
    %v5092 = vsel %vm1260, %v5088, %v5089
    %v5093 = vsel %vm1260, %v5087, %v5088
    %v5094 = vsel %vm1260, %v5086, %v5087
    %v5095 = vsel %vm1260, %v5085, %v5086
    %v5096 = vsel %vm1260, %v5084, %v5085
    %v5097 = vsel %vm1260, %v5083, %v5084
    %v5098 = vsel %vm1260, %v5090, %v5083
    %v5099 = vpack.c.bf16 %v5096, %v5097
    %v5100 = vpack.c.bf16 %v5094, %v5095
    %v5101 = vpack.c.bf16 %v5092, %v5093
    %v5102 = vpack.c.bf16 %v5098, %v5091
    %s5103 = scalar_lea.vmem %s5, 84
    %v5104 = vld [vmem:[%s5103] sm:$0xf]
    %v5105 = vld [vmem:[%s5103 + $0x4] sm:$0xf]
    %v5106 = vld [vmem:[%s5103 + $0x8] sm:$0xf]
    %v5107 = vld [vmem:[%s5103 + $0xc] sm:$0xf]
    %v5108 = vld [vmem:[%s5103 + $0x10] sm:$0xf]
    %v5109 = vld [vmem:[%s5103 + $0x14] sm:$0xf]
    %v5110 = vld [vmem:[%s5103 + $0x18] sm:$0x1]
    %v5118 = vunpack.c.l.b16 %v5104
    %v5119 = vunpack.c.l.b16 %v5105
    %v5120 = vunpack.c.l.b16 %v5106
    %v5121 = vunpack.c.l.b16 %v5107
    %v5122 = vunpack.c.l.b16 %v5108
    %v5123 = vunpack.c.l.b16 %v5109
    %v5124 = vunpack.c.l.b16 %v5110
    %v5125 = vpack.c.b16 %v5119, %v5118
    %v5126 = vpack.c.b16 %v5121, %v5120
    %v5127 = vpack.c.b16 %v5123, %v5122
    %v5128 = vpack.c.b16 %v5124, %v5124
    %v5133 = vsel %vm4142, %v5099, 0
    %v5136 = vsel %vm4142, %v5100, 0
    %v5139 = vsel %vm4142, %v5101, 0
    %v5142 = vsel %vm4142, %v5102, 0
    %v5145 = vsel %vm4884, %v5128, 0
    %5147 = vmatpush.bf16.msra.mxu0 0
    %5148 = vmatpush.bf16.msra.mxu0 0
    %5149 = vmatpush.bf16.msra.mxu0 0
    %5150 = vmatpush.bf16.msra.mxu0 0
    %5151 = vmatpush.bf16.msra.mxu0 %v5145
    %5152 = vmatpush.bf16.msra.mxu0 %v5127
    %5153 = vmatpush.bf16.msra.mxu0 %v5126
    %5154 = vmatpush.bf16.msra.mxu0 %v5125
    %5155 = vmatmul.bf16.gmra.mxu0 %v5133
    %v5156 = vpop.f32.mrf.mxu0
    %v5157 = vadd.f32 0.0, %v5156
    %v5158 = vpop.f32.mrf.mxu0
    %v5159 = vadd.f32 0.0, %v5158
    %5160 = vmatmul.bf16.gmra.mxu0 %v5136
    %v5161 = vpop.f32.mrf.mxu0
    %v5162 = vadd.f32 0.0, %v5161
    %v5163 = vpop.f32.mrf.mxu0
    %v5164 = vadd.f32 0.0, %v5163
    %5165 = vmatmul.bf16.gmra.mxu0 %v5139
    %v5166 = vpop.f32.mrf.mxu0
    %v5167 = vadd.f32 0.0, %v5166
    %v5168 = vpop.f32.mrf.mxu0
    %v5169 = vadd.f32 0.0, %v5168
    %5170 = vmatmul.bf16.gmra.mxu0 %v5142
    %v5171 = vpop.f32.mrf.mxu0
    %v5172 = vadd.f32 0.0, %v5171
    %v5173 = vpop.f32.mrf.mxu0
    %v5174 = vadd.f32 0.0, %v5173
    %5175 = vdwg.mxu0
    %v5176 = vadd.f32 %v5075, %v5157
    %v5177 = vadd.f32 %v5076, %v5159
    %v5178 = vadd.f32 %v5077, %v5162
    %v5179 = vadd.f32 %v5078, %v5164
    %v5180 = vadd.f32 %v5079, %v5167
    %v5181 = vadd.f32 %v5080, %v5169
    %v5182 = vadd.f32 %v5081, %v5172
    %v5183 = vadd.f32 %v5082, %v5174
    %v5184 = vrot.slane %v4793, 4
    %v5185 = vrot.slane %v4795, 4
    %v5186 = vrot.slane %v4798, 4
    %v5187 = vrot.slane %v4800, 4
    %v5188 = vrot.slane %v4803, 4
    %v5189 = vrot.slane %v4805, 4
    %v5190 = vrot.slane %v4808, 4
    %v5191 = vrot.slane %v4810, 4
    %v5192 = vsel %vm1515, %v5190, %v5191
    %v5193 = vsel %vm1515, %v5189, %v5190
    %v5194 = vsel %vm1515, %v5188, %v5189
    %v5195 = vsel %vm1515, %v5187, %v5188
    %v5196 = vsel %vm1515, %v5186, %v5187
    %v5197 = vsel %vm1515, %v5185, %v5186
    %v5198 = vsel %vm1515, %v5184, %v5185
    %v5199 = vsel %vm1515, %v5191, %v5184
    %v5200 = vpack.c.bf16 %v5197, %v5198
    %v5201 = vpack.c.bf16 %v5195, %v5196
    %v5202 = vpack.c.bf16 %v5193, %v5194
    %v5203 = vpack.c.bf16 %v5199, %v5192
    %s5204 = scalar_lea.vmem %s5, 112
    %v5205 = vld [vmem:[%s5204] sm:$0xf]
    %v5206 = vld [vmem:[%s5204 + $0x4] sm:$0xf]
    %v5207 = vld [vmem:[%s5204 + $0x8] sm:$0xf]
    %v5208 = vld [vmem:[%s5204 + $0xc] sm:$0xf]
    %v5209 = vld [vmem:[%s5204 + $0x10] sm:$0xf]
    %v5210 = vld [vmem:[%s5204 + $0x14] sm:$0xf]
    %v5211 = vld [vmem:[%s5204 + $0x18] sm:$0x1]
    %v5219 = vunpack.c.l.b16 %v5205
    %v5220 = vunpack.c.l.b16 %v5206
    %v5221 = vunpack.c.l.b16 %v5207
    %v5222 = vunpack.c.l.b16 %v5208
    %v5223 = vunpack.c.l.b16 %v5209
    %v5224 = vunpack.c.l.b16 %v5210
    %v5225 = vunpack.c.l.b16 %v5211
    %v5226 = vpack.c.b16 %v5220, %v5219
    %v5227 = vpack.c.b16 %v5222, %v5221
    %v5228 = vpack.c.b16 %v5224, %v5223
    %v5229 = vpack.c.b16 %v5225, %v5225
    %v5234 = vsel %vm4142, %v5200, 0
    %v5237 = vsel %vm4142, %v5201, 0
    %v5240 = vsel %vm4142, %v5202, 0
    %v5243 = vsel %vm4142, %v5203, 0
    %v5246 = vsel %vm4884, %v5229, 0
    %5248 = vmatpush.bf16.msra.mxu0 0
    %5249 = vmatpush.bf16.msra.mxu0 0
    %5250 = vmatpush.bf16.msra.mxu0 0
    %5251 = vmatpush.bf16.msra.mxu0 0
    %5252 = vmatpush.bf16.msra.mxu0 %v5246
    %5253 = vmatpush.bf16.msra.mxu0 %v5228
    %5254 = vmatpush.bf16.msra.mxu0 %v5227
    %5255 = vmatpush.bf16.msra.mxu0 %v5226
    %5256 = vmatmul.bf16.gmra.mxu0 %v5234
    %v5257 = vpop.f32.mrf.mxu0
    %v5258 = vadd.f32 0.0, %v5257
    %v5259 = vpop.f32.mrf.mxu0
    %v5260 = vadd.f32 0.0, %v5259
    %5261 = vmatmul.bf16.gmra.mxu0 %v5237
    %v5262 = vpop.f32.mrf.mxu0
    %v5263 = vadd.f32 0.0, %v5262
    %v5264 = vpop.f32.mrf.mxu0
    %v5265 = vadd.f32 0.0, %v5264
    %5266 = vmatmul.bf16.gmra.mxu0 %v5240
    %v5267 = vpop.f32.mrf.mxu0
    %v5268 = vadd.f32 0.0, %v5267
    %v5269 = vpop.f32.mrf.mxu0
    %v5270 = vadd.f32 0.0, %v5269
    %5271 = vmatmul.bf16.gmra.mxu0 %v5243
    %v5272 = vpop.f32.mrf.mxu0
    %v5273 = vadd.f32 0.0, %v5272
    %v5274 = vpop.f32.mrf.mxu0
    %v5275 = vadd.f32 0.0, %v5274
    %5276 = vdwg.mxu0
    %v5277 = vadd.f32 %v5176, %v5258
    %v5278 = vadd.f32 %v5177, %v5260
    %v5279 = vadd.f32 %v5178, %v5263
    %v5280 = vadd.f32 %v5179, %v5265
    %v5281 = vadd.f32 %v5180, %v5268
    %v5282 = vadd.f32 %v5181, %v5270
    %v5283 = vadd.f32 %v5182, %v5273
    %v5284 = vadd.f32 %v5183, %v5275
    %vm5285 = vcmp.lt.s32.totalorder %v551, 25
    %vm5286 = vcmp.lt.s32.totalorder %v552, 25
    %vm5287 = vcmp.lt.s32.totalorder %v553, 25
    %vm5288 = vcmp.lt.s32.totalorder %v554, 25
    %vm5289 = vcmp.lt.s32.totalorder %v555, 25
    %vm5290 = vcmp.lt.s32.totalorder %v556, 25
    %vm5291 = vcmp.lt.s32.totalorder %v557, 25
    %vm5292 = vcmp.lt.s32.totalorder %v558, 25
    %v5293 = vsel %vm5285, 1, 0
    %v5294 = vsel %vm5286, 1, 0
    %v5295 = vsel %vm5287, 1, 0
    %v5296 = vsel %vm5288, 1, 0
    %v5297 = vsel %vm5289, 1, 0
    %v5298 = vsel %vm5290, 1, 0
    %v5299 = vsel %vm5291, 1, 0
    %v5300 = vsel %vm5292, 1, 0
    %vm5301 = vcmp.eq.s32.totalorder %v5293, 1
    %vm5302 = vcmp.eq.s32.totalorder %v5294, 1
    %vm5303 = vcmp.eq.s32.totalorder %v5295, 1
    %vm5304 = vcmp.eq.s32.totalorder %v5296, 1
    %vm5305 = vcmp.eq.s32.totalorder %v5297, 1
    %vm5306 = vcmp.eq.s32.totalorder %v5298, 1
    %vm5307 = vcmp.eq.s32.totalorder %v5299, 1
    %vm5308 = vcmp.eq.s32.totalorder %v5300, 1
    %v5309 = vsel %vm5301, %v5277, 0.0
    %v5310 = vsel %vm5302, %v5278, 0.0
    %v5311 = vsel %vm5303, %v5279, 0.0
    %v5312 = vsel %vm5304, %v5280, 0.0
    %v5313 = vsel %vm5305, %v5281, 0.0
    %v5314 = vsel %vm5306, %v5282, 0.0
    %v5315 = vsel %vm5307, %v5283, 0.0
    %v5316 = vsel %vm5308, %v5284, 0.0
    %vm5317 = vcmask 818176
    %v5318 = vsel %vm5317, %v5309, 0.0
    %v5319 = vsel %vm5317, %v5310, 0.0
    %v5320 = vadd.f32 %v5318, %v5319
    %v5321 = vsel %vm5317, %v5311, 0.0
    %v5322 = vadd.f32 %v5320, %v5321
    %v5323 = vsel %vm5317, %v5312, 0.0
    %v5324 = vadd.f32 %v5322, %v5323
    %v5325 = vsel %vm5317, %v5313, 0.0
    %v5326 = vadd.f32 %v5324, %v5325
    %v5327 = vsel %vm5317, %v5314, 0.0
    %v5328 = vadd.f32 %v5326, %v5327
    %v5329 = vsel %vm5317, %v5315, 0.0
    %v5330 = vadd.f32 %v5328, %v5329
    %v5331 = vsel %vm5317, %v5316, 0.0
    %v5332 = vadd.f32 %v5330, %v5331
    %v5333 = vrot.slane %v5332, 4
    %v5334 = vadd.f32 %v5332, %v5333
    %v5335 = vrot.slane %v5334, 2
    %v5336 = vadd.f32 %v5334, %v5335
    %v5337 = vrot.slane %v5336, 1
    %v5338 = vadd.f32 %v5336, %v5337
    %v5339 = vmul.f32 %v5309, %v5309
    %v5340 = vmul.f32 %v5310, %v5310
    %v5341 = vmul.f32 %v5311, %v5311
    %v5342 = vmul.f32 %v5312, %v5312
    %v5343 = vmul.f32 %v5313, %v5313
    %v5344 = vmul.f32 %v5314, %v5314
    %v5345 = vmul.f32 %v5315, %v5315
    %v5346 = vmul.f32 %v5316, %v5316
    %v5347 = vsel %vm5317, %v5339, 0.0
    %v5348 = vsel %vm5317, %v5340, 0.0
    %v5349 = vadd.f32 %v5347, %v5348
    %v5350 = vsel %vm5317, %v5341, 0.0
    %v5351 = vadd.f32 %v5349, %v5350
    %v5352 = vsel %vm5317, %v5342, 0.0
    %v5353 = vadd.f32 %v5351, %v5352
    %v5354 = vsel %vm5317, %v5343, 0.0
    %v5355 = vadd.f32 %v5353, %v5354
    %v5356 = vsel %vm5317, %v5344, 0.0
    %v5357 = vadd.f32 %v5355, %v5356
    %v5358 = vsel %vm5317, %v5345, 0.0
    %v5359 = vadd.f32 %v5357, %v5358
    %v5360 = vsel %vm5317, %v5346, 0.0
    %v5361 = vadd.f32 %v5359, %v5360
    %v5362 = vrot.slane %v5361, 4
    %v5363 = vadd.f32 %v5361, %v5362
    %v5364 = vrot.slane %v5363, 2
    %v5365 = vadd.f32 %v5363, %v5364
    %v5366 = vrot.slane %v5365, 1
    %v5367 = vadd.f32 %v5365, %v5366
    %v5368 = vmul.f32 %v5338, 0.02
    %v5369 = vmul.f32 %v5367, 0.02
    %v5370 = vmul.f32 %v5368, %v5368
    %v5371 = vsub.f32 %v5369, %v5370
    %v5372 = vmax.f32 %v5371, 0.0
    %v5373 = vld [vmem:[%s6] sm:$0x3]
    %v5374 = vadd.f32 %v5372, 1e-05
    %v5375 = vrsqrt.pop %v5374
    %v5376 = vmul.f32 %v5375, %v5374
    %v5377 = vmul.f32 %v5376, %v5375
    %v5378 = vmul.f32 0.5, %v5377
    %v5379 = vsub.f32 1.5, %v5378
    %v5380 = vmul.f32 %v5375, %v5379
    %vm5381 = vweird.f32 %v5374
    %vm5382 = vweird.f32 %v5375
    %vm5383 = vmor %vm5381, %vm5382
    %v5384 = vsel %vm5383, %v5375, %v5380
    %v5385 = vmul.f32 %v5384, %v5373
    %v5386 = vmul.f32 %v5368, %v5385
    %v5388 = vrot.slane %v5386, 7
    %v5390 = vsub.f32 %v5373, %v5388
    %v5391 = vperm.slane %v5385, 0
    %v5392 = vmul.f32 %v5277, %v5391
    %v5393 = vmul.f32 %v5278, %v5391
    %v5394 = vmul.f32 %v5279, %v5391
    %v5395 = vmul.f32 %v5280, %v5391
    %v5396 = vmul.f32 %v5281, %v5391
    %v5397 = vmul.f32 %v5282, %v5391
    %v5398 = vmul.f32 %v5283, %v5391
    %v5399 = vmul.f32 %v5284, %v5391
    %v5400 = vperm.slane %v5390, 1
    %v5401 = vadd.f32 %v5392, %v5400
    %v5402 = vadd.f32 %v5393, %v5400
    %v5403 = vadd.f32 %v5394, %v5400
    %v5404 = vadd.f32 %v5395, %v5400
    %v5405 = vadd.f32 %v5396, %v5400
    %v5406 = vadd.f32 %v5397, %v5400
    %v5407 = vadd.f32 %v5398, %v5400
    %v5408 = vadd.f32 %v5399, %v5400
    %vm5409 = vcmp.gt.f32.partialorder %v5401, 0.0
    %vm5410 = vcmp.gt.f32.partialorder %v5402, 0.0
    %vm5411 = vcmp.gt.f32.partialorder %v5403, 0.0
    %vm5412 = vcmp.gt.f32.partialorder %v5404, 0.0
    %vm5413 = vcmp.gt.f32.partialorder %v5405, 0.0
    %vm5414 = vcmp.gt.f32.partialorder %v5406, 0.0
    %vm5415 = vcmp.gt.f32.partialorder %v5407, 0.0
    %vm5416 = vcmp.gt.f32.partialorder %v5408, 0.0
    %v5417 = vmin.f32 %v5401, 0.0
    %v5418 = vmin.f32 %v5402, 0.0
    %v5419 = vmin.f32 %v5403, 0.0
    %v5420 = vmin.f32 %v5404, 0.0
    %v5421 = vmin.f32 %v5405, 0.0
    %v5422 = vmin.f32 %v5406, 0.0
    %v5423 = vmin.f32 %v5407, 0.0
    %v5424 = vmin.f32 %v5408, 0.0
    %v5425 = vmul.f32 %v5417, 1.442695
    %v5426 = vpow.pop %v5425
    %v5427 = vmul.f32 %v5418, 1.442695
    %v5428 = vpow.pop %v5427
    %v5429 = vmul.f32 %v5419, 1.442695
    %v5430 = vpow.pop %v5429
    %v5431 = vmul.f32 %v5420, 1.442695
    %v5432 = vpow.pop %v5431
    %v5433 = vmul.f32 %v5421, 1.442695
    %v5434 = vpow.pop %v5433
    %v5435 = vmul.f32 %v5422, 1.442695
    %v5436 = vpow.pop %v5435
    %v5437 = vmul.f32 %v5423, 1.442695
    %v5438 = vpow.pop %v5437
    %v5439 = vmul.f32 %v5424, 1.442695
    %v5440 = vpow.pop %v5439
    %v5441 = vsub.f32 %v5426, 1.0
    %v5442 = vsub.f32 %v5428, 1.0
    %v5443 = vsub.f32 %v5430, 1.0
    %v5444 = vsub.f32 %v5432, 1.0
    %v5445 = vsub.f32 %v5434, 1.0
    %v5446 = vsub.f32 %v5436, 1.0
    %v5447 = vsub.f32 %v5438, 1.0
    %v5448 = vsub.f32 %v5440, 1.0
    %v5449 = vsel %vm5409, %v5401, %v5441
    %v5450 = vsel %vm5410, %v5402, %v5442
    %v5451 = vsel %vm5411, %v5403, %v5443
    %v5452 = vsel %vm5412, %v5404, %v5444
    %v5453 = vsel %vm5413, %v5405, %v5445
    %v5454 = vsel %vm5414, %v5406, %v5446
    %v5455 = vsel %vm5415, %v5407, %v5447
    %v5456 = vsel %vm5416, %v5408, %v5448
    %v5457 = vrot.slane %v5449, 1
    %v5458 = vrot.slane %v5450, 1
    %v5459 = vrot.slane %v5451, 1
    %v5460 = vrot.slane %v5452, 1
    %v5461 = vrot.slane %v5453, 1
    %v5462 = vrot.slane %v5454, 1
    %v5463 = vrot.slane %v5455, 1
    %v5464 = vrot.slane %v5456, 1
    %v5465 = vsel %vm640, %v5463, %v5464
    %v5466 = vsel %vm640, %v5462, %v5463
    %v5467 = vsel %vm640, %v5461, %v5462
    %v5468 = vsel %vm640, %v5460, %v5461
    %v5469 = vsel %vm640, %v5459, %v5460
    %v5470 = vsel %vm640, %v5458, %v5459
    %v5471 = vsel %vm640, %v5457, %v5458
    %v5472 = vsel %vm640, %v5464, %v5457
    %v5473 = vmax.f32 %v5449, %v5471
    %v5474 = vmax.f32 %v5450, %v5470
    %v5475 = vmax.f32 %v5451, %v5469
    %v5476 = vmax.f32 %v5452, %v5468
    %v5477 = vmax.f32 %v5453, %v5467
    %v5478 = vmax.f32 %v5454, %v5466
    %v5479 = vmax.f32 %v5455, %v5465
    %v5480 = vmax.f32 %v5456, %v5472
    %v5481 = vpack.c.bf16 %v5474, %v5473
    %v5482 = vpack.c.bf16 %v5476, %v5475
    %v5483 = vpack.c.bf16 %v5478, %v5477
    %v5484 = vpack.c.bf16 %v5480, %v5479
    %v5485 = vld [vmem:[%s7] sm:$0xff]
    %v5486 = vld [vmem:[%s7 + $0x8] sm:$0xff]
    %v5487 = vld [vmem:[%s7 + $0x10] sm:$0xff]
    %v5488 = vld [vmem:[%s7 + $0x18] sm:$0xff]
    %v5489 = vld [vmem:[%s7 + $0x20] sm:$0xff]
    %v5490 = vld [vmem:[%s7 + $0x28] sm:$0xff]
    %v5491 = vld [vmem:[%s7 + $0x30] sm:$0xff]
    %v5492 = vld [vmem:[%s7 + $0x38] sm:$0xff]
    %v5493 = vld [vmem:[%s7 + $0x40] sm:$0xff]
    %v5494 = vld [vmem:[%s7 + $0x48] sm:$0xff]
    %v5495 = vld [vmem:[%s7 + $0x50] sm:$0xff]
    %v5496 = vld [vmem:[%s7 + $0x58] sm:$0xff]
    %v5497 = vld [vmem:[%s7 + $0x60] sm:$0x33]
    %v5498 = vrot.slane %v5473, 2
    %v5499 = vrot.slane %v5474, 2
    %v5500 = vrot.slane %v5475, 2
    %v5501 = vrot.slane %v5476, 2
    %v5502 = vrot.slane %v5477, 2
    %v5503 = vrot.slane %v5478, 2
    %v5504 = vrot.slane %v5479, 2
    %v5505 = vrot.slane %v5480, 2
    %v5506 = vsel %vm1005, %v5504, %v5505
    %v5507 = vsel %vm1005, %v5503, %v5504
    %v5508 = vsel %vm1005, %v5502, %v5503
    %v5509 = vsel %vm1005, %v5501, %v5502
    %v5510 = vsel %vm1005, %v5500, %v5501
    %v5511 = vsel %vm1005, %v5499, %v5500
    %v5512 = vsel %vm1005, %v5498, %v5499
    %v5513 = vsel %vm1005, %v5505, %v5498
    %v5514 = vpack.c.bf16 %v5511, %v5512
    %v5515 = vpack.c.bf16 %v5509, %v5510
    %v5516 = vpack.c.bf16 %v5507, %v5508
    %v5517 = vpack.c.bf16 %v5513, %v5506
    %s5518 = scalar_lea.vmem %s7, 104
    %v5519 = vld [vmem:[%s5518] sm:$0xff]
    %v5520 = vld [vmem:[%s5518 + $0x8] sm:$0xff]
    %v5521 = vld [vmem:[%s5518 + $0x10] sm:$0xff]
    %v5522 = vld [vmem:[%s5518 + $0x18] sm:$0xff]
    %v5523 = vld [vmem:[%s5518 + $0x20] sm:$0xff]
    %v5524 = vld [vmem:[%s5518 + $0x28] sm:$0xff]
    %v5525 = vld [vmem:[%s5518 + $0x30] sm:$0xff]
    %v5526 = vld [vmem:[%s5518 + $0x38] sm:$0xff]
    %v5527 = vld [vmem:[%s5518 + $0x40] sm:$0xff]
    %v5528 = vld [vmem:[%s5518 + $0x48] sm:$0xff]
    %v5529 = vld [vmem:[%s5518 + $0x50] sm:$0xff]
    %v5530 = vld [vmem:[%s5518 + $0x58] sm:$0xff]
    %v5531 = vld [vmem:[%s5518 + $0x60] sm:$0x33]
    %v5545 = vunpack.c.l.b16 %v5519
    %v5546 = vunpack.c.h.b16 %v5519
    %v5547 = vunpack.c.l.b16 %v5520
    %v5548 = vunpack.c.h.b16 %v5520
    %v5549 = vunpack.c.l.b16 %v5521
    %v5550 = vunpack.c.h.b16 %v5521
    %v5551 = vunpack.c.l.b16 %v5522
    %v5552 = vunpack.c.h.b16 %v5522
    %v5553 = vunpack.c.l.b16 %v5523
    %v5554 = vunpack.c.h.b16 %v5523
    %v5555 = vunpack.c.l.b16 %v5524
    %v5556 = vunpack.c.h.b16 %v5524
    %v5557 = vunpack.c.l.b16 %v5525
    %v5558 = vunpack.c.h.b16 %v5525
    %v5559 = vunpack.c.l.b16 %v5526
    %v5560 = vunpack.c.h.b16 %v5526
    %v5561 = vunpack.c.l.b16 %v5527
    %v5562 = vunpack.c.h.b16 %v5527
    %v5563 = vunpack.c.l.b16 %v5528
    %v5564 = vunpack.c.h.b16 %v5528
    %v5565 = vunpack.c.l.b16 %v5529
    %v5566 = vunpack.c.h.b16 %v5529
    %v5567 = vunpack.c.l.b16 %v5530
    %v5568 = vunpack.c.h.b16 %v5530
    %v5569 = vunpack.c.l.b16 %v5531
    %v5570 = vunpack.c.h.b16 %v5531
    %v5571 = vpack.c.b16 %v5547, %v5545
    %v5572 = vpack.c.b16 %v5548, %v5546
    %v5573 = vpack.c.b16 %v5551, %v5549
    %v5574 = vpack.c.b16 %v5552, %v5550
    %v5575 = vpack.c.b16 %v5555, %v5553
    %v5576 = vpack.c.b16 %v5556, %v5554
    %v5577 = vpack.c.b16 %v5559, %v5557
    %v5578 = vpack.c.b16 %v5560, %v5558
    %v5579 = vpack.c.b16 %v5563, %v5561
    %v5580 = vpack.c.b16 %v5564, %v5562
    %v5581 = vpack.c.b16 %v5567, %v5565
    %v5582 = vpack.c.b16 %v5568, %v5566
    %v5583 = vpack.c.b16 %v5569, %v5569
    %v5584 = vpack.c.b16 %v5570, %v5570
    %v5598 = vsel %vm5317, %v5514, 0
    %v5601 = vsel %vm5317, %v5515, 0
    %v5604 = vsel %vm5317, %v5516, 0
    %v5607 = vsel %vm5317, %v5517, 0
    %v5610 = vsel %vm740, %v5583, 0
    %v5613 = vsel %vm740, %v5584, 0
    %5615 = vmatpush.bf16.msra.mxu0 0
    %5616 = vmatpush.bf16.msra.mxu0 %v5610
    %5617 = vmatpush.bf16.msra.mxu0 %v5581
    %5618 = vmatpush.bf16.msra.mxu0 %v5579
    %5619 = vmatpush.bf16.msra.mxu0 %v5577
    %5620 = vmatpush.bf16.msra.mxu0 %v5575
    %5621 = vmatpush.bf16.msra.mxu0 %v5573
    %5622 = vmatpush.bf16.msra.mxu0 %v5571
    %5623 = vmatmul.bf16.gmra.mxu0 %v5598
    %v5624 = vpop.f32.mrf.mxu0
    %v5625 = vadd.f32 0.0, %v5624
    %v5626 = vpop.f32.mrf.mxu0
    %v5627 = vadd.f32 0.0, %v5626
    %5628 = vmatmul.bf16.gmra.mxu0 %v5601
    %v5629 = vpop.f32.mrf.mxu0
    %v5630 = vadd.f32 0.0, %v5629
    %v5631 = vpop.f32.mrf.mxu0
    %v5632 = vadd.f32 0.0, %v5631
    %5633 = vmatmul.bf16.gmra.mxu0 %v5604
    %v5634 = vpop.f32.mrf.mxu0
    %v5635 = vadd.f32 0.0, %v5634
    %v5636 = vpop.f32.mrf.mxu0
    %v5637 = vadd.f32 0.0, %v5636
    %5638 = vmatmul.bf16.gmra.mxu0 %v5607
    %v5639 = vpop.f32.mrf.mxu0
    %v5640 = vadd.f32 0.0, %v5639
    %v5641 = vpop.f32.mrf.mxu0
    %v5642 = vadd.f32 0.0, %v5641
    %5643 = vdwg.mxu0
    %5644 = vmatpush.bf16.msra.mxu0 0
    %5645 = vmatpush.bf16.msra.mxu0 %v5613
    %5646 = vmatpush.bf16.msra.mxu0 %v5582
    %5647 = vmatpush.bf16.msra.mxu0 %v5580
    %5648 = vmatpush.bf16.msra.mxu0 %v5578
    %5649 = vmatpush.bf16.msra.mxu0 %v5576
    %5650 = vmatpush.bf16.msra.mxu0 %v5574
    %5651 = vmatpush.bf16.msra.mxu0 %v5572
    %5652 = vmatmul.bf16.gmra.mxu0 %v5598
    %v5653 = vpop.f32.mrf.mxu0
    %v5654 = vadd.f32 0.0, %v5653
    %v5655 = vpop.f32.mrf.mxu0
    %v5656 = vadd.f32 0.0, %v5655
    %5657 = vmatmul.bf16.gmra.mxu0 %v5601
    %v5658 = vpop.f32.mrf.mxu0
    %v5659 = vadd.f32 0.0, %v5658
    %v5660 = vpop.f32.mrf.mxu0
    %v5661 = vadd.f32 0.0, %v5660
    %5662 = vmatmul.bf16.gmra.mxu0 %v5604
    %v5663 = vpop.f32.mrf.mxu0
    %v5664 = vadd.f32 0.0, %v5663
    %v5665 = vpop.f32.mrf.mxu0
    %v5666 = vadd.f32 0.0, %v5665
    %5667 = vmatmul.bf16.gmra.mxu0 %v5607
    %v5668 = vpop.f32.mrf.mxu0
    %v5669 = vadd.f32 0.0, %v5668
    %v5670 = vpop.f32.mrf.mxu0
    %v5671 = vadd.f32 0.0, %v5670
    %5672 = vdwg.mxu0
    %v5686 = vunpack.c.l.b16 %v5485
    %v5687 = vunpack.c.h.b16 %v5485
    %v5688 = vunpack.c.l.b16 %v5486
    %v5689 = vunpack.c.h.b16 %v5486
    %v5690 = vunpack.c.l.b16 %v5487
    %v5691 = vunpack.c.h.b16 %v5487
    %v5692 = vunpack.c.l.b16 %v5488
    %v5693 = vunpack.c.h.b16 %v5488
    %v5694 = vunpack.c.l.b16 %v5489
    %v5695 = vunpack.c.h.b16 %v5489
    %v5696 = vunpack.c.l.b16 %v5490
    %v5697 = vunpack.c.h.b16 %v5490
    %v5698 = vunpack.c.l.b16 %v5491
    %v5699 = vunpack.c.h.b16 %v5491
    %v5700 = vunpack.c.l.b16 %v5492
    %v5701 = vunpack.c.h.b16 %v5492
    %v5702 = vunpack.c.l.b16 %v5493
    %v5703 = vunpack.c.h.b16 %v5493
    %v5704 = vunpack.c.l.b16 %v5494
    %v5705 = vunpack.c.h.b16 %v5494
    %v5706 = vunpack.c.l.b16 %v5495
    %v5707 = vunpack.c.h.b16 %v5495
    %v5708 = vunpack.c.l.b16 %v5496
    %v5709 = vunpack.c.h.b16 %v5496
    %v5710 = vunpack.c.l.b16 %v5497
    %v5711 = vunpack.c.h.b16 %v5497
    %v5712 = vpack.c.b16 %v5688, %v5686
    %v5713 = vpack.c.b16 %v5689, %v5687
    %v5714 = vpack.c.b16 %v5692, %v5690
    %v5715 = vpack.c.b16 %v5693, %v5691
    %v5716 = vpack.c.b16 %v5696, %v5694
    %v5717 = vpack.c.b16 %v5697, %v5695
    %v5718 = vpack.c.b16 %v5700, %v5698
    %v5719 = vpack.c.b16 %v5701, %v5699
    %v5720 = vpack.c.b16 %v5704, %v5702
    %v5721 = vpack.c.b16 %v5705, %v5703
    %v5722 = vpack.c.b16 %v5708, %v5706
    %v5723 = vpack.c.b16 %v5709, %v5707
    %v5724 = vpack.c.b16 %v5710, %v5710
    %v5725 = vpack.c.b16 %v5711, %v5711
    %v5739 = vsel %vm5317, %v5481, 0
    %v5742 = vsel %vm5317, %v5482, 0
    %v5745 = vsel %vm5317, %v5483, 0
    %v5748 = vsel %vm5317, %v5484, 0
    %v5751 = vsel %vm740, %v5724, 0
    %v5754 = vsel %vm740, %v5725, 0
    %5756 = vmatpush.bf16.msra.mxu0 0
    %5757 = vmatpush.bf16.msra.mxu0 %v5751
    %5758 = vmatpush.bf16.msra.mxu0 %v5722
    %5759 = vmatpush.bf16.msra.mxu0 %v5720
    %5760 = vmatpush.bf16.msra.mxu0 %v5718
    %5761 = vmatpush.bf16.msra.mxu0 %v5716
    %5762 = vmatpush.bf16.msra.mxu0 %v5714
    %5763 = vmatpush.bf16.msra.mxu0 %v5712
    %5764 = vmatmul.bf16.gmra.mxu0 %v5739
    %v5765 = vpop.f32.mrf.mxu0
    %v5766 = vadd.f32 %v5625, %v5765
    %v5767 = vpop.f32.mrf.mxu0
    %v5768 = vadd.f32 %v5627, %v5767
    %5769 = vmatmul.bf16.gmra.mxu0 %v5742
    %v5770 = vpop.f32.mrf.mxu0
    %v5771 = vadd.f32 %v5630, %v5770
    %v5772 = vpop.f32.mrf.mxu0
    %v5773 = vadd.f32 %v5632, %v5772
    %5774 = vmatmul.bf16.gmra.mxu0 %v5745
    %v5775 = vpop.f32.mrf.mxu0
    %v5776 = vadd.f32 %v5635, %v5775
    %v5777 = vpop.f32.mrf.mxu0
    %v5778 = vadd.f32 %v5637, %v5777
    %5779 = vmatmul.bf16.gmra.mxu0 %v5748
    %v5780 = vpop.f32.mrf.mxu0
    %v5781 = vadd.f32 %v5640, %v5780
    %v5782 = vpop.f32.mrf.mxu0
    %v5783 = vadd.f32 %v5642, %v5782
    %5784 = vdwg.mxu0
    %5785 = vmatpush.bf16.msra.mxu0 0
    %5786 = vmatpush.bf16.msra.mxu0 %v5754
    %5787 = vmatpush.bf16.msra.mxu0 %v5723
    %5788 = vmatpush.bf16.msra.mxu0 %v5721
    %5789 = vmatpush.bf16.msra.mxu0 %v5719
    %5790 = vmatpush.bf16.msra.mxu0 %v5717
    %5791 = vmatpush.bf16.msra.mxu0 %v5715
    %5792 = vmatpush.bf16.msra.mxu0 %v5713
    %5793 = vmatmul.bf16.gmra.mxu0 %v5739
    %v5794 = vpop.f32.mrf.mxu0
    %v5795 = vadd.f32 %v5654, %v5794
    %v5796 = vpop.f32.mrf.mxu0
    %v5797 = vadd.f32 %v5656, %v5796
    %5798 = vmatmul.bf16.gmra.mxu0 %v5742
    %v5799 = vpop.f32.mrf.mxu0
    %v5800 = vadd.f32 %v5659, %v5799
    %v5801 = vpop.f32.mrf.mxu0
    %v5802 = vadd.f32 %v5661, %v5801
    %5803 = vmatmul.bf16.gmra.mxu0 %v5745
    %v5804 = vpop.f32.mrf.mxu0
    %v5805 = vadd.f32 %v5664, %v5804
    %v5806 = vpop.f32.mrf.mxu0
    %v5807 = vadd.f32 %v5666, %v5806
    %5808 = vmatmul.bf16.gmra.mxu0 %v5748
    %v5809 = vpop.f32.mrf.mxu0
    %v5810 = vadd.f32 %v5669, %v5809
    %v5811 = vpop.f32.mrf.mxu0
    %v5812 = vadd.f32 %v5671, %v5811
    %5813 = vdwg.mxu0
    %v5814 = vrot.slane %v5473, 4
    %v5815 = vrot.slane %v5474, 4
    %v5816 = vrot.slane %v5475, 4
    %v5817 = vrot.slane %v5476, 4
    %v5818 = vrot.slane %v5477, 4
    %v5819 = vrot.slane %v5478, 4
    %v5820 = vrot.slane %v5479, 4
    %v5821 = vrot.slane %v5480, 4
    %v5822 = vsel %vm1515, %v5820, %v5821
    %v5823 = vsel %vm1515, %v5819, %v5820
    %v5824 = vsel %vm1515, %v5818, %v5819
    %v5825 = vsel %vm1515, %v5817, %v5818
    %v5826 = vsel %vm1515, %v5816, %v5817
    %v5827 = vsel %vm1515, %v5815, %v5816
    %v5828 = vsel %vm1515, %v5814, %v5815
    %v5829 = vsel %vm1515, %v5821, %v5814
    %v5830 = vpack.c.bf16 %v5827, %v5828
    %v5831 = vpack.c.bf16 %v5825, %v5826
    %v5832 = vpack.c.bf16 %v5823, %v5824
    %v5833 = vpack.c.bf16 %v5829, %v5822
    %s5834 = scalar_lea.vmem %s7, 208
    %v5835 = vld [vmem:[%s5834] sm:$0xff]
    %v5836 = vld [vmem:[%s5834 + $0x8] sm:$0xff]
    %v5837 = vld [vmem:[%s5834 + $0x10] sm:$0xff]
    %v5838 = vld [vmem:[%s5834 + $0x18] sm:$0xff]
    %v5839 = vld [vmem:[%s5834 + $0x20] sm:$0xff]
    %v5840 = vld [vmem:[%s5834 + $0x28] sm:$0xff]
    %v5841 = vld [vmem:[%s5834 + $0x30] sm:$0xff]
    %v5842 = vld [vmem:[%s5834 + $0x38] sm:$0xff]
    %v5843 = vld [vmem:[%s5834 + $0x40] sm:$0xff]
    %v5844 = vld [vmem:[%s5834 + $0x48] sm:$0xff]
    %v5845 = vld [vmem:[%s5834 + $0x50] sm:$0xff]
    %v5846 = vld [vmem:[%s5834 + $0x58] sm:$0xff]
    %v5847 = vld [vmem:[%s5834 + $0x60] sm:$0x33]
    %v5861 = vunpack.c.l.b16 %v5835
    %v5862 = vunpack.c.h.b16 %v5835
    %v5863 = vunpack.c.l.b16 %v5836
    %v5864 = vunpack.c.h.b16 %v5836
    %v5865 = vunpack.c.l.b16 %v5837
    %v5866 = vunpack.c.h.b16 %v5837
    %v5867 = vunpack.c.l.b16 %v5838
    %v5868 = vunpack.c.h.b16 %v5838
    %v5869 = vunpack.c.l.b16 %v5839
    %v5870 = vunpack.c.h.b16 %v5839
    %v5871 = vunpack.c.l.b16 %v5840
    %v5872 = vunpack.c.h.b16 %v5840
    %v5873 = vunpack.c.l.b16 %v5841
    %v5874 = vunpack.c.h.b16 %v5841
    %v5875 = vunpack.c.l.b16 %v5842
    %v5876 = vunpack.c.h.b16 %v5842
    %v5877 = vunpack.c.l.b16 %v5843
    %v5878 = vunpack.c.h.b16 %v5843
    %v5879 = vunpack.c.l.b16 %v5844
    %v5880 = vunpack.c.h.b16 %v5844
    %v5881 = vunpack.c.l.b16 %v5845
    %v5882 = vunpack.c.h.b16 %v5845
    %v5883 = vunpack.c.l.b16 %v5846
    %v5884 = vunpack.c.h.b16 %v5846
    %v5885 = vunpack.c.l.b16 %v5847
    %v5886 = vunpack.c.h.b16 %v5847
    %v5887 = vpack.c.b16 %v5863, %v5861
    %v5888 = vpack.c.b16 %v5864, %v5862
    %v5889 = vpack.c.b16 %v5867, %v5865
    %v5890 = vpack.c.b16 %v5868, %v5866
    %v5891 = vpack.c.b16 %v5871, %v5869
    %v5892 = vpack.c.b16 %v5872, %v5870
    %v5893 = vpack.c.b16 %v5875, %v5873
    %v5894 = vpack.c.b16 %v5876, %v5874
    %v5895 = vpack.c.b16 %v5879, %v5877
    %v5896 = vpack.c.b16 %v5880, %v5878
    %v5897 = vpack.c.b16 %v5883, %v5881
    %v5898 = vpack.c.b16 %v5884, %v5882
    %v5899 = vpack.c.b16 %v5885, %v5885
    %v5900 = vpack.c.b16 %v5886, %v5886
    %v5914 = vsel %vm5317, %v5830, 0
    %v5917 = vsel %vm5317, %v5831, 0
    %v5920 = vsel %vm5317, %v5832, 0
    %v5923 = vsel %vm5317, %v5833, 0
    %v5926 = vsel %vm740, %v5899, 0
    %v5929 = vsel %vm740, %v5900, 0
    %5931 = vmatpush.bf16.msra.mxu0 0
    %5932 = vmatpush.bf16.msra.mxu0 %v5926
    %5933 = vmatpush.bf16.msra.mxu0 %v5897
    %5934 = vmatpush.bf16.msra.mxu0 %v5895
    %5935 = vmatpush.bf16.msra.mxu0 %v5893
    %5936 = vmatpush.bf16.msra.mxu0 %v5891
    %5937 = vmatpush.bf16.msra.mxu0 %v5889
    %5938 = vmatpush.bf16.msra.mxu0 %v5887
    %5939 = vmatmul.bf16.gmra.mxu0 %v5914
    %v5940 = vpop.f32.mrf.mxu0
    %v5941 = vadd.f32 0.0, %v5940
    %v5942 = vpop.f32.mrf.mxu0
    %v5943 = vadd.f32 0.0, %v5942
    %5944 = vmatmul.bf16.gmra.mxu0 %v5917
    %v5945 = vpop.f32.mrf.mxu0
    %v5946 = vadd.f32 0.0, %v5945
    %v5947 = vpop.f32.mrf.mxu0
    %v5948 = vadd.f32 0.0, %v5947
    %5949 = vmatmul.bf16.gmra.mxu0 %v5920
    %v5950 = vpop.f32.mrf.mxu0
    %v5951 = vadd.f32 0.0, %v5950
    %v5952 = vpop.f32.mrf.mxu0
    %v5953 = vadd.f32 0.0, %v5952
    %5954 = vmatmul.bf16.gmra.mxu0 %v5923
    %v5955 = vpop.f32.mrf.mxu0
    %v5956 = vadd.f32 0.0, %v5955
    %v5957 = vpop.f32.mrf.mxu0
    %v5958 = vadd.f32 0.0, %v5957
    %5959 = vdwg.mxu0
    %5960 = vmatpush.bf16.msra.mxu0 0
    %5961 = vmatpush.bf16.msra.mxu0 %v5929
    %5962 = vmatpush.bf16.msra.mxu0 %v5898
    %5963 = vmatpush.bf16.msra.mxu0 %v5896
    %5964 = vmatpush.bf16.msra.mxu0 %v5894
    %5965 = vmatpush.bf16.msra.mxu0 %v5892
    %5966 = vmatpush.bf16.msra.mxu0 %v5890
    %5967 = vmatpush.bf16.msra.mxu0 %v5888
    %5968 = vmatmul.bf16.gmra.mxu0 %v5914
    %v5969 = vpop.f32.mrf.mxu0
    %v5970 = vadd.f32 0.0, %v5969
    %v5971 = vpop.f32.mrf.mxu0
    %v5972 = vadd.f32 0.0, %v5971
    %5973 = vmatmul.bf16.gmra.mxu0 %v5917
    %v5974 = vpop.f32.mrf.mxu0
    %v5975 = vadd.f32 0.0, %v5974
    %v5976 = vpop.f32.mrf.mxu0
    %v5977 = vadd.f32 0.0, %v5976
    %5978 = vmatmul.bf16.gmra.mxu0 %v5920
    %v5979 = vpop.f32.mrf.mxu0
    %v5980 = vadd.f32 0.0, %v5979
    %v5981 = vpop.f32.mrf.mxu0
    %v5982 = vadd.f32 0.0, %v5981
    %5983 = vmatmul.bf16.gmra.mxu0 %v5923
    %v5984 = vpop.f32.mrf.mxu0
    %v5985 = vadd.f32 0.0, %v5984
    %v5986 = vpop.f32.mrf.mxu0
    %v5987 = vadd.f32 0.0, %v5986
    %5988 = vdwg.mxu0
    %v5989 = vadd.f32 %v5766, %v5941
    %v5990 = vadd.f32 %v5795, %v5970
    %v5991 = vadd.f32 %v5768, %v5943
    %v5992 = vadd.f32 %v5797, %v5972
    %v5993 = vadd.f32 %v5771, %v5946
    %v5994 = vadd.f32 %v5800, %v5975
    %v5995 = vadd.f32 %v5773, %v5948
    %v5996 = vadd.f32 %v5802, %v5977
    %v5997 = vadd.f32 %v5776, %v5951
    %v5998 = vadd.f32 %v5805, %v5980
    %v5999 = vadd.f32 %v5778, %v5953
    %v6000 = vadd.f32 %v5807, %v5982
    %v6001 = vadd.f32 %v5781, %v5956
    %v6002 = vadd.f32 %v5810, %v5985
    %v6003 = vadd.f32 %v5783, %v5958
    %v6004 = vadd.f32 %v5812, %v5987
    %v6005 = vrot.slane %v5473, 6
    %v6006 = vrot.slane %v5474, 6
    %v6007 = vrot.slane %v5475, 6
    %v6008 = vrot.slane %v5476, 6
    %v6009 = vrot.slane %v5477, 6
    %v6010 = vrot.slane %v5478, 6
    %v6011 = vrot.slane %v5479, 6
    %v6012 = vrot.slane %v5480, 6
    %v6013 = vsel %vm3125, %v6011, %v6012
    %v6014 = vsel %vm3125, %v6010, %v6011
    %v6015 = vsel %vm3125, %v6009, %v6010
    %v6016 = vsel %vm3125, %v6008, %v6009
    %v6017 = vsel %vm3125, %v6007, %v6008
    %v6018 = vsel %vm3125, %v6006, %v6007
    %v6019 = vsel %vm3125, %v6005, %v6006
    %v6020 = vsel %vm3125, %v6012, %v6005
    %v6021 = vpack.c.bf16 %v6018, %v6019
    %v6022 = vpack.c.bf16 %v6016, %v6017
    %v6023 = vpack.c.bf16 %v6014, %v6015
    %v6024 = vpack.c.bf16 %v6020, %v6013
    %s6025 = scalar_lea.vmem %s7, 312
    %v6026 = vld [vmem:[%s6025] sm:$0xff]
    %v6027 = vld [vmem:[%s6025 + $0x8] sm:$0xff]
    %v6028 = vld [vmem:[%s6025 + $0x10] sm:$0xff]
    %v6029 = vld [vmem:[%s6025 + $0x18] sm:$0xff]
    %v6030 = vld [vmem:[%s6025 + $0x20] sm:$0xff]
    %v6031 = vld [vmem:[%s6025 + $0x28] sm:$0xff]
    %v6032 = vld [vmem:[%s6025 + $0x30] sm:$0xff]
    %v6033 = vld [vmem:[%s6025 + $0x38] sm:$0xff]
    %v6034 = vld [vmem:[%s6025 + $0x40] sm:$0xff]
    %v6035 = vld [vmem:[%s6025 + $0x48] sm:$0xff]
    %v6036 = vld [vmem:[%s6025 + $0x50] sm:$0xff]
    %v6037 = vld [vmem:[%s6025 + $0x58] sm:$0xff]
    %v6038 = vld [vmem:[%s6025 + $0x60] sm:$0x33]
    %v6052 = vunpack.c.l.b16 %v6026
    %v6053 = vunpack.c.h.b16 %v6026
    %v6054 = vunpack.c.l.b16 %v6027
    %v6055 = vunpack.c.h.b16 %v6027
    %v6056 = vunpack.c.l.b16 %v6028
    %v6057 = vunpack.c.h.b16 %v6028
    %v6058 = vunpack.c.l.b16 %v6029
    %v6059 = vunpack.c.h.b16 %v6029
    %v6060 = vunpack.c.l.b16 %v6030
    %v6061 = vunpack.c.h.b16 %v6030
    %v6062 = vunpack.c.l.b16 %v6031
    %v6063 = vunpack.c.h.b16 %v6031
    %v6064 = vunpack.c.l.b16 %v6032
    %v6065 = vunpack.c.h.b16 %v6032
    %v6066 = vunpack.c.l.b16 %v6033
    %v6067 = vunpack.c.h.b16 %v6033
    %v6068 = vunpack.c.l.b16 %v6034
    %v6069 = vunpack.c.h.b16 %v6034
    %v6070 = vunpack.c.l.b16 %v6035
    %v6071 = vunpack.c.h.b16 %v6035
    %v6072 = vunpack.c.l.b16 %v6036
    %v6073 = vunpack.c.h.b16 %v6036
    %v6074 = vunpack.c.l.b16 %v6037
    %v6075 = vunpack.c.h.b16 %v6037
    %v6076 = vunpack.c.l.b16 %v6038
    %v6077 = vunpack.c.h.b16 %v6038
    %v6078 = vpack.c.b16 %v6054, %v6052
    %v6079 = vpack.c.b16 %v6055, %v6053
    %v6080 = vpack.c.b16 %v6058, %v6056
    %v6081 = vpack.c.b16 %v6059, %v6057
    %v6082 = vpack.c.b16 %v6062, %v6060
    %v6083 = vpack.c.b16 %v6063, %v6061
    %v6084 = vpack.c.b16 %v6066, %v6064
    %v6085 = vpack.c.b16 %v6067, %v6065
    %v6086 = vpack.c.b16 %v6070, %v6068
    %v6087 = vpack.c.b16 %v6071, %v6069
    %v6088 = vpack.c.b16 %v6074, %v6072
    %v6089 = vpack.c.b16 %v6075, %v6073
    %v6090 = vpack.c.b16 %v6076, %v6076
    %v6091 = vpack.c.b16 %v6077, %v6077
    %v6105 = vsel %vm5317, %v6021, 0
    %v6108 = vsel %vm5317, %v6022, 0
    %v6111 = vsel %vm5317, %v6023, 0
    %v6114 = vsel %vm5317, %v6024, 0
    %v6117 = vsel %vm740, %v6090, 0
    %v6120 = vsel %vm740, %v6091, 0
    %6122 = vmatpush.bf16.msra.mxu0 0
    %6123 = vmatpush.bf16.msra.mxu0 %v6117
    %6124 = vmatpush.bf16.msra.mxu0 %v6088
    %6125 = vmatpush.bf16.msra.mxu0 %v6086
    %6126 = vmatpush.bf16.msra.mxu0 %v6084
    %6127 = vmatpush.bf16.msra.mxu0 %v6082
    %6128 = vmatpush.bf16.msra.mxu0 %v6080
    %6129 = vmatpush.bf16.msra.mxu0 %v6078
    %6130 = vmatmul.bf16.gmra.mxu0 %v6105
    %v6131 = vpop.f32.mrf.mxu0
    %v6132 = vadd.f32 0.0, %v6131
    %v6133 = vpop.f32.mrf.mxu0
    %v6134 = vadd.f32 0.0, %v6133
    %6135 = vmatmul.bf16.gmra.mxu0 %v6108
    %v6136 = vpop.f32.mrf.mxu0
    %v6137 = vadd.f32 0.0, %v6136
    %v6138 = vpop.f32.mrf.mxu0
    %v6139 = vadd.f32 0.0, %v6138
    %6140 = vmatmul.bf16.gmra.mxu0 %v6111
    %v6141 = vpop.f32.mrf.mxu0
    %v6142 = vadd.f32 0.0, %v6141
    %v6143 = vpop.f32.mrf.mxu0
    %v6144 = vadd.f32 0.0, %v6143
    %6145 = vmatmul.bf16.gmra.mxu0 %v6114
    %v6146 = vpop.f32.mrf.mxu0
    %v6147 = vadd.f32 0.0, %v6146
    %v6148 = vpop.f32.mrf.mxu0
    %v6149 = vadd.f32 0.0, %v6148
    %6150 = vdwg.mxu0
    %6151 = vmatpush.bf16.msra.mxu0 0
    %6152 = vmatpush.bf16.msra.mxu0 %v6120
    %6153 = vmatpush.bf16.msra.mxu0 %v6089
    %6154 = vmatpush.bf16.msra.mxu0 %v6087
    %6155 = vmatpush.bf16.msra.mxu0 %v6085
    %6156 = vmatpush.bf16.msra.mxu0 %v6083
    %6157 = vmatpush.bf16.msra.mxu0 %v6081
    %6158 = vmatpush.bf16.msra.mxu0 %v6079
    %6159 = vmatmul.bf16.gmra.mxu0 %v6105
    %v6160 = vpop.f32.mrf.mxu0
    %v6161 = vadd.f32 0.0, %v6160
    %v6162 = vpop.f32.mrf.mxu0
    %v6163 = vadd.f32 0.0, %v6162
    %6164 = vmatmul.bf16.gmra.mxu0 %v6108
    %v6165 = vpop.f32.mrf.mxu0
    %v6166 = vadd.f32 0.0, %v6165
    %v6167 = vpop.f32.mrf.mxu0
    %v6168 = vadd.f32 0.0, %v6167
    %6169 = vmatmul.bf16.gmra.mxu0 %v6111
    %v6170 = vpop.f32.mrf.mxu0
    %v6171 = vadd.f32 0.0, %v6170
    %v6172 = vpop.f32.mrf.mxu0
    %v6173 = vadd.f32 0.0, %v6172
    %6174 = vmatmul.bf16.gmra.mxu0 %v6114
    %v6175 = vpop.f32.mrf.mxu0
    %v6176 = vadd.f32 0.0, %v6175
    %v6177 = vpop.f32.mrf.mxu0
    %v6178 = vadd.f32 0.0, %v6177
    %6179 = vdwg.mxu0
    %v6180 = vadd.f32 %v5989, %v6132
    %v6181 = vadd.f32 %v5990, %v6161
    %v6182 = vadd.f32 %v5991, %v6134
    %v6183 = vadd.f32 %v5992, %v6163
    %v6184 = vadd.f32 %v5993, %v6137
    %v6185 = vadd.f32 %v5994, %v6166
    %v6186 = vadd.f32 %v5995, %v6139
    %v6187 = vadd.f32 %v5996, %v6168
    %v6188 = vadd.f32 %v5997, %v6142
    %v6189 = vadd.f32 %v5998, %v6171
    %v6190 = vadd.f32 %v5999, %v6144
    %v6191 = vadd.f32 %v6000, %v6173
    %v6192 = vadd.f32 %v6001, %v6147
    %v6193 = vadd.f32 %v6002, %v6176
    %v6194 = vadd.f32 %v6003, %v6149
    %v6195 = vadd.f32 %v6004, %v6178
    %v6196 = vpack.c.bf16 %v5475, %v5474
    %v6197 = vpack.c.bf16 %v5477, %v5476
    %v6198 = vpack.c.bf16 %v5479, %v5478
    %v6199 = vpack.c.bf16 %v5473, %v5480
    %s6200 = scalar_lea.vmem %s7, 416
    %v6201 = vld [vmem:[%s6200] sm:$0xff]
    %v6202 = vld [vmem:[%s6200 + $0x8] sm:$0xff]
    %v6203 = vld [vmem:[%s6200 + $0x10] sm:$0xff]
    %v6204 = vld [vmem:[%s6200 + $0x18] sm:$0xff]
    %v6205 = vld [vmem:[%s6200 + $0x20] sm:$0xff]
    %v6206 = vld [vmem:[%s6200 + $0x28] sm:$0xff]
    %v6207 = vld [vmem:[%s6200 + $0x30] sm:$0xff]
    %v6208 = vld [vmem:[%s6200 + $0x38] sm:$0xff]
    %v6209 = vld [vmem:[%s6200 + $0x40] sm:$0xff]
    %v6210 = vld [vmem:[%s6200 + $0x48] sm:$0xff]
    %v6211 = vld [vmem:[%s6200 + $0x50] sm:$0xff]
    %v6212 = vld [vmem:[%s6200 + $0x58] sm:$0xff]
    %v6213 = vld [vmem:[%s6200 + $0x60] sm:$0x33]
    %v6227 = vunpack.c.l.b16 %v6201
    %v6228 = vunpack.c.h.b16 %v6201
    %v6229 = vunpack.c.l.b16 %v6202
    %v6230 = vunpack.c.h.b16 %v6202
    %v6231 = vunpack.c.l.b16 %v6203
    %v6232 = vunpack.c.h.b16 %v6203
    %v6233 = vunpack.c.l.b16 %v6204
    %v6234 = vunpack.c.h.b16 %v6204
    %v6235 = vunpack.c.l.b16 %v6205
    %v6236 = vunpack.c.h.b16 %v6205
    %v6237 = vunpack.c.l.b16 %v6206
    %v6238 = vunpack.c.h.b16 %v6206
    %v6239 = vunpack.c.l.b16 %v6207
    %v6240 = vunpack.c.h.b16 %v6207
    %v6241 = vunpack.c.l.b16 %v6208
    %v6242 = vunpack.c.h.b16 %v6208
    %v6243 = vunpack.c.l.b16 %v6209
    %v6244 = vunpack.c.h.b16 %v6209
    %v6245 = vunpack.c.l.b16 %v6210
    %v6246 = vunpack.c.h.b16 %v6210
    %v6247 = vunpack.c.l.b16 %v6211
    %v6248 = vunpack.c.h.b16 %v6211
    %v6249 = vunpack.c.l.b16 %v6212
    %v6250 = vunpack.c.h.b16 %v6212
    %v6251 = vunpack.c.l.b16 %v6213
    %v6252 = vunpack.c.h.b16 %v6213
    %v6253 = vpack.c.b16 %v6229, %v6227
    %v6254 = vpack.c.b16 %v6230, %v6228
    %v6255 = vpack.c.b16 %v6233, %v6231
    %v6256 = vpack.c.b16 %v6234, %v6232
    %v6257 = vpack.c.b16 %v6237, %v6235
    %v6258 = vpack.c.b16 %v6238, %v6236
    %v6259 = vpack.c.b16 %v6241, %v6239
    %v6260 = vpack.c.b16 %v6242, %v6240
    %v6261 = vpack.c.b16 %v6245, %v6243
    %v6262 = vpack.c.b16 %v6246, %v6244
    %v6263 = vpack.c.b16 %v6249, %v6247
    %v6264 = vpack.c.b16 %v6250, %v6248
    %v6265 = vpack.c.b16 %v6251, %v6251
    %v6266 = vpack.c.b16 %v6252, %v6252
    %v6280 = vsel %vm5317, %v6196, 0
    %v6283 = vsel %vm5317, %v6197, 0
    %v6286 = vsel %vm5317, %v6198, 0
    %v6289 = vsel %vm5317, %v6199, 0
    %v6292 = vsel %vm740, %v6265, 0
    %v6295 = vsel %vm740, %v6266, 0
    %6297 = vmatpush.bf16.msra.mxu0 0
    %6298 = vmatpush.bf16.msra.mxu0 %v6292
    %6299 = vmatpush.bf16.msra.mxu0 %v6263
    %6300 = vmatpush.bf16.msra.mxu0 %v6261
    %6301 = vmatpush.bf16.msra.mxu0 %v6259
    %6302 = vmatpush.bf16.msra.mxu0 %v6257
    %6303 = vmatpush.bf16.msra.mxu0 %v6255
    %6304 = vmatpush.bf16.msra.mxu0 %v6253
    %6305 = vmatmul.bf16.gmra.mxu0 %v6280
    %v6306 = vpop.f32.mrf.mxu0
    %v6307 = vadd.f32 0.0, %v6306
    %v6308 = vpop.f32.mrf.mxu0
    %v6309 = vadd.f32 0.0, %v6308
    %6310 = vmatmul.bf16.gmra.mxu0 %v6283
    %v6311 = vpop.f32.mrf.mxu0
    %v6312 = vadd.f32 0.0, %v6311
    %v6313 = vpop.f32.mrf.mxu0
    %v6314 = vadd.f32 0.0, %v6313
    %6315 = vmatmul.bf16.gmra.mxu0 %v6286
    %v6316 = vpop.f32.mrf.mxu0
    %v6317 = vadd.f32 0.0, %v6316
    %v6318 = vpop.f32.mrf.mxu0
    %v6319 = vadd.f32 0.0, %v6318
    %6320 = vmatmul.bf16.gmra.mxu0 %v6289
    %v6321 = vpop.f32.mrf.mxu0
    %v6322 = vadd.f32 0.0, %v6321
    %v6323 = vpop.f32.mrf.mxu0
    %v6324 = vadd.f32 0.0, %v6323
    %6325 = vdwg.mxu0
    %6326 = vmatpush.bf16.msra.mxu0 0
    %6327 = vmatpush.bf16.msra.mxu0 %v6295
    %6328 = vmatpush.bf16.msra.mxu0 %v6264
    %6329 = vmatpush.bf16.msra.mxu0 %v6262
    %6330 = vmatpush.bf16.msra.mxu0 %v6260
    %6331 = vmatpush.bf16.msra.mxu0 %v6258
    %6332 = vmatpush.bf16.msra.mxu0 %v6256
    %6333 = vmatpush.bf16.msra.mxu0 %v6254
    %6334 = vmatmul.bf16.gmra.mxu0 %v6280
    %v6335 = vpop.f32.mrf.mxu0
    %v6336 = vadd.f32 0.0, %v6335
    %v6337 = vpop.f32.mrf.mxu0
    %v6338 = vadd.f32 0.0, %v6337
    %6339 = vmatmul.bf16.gmra.mxu0 %v6283
    %v6340 = vpop.f32.mrf.mxu0
    %v6341 = vadd.f32 0.0, %v6340
    %v6342 = vpop.f32.mrf.mxu0
    %v6343 = vadd.f32 0.0, %v6342
    %6344 = vmatmul.bf16.gmra.mxu0 %v6286
    %v6345 = vpop.f32.mrf.mxu0
    %v6346 = vadd.f32 0.0, %v6345
    %v6347 = vpop.f32.mrf.mxu0
    %v6348 = vadd.f32 0.0, %v6347
    %6349 = vmatmul.bf16.gmra.mxu0 %v6289
    %v6350 = vpop.f32.mrf.mxu0
    %v6351 = vadd.f32 0.0, %v6350
    %v6352 = vpop.f32.mrf.mxu0
    %v6353 = vadd.f32 0.0, %v6352
    %6354 = vdwg.mxu0
    %v6355 = vadd.f32 %v6180, %v6307
    %v6356 = vadd.f32 %v6181, %v6336
    %v6357 = vadd.f32 %v6182, %v6309
    %v6358 = vadd.f32 %v6183, %v6338
    %v6359 = vadd.f32 %v6184, %v6312
    %v6360 = vadd.f32 %v6185, %v6341
    %v6361 = vadd.f32 %v6186, %v6314
    %v6362 = vadd.f32 %v6187, %v6343
    %v6363 = vadd.f32 %v6188, %v6317
    %v6364 = vadd.f32 %v6189, %v6346
    %v6365 = vadd.f32 %v6190, %v6319
    %v6366 = vadd.f32 %v6191, %v6348
    %v6367 = vadd.f32 %v6192, %v6322
    %v6368 = vadd.f32 %v6193, %v6351
    %v6369 = vadd.f32 %v6194, %v6324
    %v6370 = vadd.f32 %v6195, %v6353
    %vm6371 = vcmp.lt.s32.totalorder %v551, 0
    %v6372 = vsub.s32 0, %v551
    %v6373 = vsel %vm6371, %v6372, %v551
    %v6374 = vshrl.u32 %v6373, 1
    %v6375 = vand.u32 %v6373, 1
    %v6376 = vsub.s32 0, %v6375
    %v6377 = vsel %vm6371, %v6376, %v6375
    %vm6378 = vcmp.lt.s32.totalorder %v552, 0
    %v6379 = vsub.s32 0, %v552
    %v6380 = vsel %vm6378, %v6379, %v552
    %v6381 = vshrl.u32 %v6380, 1
    %v6382 = vand.u32 %v6380, 1
    %v6383 = vsub.s32 0, %v6382
    %v6384 = vsel %vm6378, %v6383, %v6382
    %vm6385 = vcmp.lt.s32.totalorder %v553, 0
    %v6386 = vsub.s32 0, %v553
    %v6387 = vsel %vm6385, %v6386, %v553
    %v6388 = vshrl.u32 %v6387, 1
    %v6389 = vand.u32 %v6387, 1
    %v6390 = vsub.s32 0, %v6389
    %v6391 = vsel %vm6385, %v6390, %v6389
    %vm6392 = vcmp.lt.s32.totalorder %v554, 0
    %v6393 = vsub.s32 0, %v554
    %v6394 = vsel %vm6392, %v6393, %v554
    %v6395 = vshrl.u32 %v6394, 1
    %v6396 = vand.u32 %v6394, 1
    %v6397 = vsub.s32 0, %v6396
    %v6398 = vsel %vm6392, %v6397, %v6396
    %vm6399 = vcmp.lt.s32.totalorder %v555, 0
    %v6400 = vsub.s32 0, %v555
    %v6401 = vsel %vm6399, %v6400, %v555
    %v6402 = vshrl.u32 %v6401, 1
    %v6403 = vand.u32 %v6401, 1
    %v6404 = vsub.s32 0, %v6403
    %v6405 = vsel %vm6399, %v6404, %v6403
    %vm6406 = vcmp.lt.s32.totalorder %v556, 0
    %v6407 = vsub.s32 0, %v556
    %v6408 = vsel %vm6406, %v6407, %v556
    %v6409 = vshrl.u32 %v6408, 1
    %v6410 = vand.u32 %v6408, 1
    %v6411 = vsub.s32 0, %v6410
    %v6412 = vsel %vm6406, %v6411, %v6410
    %vm6413 = vcmp.lt.s32.totalorder %v557, 0
    %v6414 = vsub.s32 0, %v557
    %v6415 = vsel %vm6413, %v6414, %v557
    %v6416 = vshrl.u32 %v6415, 1
    %v6417 = vand.u32 %v6415, 1
    %v6418 = vsub.s32 0, %v6417
    %v6419 = vsel %vm6413, %v6418, %v6417
    %vm6420 = vcmp.lt.s32.totalorder %v558, 0
    %v6421 = vsub.s32 0, %v558
    %v6422 = vsel %vm6420, %v6421, %v558
    %v6423 = vshrl.u32 %v6422, 1
    %v6424 = vand.u32 %v6422, 1
    %v6425 = vsub.s32 0, %v6424
    %v6426 = vsel %vm6420, %v6425, %v6424
    %vm6427 = vcmp.ne.s32.totalorder %v6377, 0
    %vm6428 = vcmp.ne.s32.totalorder %v6384, 0
    %vm6429 = vcmp.ne.s32.totalorder %v6391, 0
    %vm6430 = vcmp.ne.s32.totalorder %v6398, 0
    %vm6431 = vcmp.ne.s32.totalorder %v6405, 0
    %vm6432 = vcmp.ne.s32.totalorder %v6412, 0
    %vm6433 = vcmp.ne.s32.totalorder %v6419, 0
    %vm6434 = vcmp.ne.s32.totalorder %v6426, 0
    %vm6435 = vcmp.lt.s32.totalorder %v6377, 0
    %vm6436 = vcmp.lt.s32.totalorder %v6384, 0
    %vm6437 = vcmp.lt.s32.totalorder %v6391, 0
    %vm6438 = vcmp.lt.s32.totalorder %v6398, 0
    %vm6439 = vcmp.lt.s32.totalorder %v6405, 0
    %vm6440 = vcmp.lt.s32.totalorder %v6412, 0
    %vm6441 = vcmp.lt.s32.totalorder %v6419, 0
    %vm6442 = vcmp.lt.s32.totalorder %v6426, 0
    %vm6443 = vmand %vm6435, %vm6427
    %vm6444 = vmand %vm6436, %vm6428
    %vm6445 = vmand %vm6437, %vm6429
    %vm6446 = vmand %vm6438, %vm6430
    %vm6447 = vmand %vm6439, %vm6431
    %vm6448 = vmand %vm6440, %vm6432
    %vm6449 = vmand %vm6441, %vm6433
    %vm6450 = vmand %vm6442, %vm6434
    %v6451 = vadd.s32 %v6377, 2
    %v6452 = vadd.s32 %v6384, 2
    %v6453 = vadd.s32 %v6391, 2
    %v6454 = vadd.s32 %v6398, 2
    %v6455 = vadd.s32 %v6405, 2
    %v6456 = vadd.s32 %v6412, 2
    %v6457 = vadd.s32 %v6419, 2
    %v6458 = vadd.s32 %v6426, 2
    %v6459 = vsel %vm6443, %v6451, %v6377
    %v6460 = vsel %vm6444, %v6452, %v6384
    %v6461 = vsel %vm6445, %v6453, %v6391
    %v6462 = vsel %vm6446, %v6454, %v6398
    %v6463 = vsel %vm6447, %v6455, %v6405
    %v6464 = vsel %vm6448, %v6456, %v6412
    %v6465 = vsel %vm6449, %v6457, %v6419
    %v6466 = vsel %vm6450, %v6458, %v6426
    %vm6467 = vcmp.eq.s32.totalorder %v6459, 0
    %vm6468 = vcmp.eq.s32.totalorder %v6460, 0
    %vm6469 = vcmp.eq.s32.totalorder %v6461, 0
    %vm6470 = vcmp.eq.s32.totalorder %v6462, 0
    %vm6471 = vcmp.eq.s32.totalorder %v6463, 0
    %vm6472 = vcmp.eq.s32.totalorder %v6464, 0
    %vm6473 = vcmp.eq.s32.totalorder %v6465, 0
    %vm6474 = vcmp.eq.s32.totalorder %v6466, 0
    %vm6475 = vcmp.lt.s32.totalorder %v551, 16
    %vm6476 = vcmp.lt.s32.totalorder %v552, 16
    %vm6477 = vcmp.lt.s32.totalorder %v553, 16
    %vm6478 = vcmp.lt.s32.totalorder %v554, 16
    %vm6479 = vcmp.lt.s32.totalorder %v555, 16
    %vm6480 = vcmp.lt.s32.totalorder %v556, 16
    %vm6481 = vcmp.lt.s32.totalorder %v557, 16
    %vm6482 = vcmp.lt.s32.totalorder %v558, 16
    %vm6483 = vmand %vm6467, %vm6475
    %vm6484 = vmand %vm6468, %vm6476
    %vm6485 = vmand %vm6469, %vm6477
    %vm6486 = vmand %vm6470, %vm6478
    %vm6487 = vmand %vm6471, %vm6479
    %vm6488 = vmand %vm6472, %vm6480
    %vm6489 = vmand %vm6473, %vm6481
    %vm6490 = vmand %vm6474, %vm6482
    %v6491 = vsel %vm6483, 1, 0
    %v6492 = vsel %vm6484, 1, 0
    %v6493 = vsel %vm6485, 1, 0
    %v6494 = vsel %vm6486, 1, 0
    %v6495 = vsel %vm6487, 1, 0
    %v6496 = vsel %vm6488, 1, 0
    %v6497 = vsel %vm6489, 1, 0
    %v6498 = vsel %vm6490, 1, 0
    %vm6499 = vcmp.eq.s32.totalorder %v6491, 1
    %vm6500 = vcmp.eq.s32.totalorder %v6492, 1
    %vm6501 = vcmp.eq.s32.totalorder %v6493, 1
    %vm6502 = vcmp.eq.s32.totalorder %v6494, 1
    %vm6503 = vcmp.eq.s32.totalorder %v6495, 1
    %vm6504 = vcmp.eq.s32.totalorder %v6496, 1
    %vm6505 = vcmp.eq.s32.totalorder %v6497, 1
    %vm6506 = vcmp.eq.s32.totalorder %v6498, 1
    %v6507 = vsel %vm6499, %v6355, 0.0
    %v6508 = vsel %vm6499, %v6356, 0.0
    %v6509 = vsel %vm6500, %v6357, 0.0
    %v6510 = vsel %vm6500, %v6358, 0.0
    %v6511 = vsel %vm6501, %v6359, 0.0
    %v6512 = vsel %vm6501, %v6360, 0.0
    %v6513 = vsel %vm6502, %v6361, 0.0
    %v6514 = vsel %vm6502, %v6362, 0.0
    %v6515 = vsel %vm6503, %v6363, 0.0
    %v6516 = vsel %vm6503, %v6364, 0.0
    %v6517 = vsel %vm6504, %v6365, 0.0
    %v6518 = vsel %vm6504, %v6366, 0.0
    %v6519 = vsel %vm6505, %v6367, 0.0
    %v6520 = vsel %vm6505, %v6368, 0.0
    %v6521 = vsel %vm6506, %v6369, 0.0
    %v6522 = vsel %vm6506, %v6370, 0.0
    %v6523 = vadd.f32 %v6507, %v6509
    %v6524 = vadd.f32 %v6523, %v6511
    %v6525 = vadd.f32 %v6524, %v6513
    %v6526 = vadd.f32 %v6525, %v6515
    %v6527 = vadd.f32 %v6526, %v6517
    %v6528 = vadd.f32 %v6527, %v6519
    %v6529 = vadd.f32 %v6528, %v6521
    %v6530 = vrot.slane %v6529, 4
    %v6531 = vadd.f32 %v6529, %v6530
    %v6532 = vrot.slane %v6531, 2
    %v6533 = vadd.f32 %v6531, %v6532
    %v6534 = vrot.slane %v6533, 1
    %v6535 = vadd.f32 %v6533, %v6534
    %vm6536 = vcmask 588800
    %v6537 = vsel %vm6536, %v6508, 0.0
    %v6538 = vsel %vm6536, %v6510, 0.0
    %v6539 = vadd.f32 %v6537, %v6538
    %v6540 = vsel %vm6536, %v6512, 0.0
    %v6541 = vadd.f32 %v6539, %v6540
    %v6542 = vsel %vm6536, %v6514, 0.0
    %v6543 = vadd.f32 %v6541, %v6542
    %v6544 = vsel %vm6536, %v6516, 0.0
    %v6545 = vadd.f32 %v6543, %v6544
    %v6546 = vsel %vm6536, %v6518, 0.0
    %v6547 = vadd.f32 %v6545, %v6546
    %v6548 = vsel %vm6536, %v6520, 0.0
    %v6549 = vadd.f32 %v6547, %v6548
    %v6550 = vsel %vm6536, %v6522, 0.0
    %v6551 = vadd.f32 %v6549, %v6550
    %v6552 = vrot.slane %v6551, 4
    %v6553 = vadd.f32 %v6551, %v6552
    %v6554 = vrot.slane %v6553, 2
    %v6555 = vadd.f32 %v6553, %v6554
    %v6556 = vrot.slane %v6555, 1
    %v6557 = vadd.f32 %v6555, %v6556
    %v6558 = vmul.f32 %v6507, %v6507
    %v6559 = vmul.f32 %v6508, %v6508
    %v6560 = vmul.f32 %v6509, %v6509
    %v6561 = vmul.f32 %v6510, %v6510
    %v6562 = vmul.f32 %v6511, %v6511
    %v6563 = vmul.f32 %v6512, %v6512
    %v6564 = vmul.f32 %v6513, %v6513
    %v6565 = vmul.f32 %v6514, %v6514
    %v6566 = vmul.f32 %v6515, %v6515
    %v6567 = vmul.f32 %v6516, %v6516
    %v6568 = vmul.f32 %v6517, %v6517
    %v6569 = vmul.f32 %v6518, %v6518
    %v6570 = vmul.f32 %v6519, %v6519
    %v6571 = vmul.f32 %v6520, %v6520
    %v6572 = vmul.f32 %v6521, %v6521
    %v6573 = vmul.f32 %v6522, %v6522
    %v6574 = vadd.f32 %v6558, %v6560
    %v6575 = vadd.f32 %v6574, %v6562
    %v6576 = vadd.f32 %v6575, %v6564
    %v6577 = vadd.f32 %v6576, %v6566
    %v6578 = vadd.f32 %v6577, %v6568
    %v6579 = vadd.f32 %v6578, %v6570
    %v6580 = vadd.f32 %v6579, %v6572
    %v6581 = vrot.slane %v6580, 4
    %v6582 = vadd.f32 %v6580, %v6581
    %v6583 = vrot.slane %v6582, 2
    %v6584 = vadd.f32 %v6582, %v6583
    %v6585 = vrot.slane %v6584, 1
    %v6586 = vadd.f32 %v6584, %v6585
    %v6587 = vsel %vm6536, %v6559, 0.0
    %v6588 = vsel %vm6536, %v6561, 0.0
    %v6589 = vadd.f32 %v6587, %v6588
    %v6590 = vsel %vm6536, %v6563, 0.0
    %v6591 = vadd.f32 %v6589, %v6590
    %v6592 = vsel %vm6536, %v6565, 0.0
    %v6593 = vadd.f32 %v6591, %v6592
    %v6594 = vsel %vm6536, %v6567, 0.0
    %v6595 = vadd.f32 %v6593, %v6594
    %v6596 = vsel %vm6536, %v6569, 0.0
    %v6597 = vadd.f32 %v6595, %v6596
    %v6598 = vsel %vm6536, %v6571, 0.0
    %v6599 = vadd.f32 %v6597, %v6598
    %v6600 = vsel %vm6536, %v6573, 0.0
    %v6601 = vadd.f32 %v6599, %v6600
    %v6602 = vrot.slane %v6601, 4
    %v6603 = vadd.f32 %v6601, %v6602
    %v6604 = vrot.slane %v6603, 2
    %v6605 = vadd.f32 %v6603, %v6604
    %v6606 = vrot.slane %v6605, 1
    %v6607 = vadd.f32 %v6605, %v6606
    %v6608 = vmul.f32 %v6535, 0.0625
    %v6609 = vmul.f32 %v6557, 0.0625
    %v6610 = vmul.f32 %v6586, 0.0625
    %v6611 = vmul.f32 %v6607, 0.0625
    %v6612 = vmul.f32 %v6608, %v6608
    %v6613 = vmul.f32 %v6609, %v6609
    %v6614 = vsub.f32 %v6610, %v6612
    %v6615 = vsub.f32 %v6611, %v6613
    %v6616 = vmax.f32 %v6614, 0.0
    %v6617 = vmax.f32 %v6615, 0.0
    %v6618 = vld [vmem:[%s8] sm:$0xf]
    %v6619 = vadd.f32 %v6616, 1e-05
    %v6620 = vadd.f32 %v6617, 1e-05
    %v6621 = vrsqrt.pop %v6619
    %v6622 = vmul.f32 %v6621, %v6619
    %v6623 = vmul.f32 %v6622, %v6621
    %v6624 = vmul.f32 0.5, %v6623
    %v6625 = vsub.f32 1.5, %v6624
    %v6626 = vmul.f32 %v6621, %v6625
    %vm6627 = vweird.f32 %v6619
    %vm6628 = vweird.f32 %v6621
    %vm6629 = vmor %vm6627, %vm6628
    %v6630 = vsel %vm6629, %v6621, %v6626
    %v6631 = vrsqrt.pop %v6620
    %v6632 = vmul.f32 %v6631, %v6620
    %v6633 = vmul.f32 %v6632, %v6631
    %v6634 = vmul.f32 0.5, %v6633
    %v6635 = vsub.f32 1.5, %v6634
    %v6636 = vmul.f32 %v6631, %v6635
    %vm6637 = vweird.f32 %v6620
    %vm6638 = vweird.f32 %v6631
    %vm6639 = vmor %vm6637, %vm6638
    %v6640 = vsel %vm6639, %v6631, %v6636
    %v6642 = vperm.slane %v6618, 0
    %v6643 = vperm.slane %v6618, 2
    %v6646 = vmul.f32 %v6630, %v6642
    %v6647 = vmul.f32 %v6640, %v6643
    %v6648 = vmul.f32 %v6608, %v6646
    %v6649 = vmul.f32 %v6609, %v6647
    %v6652 = vrot.slane %v6649, 6
    %v6653 = vsel %vm740, %v6648, %v6652
    %v6654 = vrot.slane %v6653, 7
    %v6656 = vsub.f32 %v6618, %v6654
    %v6657 = vperm.slane %v6646, 0
    %v6658 = vperm.slane %v6647, 0
    %v6659 = vmul.f32 %v6355, %v6657
    %v6660 = vmul.f32 %v6356, %v6658
    %v6661 = vmul.f32 %v6357, %v6657
    %v6662 = vmul.f32 %v6358, %v6658
    %v6663 = vmul.f32 %v6359, %v6657
    %v6664 = vmul.f32 %v6360, %v6658
    %v6665 = vmul.f32 %v6361, %v6657
    %v6666 = vmul.f32 %v6362, %v6658
    %v6667 = vmul.f32 %v6363, %v6657
    %v6668 = vmul.f32 %v6364, %v6658
    %v6669 = vmul.f32 %v6365, %v6657
    %v6670 = vmul.f32 %v6366, %v6658
    %v6671 = vmul.f32 %v6367, %v6657
    %v6672 = vmul.f32 %v6368, %v6658
    %v6673 = vmul.f32 %v6369, %v6657
    %v6674 = vmul.f32 %v6370, %v6658
    %v6676 = vperm.slane %v6656, 1
    %v6677 = vperm.slane %v6656, 3
    %v6680 = vperm.slane %v6676, 1
    %v6681 = vperm.slane %v6677, 1
    %v6682 = vadd.f32 %v6659, %v6680
    %v6683 = vadd.f32 %v6660, %v6681
    %v6684 = vadd.f32 %v6661, %v6680
    %v6685 = vadd.f32 %v6662, %v6681
    %v6686 = vadd.f32 %v6663, %v6680
    %v6687 = vadd.f32 %v6664, %v6681
    %v6688 = vadd.f32 %v6665, %v6680
    %v6689 = vadd.f32 %v6666, %v6681
    %v6690 = vadd.f32 %v6667, %v6680
    %v6691 = vadd.f32 %v6668, %v6681
    %v6692 = vadd.f32 %v6669, %v6680
    %v6693 = vadd.f32 %v6670, %v6681
    %v6694 = vadd.f32 %v6671, %v6680
    %v6695 = vadd.f32 %v6672, %v6681
    %v6696 = vadd.f32 %v6673, %v6680
    %v6697 = vadd.f32 %v6674, %v6681
    %vm6698 = vcmp.gt.f32.partialorder %v6682, 0.0
    %vm6699 = vcmp.gt.f32.partialorder %v6683, 0.0
    %vm6700 = vcmp.gt.f32.partialorder %v6684, 0.0
    %vm6701 = vcmp.gt.f32.partialorder %v6685, 0.0
    %vm6702 = vcmp.gt.f32.partialorder %v6686, 0.0
    %vm6703 = vcmp.gt.f32.partialorder %v6687, 0.0
    %vm6704 = vcmp.gt.f32.partialorder %v6688, 0.0
    %vm6705 = vcmp.gt.f32.partialorder %v6689, 0.0
    %vm6706 = vcmp.gt.f32.partialorder %v6690, 0.0
    %vm6707 = vcmp.gt.f32.partialorder %v6691, 0.0
    %vm6708 = vcmp.gt.f32.partialorder %v6692, 0.0
    %vm6709 = vcmp.gt.f32.partialorder %v6693, 0.0
    %vm6710 = vcmp.gt.f32.partialorder %v6694, 0.0
    %vm6711 = vcmp.gt.f32.partialorder %v6695, 0.0
    %vm6712 = vcmp.gt.f32.partialorder %v6696, 0.0
    %vm6713 = vcmp.gt.f32.partialorder %v6697, 0.0
    %v6714 = vmin.f32 %v6682, 0.0
    %v6715 = vmin.f32 %v6683, 0.0
    %v6716 = vmin.f32 %v6684, 0.0
    %v6717 = vmin.f32 %v6685, 0.0
    %v6718 = vmin.f32 %v6686, 0.0
    %v6719 = vmin.f32 %v6687, 0.0
    %v6720 = vmin.f32 %v6688, 0.0
    %v6721 = vmin.f32 %v6689, 0.0
    %v6722 = vmin.f32 %v6690, 0.0
    %v6723 = vmin.f32 %v6691, 0.0
    %v6724 = vmin.f32 %v6692, 0.0
    %v6725 = vmin.f32 %v6693, 0.0
    %v6726 = vmin.f32 %v6694, 0.0
    %v6727 = vmin.f32 %v6695, 0.0
    %v6728 = vmin.f32 %v6696, 0.0
    %v6729 = vmin.f32 %v6697, 0.0
    %v6730 = vmul.f32 %v6714, 1.442695
    %v6731 = vpow.pop %v6730
    %v6732 = vmul.f32 %v6715, 1.442695
    %v6733 = vpow.pop %v6732
    %v6734 = vmul.f32 %v6716, 1.442695
    %v6735 = vpow.pop %v6734
    %v6736 = vmul.f32 %v6717, 1.442695
    %v6737 = vpow.pop %v6736
    %v6738 = vmul.f32 %v6718, 1.442695
    %v6739 = vpow.pop %v6738
    %v6740 = vmul.f32 %v6719, 1.442695
    %v6741 = vpow.pop %v6740
    %v6742 = vmul.f32 %v6720, 1.442695
    %v6743 = vpow.pop %v6742
    %v6744 = vmul.f32 %v6721, 1.442695
    %v6745 = vpow.pop %v6744
    %v6746 = vmul.f32 %v6722, 1.442695
    %v6747 = vpow.pop %v6746
    %v6748 = vmul.f32 %v6723, 1.442695
    %v6749 = vpow.pop %v6748
    %v6750 = vmul.f32 %v6724, 1.442695
    %v6751 = vpow.pop %v6750
    %v6752 = vmul.f32 %v6725, 1.442695
    %v6753 = vpow.pop %v6752
    %v6754 = vmul.f32 %v6726, 1.442695
    %v6755 = vpow.pop %v6754
    %v6756 = vmul.f32 %v6727, 1.442695
    %v6757 = vpow.pop %v6756
    %v6758 = vmul.f32 %v6728, 1.442695
    %v6759 = vpow.pop %v6758
    %v6760 = vmul.f32 %v6729, 1.442695
    %v6761 = vpow.pop %v6760
    %v6762 = vsub.f32 %v6731, 1.0
    %v6763 = vsub.f32 %v6733, 1.0
    %v6764 = vsub.f32 %v6735, 1.0
    %v6765 = vsub.f32 %v6737, 1.0
    %v6766 = vsub.f32 %v6739, 1.0
    %v6767 = vsub.f32 %v6741, 1.0
    %v6768 = vsub.f32 %v6743, 1.0
    %v6769 = vsub.f32 %v6745, 1.0
    %v6770 = vsub.f32 %v6747, 1.0
    %v6771 = vsub.f32 %v6749, 1.0
    %v6772 = vsub.f32 %v6751, 1.0
    %v6773 = vsub.f32 %v6753, 1.0
    %v6774 = vsub.f32 %v6755, 1.0
    %v6775 = vsub.f32 %v6757, 1.0
    %v6776 = vsub.f32 %v6759, 1.0
    %v6777 = vsub.f32 %v6761, 1.0
    %v6778 = vsel %vm6698, %v6682, %v6762
    %v6779 = vsel %vm6699, %v6683, %v6763
    %v6780 = vsel %vm6700, %v6684, %v6764
    %v6781 = vsel %vm6701, %v6685, %v6765
    %v6782 = vsel %vm6702, %v6686, %v6766
    %v6783 = vsel %vm6703, %v6687, %v6767
    %v6784 = vsel %vm6704, %v6688, %v6768
    %v6785 = vsel %vm6705, %v6689, %v6769
    %v6786 = vsel %vm6706, %v6690, %v6770
    %v6787 = vsel %vm6707, %v6691, %v6771
    %v6788 = vsel %vm6708, %v6692, %v6772
    %v6789 = vsel %vm6709, %v6693, %v6773
    %v6790 = vsel %vm6710, %v6694, %v6774
    %v6791 = vsel %vm6711, %v6695, %v6775
    %v6792 = vsel %vm6712, %v6696, %v6776
    %v6793 = vsel %vm6713, %v6697, %v6777
    %v6794 = vrot.slane %v6778, 2
    %v6795 = vrot.slane %v6779, 2
    %v6796 = vrot.slane %v6780, 2
    %v6797 = vrot.slane %v6781, 2
    %v6798 = vrot.slane %v6782, 2
    %v6799 = vrot.slane %v6783, 2
    %v6800 = vrot.slane %v6784, 2
    %v6801 = vrot.slane %v6785, 2
    %v6802 = vrot.slane %v6786, 2
    %v6803 = vrot.slane %v6787, 2
    %v6804 = vrot.slane %v6788, 2
    %v6805 = vrot.slane %v6789, 2
    %v6806 = vrot.slane %v6790, 2
    %v6807 = vrot.slane %v6791, 2
    %v6808 = vrot.slane %v6792, 2
    %v6809 = vrot.slane %v6793, 2
    %v6810 = vsel %vm1005, %v6806, %v6808
    %v6811 = vsel %vm1005, %v6807, %v6809
    %v6812 = vsel %vm1005, %v6804, %v6806
    %v6813 = vsel %vm1005, %v6805, %v6807
    %v6814 = vsel %vm1005, %v6802, %v6804
    %v6815 = vsel %vm1005, %v6803, %v6805
    %v6816 = vsel %vm1005, %v6800, %v6802
    %v6817 = vsel %vm1005, %v6801, %v6803
    %v6818 = vsel %vm1005, %v6798, %v6800
    %v6819 = vsel %vm1005, %v6799, %v6801
    %v6820 = vsel %vm1005, %v6796, %v6798
    %v6821 = vsel %vm1005, %v6797, %v6799
    %v6822 = vsel %vm1005, %v6794, %v6796
    %v6823 = vsel %vm1005, %v6795, %v6797
    %v6824 = vsel %vm1005, %v6808, %v6794
    %v6825 = vsel %vm1005, %v6809, %v6795
    %v6826 = vmax.f32 %v6778, %v6822
    %v6827 = vmax.f32 %v6779, %v6823
    %v6828 = vmax.f32 %v6780, %v6820
    %v6829 = vmax.f32 %v6781, %v6821
    %v6830 = vmax.f32 %v6782, %v6818
    %v6831 = vmax.f32 %v6783, %v6819
    %v6832 = vmax.f32 %v6784, %v6816
    %v6833 = vmax.f32 %v6785, %v6817
    %v6834 = vmax.f32 %v6786, %v6814
    %v6835 = vmax.f32 %v6787, %v6815
    %v6836 = vmax.f32 %v6788, %v6812
    %v6837 = vmax.f32 %v6789, %v6813
    %v6838 = vmax.f32 %v6790, %v6810
    %v6839 = vmax.f32 %v6791, %v6811
    %v6840 = vmax.f32 %v6792, %v6824
    %v6841 = vmax.f32 %v6793, %v6825
    %v6842 = vld [vmem:[%s10] sm:$0x1]
    %v6843 = vpack.c.bf16 %v6828, %v6826
    %v6844 = vpack.c.bf16 %v6829, %v6827
    %v6845 = vpack.c.bf16 %v6832, %v6830
    %v6846 = vpack.c.bf16 %v6833, %v6831
    %v6847 = vpack.c.bf16 %v6836, %v6834
    %v6848 = vpack.c.bf16 %v6837, %v6835
    %v6849 = vpack.c.bf16 %v6840, %v6838
    %v6850 = vpack.c.bf16 %v6841, %v6839
    %vm6851 = vcmask 523264
    %v6853 = vsel %vm6851, %v6842, 0
    %6855 = vmatpush.bf16.msra.mxu0 0
    %6856 = vmatpush.bf16.msra.mxu0 0
    %6857 = vmatpush.bf16.msra.mxu0 0
    %6858 = vmatpush.bf16.msra.mxu0 0
    %6859 = vmatpush.bf16.msra.mxu0 %v6849
    %6860 = vmatpush.bf16.msra.mxu0 %v6847
    %6861 = vmatpush.bf16.msra.mxu0 %v6845
    %6862 = vmatpush.bf16.msra.mxu0 %v6843
    %6863 = vmatmul.bf16.gmra.mxu0 %v6853
    %v6864 = vpop.f32.mrf.mxu0
    %v6865 = vadd.f32 0.0, %v6864
    %v6866 = vpop.f32.mrf.mxu0
    %6867 = vdwg.mxu0
    %6868 = vmatpush.bf16.msra.mxu0 0
    %6869 = vmatpush.bf16.msra.mxu0 0
    %6870 = vmatpush.bf16.msra.mxu0 0
    %6871 = vmatpush.bf16.msra.mxu0 0
    %6872 = vmatpush.bf16.msra.mxu0 %v6850
    %6873 = vmatpush.bf16.msra.mxu0 %v6848
    %6874 = vmatpush.bf16.msra.mxu0 %v6846
    %6875 = vmatpush.bf16.msra.mxu0 %v6844
    %6876 = vmatmul.bf16.gmra.mxu0 %v6853
    %v6877 = vpop.f32.mrf.mxu0
    %v6878 = vadd.f32 0.0, %v6877
    %v6879 = vpop.f32.mrf.mxu0
    %6880 = vdwg.mxu0
    %v6881 = vmul.f32 %v6865, 0.25
    %v6882 = vmul.f32 %v6878, 0.25
    %v6883 = vpack.c.bf16 %v6881, %v6881
    %v6884 = vpack.c.bf16 %v6882, %v6882
    %v6885 = vld [vmem:[%s11] sm:$0xf]
    %v6886 = vld [vmem:[%s11 + $0x4] sm:$0xf]
    %v6887 = vld [vmem:[%s11 + $0x8] sm:$0xf]
    %v6888 = vld [vmem:[%s11 + $0xc] sm:$0xf]
    %v6889 = vld [vmem:[%s11 + $0x10] sm:$0xf]
    %v6890 = vld [vmem:[%s11 + $0x14] sm:$0xf]
    %v6891 = vld [vmem:[%s11 + $0x18] sm:$0xf]
    %v6892 = vld [vmem:[%s11 + $0x1c] sm:$0xf]
    %v6893 = vld [vmem:[%s11 + $0x20] sm:$0xf]
    %v6894 = vld [vmem:[%s11 + $0x24] sm:$0xf]
    %v6895 = vld [vmem:[%s11 + $0x28] sm:$0xf]
    %v6896 = vld [vmem:[%s11 + $0x2c] sm:$0xf]
    %v6897 = vld [vmem:[%s11 + $0x30] sm:$0xf]
    %v6898 = vld [vmem:[%s11 + $0x34] sm:$0xf]
    %v6899 = vld [vmem:[%s11 + $0x38] sm:$0xf]
    %v6900 = vld [vmem:[%s11 + $0x3c] sm:$0xf]
    %v6901 = vld [vmem:[%s11 + $0x40] sm:$0xf]
    %v6902 = vld [vmem:[%s11 + $0x44] sm:$0xf]
    %v6903 = vld [vmem:[%s11 + $0x48] sm:$0xf]
    %v6904 = vld [vmem:[%s11 + $0x4c] sm:$0xf]
    %v6905 = vld [vmem:[%s11 + $0x50] sm:$0xf]
    %v6906 = vld [vmem:[%s11 + $0x54] sm:$0xf]
    %v6907 = vld [vmem:[%s11 + $0x58] sm:$0xf]
    %v6908 = vld [vmem:[%s11 + $0x5c] sm:$0xf]
    %v6909 = vld [vmem:[%s11 + $0x60] sm:$0xf]
    %v6910 = vld [vmem:[%s12] sm:$0x1]
    %v6912 = vperm.slane %v6910, 0
    %v6939 = vunpack.c.l.b16 %v6885
    %v6940 = vunpack.c.l.b16 %v6886
    %v6941 = vunpack.c.l.b16 %v6887
    %v6942 = vunpack.c.l.b16 %v6888
    %v6943 = vunpack.c.l.b16 %v6889
    %v6944 = vunpack.c.l.b16 %v6890
    %v6945 = vunpack.c.l.b16 %v6891
    %v6946 = vunpack.c.l.b16 %v6892
    %v6947 = vunpack.c.l.b16 %v6893
    %v6948 = vunpack.c.l.b16 %v6894
    %v6949 = vunpack.c.l.b16 %v6895
    %v6950 = vunpack.c.l.b16 %v6896
    %v6951 = vunpack.c.l.b16 %v6897
    %v6952 = vunpack.c.l.b16 %v6898
    %v6953 = vunpack.c.l.b16 %v6899
    %v6954 = vunpack.c.l.b16 %v6900
    %v6955 = vunpack.c.l.b16 %v6901
    %v6956 = vunpack.c.l.b16 %v6902
    %v6957 = vunpack.c.l.b16 %v6903
    %v6958 = vunpack.c.l.b16 %v6904
    %v6959 = vunpack.c.l.b16 %v6905
    %v6960 = vunpack.c.l.b16 %v6906
    %v6961 = vunpack.c.l.b16 %v6907
    %v6962 = vunpack.c.l.b16 %v6908
    %v6963 = vunpack.c.l.b16 %v6909
    %v6964 = vpack.c.b16 %v6940, %v6939
    %v6965 = vpack.c.b16 %v6942, %v6941
    %v6966 = vpack.c.b16 %v6944, %v6943
    %v6967 = vpack.c.b16 %v6946, %v6945
    %v6968 = vpack.c.b16 %v6948, %v6947
    %v6969 = vpack.c.b16 %v6950, %v6949
    %v6970 = vpack.c.b16 %v6952, %v6951
    %v6971 = vpack.c.b16 %v6954, %v6953
    %v6972 = vpack.c.b16 %v6956, %v6955
    %v6973 = vpack.c.b16 %v6958, %v6957
    %v6974 = vpack.c.b16 %v6960, %v6959
    %v6975 = vpack.c.b16 %v6962, %v6961
    %v6976 = vpack.c.b16 %v6963, %v6963
    %v6990 = vsel %vm6536, %v6884, 0
    %v6993 = vsel %vm2578, %v6976, 0
    %6995 = vmatpush.bf16.msra.mxu0 %v6971
    %6996 = vmatpush.bf16.msra.mxu0 %v6970
    %6997 = vmatpush.bf16.msra.mxu0 %v6969
    %6998 = vmatpush.bf16.msra.mxu0 %v6968
    %6999 = vmatpush.bf16.msra.mxu0 %v6967
    %7000 = vmatpush.bf16.msra.mxu0 %v6966
    %7001 = vmatpush.bf16.msra.mxu0 %v6965
    %7002 = vmatpush.bf16.msra.mxu0 %v6964
    %7003 = vmatmul.bf16.gmra.mxu0 %v6883
    %v7004 = vpop.f32.mrf.mxu0
    %v7005 = vadd.f32 %v6912, %v7004
    %v7006 = vpop.f32.mrf.mxu0
    %7007 = vdwg.mxu0
    %7008 = vmatpush.bf16.msra.mxu0 0
    %7009 = vmatpush.bf16.msra.mxu0 0
    %7010 = vmatpush.bf16.msra.mxu0 0
    %7011 = vmatpush.bf16.msra.mxu0 %v6993
    %7012 = vmatpush.bf16.msra.mxu0 %v6975
    %7013 = vmatpush.bf16.msra.mxu0 %v6974
    %7014 = vmatpush.bf16.msra.mxu0 %v6973
    %7015 = vmatpush.bf16.msra.mxu0 %v6972
    %7016 = vmatmul.bf16.gmra.mxu0 %v6990
    %v7017 = vpop.f32.mrf.mxu0
    %v7018 = vadd.f32 %v7005, %v7017
    %v7019 = vpop.f32.mrf.mxu0
    %7020 = vdwg.mxu0
    %vm7021 = vcmask 9216
    %v7022 = vsel %vm7021, %v7018, -inf
    %7023 = vmax.xlane.f32.xlu0 %v7022
    %v7024 = vpop.xlane.xlu0 %7023
    %v7025 = vsub.f32 %v7018, %v7024
    %v7026 = vmul.f32 %v7025, 1.442695
    %v7027 = vpow.pop %v7026
    %v7028 = vsel %vm7021, %v7027, 0.0
    %7029 = vadd.xlane.f32.xlu0 %v7028
    %v7030 = vpop.xlane.xlu0 %7029
    %v7031 = vrcp.pop %v7030
    %v7032 = vmul.f32 %v7030, %v7031
    %v7033 = vsub.f32 1.0, %v7032
    %v7034 = vmul.f32 %v7031, %v7033
    %v7035 = vadd.f32 %v7031, %v7034
    %vm7036 = vweird.f32 %v7030
    %vm7037 = vweird.f32 %v7031
    %vm7038 = vmor %vm7036, %vm7037
    %v7039 = vsel %vm7038, %v7031, %v7035
    %v7040 = vand.u32 2147483647, %v7030
    %vm7041 = vcmp.eq.f32.partialorder %v7040, 8.507059e+37
    %v7042 = vand.u32 %v7030, 2147483648
    %v7043 = vor.u32 1.1754944e-38, %v7042
    %v7044 = vsel %vm7041, %v7043, %v7039
    %v7045 = vmul.f32 %v7027, %v7044
    %7046 = vst.msk [vmem:[#allocation2] sm:$0x3] %vm7021, %v7045
    // Predicated region
    $region54: #{tpu_custom_call.1} parent=1 // pred_check
      _
    $region55: #{tpu_custom_call.1} parent=1 // pred_check_branch
      %7048 = sbr.rel (0) target = $region57
    $region56: #{tpu_custom_call.1} parent=1 // pred_region
      %7050 = vsyncadd [#allocation3], 0
      %s7052 = sshll.u32 [#allocation2], 4
      %s7053 = int_to_ptr.vmem [resolvable:$true] %s7052
      %s7054 = sshll.u32 %s13, 4
      %s7055 = int_to_ptr.hbm [resolvable:$true] %s7054
      %7057 = dma.vmem_to_hbm [thread:$0]  %s7053, 32, %s7055, [#allocation3]
    $region57: #{tpu_custom_call.1} parent=1 // pred_fallthru
      _
    // Predicated region
    $region58: #{tpu_custom_call.1} parent=1 // pred_check
      _
    $region59: #{tpu_custom_call.1} parent=1 // pred_check_branch
      %7059 = sbr.rel (0) target = $region61
    $region60: #{tpu_custom_call.1} parent=1 // pred_region
      %7061 = dma.done [#allocation3], 32
    $region61: #{tpu_custom_call.1} parent=1 // pred_fallthru
      _
    %7062 = vsyncpa [#allocation3], 1

</llo_original>
